<compile_context>
chip_gen: v5e
topology: v5e:2x2
jax: 0.10.0
libtpu: 0.0.40
codegen_flags: <defaults>
</compile_context>

<pallas_src>
import functools

import jax
import jax.numpy as jnp
from jax.experimental import pallas as pl
from jax.experimental.pallas import tpu as pltpu

P_DROP = 0.6
KEEP_SCALE = 1.0 / (1.0 - P_DROP)
NUM_CLASSES = 10
NUM_CLASSES_PAD = 128  # lane-dense final output; sliced to NUM_CLASSES outside


# --------------------------------------------------------------------------
# Pallas kernels
# --------------------------------------------------------------------------
def conv_block_kernel(pe_ref, po_ref, w_ref, b_ref, mask_ref, out_ref):
    """conv1d (im2col matmul) + bias + maxpool(2,2) + ReLU + dropout.

    pe_ref / po_ref: (b*t_pool, Cin*K)  patches for even / odd conv positions
    w_ref:           (Cin*K, Cout)
    b_ref:           (1, Cout)
    mask_ref:        (b*t_pool, Cout)   pre-scaled dropout keep mask
    out_ref:         (b*t_pool, Cout)
    """
    w = w_ref[...]
    y_even = jnp.dot(pe_ref[...], w, preferred_element_type=jnp.float32)
    y_odd = jnp.dot(po_ref[...], w, preferred_element_type=jnp.float32)
    # max-pool(2,2): max over the (even, odd) pair.  Bias is per-channel, so
    # adding it after the max is equivalent to adding it before.
    y = jnp.maximum(y_even, y_odd) + b_ref[...]
    y = jnp.maximum(y, 0.0)                      # ReLU
    y = y * mask_ref[...]                        # dropout (mask pre-scaled)
    out_ref[...] = y.astype(out_ref.dtype)


def linear_kernel(x_ref, w_ref, b_ref, out_ref, *, relu):
    """y = act(x @ w + b), tiled over output columns.

    x_ref: (B, K)   w_ref: (K, tn)   b_ref: (1, tn)   out_ref: (B, tn)
    Weight may be bf16; accumulation is f32 via preferred_element_type.
    """
    x = x_ref[...].astype(w_ref.dtype)
    y = jnp.dot(x, w_ref[...], preferred_element_type=jnp.float32)
    y = y + b_ref[...]
    if relu:
        y = jnp.maximum(y, 0.0)
    out_ref[...] = y.astype(out_ref.dtype)


# --------------------------------------------------------------------------
# Pallas wrappers
# --------------------------------------------------------------------------
def conv_block(p_even, p_odd, w_mat, bias, mask):
    m, ck = p_even.shape
    cout = w_mat.shape[1]
    return pl.pallas_call(
        conv_block_kernel,
        out_shape=jax.ShapeDtypeStruct((m, cout), jnp.float32),
        grid=(1,),
        in_specs=[
            pl.BlockSpec((m, ck), lambda i: (0, 0)),
            pl.BlockSpec((m, ck), lambda i: (0, 0)),
            pl.BlockSpec((ck, cout), lambda i: (0, 0)),
            pl.BlockSpec((1, cout), lambda i: (0, 0)),
            pl.BlockSpec((m, cout), lambda i: (0, 0)),
        ],
        out_specs=pl.BlockSpec((m, cout), lambda i: (0, 0)),
        compiler_params=pltpu.CompilerParams(
            dimension_semantics=("arbitrary",)),
    )(p_even, p_odd, w_mat, bias, mask)


def linear(x, w, bias, *, relu, tile_n=None):
    b, k = x.shape
    n = w.shape[1]
    tn = n if tile_n is None else min(tile_n, n)
    kern = functools.partial(linear_kernel, relu=relu)
    return pl.pallas_call(
        kern,
        out_shape=jax.ShapeDtypeStruct((b, n), jnp.float32),
        grid=(pl.cdiv(n, tn),),
        in_specs=[
            pl.BlockSpec((b, k), lambda j: (0, 0)),
            pl.BlockSpec((k, tn), lambda j: (0, j)),
            pl.BlockSpec((1, tn), lambda j: (0, j)),
        ],
        out_specs=pl.BlockSpec((b, tn), lambda j: (0, j)),
        compiler_params=pltpu.CompilerParams(
            dimension_semantics=("parallel",)),
    )(x, w, bias)


# --------------------------------------------------------------------------
# Plain-JAX glue
# --------------------------------------------------------------------------
def im2col_pairs(xt, *, k, stride, t_pool):
    """xt: (b, T, C) -> even/odd im2col patches, each (b*t_pool, C*k).

    Patch column index is flattened as c*k + j, matching the reshaped PyTorch
    conv weight.  "even" rows correspond to conv output positions 0,2,4,...,
    "odd" to 1,3,5,...; max-pooling pairs them, and conv positions beyond
    2*t_pool (dropped by MaxPool1d(2,2)) are never computed.
    """
    b, _, c = xt.shape
    t_out = 2 * t_pool
    cols = jnp.stack(
        [xt[:, j:j + stride * t_out:stride, :][:, :t_out, :] for j in range(k)],
        axis=-1,
    )                                                    # (b, t_out, C, k)
    cols = cols.reshape(b, t_out, c * k)
    even = cols[:, 0::2, :].reshape(b * t_pool, c * k)
    odd = cols[:, 1::2, :].reshape(b * t_pool, c * k)
    return even, odd


def dropout_mask(key, shape, p=P_DROP):
    """Pre-scaled keep mask: keep * 1/(1-p), training-mode dropout."""
    keep = jax.random.bernoulli(key, 1.0 - p, shape)
    return keep.astype(jnp.float32) * (1.0 / (1.0 - p))


def sc_ae_aa_standin(x, proj):
    """Deterministic stand-in for the external SC_AE_AA submodule.
    x: (b, c, s, L) -> AAF_out{1..4}: (b, 64, 1, L),  weight: (b, c*s)."""
    b, c, s, L = x.shape
    xf = x.reshape(b, c * s, L)                          # (b, 6, L)
    feat = jnp.einsum("oc,bcl->bol", proj, xf)           # (b, 64, L)
    aaf = feat[:, :, None, :]                            # (b, 64, 1, L)
    weight = jax.nn.softmax(jnp.mean(jnp.abs(xf), axis=-1), axis=-1)
    return aaf, aaf, aaf, aaf, weight


def init_params(key, num_classes=NUM_CLASSES, in_sensors=6):
    ks = jax.random.split(key, 9)
    scale = 0.02
    w1 = jax.random.normal(ks[0], (128, 64, 3), jnp.float32) * scale    # Conv1d(64,128,3,2)
    b1 = jax.random.normal(ks[1], (128,), jnp.float32) * scale
    w2 = jax.random.normal(ks[2], (256, 128, 3), jnp.float32) * scale   # Conv1d(128,256,3,1)
    b2 = jax.random.normal(ks[3], (256,), jnp.float32) * scale
    wl1 = jax.random.normal(ks[4], (256 * 6, 256 * 12), jnp.float32) * scale  # Linear(3072,1536)
    bl1 = jax.random.normal(ks[5], (256 * 6,), jnp.float32) * scale
    wl2 = jax.random.normal(ks[6], (num_classes, 256 * 6), jnp.float32) * scale  # Linear(1536,nc)
    bl2 = jax.random.normal(ks[7], (num_classes,), jnp.float32) * scale
    proj = jax.random.normal(ks[8], (64, in_sensors), jnp.float32) * scale

    # Pad the final linear to 128 output lanes (lane-dense stores).
    wl2_pad = jnp.zeros((256 * 6, NUM_CLASSES_PAD), jnp.float32)
    wl2_pad = wl2_pad.at[:, :num_classes].set(wl2.T)
    bl2_pad = jnp.zeros((1, NUM_CLASSES_PAD), jnp.float32)
    bl2_pad = bl2_pad.at[0, :num_classes].set(bl2)

    return {
        "proj": proj,
        # conv weights reshaped to im2col matmul form: (Cin*K, Cout), rows c*K+j
        "w1m": w1.reshape(128, 64 * 3).T, "b1": b1.reshape(1, 128),
        "w2m": w2.reshape(256, 128 * 3).T, "b2": b2.reshape(1, 256),
        # big linear weight stored bf16 (HBM-bandwidth bound layer); bias f32
        "wl1": wl1.T.astype(jnp.bfloat16), "bl1": bl1.reshape(1, -1),
        "wl2": wl2_pad, "bl2": bl2_pad,
    }


def msscaeaa_forward(x, params, key):
    b, c, s, L = x.shape
    aaf1, aaf2, aaf3, aaf4, weight = sc_ae_aa_standin(x, params["proj"])
    # x03 = AAF_out3.view(b, C, L)
    x03 = aaf3.reshape(b, aaf3.shape[1], aaf3.shape[3])          # (b, 64, L)

    k1, k2 = jax.random.split(key)

    # ---- conv block 1: Conv1d(64,128,3,2) + MaxPool(2,2) + ReLU + Dropout ----
    x03_t = jnp.transpose(x03, (0, 2, 1))                        # (b, L, 64)
    t1 = (L - 3) // 2 + 1
    t1p = t1 // 2
    pe1, po1 = im2col_pairs(x03_t, k=3, stride=2, t_pool=t1p)    # (b*t1p, 192)
    mask1 = dropout_mask(k1, (b * t1p, 128))
    h1_2d = conv_block(pe1, po1, params["w1m"], params["b1"], mask1)
    h1 = h1_2d.reshape(b, t1p, 128)                              # (b, 27, 128)

    # ---- conv block 2: Conv1d(128,256,3,1) + MaxPool(2,2) + ReLU + Dropout ----
    t2 = t1p - 2
    t2p = t2 // 2
    pe2, po2 = im2col_pairs(h1, k=3, stride=1, t_pool=t2p)       # (b*t2p, 384)
    mask2 = dropout_mask(k2, (b * t2p, 256))
    h2_2d = conv_block(pe2, po2, params["w2m"], params["b2"], mask2)
    h2 = h2_2d.reshape(b, t2p, 256)                              # (b, 12, 256)

    # ---- MLP head ----
    # PyTorch flattens x6 (b, 256, 12) channel-major -> replicate that ordering.
    x7 = jnp.transpose(h2, (0, 2, 1)).reshape(b, 256 * t2p)      # (b, 3072)
    x8 = linear(x7, params["wl1"], params["bl1"], relu=True, tile_n=768)
    out_pad = linear(x8, params["wl2"], params["bl2"], relu=False)   # (b, 128)
    out = out_pad[:, :NUM_CLASSES]
    return out, x8, weight


if __name__ == "__main__":
    # Input [b, c, s, L] = [2, 1, 6, 110]  (6-sensor data); L=110 makes the
    # downstream pipeline produce exactly 256*12 features, as the module requires.
    key = jax.random.PRNGKey(0)
    x = jax.random.normal(key, (2, 1, 6, 110), jnp.float32)
    params = init_params(jax.random.PRNGKey(42))

    fwd = jax.jit(msscaeaa_forward)
    out, x8, weight = fwd(x, params, jax.random.PRNGKey(123))
    jax.block_until_ready((out, x8, weight))

    assert out.shape == (2, NUM_CLASSES)
    assert x8.shape == (2, 256 * 6)
    assert weight.shape == (2, 6)
    print("KERNEL_OK")
</pallas_src>

<mosaic_0001>
module attributes {stable_mosaic.version = 11 : i64} {
  func.func @conv_block_kernel(%arg0: i32, %arg1: memref<54x192xf32, #tpu.memory_space<vmem>>, %arg2: memref<54x192xf32, #tpu.memory_space<vmem>>, %arg3: memref<192x128xf32, #tpu.memory_space<vmem>>, %arg4: memref<1x128xf32, #tpu.memory_space<vmem>>, %arg5: memref<54x128xf32, #tpu.memory_space<vmem>>, %arg6: memref<54x128xf32, #tpu.memory_space<vmem>>) attributes {dimension_semantics = [#tpu.dimension_semantics<arbitrary>], iteration_bounds = array<i64: 1>, scalar_prefetch = 0 : i64, scratch_operands = 0 : i64, tpu.core_type = #tpu.core_type<tc>, window_params = [{pipeline_mode = #tpu.pipeline_mode<synchronous>, transform_indices = @transform_0, window_bounds = array<i64: 54, 192>}, {pipeline_mode = #tpu.pipeline_mode<synchronous>, transform_indices = @transform_1, window_bounds = array<i64: 54, 192>}, {pipeline_mode = #tpu.pipeline_mode<synchronous>, transform_indices = @transform_2, window_bounds = array<i64: 192, 128>}, {pipeline_mode = #tpu.pipeline_mode<synchronous>, transform_indices = @transform_3, window_bounds = array<i64: 1, 128>}, {pipeline_mode = #tpu.pipeline_mode<synchronous>, transform_indices = @transform_4, window_bounds = array<i64: 54, 128>}, {pipeline_mode = #tpu.pipeline_mode<synchronous>, transform_indices = @transform_5, window_bounds = array<i64: 54, 128>}]} {
    %c0 = arith.constant 0 : index
    %c0_0 = arith.constant 0 : index
    %0 = vector.load %arg3[%c0, %c0_0] : memref<192x128xf32, #tpu.memory_space<vmem>>, vector<192x128xf32>
    %c0_1 = arith.constant 0 : index
    %c0_2 = arith.constant 0 : index
    %1 = vector.load %arg1[%c0_1, %c0_2] : memref<54x192xf32, #tpu.memory_space<vmem>>, vector<54x192xf32>
    %cst = arith.constant dense<0.000000e+00> : vector<54x128xf32>
    %2 = tpu.matmul %1, %0, %cst {dimension_numbers = #tpu.dot_dimension_numbers<[1], [0], [0], [1], [0, 0, 1, 1], [], []>} : vector<54x192xf32>, vector<192x128xf32>, vector<54x128xf32> -> vector<54x128xf32>
    %c0_3 = arith.constant 0 : index
    %c0_4 = arith.constant 0 : index
    %3 = vector.load %arg2[%c0_3, %c0_4] : memref<54x192xf32, #tpu.memory_space<vmem>>, vector<54x192xf32>
    %cst_5 = arith.constant dense<0.000000e+00> : vector<54x128xf32>
    %4 = tpu.matmul %3, %0, %cst_5 {dimension_numbers = #tpu.dot_dimension_numbers<[1], [0], [0], [1], [0, 0, 1, 1], [], []>} : vector<54x192xf32>, vector<192x128xf32>, vector<54x128xf32> -> vector<54x128xf32>
    %5 = arith.maximumf %2, %4 : vector<54x128xf32>
    %c0_6 = arith.constant 0 : index
    %c0_7 = arith.constant 0 : index
    %6 = vector.load %arg4[%c0_6, %c0_7] : memref<1x128xf32, #tpu.memory_space<vmem>>, vector<1x128xf32>
    %7 = vector.broadcast %6 : vector<1x128xf32> to vector<54x128xf32>
    %8 = arith.addf %5, %7 : vector<54x128xf32>
    %cst_8 = arith.constant 0.000000e+00 : f32
    %9 = vector.broadcast %cst_8 : f32 to vector<54x128xf32>
    %10 = arith.maximumf %8, %9 : vector<54x128xf32>
    %c0_9 = arith.constant 0 : index
    %c0_10 = arith.constant 0 : index
    %11 = vector.load %arg5[%c0_9, %c0_10] : memref<54x128xf32, #tpu.memory_space<vmem>>, vector<54x128xf32>
    %12 = arith.mulf %10, %11 : vector<54x128xf32>
    %c0_11 = arith.constant 0 : index
    %c0_12 = arith.constant 0 : index
    %13 = vector.load %arg6[%c0_11, %c0_12] : memref<54x128xf32, #tpu.memory_space<vmem>>, vector<54x128xf32>
    tpu.vector_store %arg6[%c0_11, %c0_12], %12 {strides = array<i32>} : memref<54x128xf32, #tpu.memory_space<vmem>>, vector<54x128xf32>,
    return
  }
  func.func @transform_0(%arg0: i32) -> (i32, i32) {
    %c0_i32 = arith.constant 0 : i32
    %c0_i32_0 = arith.constant 0 : i32
    %c0_i32_1 = arith.constant 0 : i32
    return %c0_i32, %c0_i32_0 : i32, i32
  }
  func.func @transform_1(%arg0: i32) -> (i32, i32) {
    %c0_i32 = arith.constant 0 : i32
    %c0_i32_0 = arith.constant 0 : i32
    %c0_i32_1 = arith.constant 0 : i32
    return %c0_i32, %c0_i32_0 : i32, i32
  }
  func.func @transform_2(%arg0: i32) -> (i32, i32) {
    %c0_i32 = arith.constant 0 : i32
    %c0_i32_0 = arith.constant 0 : i32
    %c0_i32_1 = arith.constant 0 : i32
    return %c0_i32, %c0_i32_0 : i32, i32
  }
  func.func @transform_3(%arg0: i32) -> (i32, i32) {
    %c0_i32 = arith.constant 0 : i32
    %c0_i32_0 = arith.constant 0 : i32
    %c0_i32_1 = arith.constant 0 : i32
    return %c0_i32, %c0_i32_0 : i32, i32
  }
  func.func @transform_4(%arg0: i32) -> (i32, i32) {
    %c0_i32 = arith.constant 0 : i32
    %c0_i32_0 = arith.constant 0 : i32
    %c0_i32_1 = arith.constant 0 : i32
    return %c0_i32, %c0_i32_0 : i32, i32
  }
  func.func @transform_5(%arg0: i32) -> (i32, i32) {
    %c0_i32 = arith.constant 0 : i32
    %c0_i32_0 = arith.constant 0 : i32
    %c0_i32_1 = arith.constant 0 : i32
    return %c0_i32, %c0_i32_0 : i32, i32
  }
}

module attributes {stable_mosaic.version = 11 : i64} {
  func.func @conv_block_kernel(%arg0: i32, %arg1: memref<24x384xf32, #tpu.memory_space<vmem>>, %arg2: memref<24x384xf32, #tpu.memory_space<vmem>>, %arg3: memref<384x256xf32, #tpu.memory_space<vmem>>, %arg4: memref<1x256xf32, #tpu.memory_space<vmem>>, %arg5: memref<24x256xf32, #tpu.memory_space<vmem>>, %arg6: memref<24x256xf32, #tpu.memory_space<vmem>>) attributes {dimension_semantics = [#tpu.dimension_semantics<arbitrary>], iteration_bounds = array<i64: 1>, scalar_prefetch = 0 : i64, scratch_operands = 0 : i64, tpu.core_type = #tpu.core_type<tc>, window_params = [{pipeline_mode = #tpu.pipeline_mode<synchronous>, transform_indices = @transform_0, window_bounds = array<i64: 24, 384>}, {pipeline_mode = #tpu.pipeline_mode<synchronous>, transform_indices = @transform_1, window_bounds = array<i64: 24, 384>}, {pipeline_mode = #tpu.pipeline_mode<synchronous>, transform_indices = @transform_2, window_bounds = array<i64: 384, 256>}, {pipeline_mode = #tpu.pipeline_mode<synchronous>, transform_indices = @transform_3, window_bounds = array<i64: 1, 256>}, {pipeline_mode = #tpu.pipeline_mode<synchronous>, transform_indices = @transform_4, window_bounds = array<i64: 24, 256>}, {pipeline_mode = #tpu.pipeline_mode<synchronous>, transform_indices = @transform_5, window_bounds = array<i64: 24, 256>}]} {
    %c0 = arith.constant 0 : index
    %c0_0 = arith.constant 0 : index
    %0 = vector.load %arg3[%c0, %c0_0] : memref<384x256xf32, #tpu.memory_space<vmem>>, vector<384x256xf32>
    %c0_1 = arith.constant 0 : index
    %c0_2 = arith.constant 0 : index
    %1 = vector.load %arg1[%c0_1, %c0_2] : memref<24x384xf32, #tpu.memory_space<vmem>>, vector<24x384xf32>
    %cst = arith.constant dense<0.000000e+00> : vector<24x256xf32>
    %2 = tpu.matmul %1, %0, %cst {dimension_numbers = #tpu.dot_dimension_numbers<[1], [0], [0], [1], [0, 0, 1, 1], [], []>} : vector<24x384xf32>, vector<384x256xf32>, vector<24x256xf32> -> vector<24x256xf32>
    %c0_3 = arith.constant 0 : index
    %c0_4 = arith.constant 0 : index
    %3 = vector.load %arg2[%c0_3, %c0_4] : memref<24x384xf32, #tpu.memory_space<vmem>>, vector<24x384xf32>
    %cst_5 = arith.constant dense<0.000000e+00> : vector<24x256xf32>
    %4 = tpu.matmul %3, %0, %cst_5 {dimension_numbers = #tpu.dot_dimension_numbers<[1], [0], [0], [1], [0, 0, 1, 1], [], []>} : vector<24x384xf32>, vector<384x256xf32>, vector<24x256xf32> -> vector<24x256xf32>
    %5 = arith.maximumf %2, %4 : vector<24x256xf32>
    %c0_6 = arith.constant 0 : index
    %c0_7 = arith.constant 0 : index
    %6 = vector.load %arg4[%c0_6, %c0_7] : memref<1x256xf32, #tpu.memory_space<vmem>>, vector<1x256xf32>
    %7 = vector.broadcast %6 : vector<1x256xf32> to vector<24x256xf32>
    %8 = arith.addf %5, %7 : vector<24x256xf32>
    %cst_8 = arith.constant 0.000000e+00 : f32
    %9 = vector.broadcast %cst_8 : f32 to vector<24x256xf32>
    %10 = arith.maximumf %8, %9 : vector<24x256xf32>
    %c0_9 = arith.constant 0 : index
    %c0_10 = arith.constant 0 : index
    %11 = vector.load %arg5[%c0_9, %c0_10] : memref<24x256xf32, #tpu.memory_space<vmem>>, vector<24x256xf32>
    %12 = arith.mulf %10, %11 : vector<24x256xf32>
    %c0_11 = arith.constant 0 : index
    %c0_12 = arith.constant 0 : index
    %13 = vector.load %arg6[%c0_11, %c0_12] : memref<24x256xf32, #tpu.memory_space<vmem>>, vector<24x256xf32>
    tpu.vector_store %arg6[%c0_11, %c0_12], %12 {strides = array<i32>} : memref<24x256xf32, #tpu.memory_space<vmem>>, vector<24x256xf32>,
    return
  }
  func.func @transform_0(%arg0: i32) -> (i32, i32) {
    %c0_i32 = arith.constant 0 : i32
    %c0_i32_0 = arith.constant 0 : i32
    %c0_i32_1 = arith.constant 0 : i32
    return %c0_i32, %c0_i32_0 : i32, i32
  }
  func.func @transform_1(%arg0: i32) -> (i32, i32) {
    %c0_i32 = arith.constant 0 : i32
    %c0_i32_0 = arith.constant 0 : i32
    %c0_i32_1 = arith.constant 0 : i32
    return %c0_i32, %c0_i32_0 : i32, i32
  }
  func.func @transform_2(%arg0: i32) -> (i32, i32) {
    %c0_i32 = arith.constant 0 : i32
    %c0_i32_0 = arith.constant 0 : i32
    %c0_i32_1 = arith.constant 0 : i32
    return %c0_i32, %c0_i32_0 : i32, i32
  }
  func.func @transform_3(%arg0: i32) -> (i32, i32) {
    %c0_i32 = arith.constant 0 : i32
    %c0_i32_0 = arith.constant 0 : i32
    %c0_i32_1 = arith.constant 0 : i32
    return %c0_i32, %c0_i32_0 : i32, i32
  }
  func.func @transform_4(%arg0: i32) -> (i32, i32) {
    %c0_i32 = arith.constant 0 : i32
    %c0_i32_0 = arith.constant 0 : i32
    %c0_i32_1 = arith.constant 0 : i32
    return %c0_i32, %c0_i32_0 : i32, i32
  }
  func.func @transform_5(%arg0: i32) -> (i32, i32) {
    %c0_i32 = arith.constant 0 : i32
    %c0_i32_0 = arith.constant 0 : i32
    %c0_i32_1 = arith.constant 0 : i32
    return %c0_i32, %c0_i32_0 : i32, i32
  }
}

module attributes {stable_mosaic.version = 11 : i64} {
  func.func @linear_kernel(%arg0: i32, %arg1: memref<2x3072xf32, #tpu.memory_space<vmem>>, %arg2: memref<3072x768xbf16, #tpu.memory_space<vmem>>, %arg3: memref<1x768xf32, #tpu.memory_space<vmem>>, %arg4: memref<2x768xf32, #tpu.memory_space<vmem>>) attributes {dimension_semantics = [#tpu.dimension_semantics<parallel>], iteration_bounds = array<i64: 2>, scalar_prefetch = 0 : i64, scratch_operands = 0 : i64, tpu.core_type = #tpu.core_type<tc>, window_params = [{pipeline_mode = #tpu.pipeline_mode<synchronous>, transform_indices = @transform_0, window_bounds = array<i64: 2, 3072>}, {transform_indices = @transform_1, window_bounds = array<i64: 3072, 768>}, {transform_indices = @transform_2, window_bounds = array<i64: 1, 768>}, {transform_indices = @transform_3, window_bounds = array<i64: 2, 768>}]} {
    %c0 = arith.constant 0 : index
    %c0_0 = arith.constant 0 : index
    %0 = vector.load %arg1[%c0, %c0_0] : memref<2x3072xf32, #tpu.memory_space<vmem>>, vector<2x3072xf32>
    %1 = arith.truncf %0 : vector<2x3072xf32> to vector<2x3072xbf16>
    %c0_1 = arith.constant 0 : index
    %c0_2 = arith.constant 0 : index
    %2 = vector.load %arg2[%c0_1, %c0_2] : memref<3072x768xbf16, #tpu.memory_space<vmem>>, vector<3072x768xbf16>
    %cst = arith.constant dense<0.000000e+00> : vector<2x768xf32>
    %3 = tpu.matmul %1, %2, %cst {dimension_numbers = #tpu.dot_dimension_numbers<[1], [0], [0], [1], [0, 0, 1, 1], [], []>} : vector<2x3072xbf16>, vector<3072x768xbf16>, vector<2x768xf32> -> vector<2x768xf32>
    %c0_3 = arith.constant 0 : index
    %c0_4 = arith.constant 0 : index
    %4 = vector.load %arg3[%c0_3, %c0_4] : memref<1x768xf32, #tpu.memory_space<vmem>>, vector<1x768xf32>
    %5 = vector.broadcast %4 : vector<1x768xf32> to vector<2x768xf32>
    %6 = arith.addf %3, %5 : vector<2x768xf32>
    %cst_5 = arith.constant 0.000000e+00 : f32
    %7 = vector.broadcast %cst_5 : f32 to vector<2x768xf32>
    %8 = arith.maximumf %6, %7 : vector<2x768xf32>
    %c0_6 = arith.constant 0 : index
    %c0_7 = arith.constant 0 : index
    %9 = vector.load %arg4[%c0_6, %c0_7] : memref<2x768xf32, #tpu.memory_space<vmem>>, vector<2x768xf32>
    tpu.vector_store %arg4[%c0_6, %c0_7], %8 {strides = array<i32>} : memref<2x768xf32, #tpu.memory_space<vmem>>, vector<2x768xf32>,
    return
  }
  func.func @transform_0(%arg0: i32) -> (i32, i32) {
    %c0_i32 = arith.constant 0 : i32
    %c0_i32_0 = arith.constant 0 : i32
    %c0_i32_1 = arith.constant 0 : i32
    return %c0_i32, %c0_i32_0 : i32, i32
  }
  func.func @transform_1(%arg0: i32) -> (i32, i32) {
    %c0_i32 = arith.constant 0 : i32
    %c0_i32_0 = arith.constant 0 : i32
    return %c0_i32, %arg0 : i32, i32
  }
  func.func @transform_2(%arg0: i32) -> (i32, i32) {
    %c0_i32 = arith.constant 0 : i32
    %c0_i32_0 = arith.constant 0 : i32
    return %c0_i32, %arg0 : i32, i32
  }
  func.func @transform_3(%arg0: i32) -> (i32, i32) {
    %c0_i32 = arith.constant 0 : i32
    %c0_i32_0 = arith.constant 0 : i32
    return %c0_i32, %arg0 : i32, i32
  }
}

module attributes {stable_mosaic.version = 11 : i64} {
  func.func @linear_kernel(%arg0: i32, %arg1: memref<2x1536xf32, #tpu.memory_space<vmem>>, %arg2: memref<1536x128xf32, #tpu.memory_space<vmem>>, %arg3: memref<1x128xf32, #tpu.memory_space<vmem>>, %arg4: memref<2x128xf32, #tpu.memory_space<vmem>>) attributes {dimension_semantics = [#tpu.dimension_semantics<parallel>], iteration_bounds = array<i64: 1>, scalar_prefetch = 0 : i64, scratch_operands = 0 : i64, tpu.core_type = #tpu.core_type<tc>, window_params = [{pipeline_mode = #tpu.pipeline_mode<synchronous>, transform_indices = @transform_0, window_bounds = array<i64: 2, 1536>}, {transform_indices = @transform_1, window_bounds = array<i64: 1536, 128>}, {transform_indices = @transform_2, window_bounds = array<i64: 1, 128>}, {transform_indices = @transform_3, window_bounds = array<i64: 2, 128>}]} {
    %c0 = arith.constant 0 : index
    %c0_0 = arith.constant 0 : index
    %0 = vector.load %arg1[%c0, %c0_0] : memref<2x1536xf32, #tpu.memory_space<vmem>>, vector<2x1536xf32>
    %c0_1 = arith.constant 0 : index
    %c0_2 = arith.constant 0 : index
    %1 = vector.load %arg2[%c0_1, %c0_2] : memref<1536x128xf32, #tpu.memory_space<vmem>>, vector<1536x128xf32>
    %cst = arith.constant dense<0.000000e+00> : vector<2x128xf32>
    %2 = tpu.matmul %0, %1, %cst {dimension_numbers = #tpu.dot_dimension_numbers<[1], [0], [0], [1], [0, 0, 1, 1], [], []>} : vector<2x1536xf32>, vector<1536x128xf32>, vector<2x128xf32> -> vector<2x128xf32>
    %c0_3 = arith.constant 0 : index
    %c0_4 = arith.constant 0 : index
    %3 = vector.load %arg3[%c0_3, %c0_4] : memref<1x128xf32, #tpu.memory_space<vmem>>, vector<1x128xf32>
    %4 = vector.broadcast %3 : vector<1x128xf32> to vector<2x128xf32>
    %5 = arith.addf %2, %4 : vector<2x128xf32>
    %c0_5 = arith.constant 0 : index
    %c0_6 = arith.constant 0 : index
    %6 = vector.load %arg4[%c0_5, %c0_6] : memref<2x128xf32, #tpu.memory_space<vmem>>, vector<2x128xf32>
    tpu.vector_store %arg4[%c0_5, %c0_6], %5 {strides = array<i32>} : memref<2x128xf32, #tpu.memory_space<vmem>>, vector<2x128xf32>,
    return
  }
  func.func @transform_0(%arg0: i32) -> (i32, i32) {
    %c0_i32 = arith.constant 0 : i32
    %c0_i32_0 = arith.constant 0 : i32
    %c0_i32_1 = arith.constant 0 : i32
    return %c0_i32, %c0_i32_0 : i32, i32
  }
  func.func @transform_1(%arg0: i32) -> (i32, i32) {
    %c0_i32 = arith.constant 0 : i32
    %c0_i32_0 = arith.constant 0 : i32
    return %c0_i32, %arg0 : i32, i32
  }
  func.func @transform_2(%arg0: i32) -> (i32, i32) {
    %c0_i32 = arith.constant 0 : i32
    %c0_i32_0 = arith.constant 0 : i32
    return %c0_i32, %arg0 : i32, i32
  }
  func.func @transform_3(%arg0: i32) -> (i32, i32) {
    %c0_i32 = arith.constant 0 : i32
    %c0_i32_0 = arith.constant 0 : i32
    return %c0_i32, %arg0 : i32, i32
  }
}

</mosaic_0001>

<llo_original>
// kernel: msscaeaa_forward.6
$region0: #{msscaeaa_forward.6}
  #allocation0 [shape = 'u32[]', space=smem, size = 0x4, offset = 0x4, fixed_abs, tag = 'smem constant byte address 0x4 - core index']
  #allocation1 [shape = 'u32[72,128]{1,0:T(1,128)}', space=vmem, size = 0x9000, scoped, tag = 'internal scratch']
  %s0 = inlined_call_operand.vmem [shape: f32[54,192], index: 0, kind: input, shape index: {}]
  %s1 = inlined_call_operand.vmem [shape: f32[54,192], index: 1, kind: input, shape index: {}]
  %s2 = inlined_call_operand.hbm [shape: f32[192,128], index: 2, kind: input, shape index: {}]
  %s3 = inlined_call_operand.hbm [shape: f32[1,128], index: 3, kind: input, shape index: {}]
  %s4 = inlined_call_operand.vmem [shape: f32[54,128], index: 4, kind: input, shape index: {}]
  %s5 = inlined_call_operand.vmem [shape: f32[54,128], index: 5, kind: output, shape index: {}]
  %s6 = sld [smem:[#allocation0]]
  $region38: #{msscaeaa_forward.6} parent=0
    _
  %s8 = ssub.s32 1, %s6
  %s9 = scalar_select 0, %s8, %s6
  $region1: #{msscaeaa_forward.6} parent=0
    #allocation2 [shape = 'u8[98304]{0}', space=vmem, size = 0x18000, scoped, tag = 'input window, operand 2, single buffered']
    #allocation3 [shape = 's32[1]{0}', space=sflag, size = 0x4, scoped, tag = 'scoped memory for msscaeaa_forward.6']
    #allocation4 [shape = 'u8[512]{0}', space=vmem, size = 0x400, scoped, tag = 'input window, operand 3, single buffered']
    #allocation5 [shape = 's32[1]{0}', space=sflag, size = 0x4, scoped, tag = 'scoped memory for msscaeaa_forward.6']
    %10 = vsyncpa [#allocation3], 0
    %11 = vsyncpa [#allocation5], 0
    // Predicated region
    $region2: #{msscaeaa_forward.6} parent=1 // pred_check
      _
    $region3: #{msscaeaa_forward.6} parent=1 // pred_check_branch
      %13 = sbr.rel (0) target = $region5
    $region4: #{msscaeaa_forward.6} parent=1 // pred_region
      _
    $region5: #{msscaeaa_forward.6} parent=1 // pred_fallthru
      _
    // Predicated region
    $region6: #{msscaeaa_forward.6} parent=1 // pred_check
      _
    $region7: #{msscaeaa_forward.6} parent=1 // pred_check_branch
      %15 = sbr.rel (0) target = $region9
    $region8: #{msscaeaa_forward.6} parent=1 // pred_region
      _
    $region9: #{msscaeaa_forward.6} parent=1 // pred_fallthru
      _
    // Predicated region
    $region10: #{msscaeaa_forward.6} parent=1 // pred_check
      _
    $region11: #{msscaeaa_forward.6} parent=1 // pred_check_branch
      %17 = sbr.rel (0) target = $region13
    $region12: #{msscaeaa_forward.6} parent=1 // pred_region
      %19 = vsyncadd [#allocation3], 0
      %s20 = sshll.u32 %s2, 4
      %s21 = int_to_ptr.hbm [resolvable:$true] %s20
      %s22 = sshll.u32 [#allocation2], 4
      %s23 = int_to_ptr.vmem [resolvable:$true] %s22
      %28 = dma.hbm_to_vmem [thread:$0]  %s21, 3072, %s23, [#allocation3], 128, 128, 8
    $region13: #{msscaeaa_forward.6} parent=1 // pred_fallthru
      _
    // Predicated region
    $region14: #{msscaeaa_forward.6} parent=1 // pred_check
      _
    $region15: #{msscaeaa_forward.6} parent=1 // pred_check_branch
      %30 = sbr.rel (0) target = $region17
    $region16: #{msscaeaa_forward.6} parent=1 // pred_region
      %32 = vsyncadd [#allocation5], 0
      %s34 = sshll.u32 %s3, 4
      %s35 = int_to_ptr.hbm [resolvable:$true] %s34
      %s36 = sshll.u32 [#allocation4], 4
      %s37 = int_to_ptr.vmem [resolvable:$true] %s36
      %39 = dma.hbm_to_vmem [thread:$0]  %s35, 16, %s37, [#allocation5]
    $region17: #{msscaeaa_forward.6} parent=1 // pred_fallthru
      _
    // Predicated region
    $region18: #{msscaeaa_forward.6} parent=1 // pred_check
      _
    $region19: #{msscaeaa_forward.6} parent=1 // pred_check_branch
      %41 = sbr.rel (0) target = $region21
    $region20: #{msscaeaa_forward.6} parent=1 // pred_region
      _
    $region21: #{msscaeaa_forward.6} parent=1 // pred_fallthru
      _
    // Predicated region
    $region22: #{msscaeaa_forward.6} parent=1 // pred_check
      _
    $region23: #{msscaeaa_forward.6} parent=1 // pred_check_branch
      %43 = sbr.rel (0) target = $region25
    $region24: #{msscaeaa_forward.6} parent=1 // pred_region
      %45 = dma.done [#allocation3], 3072
    $region25: #{msscaeaa_forward.6} parent=1 // pred_fallthru
      _
    // Predicated region
    $region26: #{msscaeaa_forward.6} parent=1 // pred_check
      _
    $region27: #{msscaeaa_forward.6} parent=1 // pred_check_branch
      %47 = sbr.rel (0) target = $region29
    $region28: #{msscaeaa_forward.6} parent=1 // pred_region
      %49 = dma.done [#allocation5], 16
    $region29: #{msscaeaa_forward.6} parent=1 // pred_fallthru
      _
    %v50 = vld [vmem:[#allocation2] sm:$0xff]
    %v51 = vld [vmem:[#allocation2 + $0x8] sm:$0xff]
    %v52 = vld [vmem:[#allocation2 + $0x10] sm:$0xff]
    %v53 = vld [vmem:[#allocation2 + $0x18] sm:$0xff]
    %v54 = vld [vmem:[#allocation2 + $0x20] sm:$0xff]
    %v55 = vld [vmem:[#allocation2 + $0x28] sm:$0xff]
    %v56 = vld [vmem:[#allocation2 + $0x30] sm:$0xff]
    %v57 = vld [vmem:[#allocation2 + $0x38] sm:$0xff]
    %v58 = vld [vmem:[#allocation2 + $0x40] sm:$0xff]
    %v59 = vld [vmem:[#allocation2 + $0x48] sm:$0xff]
    %v60 = vld [vmem:[#allocation2 + $0x50] sm:$0xff]
    %v61 = vld [vmem:[#allocation2 + $0x58] sm:$0xff]
    %v62 = vld [vmem:[#allocation2 + $0x60] sm:$0xff]
    %v63 = vld [vmem:[#allocation2 + $0x68] sm:$0xff]
    %v64 = vld [vmem:[#allocation2 + $0x70] sm:$0xff]
    %v65 = vld [vmem:[#allocation2 + $0x78] sm:$0xff]
    %v66 = vld [vmem:[#allocation2 + $0x80] sm:$0xff]
    %v67 = vld [vmem:[#allocation2 + $0x88] sm:$0xff]
    %v68 = vld [vmem:[#allocation2 + $0x90] sm:$0xff]
    %v69 = vld [vmem:[#allocation2 + $0x98] sm:$0xff]
    %v70 = vld [vmem:[#allocation2 + $0xa0] sm:$0xff]
    %v71 = vld [vmem:[#allocation2 + $0xa8] sm:$0xff]
    %v72 = vld [vmem:[#allocation2 + $0xb0] sm:$0xff]
    %v73 = vld [vmem:[#allocation2 + $0xb8] sm:$0xff]
    %v74 = vld [vmem:[%s0] sm:$0xff]
    %v75 = vld [vmem:[%s0 + $0x8] sm:$0xff]
    %v76 = vld [vmem:[%s0 + $0x10] sm:$0xff]
    %v77 = vld [vmem:[%s0 + $0x18] sm:$0xff]
    %v78 = vld [vmem:[%s0 + $0x20] sm:$0xff]
    %v79 = vld [vmem:[%s0 + $0x28] sm:$0xff]
    %v80 = vld [vmem:[%s0 + $0x30] sm:$0xff]
    %v81 = vld [vmem:[%s0 + $0x38] sm:$0xff]
    %v82 = vld [vmem:[%s0 + $0x40] sm:$0xff]
    %v83 = vld [vmem:[%s0 + $0x48] sm:$0xff]
    %v84 = vld [vmem:[%s0 + $0x50] sm:$0xff]
    %v85 = vld [vmem:[%s0 + $0x58] sm:$0xff]
    %v86 = vld [vmem:[%s0 + $0x60] sm:$0x3f]
    %v87 = vld [vmem:[%s0 + $0x68] sm:$0x3f]
    %vm88 = vcmask 523264
    %v90 = vsel %vm88, %v75, 0
    %v93 = vsel %vm88, %v77, 0
    %v96 = vsel %vm88, %v79, 0
    %v99 = vsel %vm88, %v81, 0
    %v102 = vsel %vm88, %v83, 0
    %v105 = vsel %vm88, %v85, 0
    %v108 = vsel %vm88, %v87, 0
    %110 = vmatpush.msra.mxu0 %v65
    %111 = vmatpush.msra.mxu0 %v64
    %112 = vmatpush.msra.mxu0 %v63
    %113 = vmatpush.msra.mxu0 %v62
    %114 = vmatpush.msra.mxu0 %v61
    %115 = vmatpush.msra.mxu0 %v60
    %116 = vmatpush.msra.mxu0 %v59
    %117 = vmatpush.msra.mxu0 %v58
    %118 = vmatpush.msra.mxu0 %v57
    %119 = vmatpush.msra.mxu0 %v56
    %120 = vmatpush.msra.mxu0 %v55
    %121 = vmatpush.msra.mxu0 %v54
    %122 = vmatpush.msra.mxu0 %v53
    %123 = vmatpush.msra.mxu0 %v52
    %124 = vmatpush.msra.mxu0 %v51
    %125 = vmatpush.msra.mxu0 %v50
    %126 = vmatmul.f32.gmra.mxu0 %v74
    %v127 = vpop.f32.mrf.mxu0
    %v128 = vadd.f32 0.0, %v127
    %129 = vmatmul.f32.gmra.mxu0 %v76
    %v130 = vpop.f32.mrf.mxu0
    %v131 = vadd.f32 0.0, %v130
    %132 = vmatmul.f32.gmra.mxu0 %v78
    %v133 = vpop.f32.mrf.mxu0
    %v134 = vadd.f32 0.0, %v133
    %135 = vmatmul.f32.gmra.mxu0 %v80
    %v136 = vpop.f32.mrf.mxu0
    %v137 = vadd.f32 0.0, %v136
    %138 = vmatmul.f32.gmra.mxu0 %v82
    %v139 = vpop.f32.mrf.mxu0
    %v140 = vadd.f32 0.0, %v139
    %141 = vmatmul.f32.gmra.mxu0 %v84
    %v142 = vpop.f32.mrf.mxu0
    %v143 = vadd.f32 0.0, %v142
    %144 = vmatmul.f32.gmra.mxu0 %v86
    %v145 = vpop.f32.mrf.mxu0
    %v146 = vadd.f32 0.0, %v145
    %147 = vdwg.mxu0
    %148 = vmatpush.msra.mxu0 0.0
    %149 = vmatpush.msra.mxu0 0.0
    %150 = vmatpush.msra.mxu0 0.0
    %151 = vmatpush.msra.mxu0 0.0
    %152 = vmatpush.msra.mxu0 0.0
    %153 = vmatpush.msra.mxu0 0.0
    %154 = vmatpush.msra.mxu0 0.0
    %155 = vmatpush.msra.mxu0 0.0
    %156 = vmatpush.msra.mxu0 %v73
    %157 = vmatpush.msra.mxu0 %v72
    %158 = vmatpush.msra.mxu0 %v71
    %159 = vmatpush.msra.mxu0 %v70
    %160 = vmatpush.msra.mxu0 %v69
    %161 = vmatpush.msra.mxu0 %v68
    %162 = vmatpush.msra.mxu0 %v67
    %163 = vmatpush.msra.mxu0 %v66
    %164 = vmatmul.f32.gmra.mxu0 %v90
    %v165 = vpop.f32.mrf.mxu0
    %v166 = vadd.f32 %v128, %v165
    %167 = vmatmul.f32.gmra.mxu0 %v93
    %v168 = vpop.f32.mrf.mxu0
    %v169 = vadd.f32 %v131, %v168
    %170 = vmatmul.f32.gmra.mxu0 %v96
    %v171 = vpop.f32.mrf.mxu0
    %v172 = vadd.f32 %v134, %v171
    %173 = vmatmul.f32.gmra.mxu0 %v99
    %v174 = vpop.f32.mrf.mxu0
    %v175 = vadd.f32 %v137, %v174
    %176 = vmatmul.f32.gmra.mxu0 %v102
    %v177 = vpop.f32.mrf.mxu0
    %v178 = vadd.f32 %v140, %v177
    %179 = vmatmul.f32.gmra.mxu0 %v105
    %v180 = vpop.f32.mrf.mxu0
    %v181 = vadd.f32 %v143, %v180
    %182 = vmatmul.f32.gmra.mxu0 %v108
    %v183 = vpop.f32.mrf.mxu0
    %v184 = vadd.f32 %v146, %v183
    %185 = vdwg.mxu0
    %v186 = vld [vmem:[%s1] sm:$0xff]
    %v187 = vld [vmem:[%s1 + $0x8] sm:$0xff]
    %v188 = vld [vmem:[%s1 + $0x10] sm:$0xff]
    %v189 = vld [vmem:[%s1 + $0x18] sm:$0xff]
    %v190 = vld [vmem:[%s1 + $0x20] sm:$0xff]
    %v191 = vld [vmem:[%s1 + $0x28] sm:$0xff]
    %v192 = vld [vmem:[%s1 + $0x30] sm:$0xff]
    %v193 = vld [vmem:[%s1 + $0x38] sm:$0xff]
    %v194 = vld [vmem:[%s1 + $0x40] sm:$0xff]
    %v195 = vld [vmem:[%s1 + $0x48] sm:$0xff]
    %v196 = vld [vmem:[%s1 + $0x50] sm:$0xff]
    %v197 = vld [vmem:[%s1 + $0x58] sm:$0xff]
    %v198 = vld [vmem:[%s1 + $0x60] sm:$0x3f]
    %v199 = vld [vmem:[%s1 + $0x68] sm:$0x3f]
    %v201 = vsel %vm88, %v187, 0
    %v204 = vsel %vm88, %v189, 0
    %v207 = vsel %vm88, %v191, 0
    %v210 = vsel %vm88, %v193, 0
    %v213 = vsel %vm88, %v195, 0
    %v216 = vsel %vm88, %v197, 0
    %v219 = vsel %vm88, %v199, 0
    %221 = vmatpush.msra.mxu0 %v65
    %222 = vmatpush.msra.mxu0 %v64
    %223 = vmatpush.msra.mxu0 %v63
    %224 = vmatpush.msra.mxu0 %v62
    %225 = vmatpush.msra.mxu0 %v61
    %226 = vmatpush.msra.mxu0 %v60
    %227 = vmatpush.msra.mxu0 %v59
    %228 = vmatpush.msra.mxu0 %v58
    %229 = vmatpush.msra.mxu0 %v57
    %230 = vmatpush.msra.mxu0 %v56
    %231 = vmatpush.msra.mxu0 %v55
    %232 = vmatpush.msra.mxu0 %v54
    %233 = vmatpush.msra.mxu0 %v53
    %234 = vmatpush.msra.mxu0 %v52
    %235 = vmatpush.msra.mxu0 %v51
    %236 = vmatpush.msra.mxu0 %v50
    %237 = vmatmul.f32.gmra.mxu0 %v186
    %v238 = vpop.f32.mrf.mxu0
    %v239 = vadd.f32 0.0, %v238
    %240 = vmatmul.f32.gmra.mxu0 %v188
    %v241 = vpop.f32.mrf.mxu0
    %v242 = vadd.f32 0.0, %v241
    %243 = vmatmul.f32.gmra.mxu0 %v190
    %v244 = vpop.f32.mrf.mxu0
    %v245 = vadd.f32 0.0, %v244
    %246 = vmatmul.f32.gmra.mxu0 %v192
    %v247 = vpop.f32.mrf.mxu0
    %v248 = vadd.f32 0.0, %v247
    %249 = vmatmul.f32.gmra.mxu0 %v194
    %v250 = vpop.f32.mrf.mxu0
    %v251 = vadd.f32 0.0, %v250
    %252 = vmatmul.f32.gmra.mxu0 %v196
    %v253 = vpop.f32.mrf.mxu0
    %v254 = vadd.f32 0.0, %v253
    %255 = vmatmul.f32.gmra.mxu0 %v198
    %v256 = vpop.f32.mrf.mxu0
    %v257 = vadd.f32 0.0, %v256
    %258 = vdwg.mxu0
    %259 = vmatpush.msra.mxu0 0.0
    %260 = vmatpush.msra.mxu0 0.0
    %261 = vmatpush.msra.mxu0 0.0
    %262 = vmatpush.msra.mxu0 0.0
    %263 = vmatpush.msra.mxu0 0.0
    %264 = vmatpush.msra.mxu0 0.0
    %265 = vmatpush.msra.mxu0 0.0
    %266 = vmatpush.msra.mxu0 0.0
    %267 = vmatpush.msra.mxu0 %v73
    %268 = vmatpush.msra.mxu0 %v72
    %269 = vmatpush.msra.mxu0 %v71
    %270 = vmatpush.msra.mxu0 %v70
    %271 = vmatpush.msra.mxu0 %v69
    %272 = vmatpush.msra.mxu0 %v68
    %273 = vmatpush.msra.mxu0 %v67
    %274 = vmatpush.msra.mxu0 %v66
    %275 = vmatmul.f32.gmra.mxu0 %v201
    %v276 = vpop.f32.mrf.mxu0
    %v277 = vadd.f32 %v239, %v276
    %278 = vmatmul.f32.gmra.mxu0 %v204
    %v279 = vpop.f32.mrf.mxu0
    %v280 = vadd.f32 %v242, %v279
    %281 = vmatmul.f32.gmra.mxu0 %v207
    %v282 = vpop.f32.mrf.mxu0
    %v283 = vadd.f32 %v245, %v282
    %284 = vmatmul.f32.gmra.mxu0 %v210
    %v285 = vpop.f32.mrf.mxu0
    %v286 = vadd.f32 %v248, %v285
    %287 = vmatmul.f32.gmra.mxu0 %v213
    %v288 = vpop.f32.mrf.mxu0
    %v289 = vadd.f32 %v251, %v288
    %290 = vmatmul.f32.gmra.mxu0 %v216
    %v291 = vpop.f32.mrf.mxu0
    %v292 = vadd.f32 %v254, %v291
    %293 = vmatmul.f32.gmra.mxu0 %v219
    %v294 = vpop.f32.mrf.mxu0
    %v295 = vadd.f32 %v257, %v294
    %296 = vdwg.mxu0
    %v297 = vmax.f32 %v166, %v277
    %v298 = vmax.f32 %v169, %v280
    %v299 = vmax.f32 %v172, %v283
    %v300 = vmax.f32 %v175, %v286
    %v301 = vmax.f32 %v178, %v289
    %v302 = vmax.f32 %v181, %v292
    %v303 = vmax.f32 %v184, %v295
    %v304 = vld [vmem:[#allocation4] sm:$0x1]
    %v306 = vperm.slane %v304, 0
    %v308 = vadd.f32 %v297, %v306
    %v309 = vadd.f32 %v298, %v306
    %v310 = vadd.f32 %v299, %v306
    %v311 = vadd.f32 %v300, %v306
    %v312 = vadd.f32 %v301, %v306
    %v313 = vadd.f32 %v302, %v306
    %v314 = vadd.f32 %v303, %v306
    %v315 = vmax.f32 %v308, 0.0
    %v316 = vmax.f32 %v309, 0.0
    %v317 = vmax.f32 %v310, 0.0
    %v318 = vmax.f32 %v311, 0.0
    %v319 = vmax.f32 %v312, 0.0
    %v320 = vmax.f32 %v313, 0.0
    %v321 = vmax.f32 %v314, 0.0
    %v322 = vld [vmem:[%s4] sm:$0xff]
    %v323 = vld [vmem:[%s4 + $0x8] sm:$0xff]
    %v324 = vld [vmem:[%s4 + $0x10] sm:$0xff]
    %v325 = vld [vmem:[%s4 + $0x18] sm:$0xff]
    %v326 = vld [vmem:[%s4 + $0x20] sm:$0xff]
    %v327 = vld [vmem:[%s4 + $0x28] sm:$0xff]
    %v328 = vld [vmem:[%s4 + $0x30] sm:$0x3f]
    %v329 = vmul.f32 %v315, %v322
    %v330 = vmul.f32 %v316, %v323
    %v331 = vmul.f32 %v317, %v324
    %v332 = vmul.f32 %v318, %v325
    %v333 = vmul.f32 %v319, %v326
    %v334 = vmul.f32 %v320, %v327
    %v335 = vmul.f32 %v321, %v328
    %336 = vst [vmem:[%s5] sm:$0xff] %v329
    %337 = vst [vmem:[%s5 + $0x8] sm:$0xff] %v330
    %338 = vst [vmem:[%s5 + $0x10] sm:$0xff] %v331
    %339 = vst [vmem:[%s5 + $0x18] sm:$0xff] %v332
    %340 = vst [vmem:[%s5 + $0x20] sm:$0xff] %v333
    %341 = vst [vmem:[%s5 + $0x28] sm:$0xff] %v334
    %342 = vst [vmem:[%s5 + $0x30] sm:$0x3f] %v335
    // Predicated region
    $region30: #{msscaeaa_forward.6} parent=1 // pred_check
      _
    $region31: #{msscaeaa_forward.6} parent=1 // pred_check_branch
      %344 = sbr.rel (0) target = $region33
    $region32: #{msscaeaa_forward.6} parent=1 // pred_region
      _
    $region33: #{msscaeaa_forward.6} parent=1 // pred_fallthru
      _
    // Predicated region
    $region34: #{msscaeaa_forward.6} parent=1 // pred_check
      _
    $region35: #{msscaeaa_forward.6} parent=1 // pred_check_branch
      %346 = sbr.rel (0) target = $region37
    $region36: #{msscaeaa_forward.6} parent=1 // pred_region
      _
    $region37: #{msscaeaa_forward.6} parent=1 // pred_fallthru
      _
    %347 = vsyncpa [#allocation3], 1
    %348 = vsyncpa [#allocation5], 1

// kernel: msscaeaa_forward.7
$region0: #{msscaeaa_forward.7}
  #allocation0 [shape = 'u32[]', space=smem, size = 0x4, offset = 0x4, fixed_abs, tag = 'smem constant byte address 0x4 - core index']
  #allocation1 [shape = 'u32[72,128]{1,0:T(1,128)}', space=vmem, size = 0x9000, scoped, tag = 'internal scratch']
  %s0 = inlined_call_operand.vmem [shape: f32[24,384], index: 0, kind: input, shape index: {}]
  %s1 = inlined_call_operand.vmem [shape: f32[24,384], index: 1, kind: input, shape index: {}]
  %s2 = inlined_call_operand.hbm [shape: f32[384,256], index: 2, kind: input, shape index: {}]
  %s3 = inlined_call_operand.hbm [shape: f32[1,256], index: 3, kind: input, shape index: {}]
  %s4 = inlined_call_operand.vmem [shape: f32[24,256], index: 4, kind: input, shape index: {}]
  %s5 = inlined_call_operand.vmem [shape: f32[24,256], index: 5, kind: output, shape index: {}]
  %s6 = sld [smem:[#allocation0]]
  $region38: #{msscaeaa_forward.7} parent=0
    _
  %s8 = ssub.s32 1, %s6
  %s9 = scalar_select 0, %s8, %s6
  $region1: #{msscaeaa_forward.7} parent=0
    #allocation2 [shape = 'u8[393216]{0}', space=vmem, size = 0x60000, scoped, tag = 'input window, operand 2, single buffered']
    #allocation3 [shape = 's32[1]{0}', space=sflag, size = 0x4, scoped, tag = 'scoped memory for msscaeaa_forward.7']
    #allocation4 [shape = 'u8[1024]{0}', space=vmem, size = 0x400, scoped, tag = 'input window, operand 3, single buffered']
    #allocation5 [shape = 's32[1]{0}', space=sflag, size = 0x4, scoped, tag = 'scoped memory for msscaeaa_forward.7']
    %10 = vsyncpa [#allocation3], 0
    %11 = vsyncpa [#allocation5], 0
    // Predicated region
    $region2: #{msscaeaa_forward.7} parent=1 // pred_check
      _
    $region3: #{msscaeaa_forward.7} parent=1 // pred_check_branch
      %13 = sbr.rel (0) target = $region5
    $region4: #{msscaeaa_forward.7} parent=1 // pred_region
      _
    $region5: #{msscaeaa_forward.7} parent=1 // pred_fallthru
      _
    // Predicated region
    $region6: #{msscaeaa_forward.7} parent=1 // pred_check
      _
    $region7: #{msscaeaa_forward.7} parent=1 // pred_check_branch
      %15 = sbr.rel (0) target = $region9
    $region8: #{msscaeaa_forward.7} parent=1 // pred_region
      _
    $region9: #{msscaeaa_forward.7} parent=1 // pred_fallthru
      _
    // Predicated region
    $region10: #{msscaeaa_forward.7} parent=1 // pred_check
      _
    $region11: #{msscaeaa_forward.7} parent=1 // pred_check_branch
      %17 = sbr.rel (0) target = $region13
    $region12: #{msscaeaa_forward.7} parent=1 // pred_region
      %19 = vsyncadd [#allocation3], 0
      %s20 = sshll.u32 %s2, 4
      %s21 = int_to_ptr.hbm [resolvable:$true] %s20
      %s22 = sshll.u32 [#allocation2], 4
      %s23 = int_to_ptr.vmem [resolvable:$true] %s22
      %28 = dma.hbm_to_vmem [thread:$0]  %s21, 12288, %s23, [#allocation3], 256, 256, 16
    $region13: #{msscaeaa_forward.7} parent=1 // pred_fallthru
      _
    // Predicated region
    $region14: #{msscaeaa_forward.7} parent=1 // pred_check
      _
    $region15: #{msscaeaa_forward.7} parent=1 // pred_check_branch
      %30 = sbr.rel (0) target = $region17
    $region16: #{msscaeaa_forward.7} parent=1 // pred_region
      %32 = vsyncadd [#allocation5], 0
      %s34 = sshll.u32 %s3, 4
      %s35 = int_to_ptr.hbm [resolvable:$true] %s34
      %s36 = sshll.u32 [#allocation4], 4
      %s37 = int_to_ptr.vmem [resolvable:$true] %s36
      %39 = dma.hbm_to_vmem [thread:$0]  %s35, 32, %s37, [#allocation5]
    $region17: #{msscaeaa_forward.7} parent=1 // pred_fallthru
      _
    // Predicated region
    $region18: #{msscaeaa_forward.7} parent=1 // pred_check
      _
    $region19: #{msscaeaa_forward.7} parent=1 // pred_check_branch
      %41 = sbr.rel (0) target = $region21
    $region20: #{msscaeaa_forward.7} parent=1 // pred_region
      _
    $region21: #{msscaeaa_forward.7} parent=1 // pred_fallthru
      _
    // Predicated region
    $region22: #{msscaeaa_forward.7} parent=1 // pred_check
      _
    $region23: #{msscaeaa_forward.7} parent=1 // pred_check_branch
      %43 = sbr.rel (0) target = $region25
    $region24: #{msscaeaa_forward.7} parent=1 // pred_region
      %45 = dma.done [#allocation3], 12288
    $region25: #{msscaeaa_forward.7} parent=1 // pred_fallthru
      _
    // Predicated region
    $region26: #{msscaeaa_forward.7} parent=1 // pred_check
      _
    $region27: #{msscaeaa_forward.7} parent=1 // pred_check_branch
      %47 = sbr.rel (0) target = $region29
    $region28: #{msscaeaa_forward.7} parent=1 // pred_region
      %49 = dma.done [#allocation5], 32
    $region29: #{msscaeaa_forward.7} parent=1 // pred_fallthru
      _
    %v50 = vld [vmem:[#allocation2] sm:$0xff]
    %v51 = vld [vmem:[#allocation2 + $0x8] sm:$0xff]
    %v52 = vld [vmem:[#allocation2 + $0x10] sm:$0xff]
    %v53 = vld [vmem:[#allocation2 + $0x18] sm:$0xff]
    %v54 = vld [vmem:[#allocation2 + $0x20] sm:$0xff]
    %v55 = vld [vmem:[#allocation2 + $0x28] sm:$0xff]
    %v56 = vld [vmem:[#allocation2 + $0x30] sm:$0xff]
    %v57 = vld [vmem:[#allocation2 + $0x38] sm:$0xff]
    %v58 = vld [vmem:[#allocation2 + $0x40] sm:$0xff]
    %v59 = vld [vmem:[#allocation2 + $0x48] sm:$0xff]
    %v60 = vld [vmem:[#allocation2 + $0x50] sm:$0xff]
    %v61 = vld [vmem:[#allocation2 + $0x58] sm:$0xff]
    %v62 = vld [vmem:[#allocation2 + $0x60] sm:$0xff]
    %v63 = vld [vmem:[#allocation2 + $0x68] sm:$0xff]
    %v64 = vld [vmem:[#allocation2 + $0x70] sm:$0xff]
    %v65 = vld [vmem:[#allocation2 + $0x78] sm:$0xff]
    %v66 = vld [vmem:[#allocation2 + $0x80] sm:$0xff]
    %v67 = vld [vmem:[#allocation2 + $0x88] sm:$0xff]
    %v68 = vld [vmem:[#allocation2 + $0x90] sm:$0xff]
    %v69 = vld [vmem:[#allocation2 + $0x98] sm:$0xff]
    %v70 = vld [vmem:[#allocation2 + $0xa0] sm:$0xff]
    %v71 = vld [vmem:[#allocation2 + $0xa8] sm:$0xff]
    %v72 = vld [vmem:[#allocation2 + $0xb0] sm:$0xff]
    %v73 = vld [vmem:[#allocation2 + $0xb8] sm:$0xff]
    %v74 = vld [vmem:[#allocation2 + $0xc0] sm:$0xff]
    %v75 = vld [vmem:[#allocation2 + $0xc8] sm:$0xff]
    %v76 = vld [vmem:[#allocation2 + $0xd0] sm:$0xff]
    %v77 = vld [vmem:[#allocation2 + $0xd8] sm:$0xff]
    %v78 = vld [vmem:[#allocation2 + $0xe0] sm:$0xff]
    %v79 = vld [vmem:[#allocation2 + $0xe8] sm:$0xff]
    %v80 = vld [vmem:[#allocation2 + $0xf0] sm:$0xff]
    %v81 = vld [vmem:[#allocation2 + $0xf8] sm:$0xff]
    %v82 = vld [vmem:[#allocation2 + $0x100] sm:$0xff]
    %v83 = vld [vmem:[#allocation2 + $0x108] sm:$0xff]
    %v84 = vld [vmem:[#allocation2 + $0x110] sm:$0xff]
    %v85 = vld [vmem:[#allocation2 + $0x118] sm:$0xff]
    %v86 = vld [vmem:[#allocation2 + $0x120] sm:$0xff]
    %v87 = vld [vmem:[#allocation2 + $0x128] sm:$0xff]
    %v88 = vld [vmem:[#allocation2 + $0x130] sm:$0xff]
    %v89 = vld [vmem:[#allocation2 + $0x138] sm:$0xff]
    %v90 = vld [vmem:[#allocation2 + $0x140] sm:$0xff]
    %v91 = vld [vmem:[#allocation2 + $0x148] sm:$0xff]
    %v92 = vld [vmem:[#allocation2 + $0x150] sm:$0xff]
    %v93 = vld [vmem:[#allocation2 + $0x158] sm:$0xff]
    %v94 = vld [vmem:[#allocation2 + $0x160] sm:$0xff]
    %v95 = vld [vmem:[#allocation2 + $0x168] sm:$0xff]
    %v96 = vld [vmem:[#allocation2 + $0x170] sm:$0xff]
    %v97 = vld [vmem:[#allocation2 + $0x178] sm:$0xff]
    %v98 = vld [vmem:[#allocation2 + $0x180] sm:$0xff]
    %v99 = vld [vmem:[#allocation2 + $0x188] sm:$0xff]
    %v100 = vld [vmem:[#allocation2 + $0x190] sm:$0xff]
    %v101 = vld [vmem:[#allocation2 + $0x198] sm:$0xff]
    %v102 = vld [vmem:[#allocation2 + $0x1a0] sm:$0xff]
    %v103 = vld [vmem:[#allocation2 + $0x1a8] sm:$0xff]
    %v104 = vld [vmem:[#allocation2 + $0x1b0] sm:$0xff]
    %v105 = vld [vmem:[#allocation2 + $0x1b8] sm:$0xff]
    %v106 = vld [vmem:[#allocation2 + $0x1c0] sm:$0xff]
    %v107 = vld [vmem:[#allocation2 + $0x1c8] sm:$0xff]
    %v108 = vld [vmem:[#allocation2 + $0x1d0] sm:$0xff]
    %v109 = vld [vmem:[#allocation2 + $0x1d8] sm:$0xff]
    %v110 = vld [vmem:[#allocation2 + $0x1e0] sm:$0xff]
    %v111 = vld [vmem:[#allocation2 + $0x1e8] sm:$0xff]
    %v112 = vld [vmem:[#allocation2 + $0x1f0] sm:$0xff]
    %v113 = vld [vmem:[#allocation2 + $0x1f8] sm:$0xff]
    %v114 = vld [vmem:[#allocation2 + $0x200] sm:$0xff]
    %v115 = vld [vmem:[#allocation2 + $0x208] sm:$0xff]
    %v116 = vld [vmem:[#allocation2 + $0x210] sm:$0xff]
    %v117 = vld [vmem:[#allocation2 + $0x218] sm:$0xff]
    %v118 = vld [vmem:[#allocation2 + $0x220] sm:$0xff]
    %v119 = vld [vmem:[#allocation2 + $0x228] sm:$0xff]
    %v120 = vld [vmem:[#allocation2 + $0x230] sm:$0xff]
    %v121 = vld [vmem:[#allocation2 + $0x238] sm:$0xff]
    %v122 = vld [vmem:[#allocation2 + $0x240] sm:$0xff]
    %v123 = vld [vmem:[#allocation2 + $0x248] sm:$0xff]
    %v124 = vld [vmem:[#allocation2 + $0x250] sm:$0xff]
    %v125 = vld [vmem:[#allocation2 + $0x258] sm:$0xff]
    %v126 = vld [vmem:[#allocation2 + $0x260] sm:$0xff]
    %v127 = vld [vmem:[#allocation2 + $0x268] sm:$0xff]
    %v128 = vld [vmem:[#allocation2 + $0x270] sm:$0xff]
    %v129 = vld [vmem:[#allocation2 + $0x278] sm:$0xff]
    %v130 = vld [vmem:[#allocation2 + $0x280] sm:$0xff]
    %v131 = vld [vmem:[#allocation2 + $0x288] sm:$0xff]
    %v132 = vld [vmem:[#allocation2 + $0x290] sm:$0xff]
    %v133 = vld [vmem:[#allocation2 + $0x298] sm:$0xff]
    %v134 = vld [vmem:[#allocation2 + $0x2a0] sm:$0xff]
    %v135 = vld [vmem:[#allocation2 + $0x2a8] sm:$0xff]
    %v136 = vld [vmem:[#allocation2 + $0x2b0] sm:$0xff]
    %v137 = vld [vmem:[#allocation2 + $0x2b8] sm:$0xff]
    %v138 = vld [vmem:[#allocation2 + $0x2c0] sm:$0xff]
    %v139 = vld [vmem:[#allocation2 + $0x2c8] sm:$0xff]
    %v140 = vld [vmem:[#allocation2 + $0x2d0] sm:$0xff]
    %v141 = vld [vmem:[#allocation2 + $0x2d8] sm:$0xff]
    %v142 = vld [vmem:[#allocation2 + $0x2e0] sm:$0xff]
    %v143 = vld [vmem:[#allocation2 + $0x2e8] sm:$0xff]
    %v144 = vld [vmem:[#allocation2 + $0x2f0] sm:$0xff]
    %v145 = vld [vmem:[#allocation2 + $0x2f8] sm:$0xff]
    %v146 = vld [vmem:[%s0] sm:$0xff]
    %v147 = vld [vmem:[%s0 + $0x8] sm:$0xff]
    %v148 = vld [vmem:[%s0 + $0x10] sm:$0xff]
    %v149 = vld [vmem:[%s0 + $0x18] sm:$0xff]
    %v150 = vld [vmem:[%s0 + $0x20] sm:$0xff]
    %v151 = vld [vmem:[%s0 + $0x28] sm:$0xff]
    %v152 = vld [vmem:[%s0 + $0x30] sm:$0xff]
    %v153 = vld [vmem:[%s0 + $0x38] sm:$0xff]
    %v154 = vld [vmem:[%s0 + $0x40] sm:$0xff]
    %155 = vmatpush.msra.mxu0 %v80
    %156 = vmatpush.msra.mxu0 %v78
    %157 = vmatpush.msra.mxu0 %v76
    %158 = vmatpush.msra.mxu0 %v74
    %159 = vmatpush.msra.mxu0 %v72
    %160 = vmatpush.msra.mxu0 %v70
    %161 = vmatpush.msra.mxu0 %v68
    %162 = vmatpush.msra.mxu0 %v66
    %163 = vmatpush.msra.mxu0 %v64
    %164 = vmatpush.msra.mxu0 %v62
    %165 = vmatpush.msra.mxu0 %v60
    %166 = vmatpush.msra.mxu0 %v58
    %167 = vmatpush.msra.mxu0 %v56
    %168 = vmatpush.msra.mxu0 %v54
    %169 = vmatpush.msra.mxu0 %v52
    %170 = vmatpush.msra.mxu0 %v50
    %171 = vmatmul.f32.gmra.mxu0 %v146
    %v172 = vpop.f32.mrf.mxu0
    %v173 = vadd.f32 0.0, %v172
    %174 = vmatmul.f32.gmra.mxu0 %v149
    %v175 = vpop.f32.mrf.mxu0
    %v176 = vadd.f32 0.0, %v175
    %177 = vmatmul.f32.gmra.mxu0 %v152
    %v178 = vpop.f32.mrf.mxu0
    %v179 = vadd.f32 0.0, %v178
    %180 = vdwg.mxu0
    %181 = vmatpush.msra.mxu0 %v112
    %182 = vmatpush.msra.mxu0 %v110
    %183 = vmatpush.msra.mxu0 %v108
    %184 = vmatpush.msra.mxu0 %v106
    %185 = vmatpush.msra.mxu0 %v104
    %186 = vmatpush.msra.mxu0 %v102
    %187 = vmatpush.msra.mxu0 %v100
    %188 = vmatpush.msra.mxu0 %v98
    %189 = vmatpush.msra.mxu0 %v96
    %190 = vmatpush.msra.mxu0 %v94
    %191 = vmatpush.msra.mxu0 %v92
    %192 = vmatpush.msra.mxu0 %v90
    %193 = vmatpush.msra.mxu0 %v88
    %194 = vmatpush.msra.mxu0 %v86
    %195 = vmatpush.msra.mxu0 %v84
    %196 = vmatpush.msra.mxu0 %v82
    %197 = vmatmul.f32.gmra.mxu0 %v147
    %v198 = vpop.f32.mrf.mxu0
    %v199 = vadd.f32 %v173, %v198
    %200 = vmatmul.f32.gmra.mxu0 %v150
    %v201 = vpop.f32.mrf.mxu0
    %v202 = vadd.f32 %v176, %v201
    %203 = vmatmul.f32.gmra.mxu0 %v153
    %v204 = vpop.f32.mrf.mxu0
    %v205 = vadd.f32 %v179, %v204
    %206 = vdwg.mxu0
    %207 = vmatpush.msra.mxu0 %v144
    %208 = vmatpush.msra.mxu0 %v142
    %209 = vmatpush.msra.mxu0 %v140
    %210 = vmatpush.msra.mxu0 %v138
    %211 = vmatpush.msra.mxu0 %v136
    %212 = vmatpush.msra.mxu0 %v134
    %213 = vmatpush.msra.mxu0 %v132
    %214 = vmatpush.msra.mxu0 %v130
    %215 = vmatpush.msra.mxu0 %v128
    %216 = vmatpush.msra.mxu0 %v126
    %217 = vmatpush.msra.mxu0 %v124
    %218 = vmatpush.msra.mxu0 %v122
    %219 = vmatpush.msra.mxu0 %v120
    %220 = vmatpush.msra.mxu0 %v118
    %221 = vmatpush.msra.mxu0 %v116
    %222 = vmatpush.msra.mxu0 %v114
    %223 = vmatmul.f32.gmra.mxu0 %v148
    %v224 = vpop.f32.mrf.mxu0
    %v225 = vadd.f32 %v199, %v224
    %226 = vmatmul.f32.gmra.mxu0 %v151
    %v227 = vpop.f32.mrf.mxu0
    %v228 = vadd.f32 %v202, %v227
    %229 = vmatmul.f32.gmra.mxu0 %v154
    %v230 = vpop.f32.mrf.mxu0
    %v231 = vadd.f32 %v205, %v230
    %232 = vdwg.mxu0
    %233 = vmatpush.msra.mxu0 %v81
    %234 = vmatpush.msra.mxu0 %v79
    %235 = vmatpush.msra.mxu0 %v77
    %236 = vmatpush.msra.mxu0 %v75
    %237 = vmatpush.msra.mxu0 %v73
    %238 = vmatpush.msra.mxu0 %v71
    %239 = vmatpush.msra.mxu0 %v69
    %240 = vmatpush.msra.mxu0 %v67
    %241 = vmatpush.msra.mxu0 %v65
    %242 = vmatpush.msra.mxu0 %v63
    %243 = vmatpush.msra.mxu0 %v61
    %244 = vmatpush.msra.mxu0 %v59
    %245 = vmatpush.msra.mxu0 %v57
    %246 = vmatpush.msra.mxu0 %v55
    %247 = vmatpush.msra.mxu0 %v53
    %248 = vmatpush.msra.mxu0 %v51
    %249 = vmatmul.f32.gmra.mxu0 %v146
    %v250 = vpop.f32.mrf.mxu0
    %v251 = vadd.f32 0.0, %v250
    %252 = vmatmul.f32.gmra.mxu0 %v149
    %v253 = vpop.f32.mrf.mxu0
    %v254 = vadd.f32 0.0, %v253
    %255 = vmatmul.f32.gmra.mxu0 %v152
    %v256 = vpop.f32.mrf.mxu0
    %v257 = vadd.f32 0.0, %v256
    %258 = vdwg.mxu0
    %259 = vmatpush.msra.mxu0 %v113
    %260 = vmatpush.msra.mxu0 %v111
    %261 = vmatpush.msra.mxu0 %v109
    %262 = vmatpush.msra.mxu0 %v107
    %263 = vmatpush.msra.mxu0 %v105
    %264 = vmatpush.msra.mxu0 %v103
    %265 = vmatpush.msra.mxu0 %v101
    %266 = vmatpush.msra.mxu0 %v99
    %267 = vmatpush.msra.mxu0 %v97
    %268 = vmatpush.msra.mxu0 %v95
    %269 = vmatpush.msra.mxu0 %v93
    %270 = vmatpush.msra.mxu0 %v91
    %271 = vmatpush.msra.mxu0 %v89
    %272 = vmatpush.msra.mxu0 %v87
    %273 = vmatpush.msra.mxu0 %v85
    %274 = vmatpush.msra.mxu0 %v83
    %275 = vmatmul.f32.gmra.mxu0 %v147
    %v276 = vpop.f32.mrf.mxu0
    %v277 = vadd.f32 %v251, %v276
    %278 = vmatmul.f32.gmra.mxu0 %v150
    %v279 = vpop.f32.mrf.mxu0
    %v280 = vadd.f32 %v254, %v279
    %281 = vmatmul.f32.gmra.mxu0 %v153
    %v282 = vpop.f32.mrf.mxu0
    %v283 = vadd.f32 %v257, %v282
    %284 = vdwg.mxu0
    %285 = vmatpush.msra.mxu0 %v145
    %286 = vmatpush.msra.mxu0 %v143
    %287 = vmatpush.msra.mxu0 %v141
    %288 = vmatpush.msra.mxu0 %v139
    %289 = vmatpush.msra.mxu0 %v137
    %290 = vmatpush.msra.mxu0 %v135
    %291 = vmatpush.msra.mxu0 %v133
    %292 = vmatpush.msra.mxu0 %v131
    %293 = vmatpush.msra.mxu0 %v129
    %294 = vmatpush.msra.mxu0 %v127
    %295 = vmatpush.msra.mxu0 %v125
    %296 = vmatpush.msra.mxu0 %v123
    %297 = vmatpush.msra.mxu0 %v121
    %298 = vmatpush.msra.mxu0 %v119
    %299 = vmatpush.msra.mxu0 %v117
    %300 = vmatpush.msra.mxu0 %v115
    %301 = vmatmul.f32.gmra.mxu0 %v148
    %v302 = vpop.f32.mrf.mxu0
    %v303 = vadd.f32 %v277, %v302
    %304 = vmatmul.f32.gmra.mxu0 %v151
    %v305 = vpop.f32.mrf.mxu0
    %v306 = vadd.f32 %v280, %v305
    %307 = vmatmul.f32.gmra.mxu0 %v154
    %v308 = vpop.f32.mrf.mxu0
    %v309 = vadd.f32 %v283, %v308
    %310 = vdwg.mxu0
    %v311 = vld [vmem:[%s1] sm:$0xff]
    %v312 = vld [vmem:[%s1 + $0x8] sm:$0xff]
    %v313 = vld [vmem:[%s1 + $0x10] sm:$0xff]
    %v314 = vld [vmem:[%s1 + $0x18] sm:$0xff]
    %v315 = vld [vmem:[%s1 + $0x20] sm:$0xff]
    %v316 = vld [vmem:[%s1 + $0x28] sm:$0xff]
    %v317 = vld [vmem:[%s1 + $0x30] sm:$0xff]
    %v318 = vld [vmem:[%s1 + $0x38] sm:$0xff]
    %v319 = vld [vmem:[%s1 + $0x40] sm:$0xff]
    %320 = vmatpush.msra.mxu0 %v80
    %321 = vmatpush.msra.mxu0 %v78
    %322 = vmatpush.msra.mxu0 %v76
    %323 = vmatpush.msra.mxu0 %v74
    %324 = vmatpush.msra.mxu0 %v72
    %325 = vmatpush.msra.mxu0 %v70
    %326 = vmatpush.msra.mxu0 %v68
    %327 = vmatpush.msra.mxu0 %v66
    %328 = vmatpush.msra.mxu0 %v64
    %329 = vmatpush.msra.mxu0 %v62
    %330 = vmatpush.msra.mxu0 %v60
    %331 = vmatpush.msra.mxu0 %v58
    %332 = vmatpush.msra.mxu0 %v56
    %333 = vmatpush.msra.mxu0 %v54
    %334 = vmatpush.msra.mxu0 %v52
    %335 = vmatpush.msra.mxu0 %v50
    %336 = vmatmul.f32.gmra.mxu0 %v311
    %v337 = vpop.f32.mrf.mxu0
    %v338 = vadd.f32 0.0, %v337
    %339 = vmatmul.f32.gmra.mxu0 %v314
    %v340 = vpop.f32.mrf.mxu0
    %v341 = vadd.f32 0.0, %v340
    %342 = vmatmul.f32.gmra.mxu0 %v317
    %v343 = vpop.f32.mrf.mxu0
    %v344 = vadd.f32 0.0, %v343
    %345 = vdwg.mxu0
    %346 = vmatpush.msra.mxu0 %v112
    %347 = vmatpush.msra.mxu0 %v110
    %348 = vmatpush.msra.mxu0 %v108
    %349 = vmatpush.msra.mxu0 %v106
    %350 = vmatpush.msra.mxu0 %v104
    %351 = vmatpush.msra.mxu0 %v102
    %352 = vmatpush.msra.mxu0 %v100
    %353 = vmatpush.msra.mxu0 %v98
    %354 = vmatpush.msra.mxu0 %v96
    %355 = vmatpush.msra.mxu0 %v94
    %356 = vmatpush.msra.mxu0 %v92
    %357 = vmatpush.msra.mxu0 %v90
    %358 = vmatpush.msra.mxu0 %v88
    %359 = vmatpush.msra.mxu0 %v86
    %360 = vmatpush.msra.mxu0 %v84
    %361 = vmatpush.msra.mxu0 %v82
    %362 = vmatmul.f32.gmra.mxu0 %v312
    %v363 = vpop.f32.mrf.mxu0
    %v364 = vadd.f32 %v338, %v363
    %365 = vmatmul.f32.gmra.mxu0 %v315
    %v366 = vpop.f32.mrf.mxu0
    %v367 = vadd.f32 %v341, %v366
    %368 = vmatmul.f32.gmra.mxu0 %v318
    %v369 = vpop.f32.mrf.mxu0
    %v370 = vadd.f32 %v344, %v369
    %371 = vdwg.mxu0
    %372 = vmatpush.msra.mxu0 %v144
    %373 = vmatpush.msra.mxu0 %v142
    %374 = vmatpush.msra.mxu0 %v140
    %375 = vmatpush.msra.mxu0 %v138
    %376 = vmatpush.msra.mxu0 %v136
    %377 = vmatpush.msra.mxu0 %v134
    %378 = vmatpush.msra.mxu0 %v132
    %379 = vmatpush.msra.mxu0 %v130
    %380 = vmatpush.msra.mxu0 %v128
    %381 = vmatpush.msra.mxu0 %v126
    %382 = vmatpush.msra.mxu0 %v124
    %383 = vmatpush.msra.mxu0 %v122
    %384 = vmatpush.msra.mxu0 %v120
    %385 = vmatpush.msra.mxu0 %v118
    %386 = vmatpush.msra.mxu0 %v116
    %387 = vmatpush.msra.mxu0 %v114
    %388 = vmatmul.f32.gmra.mxu0 %v313
    %v389 = vpop.f32.mrf.mxu0
    %v390 = vadd.f32 %v364, %v389
    %391 = vmatmul.f32.gmra.mxu0 %v316
    %v392 = vpop.f32.mrf.mxu0
    %v393 = vadd.f32 %v367, %v392
    %394 = vmatmul.f32.gmra.mxu0 %v319
    %v395 = vpop.f32.mrf.mxu0
    %v396 = vadd.f32 %v370, %v395
    %397 = vdwg.mxu0
    %398 = vmatpush.msra.mxu0 %v81
    %399 = vmatpush.msra.mxu0 %v79
    %400 = vmatpush.msra.mxu0 %v77
    %401 = vmatpush.msra.mxu0 %v75
    %402 = vmatpush.msra.mxu0 %v73
    %403 = vmatpush.msra.mxu0 %v71
    %404 = vmatpush.msra.mxu0 %v69
    %405 = vmatpush.msra.mxu0 %v67
    %406 = vmatpush.msra.mxu0 %v65
    %407 = vmatpush.msra.mxu0 %v63
    %408 = vmatpush.msra.mxu0 %v61
    %409 = vmatpush.msra.mxu0 %v59
    %410 = vmatpush.msra.mxu0 %v57
    %411 = vmatpush.msra.mxu0 %v55
    %412 = vmatpush.msra.mxu0 %v53
    %413 = vmatpush.msra.mxu0 %v51
    %414 = vmatmul.f32.gmra.mxu0 %v311
    %v415 = vpop.f32.mrf.mxu0
    %v416 = vadd.f32 0.0, %v415
    %417 = vmatmul.f32.gmra.mxu0 %v314
    %v418 = vpop.f32.mrf.mxu0
    %v419 = vadd.f32 0.0, %v418
    %420 = vmatmul.f32.gmra.mxu0 %v317
    %v421 = vpop.f32.mrf.mxu0
    %v422 = vadd.f32 0.0, %v421
    %423 = vdwg.mxu0
    %424 = vmatpush.msra.mxu0 %v113
    %425 = vmatpush.msra.mxu0 %v111
    %426 = vmatpush.msra.mxu0 %v109
    %427 = vmatpush.msra.mxu0 %v107
    %428 = vmatpush.msra.mxu0 %v105
    %429 = vmatpush.msra.mxu0 %v103
    %430 = vmatpush.msra.mxu0 %v101
    %431 = vmatpush.msra.mxu0 %v99
    %432 = vmatpush.msra.mxu0 %v97
    %433 = vmatpush.msra.mxu0 %v95
    %434 = vmatpush.msra.mxu0 %v93
    %435 = vmatpush.msra.mxu0 %v91
    %436 = vmatpush.msra.mxu0 %v89
    %437 = vmatpush.msra.mxu0 %v87
    %438 = vmatpush.msra.mxu0 %v85
    %439 = vmatpush.msra.mxu0 %v83
    %440 = vmatmul.f32.gmra.mxu0 %v312
    %v441 = vpop.f32.mrf.mxu0
    %v442 = vadd.f32 %v416, %v441
    %443 = vmatmul.f32.gmra.mxu0 %v315
    %v444 = vpop.f32.mrf.mxu0
    %v445 = vadd.f32 %v419, %v444
    %446 = vmatmul.f32.gmra.mxu0 %v318
    %v447 = vpop.f32.mrf.mxu0
    %v448 = vadd.f32 %v422, %v447
    %449 = vdwg.mxu0
    %450 = vmatpush.msra.mxu0 %v145
    %451 = vmatpush.msra.mxu0 %v143
    %452 = vmatpush.msra.mxu0 %v141
    %453 = vmatpush.msra.mxu0 %v139
    %454 = vmatpush.msra.mxu0 %v137
    %455 = vmatpush.msra.mxu0 %v135
    %456 = vmatpush.msra.mxu0 %v133
    %457 = vmatpush.msra.mxu0 %v131
    %458 = vmatpush.msra.mxu0 %v129
    %459 = vmatpush.msra.mxu0 %v127
    %460 = vmatpush.msra.mxu0 %v125
    %461 = vmatpush.msra.mxu0 %v123
    %462 = vmatpush.msra.mxu0 %v121
    %463 = vmatpush.msra.mxu0 %v119
    %464 = vmatpush.msra.mxu0 %v117
    %465 = vmatpush.msra.mxu0 %v115
    %466 = vmatmul.f32.gmra.mxu0 %v313
    %v467 = vpop.f32.mrf.mxu0
    %v468 = vadd.f32 %v442, %v467
    %469 = vmatmul.f32.gmra.mxu0 %v316
    %v470 = vpop.f32.mrf.mxu0
    %v471 = vadd.f32 %v445, %v470
    %472 = vmatmul.f32.gmra.mxu0 %v319
    %v473 = vpop.f32.mrf.mxu0
    %v474 = vadd.f32 %v448, %v473
    %475 = vdwg.mxu0
    %v476 = vmax.f32 %v225, %v390
    %v477 = vmax.f32 %v303, %v468
    %v478 = vmax.f32 %v228, %v393
    %v479 = vmax.f32 %v306, %v471
    %v480 = vmax.f32 %v231, %v396
    %v481 = vmax.f32 %v309, %v474
    %v482 = vld [vmem:[#allocation4] sm:$0x3]
    %v484 = vperm.slane %v482, 0
    %v485 = vperm.slane %v482, 1
    %v488 = vadd.f32 %v476, %v484
    %v489 = vadd.f32 %v477, %v485
    %v490 = vadd.f32 %v478, %v484
    %v491 = vadd.f32 %v479, %v485
    %v492 = vadd.f32 %v480, %v484
    %v493 = vadd.f32 %v481, %v485
    %v494 = vmax.f32 %v488, 0.0
    %v495 = vmax.f32 %v489, 0.0
    %v496 = vmax.f32 %v490, 0.0
    %v497 = vmax.f32 %v491, 0.0
    %v498 = vmax.f32 %v492, 0.0
    %v499 = vmax.f32 %v493, 0.0
    %v500 = vld [vmem:[%s4] sm:$0xff]
    %v501 = vld [vmem:[%s4 + $0x8] sm:$0xff]
    %v502 = vld [vmem:[%s4 + $0x10] sm:$0xff]
    %v503 = vld [vmem:[%s4 + $0x18] sm:$0xff]
    %v504 = vld [vmem:[%s4 + $0x20] sm:$0xff]
    %v505 = vld [vmem:[%s4 + $0x28] sm:$0xff]
    %v506 = vmul.f32 %v494, %v500
    %v507 = vmul.f32 %v495, %v501
    %v508 = vmul.f32 %v496, %v502
    %v509 = vmul.f32 %v497, %v503
    %v510 = vmul.f32 %v498, %v504
    %v511 = vmul.f32 %v499, %v505
    %512 = vst [vmem:[%s5] sm:$0xff] %v506
    %513 = vst [vmem:[%s5 + $0x8] sm:$0xff] %v507
    %514 = vst [vmem:[%s5 + $0x10] sm:$0xff] %v508
    %515 = vst [vmem:[%s5 + $0x18] sm:$0xff] %v509
    %516 = vst [vmem:[%s5 + $0x20] sm:$0xff] %v510
    %517 = vst [vmem:[%s5 + $0x28] sm:$0xff] %v511
    // Predicated region
    $region30: #{msscaeaa_forward.7} parent=1 // pred_check
      _
    $region31: #{msscaeaa_forward.7} parent=1 // pred_check_branch
      %519 = sbr.rel (0) target = $region33
    $region32: #{msscaeaa_forward.7} parent=1 // pred_region
      _
    $region33: #{msscaeaa_forward.7} parent=1 // pred_fallthru
      _
    // Predicated region
    $region34: #{msscaeaa_forward.7} parent=1 // pred_check
      _
    $region35: #{msscaeaa_forward.7} parent=1 // pred_check_branch
      %521 = sbr.rel (0) target = $region37
    $region36: #{msscaeaa_forward.7} parent=1 // pred_region
      _
    $region37: #{msscaeaa_forward.7} parent=1 // pred_fallthru
      _
    %522 = vsyncpa [#allocation3], 1
    %523 = vsyncpa [#allocation5], 1

// kernel: msscaeaa_forward.9
$region0: #{msscaeaa_forward.9}
  #allocation0 [shape = 'u32[]', space=smem, size = 0x4, offset = 0x4, fixed_abs, tag = 'smem constant byte address 0x4 - core index']
  #allocation1 [shape = 'u32[72,128]{1,0:T(1,128)}', space=vmem, size = 0x9000, scoped, tag = 'internal scratch']
  %s0 = inlined_call_operand.vmem [shape: f32[2,1536], index: 0, kind: input, shape index: {}]
  %s1 = inlined_call_operand.hbm [shape: f32[1536,128], index: 1, kind: input, shape index: {}]
  %s2 = inlined_call_operand.hbm [shape: f32[1,128], index: 2, kind: input, shape index: {}]
  %s3 = inlined_call_operand.hbm [shape: f32[2,128], index: 3, kind: output, shape index: {}]
  %s4 = sld [smem:[#allocation0]]
  $region30: #{msscaeaa_forward.9} parent=0
    _
  %s6 = ssub.s32 1, %s4
  %s7 = scalar_select 0, %s6, %s4
  $region1: #{msscaeaa_forward.9} parent=0
    #allocation2 [shape = 'u8[786432]{0}', space=vmem, size = 0xc0000, scoped, tag = 'input window, operand 1, single buffered']
    #allocation3 [shape = 's32[1]{0}', space=sflag, size = 0x4, scoped, tag = 'scoped memory for msscaeaa_forward.9']
    #allocation4 [shape = 's32[1]{0}', space=sflag, size = 0x4, scoped, tag = 'scoped memory for msscaeaa_forward.9']
    #allocation5 [shape = 'u8[512]{0}', space=vmem, size = 0x400, scoped, tag = 'input window, operand 2, single buffered']
    #allocation6 [shape = 's32[1]{0}', space=sflag, size = 0x4, scoped, tag = 'scoped memory for msscaeaa_forward.9']
    #allocation7 [shape = 'u8[1024]{0}', space=vmem, size = 0x400, scoped, tag = 'output window, operand 0, single buffered']
    %8 = vsyncpa [#allocation3], 0
    %9 = vsyncpa [#allocation6], 0
    %10 = vsyncpa [#allocation4], 0
    // Predicated region
    $region2: #{msscaeaa_forward.9} parent=1 // pred_check
      _
    $region3: #{msscaeaa_forward.9} parent=1 // pred_check_branch
      %12 = sbr.rel (0) target = $region5
    $region4: #{msscaeaa_forward.9} parent=1 // pred_region
      _
    $region5: #{msscaeaa_forward.9} parent=1 // pred_fallthru
      _
    // Predicated region
    $region6: #{msscaeaa_forward.9} parent=1 // pred_check
      _
    $region7: #{msscaeaa_forward.9} parent=1 // pred_check_branch
      %14 = sbr.rel (0) target = $region9
    $region8: #{msscaeaa_forward.9} parent=1 // pred_region
      %16 = vsyncadd [#allocation3], 0
      %s17 = sshll.u32 %s1, 4
      %s18 = int_to_ptr.hbm [resolvable:$true] %s17
      %s19 = sshll.u32 [#allocation2], 4
      %s20 = int_to_ptr.vmem [resolvable:$true] %s19
      %25 = dma.hbm_to_vmem [thread:$0]  %s18, 24576, %s20, [#allocation3], 128, 128, 8
    $region9: #{msscaeaa_forward.9} parent=1 // pred_fallthru
      _
    // Predicated region
    $region10: #{msscaeaa_forward.9} parent=1 // pred_check
      _
    $region11: #{msscaeaa_forward.9} parent=1 // pred_check_branch
      %27 = sbr.rel (0) target = $region13
    $region12: #{msscaeaa_forward.9} parent=1 // pred_region
      %29 = vsyncadd [#allocation6], 0
      %s31 = sshll.u32 %s2, 4
      %s32 = int_to_ptr.hbm [resolvable:$true] %s31
      %s33 = sshll.u32 [#allocation5], 4
      %s34 = int_to_ptr.vmem [resolvable:$true] %s33
      %36 = dma.hbm_to_vmem [thread:$0]  %s32, 16, %s34, [#allocation6]
    $region13: #{msscaeaa_forward.9} parent=1 // pred_fallthru
      _
    // Predicated region
    $region14: #{msscaeaa_forward.9} parent=1 // pred_check
      _
    $region15: #{msscaeaa_forward.9} parent=1 // pred_check_branch
      %38 = sbr.rel (0) target = $region17
    $region16: #{msscaeaa_forward.9} parent=1 // pred_region
      %40 = dma.done [#allocation3], 24576
    $region17: #{msscaeaa_forward.9} parent=1 // pred_fallthru
      _
    // Predicated region
    $region18: #{msscaeaa_forward.9} parent=1 // pred_check
      _
    $region19: #{msscaeaa_forward.9} parent=1 // pred_check_branch
      %42 = sbr.rel (0) target = $region21
    $region20: #{msscaeaa_forward.9} parent=1 // pred_region
      %44 = dma.done [#allocation6], 16
    $region21: #{msscaeaa_forward.9} parent=1 // pred_fallthru
      _
    %v45 = vld [vmem:[%s0] sm:$0xff]
    %v46 = vld [vmem:[%s0 + $0x8] sm:$0xff]
    %v47 = vld [vmem:[%s0 + $0x10] sm:$0xff]
    %v48 = vld [vmem:[#allocation2] sm:$0xff]
    %v49 = vld [vmem:[#allocation2 + $0x8] sm:$0xff]
    %v50 = vld [vmem:[#allocation2 + $0x10] sm:$0xff]
    %v51 = vld [vmem:[#allocation2 + $0x18] sm:$0xff]
    %v52 = vld [vmem:[#allocation2 + $0x20] sm:$0xff]
    %v53 = vld [vmem:[#allocation2 + $0x28] sm:$0xff]
    %v54 = vld [vmem:[#allocation2 + $0x30] sm:$0xff]
    %v55 = vld [vmem:[#allocation2 + $0x38] sm:$0xff]
    %v56 = vld [vmem:[#allocation2 + $0x40] sm:$0xff]
    %v57 = vld [vmem:[#allocation2 + $0x48] sm:$0xff]
    %v58 = vld [vmem:[#allocation2 + $0x50] sm:$0xff]
    %v59 = vld [vmem:[#allocation2 + $0x58] sm:$0xff]
    %v60 = vld [vmem:[#allocation2 + $0x60] sm:$0xff]
    %v61 = vld [vmem:[#allocation2 + $0x68] sm:$0xff]
    %v62 = vld [vmem:[#allocation2 + $0x70] sm:$0xff]
    %v63 = vld [vmem:[#allocation2 + $0x78] sm:$0xff]
    %v64 = vld [vmem:[#allocation2 + $0x80] sm:$0xff]
    %v65 = vld [vmem:[#allocation2 + $0x88] sm:$0xff]
    %v66 = vld [vmem:[#allocation2 + $0x90] sm:$0xff]
    %v67 = vld [vmem:[#allocation2 + $0x98] sm:$0xff]
    %v68 = vld [vmem:[#allocation2 + $0xa0] sm:$0xff]
    %v69 = vld [vmem:[#allocation2 + $0xa8] sm:$0xff]
    %v70 = vld [vmem:[#allocation2 + $0xb0] sm:$0xff]
    %v71 = vld [vmem:[#allocation2 + $0xb8] sm:$0xff]
    %v72 = vld [vmem:[#allocation2 + $0xc0] sm:$0xff]
    %v73 = vld [vmem:[#allocation2 + $0xc8] sm:$0xff]
    %v74 = vld [vmem:[#allocation2 + $0xd0] sm:$0xff]
    %v75 = vld [vmem:[#allocation2 + $0xd8] sm:$0xff]
    %v76 = vld [vmem:[#allocation2 + $0xe0] sm:$0xff]
    %v77 = vld [vmem:[#allocation2 + $0xe8] sm:$0xff]
    %v78 = vld [vmem:[#allocation2 + $0xf0] sm:$0xff]
    %v79 = vld [vmem:[#allocation2 + $0xf8] sm:$0xff]
    %v80 = vld [vmem:[#allocation2 + $0x100] sm:$0xff]
    %v81 = vld [vmem:[#allocation2 + $0x108] sm:$0xff]
    %v82 = vld [vmem:[#allocation2 + $0x110] sm:$0xff]
    %v83 = vld [vmem:[#allocation2 + $0x118] sm:$0xff]
    %v84 = vld [vmem:[#allocation2 + $0x120] sm:$0xff]
    %v85 = vld [vmem:[#allocation2 + $0x128] sm:$0xff]
    %v86 = vld [vmem:[#allocation2 + $0x130] sm:$0xff]
    %v87 = vld [vmem:[#allocation2 + $0x138] sm:$0xff]
    %v88 = vld [vmem:[#allocation2 + $0x140] sm:$0xff]
    %v89 = vld [vmem:[#allocation2 + $0x148] sm:$0xff]
    %v90 = vld [vmem:[#allocation2 + $0x150] sm:$0xff]
    %v91 = vld [vmem:[#allocation2 + $0x158] sm:$0xff]
    %v92 = vld [vmem:[#allocation2 + $0x160] sm:$0xff]
    %v93 = vld [vmem:[#allocation2 + $0x168] sm:$0xff]
    %v94 = vld [vmem:[#allocation2 + $0x170] sm:$0xff]
    %v95 = vld [vmem:[#allocation2 + $0x178] sm:$0xff]
    %v96 = vld [vmem:[#allocation2 + $0x180] sm:$0xff]
    %v97 = vld [vmem:[#allocation2 + $0x188] sm:$0xff]
    %v98 = vld [vmem:[#allocation2 + $0x190] sm:$0xff]
    %v99 = vld [vmem:[#allocation2 + $0x198] sm:$0xff]
    %v100 = vld [vmem:[#allocation2 + $0x1a0] sm:$0xff]
    %v101 = vld [vmem:[#allocation2 + $0x1a8] sm:$0xff]
    %v102 = vld [vmem:[#allocation2 + $0x1b0] sm:$0xff]
    %v103 = vld [vmem:[#allocation2 + $0x1b8] sm:$0xff]
    %v104 = vld [vmem:[#allocation2 + $0x1c0] sm:$0xff]
    %v105 = vld [vmem:[#allocation2 + $0x1c8] sm:$0xff]
    %v106 = vld [vmem:[#allocation2 + $0x1d0] sm:$0xff]
    %v107 = vld [vmem:[#allocation2 + $0x1d8] sm:$0xff]
    %v108 = vld [vmem:[#allocation2 + $0x1e0] sm:$0xff]
    %v109 = vld [vmem:[#allocation2 + $0x1e8] sm:$0xff]
    %v110 = vld [vmem:[#allocation2 + $0x1f0] sm:$0xff]
    %v111 = vld [vmem:[#allocation2 + $0x1f8] sm:$0xff]
    %v112 = vld [vmem:[#allocation2 + $0x200] sm:$0xff]
    %v113 = vld [vmem:[#allocation2 + $0x208] sm:$0xff]
    %v114 = vld [vmem:[#allocation2 + $0x210] sm:$0xff]
    %v115 = vld [vmem:[#allocation2 + $0x218] sm:$0xff]
    %v116 = vld [vmem:[#allocation2 + $0x220] sm:$0xff]
    %v117 = vld [vmem:[#allocation2 + $0x228] sm:$0xff]
    %v118 = vld [vmem:[#allocation2 + $0x230] sm:$0xff]
    %v119 = vld [vmem:[#allocation2 + $0x238] sm:$0xff]
    %v120 = vld [vmem:[#allocation2 + $0x240] sm:$0xff]
    %v121 = vld [vmem:[#allocation2 + $0x248] sm:$0xff]
    %v122 = vld [vmem:[#allocation2 + $0x250] sm:$0xff]
    %v123 = vld [vmem:[#allocation2 + $0x258] sm:$0xff]
    %v124 = vld [vmem:[#allocation2 + $0x260] sm:$0xff]
    %v125 = vld [vmem:[#allocation2 + $0x268] sm:$0xff]
    %v126 = vld [vmem:[#allocation2 + $0x270] sm:$0xff]
    %v127 = vld [vmem:[#allocation2 + $0x278] sm:$0xff]
    %v128 = vld [vmem:[#allocation2 + $0x280] sm:$0xff]
    %v129 = vld [vmem:[#allocation2 + $0x288] sm:$0xff]
    %v130 = vld [vmem:[#allocation2 + $0x290] sm:$0xff]
    %v131 = vld [vmem:[#allocation2 + $0x298] sm:$0xff]
    %v132 = vld [vmem:[#allocation2 + $0x2a0] sm:$0xff]
    %v133 = vld [vmem:[#allocation2 + $0x2a8] sm:$0xff]
    %v134 = vld [vmem:[#allocation2 + $0x2b0] sm:$0xff]
    %v135 = vld [vmem:[#allocation2 + $0x2b8] sm:$0xff]
    %v136 = vld [vmem:[#allocation2 + $0x2c0] sm:$0xff]
    %v137 = vld [vmem:[#allocation2 + $0x2c8] sm:$0xff]
    %v138 = vld [vmem:[#allocation2 + $0x2d0] sm:$0xff]
    %v139 = vld [vmem:[#allocation2 + $0x2d8] sm:$0xff]
    %v140 = vld [vmem:[#allocation2 + $0x2e0] sm:$0xff]
    %v141 = vld [vmem:[#allocation2 + $0x2e8] sm:$0xff]
    %v142 = vld [vmem:[#allocation2 + $0x2f0] sm:$0xff]
    %v143 = vld [vmem:[#allocation2 + $0x2f8] sm:$0xff]
    %v144 = vld [vmem:[#allocation2 + $0x300] sm:$0xff]
    %v145 = vld [vmem:[#allocation2 + $0x308] sm:$0xff]
    %v146 = vld [vmem:[#allocation2 + $0x310] sm:$0xff]
    %v147 = vld [vmem:[#allocation2 + $0x318] sm:$0xff]
    %v148 = vld [vmem:[#allocation2 + $0x320] sm:$0xff]
    %v149 = vld [vmem:[#allocation2 + $0x328] sm:$0xff]
    %v150 = vld [vmem:[#allocation2 + $0x330] sm:$0xff]
    %v151 = vld [vmem:[#allocation2 + $0x338] sm:$0xff]
    %v152 = vld [vmem:[#allocation2 + $0x340] sm:$0xff]
    %v153 = vld [vmem:[#allocation2 + $0x348] sm:$0xff]
    %v154 = vld [vmem:[#allocation2 + $0x350] sm:$0xff]
    %v155 = vld [vmem:[#allocation2 + $0x358] sm:$0xff]
    %v156 = vld [vmem:[#allocation2 + $0x360] sm:$0xff]
    %v157 = vld [vmem:[#allocation2 + $0x368] sm:$0xff]
    %v158 = vld [vmem:[#allocation2 + $0x370] sm:$0xff]
    %v159 = vld [vmem:[#allocation2 + $0x378] sm:$0xff]
    %v160 = vld [vmem:[#allocation2 + $0x380] sm:$0xff]
    %v161 = vld [vmem:[#allocation2 + $0x388] sm:$0xff]
    %v162 = vld [vmem:[#allocation2 + $0x390] sm:$0xff]
    %v163 = vld [vmem:[#allocation2 + $0x398] sm:$0xff]
    %v164 = vld [vmem:[#allocation2 + $0x3a0] sm:$0xff]
    %v165 = vld [vmem:[#allocation2 + $0x3a8] sm:$0xff]
    %v166 = vld [vmem:[#allocation2 + $0x3b0] sm:$0xff]
    %v167 = vld [vmem:[#allocation2 + $0x3b8] sm:$0xff]
    %v168 = vld [vmem:[#allocation2 + $0x3c0] sm:$0xff]
    %v169 = vld [vmem:[#allocation2 + $0x3c8] sm:$0xff]
    %v170 = vld [vmem:[#allocation2 + $0x3d0] sm:$0xff]
    %v171 = vld [vmem:[#allocation2 + $0x3d8] sm:$0xff]
    %v172 = vld [vmem:[#allocation2 + $0x3e0] sm:$0xff]
    %v173 = vld [vmem:[#allocation2 + $0x3e8] sm:$0xff]
    %v174 = vld [vmem:[#allocation2 + $0x3f0] sm:$0xff]
    %v175 = vld [vmem:[#allocation2 + $0x3f8] sm:$0xff]
    %v176 = vld [vmem:[#allocation2 + $0x400] sm:$0xff]
    %v177 = vld [vmem:[#allocation2 + $0x408] sm:$0xff]
    %v178 = vld [vmem:[#allocation2 + $0x410] sm:$0xff]
    %v179 = vld [vmem:[#allocation2 + $0x418] sm:$0xff]
    %v180 = vld [vmem:[#allocation2 + $0x420] sm:$0xff]
    %v181 = vld [vmem:[#allocation2 + $0x428] sm:$0xff]
    %v182 = vld [vmem:[#allocation2 + $0x430] sm:$0xff]
    %v183 = vld [vmem:[#allocation2 + $0x438] sm:$0xff]
    %v184 = vld [vmem:[#allocation2 + $0x440] sm:$0xff]
    %v185 = vld [vmem:[#allocation2 + $0x448] sm:$0xff]
    %v186 = vld [vmem:[#allocation2 + $0x450] sm:$0xff]
    %v187 = vld [vmem:[#allocation2 + $0x458] sm:$0xff]
    %v188 = vld [vmem:[#allocation2 + $0x460] sm:$0xff]
    %v189 = vld [vmem:[#allocation2 + $0x468] sm:$0xff]
    %v190 = vld [vmem:[#allocation2 + $0x470] sm:$0xff]
    %v191 = vld [vmem:[#allocation2 + $0x478] sm:$0xff]
    %v192 = vld [vmem:[#allocation2 + $0x480] sm:$0xff]
    %v193 = vld [vmem:[#allocation2 + $0x488] sm:$0xff]
    %v194 = vld [vmem:[#allocation2 + $0x490] sm:$0xff]
    %v195 = vld [vmem:[#allocation2 + $0x498] sm:$0xff]
    %v196 = vld [vmem:[#allocation2 + $0x4a0] sm:$0xff]
    %v197 = vld [vmem:[#allocation2 + $0x4a8] sm:$0xff]
    %v198 = vld [vmem:[#allocation2 + $0x4b0] sm:$0xff]
    %v199 = vld [vmem:[#allocation2 + $0x4b8] sm:$0xff]
    %v200 = vld [vmem:[#allocation2 + $0x4c0] sm:$0xff]
    %v201 = vld [vmem:[#allocation2 + $0x4c8] sm:$0xff]
    %v202 = vld [vmem:[#allocation2 + $0x4d0] sm:$0xff]
    %v203 = vld [vmem:[#allocation2 + $0x4d8] sm:$0xff]
    %v204 = vld [vmem:[#allocation2 + $0x4e0] sm:$0xff]
    %v205 = vld [vmem:[#allocation2 + $0x4e8] sm:$0xff]
    %v206 = vld [vmem:[#allocation2 + $0x4f0] sm:$0xff]
    %v207 = vld [vmem:[#allocation2 + $0x4f8] sm:$0xff]
    %v208 = vld [vmem:[#allocation2 + $0x500] sm:$0xff]
    %v209 = vld [vmem:[#allocation2 + $0x508] sm:$0xff]
    %v210 = vld [vmem:[#allocation2 + $0x510] sm:$0xff]
    %v211 = vld [vmem:[#allocation2 + $0x518] sm:$0xff]
    %v212 = vld [vmem:[#allocation2 + $0x520] sm:$0xff]
    %v213 = vld [vmem:[#allocation2 + $0x528] sm:$0xff]
    %v214 = vld [vmem:[#allocation2 + $0x530] sm:$0xff]
    %v215 = vld [vmem:[#allocation2 + $0x538] sm:$0xff]
    %v216 = vld [vmem:[#allocation2 + $0x540] sm:$0xff]
    %v217 = vld [vmem:[#allocation2 + $0x548] sm:$0xff]
    %v218 = vld [vmem:[#allocation2 + $0x550] sm:$0xff]
    %v219 = vld [vmem:[#allocation2 + $0x558] sm:$0xff]
    %v220 = vld [vmem:[#allocation2 + $0x560] sm:$0xff]
    %v221 = vld [vmem:[#allocation2 + $0x568] sm:$0xff]
    %v222 = vld [vmem:[#allocation2 + $0x570] sm:$0xff]
    %v223 = vld [vmem:[#allocation2 + $0x578] sm:$0xff]
    %v224 = vld [vmem:[#allocation2 + $0x580] sm:$0xff]
    %v225 = vld [vmem:[#allocation2 + $0x588] sm:$0xff]
    %v226 = vld [vmem:[#allocation2 + $0x590] sm:$0xff]
    %v227 = vld [vmem:[#allocation2 + $0x598] sm:$0xff]
    %v228 = vld [vmem:[#allocation2 + $0x5a0] sm:$0xff]
    %v229 = vld [vmem:[#allocation2 + $0x5a8] sm:$0xff]
    %v230 = vld [vmem:[#allocation2 + $0x5b0] sm:$0xff]
    %v231 = vld [vmem:[#allocation2 + $0x5b8] sm:$0xff]
    %v232 = vld [vmem:[#allocation2 + $0x5c0] sm:$0xff]
    %v233 = vld [vmem:[#allocation2 + $0x5c8] sm:$0xff]
    %v234 = vld [vmem:[#allocation2 + $0x5d0] sm:$0xff]
    %v235 = vld [vmem:[#allocation2 + $0x5d8] sm:$0xff]
    %v236 = vld [vmem:[#allocation2 + $0x5e0] sm:$0xff]
    %v237 = vld [vmem:[#allocation2 + $0x5e8] sm:$0xff]
    %v238 = vld [vmem:[#allocation2 + $0x5f0] sm:$0xff]
    %v239 = vld [vmem:[#allocation2 + $0x5f8] sm:$0xff]
    %v240 = vld [vmem:[#allocation5] sm:$0x1]
    %v242 = vperm.slane %v240, 0
    %247 = vst [vmem:[#allocation1] ss:$4 sm:$0xff] %v45
    %s248 = scalar_lea.vmem [#allocation1], 32
    %249 = vst [vmem:[%s248] ss:$4 sm:$0xff] %v46
    %v250 = vld.sshfl [vmem:[#allocation1] sm:$0xff pattern:$0x73625140]
    %v251 = vld.sshfl [vmem:[#allocation1 + $0x8] sm:$0xff pattern:$0x73625140]
    %v252 = vld.sshfl [vmem:[#allocation1 + $0x10] sm:$0xff pattern:$0x73625140]
    %v253 = vld.sshfl [vmem:[#allocation1 + $0x18] sm:$0xff pattern:$0x73625140]
    %v254 = vld.sshfl [vmem:[#allocation1 + $0x20] sm:$0xff pattern:$0x73625140]
    %v255 = vld.sshfl [vmem:[#allocation1 + $0x28] sm:$0xff pattern:$0x73625140]
    %v256 = vld.sshfl [vmem:[#allocation1 + $0x30] sm:$0xff pattern:$0x73625140]
    %v257 = vld.sshfl [vmem:[#allocation1 + $0x38] sm:$0xff pattern:$0x73625140]
    %258 = vst [vmem:[#allocation1] ss:$4 sm:$0xff] %v47
    %v259 = vld.sshfl [vmem:[#allocation1] sm:$0xff pattern:$0x73625140]
    %v260 = vld.sshfl [vmem:[#allocation1 + $0x8] sm:$0xff pattern:$0x73625140]
    %v261 = vld.sshfl [vmem:[#allocation1 + $0x10] sm:$0xff pattern:$0x73625140]
    %v262 = vld.sshfl [vmem:[#allocation1 + $0x18] sm:$0xff pattern:$0x73625140]
    %275 = vmatpush.msra.mxu0 %v63
    %276 = vmatpush.msra.mxu0 %v62
    %277 = vmatpush.msra.mxu0 %v61
    %278 = vmatpush.msra.mxu0 %v60
    %279 = vmatpush.msra.mxu0 %v59
    %280 = vmatpush.msra.mxu0 %v58
    %281 = vmatpush.msra.mxu0 %v57
    %282 = vmatpush.msra.mxu0 %v56
    %283 = vmatpush.msra.mxu0 %v55
    %284 = vmatpush.msra.mxu0 %v54
    %285 = vmatpush.msra.mxu0 %v53
    %286 = vmatpush.msra.mxu0 %v52
    %287 = vmatpush.msra.mxu0 %v51
    %288 = vmatpush.msra.mxu0 %v50
    %289 = vmatpush.msra.mxu0 %v49
    %290 = vmatpush.msra.mxu0 %v48
    %291 = vmatmul.f32.gmra.mxu0 %v250
    %v292 = vpop.f32.mrf.mxu0
    %v293 = vadd.f32 %v242, %v292
    %294 = vdwg.mxu0
    %295 = vmatpush.msra.mxu0 %v79
    %296 = vmatpush.msra.mxu0 %v78
    %297 = vmatpush.msra.mxu0 %v77
    %298 = vmatpush.msra.mxu0 %v76
    %299 = vmatpush.msra.mxu0 %v75
    %300 = vmatpush.msra.mxu0 %v74
    %301 = vmatpush.msra.mxu0 %v73
    %302 = vmatpush.msra.mxu0 %v72
    %303 = vmatpush.msra.mxu0 %v71
    %304 = vmatpush.msra.mxu0 %v70
    %305 = vmatpush.msra.mxu0 %v69
    %306 = vmatpush.msra.mxu0 %v68
    %307 = vmatpush.msra.mxu0 %v67
    %308 = vmatpush.msra.mxu0 %v66
    %309 = vmatpush.msra.mxu0 %v65
    %310 = vmatpush.msra.mxu0 %v64
    %311 = vmatmul.f32.gmra.mxu0 %v251
    %v312 = vpop.f32.mrf.mxu0
    %v313 = vadd.f32 %v293, %v312
    %314 = vdwg.mxu0
    %315 = vmatpush.msra.mxu0 %v95
    %316 = vmatpush.msra.mxu0 %v94
    %317 = vmatpush.msra.mxu0 %v93
    %318 = vmatpush.msra.mxu0 %v92
    %319 = vmatpush.msra.mxu0 %v91
    %320 = vmatpush.msra.mxu0 %v90
    %321 = vmatpush.msra.mxu0 %v89
    %322 = vmatpush.msra.mxu0 %v88
    %323 = vmatpush.msra.mxu0 %v87
    %324 = vmatpush.msra.mxu0 %v86
    %325 = vmatpush.msra.mxu0 %v85
    %326 = vmatpush.msra.mxu0 %v84
    %327 = vmatpush.msra.mxu0 %v83
    %328 = vmatpush.msra.mxu0 %v82
    %329 = vmatpush.msra.mxu0 %v81
    %330 = vmatpush.msra.mxu0 %v80
    %331 = vmatmul.f32.gmra.mxu0 %v252
    %v332 = vpop.f32.mrf.mxu0
    %v333 = vadd.f32 %v313, %v332
    %334 = vdwg.mxu0
    %335 = vmatpush.msra.mxu0 %v111
    %336 = vmatpush.msra.mxu0 %v110
    %337 = vmatpush.msra.mxu0 %v109
    %338 = vmatpush.msra.mxu0 %v108
    %339 = vmatpush.msra.mxu0 %v107
    %340 = vmatpush.msra.mxu0 %v106
    %341 = vmatpush.msra.mxu0 %v105
    %342 = vmatpush.msra.mxu0 %v104
    %343 = vmatpush.msra.mxu0 %v103
    %344 = vmatpush.msra.mxu0 %v102
    %345 = vmatpush.msra.mxu0 %v101
    %346 = vmatpush.msra.mxu0 %v100
    %347 = vmatpush.msra.mxu0 %v99
    %348 = vmatpush.msra.mxu0 %v98
    %349 = vmatpush.msra.mxu0 %v97
    %350 = vmatpush.msra.mxu0 %v96
    %351 = vmatmul.f32.gmra.mxu0 %v253
    %v352 = vpop.f32.mrf.mxu0
    %v353 = vadd.f32 %v333, %v352
    %354 = vdwg.mxu0
    %355 = vmatpush.msra.mxu0 %v127
    %356 = vmatpush.msra.mxu0 %v126
    %357 = vmatpush.msra.mxu0 %v125
    %358 = vmatpush.msra.mxu0 %v124
    %359 = vmatpush.msra.mxu0 %v123
    %360 = vmatpush.msra.mxu0 %v122
    %361 = vmatpush.msra.mxu0 %v121
    %362 = vmatpush.msra.mxu0 %v120
    %363 = vmatpush.msra.mxu0 %v119
    %364 = vmatpush.msra.mxu0 %v118
    %365 = vmatpush.msra.mxu0 %v117
    %366 = vmatpush.msra.mxu0 %v116
    %367 = vmatpush.msra.mxu0 %v115
    %368 = vmatpush.msra.mxu0 %v114
    %369 = vmatpush.msra.mxu0 %v113
    %370 = vmatpush.msra.mxu0 %v112
    %371 = vmatmul.f32.gmra.mxu0 %v254
    %v372 = vpop.f32.mrf.mxu0
    %v373 = vadd.f32 %v353, %v372
    %374 = vdwg.mxu0
    %375 = vmatpush.msra.mxu0 %v143
    %376 = vmatpush.msra.mxu0 %v142
    %377 = vmatpush.msra.mxu0 %v141
    %378 = vmatpush.msra.mxu0 %v140
    %379 = vmatpush.msra.mxu0 %v139
    %380 = vmatpush.msra.mxu0 %v138
    %381 = vmatpush.msra.mxu0 %v137
    %382 = vmatpush.msra.mxu0 %v136
    %383 = vmatpush.msra.mxu0 %v135
    %384 = vmatpush.msra.mxu0 %v134
    %385 = vmatpush.msra.mxu0 %v133
    %386 = vmatpush.msra.mxu0 %v132
    %387 = vmatpush.msra.mxu0 %v131
    %388 = vmatpush.msra.mxu0 %v130
    %389 = vmatpush.msra.mxu0 %v129
    %390 = vmatpush.msra.mxu0 %v128
    %391 = vmatmul.f32.gmra.mxu0 %v255
    %v392 = vpop.f32.mrf.mxu0
    %v393 = vadd.f32 %v373, %v392
    %394 = vdwg.mxu0
    %395 = vmatpush.msra.mxu0 %v159
    %396 = vmatpush.msra.mxu0 %v158
    %397 = vmatpush.msra.mxu0 %v157
    %398 = vmatpush.msra.mxu0 %v156
    %399 = vmatpush.msra.mxu0 %v155
    %400 = vmatpush.msra.mxu0 %v154
    %401 = vmatpush.msra.mxu0 %v153
    %402 = vmatpush.msra.mxu0 %v152
    %403 = vmatpush.msra.mxu0 %v151
    %404 = vmatpush.msra.mxu0 %v150
    %405 = vmatpush.msra.mxu0 %v149
    %406 = vmatpush.msra.mxu0 %v148
    %407 = vmatpush.msra.mxu0 %v147
    %408 = vmatpush.msra.mxu0 %v146
    %409 = vmatpush.msra.mxu0 %v145
    %410 = vmatpush.msra.mxu0 %v144
    %411 = vmatmul.f32.gmra.mxu0 %v256
    %v412 = vpop.f32.mrf.mxu0
    %v413 = vadd.f32 %v393, %v412
    %414 = vdwg.mxu0
    %415 = vmatpush.msra.mxu0 %v175
    %416 = vmatpush.msra.mxu0 %v174
    %417 = vmatpush.msra.mxu0 %v173
    %418 = vmatpush.msra.mxu0 %v172
    %419 = vmatpush.msra.mxu0 %v171
    %420 = vmatpush.msra.mxu0 %v170
    %421 = vmatpush.msra.mxu0 %v169
    %422 = vmatpush.msra.mxu0 %v168
    %423 = vmatpush.msra.mxu0 %v167
    %424 = vmatpush.msra.mxu0 %v166
    %425 = vmatpush.msra.mxu0 %v165
    %426 = vmatpush.msra.mxu0 %v164
    %427 = vmatpush.msra.mxu0 %v163
    %428 = vmatpush.msra.mxu0 %v162
    %429 = vmatpush.msra.mxu0 %v161
    %430 = vmatpush.msra.mxu0 %v160
    %431 = vmatmul.f32.gmra.mxu0 %v257
    %v432 = vpop.f32.mrf.mxu0
    %v433 = vadd.f32 %v413, %v432
    %434 = vdwg.mxu0
    %435 = vmatpush.msra.mxu0 %v191
    %436 = vmatpush.msra.mxu0 %v190
    %437 = vmatpush.msra.mxu0 %v189
    %438 = vmatpush.msra.mxu0 %v188
    %439 = vmatpush.msra.mxu0 %v187
    %440 = vmatpush.msra.mxu0 %v186
    %441 = vmatpush.msra.mxu0 %v185
    %442 = vmatpush.msra.mxu0 %v184
    %443 = vmatpush.msra.mxu0 %v183
    %444 = vmatpush.msra.mxu0 %v182
    %445 = vmatpush.msra.mxu0 %v181
    %446 = vmatpush.msra.mxu0 %v180
    %447 = vmatpush.msra.mxu0 %v179
    %448 = vmatpush.msra.mxu0 %v178
    %449 = vmatpush.msra.mxu0 %v177
    %450 = vmatpush.msra.mxu0 %v176
    %451 = vmatmul.f32.gmra.mxu0 %v259
    %v452 = vpop.f32.mrf.mxu0
    %v453 = vadd.f32 %v433, %v452
    %454 = vdwg.mxu0
    %455 = vmatpush.msra.mxu0 %v207
    %456 = vmatpush.msra.mxu0 %v206
    %457 = vmatpush.msra.mxu0 %v205
    %458 = vmatpush.msra.mxu0 %v204
    %459 = vmatpush.msra.mxu0 %v203
    %460 = vmatpush.msra.mxu0 %v202
    %461 = vmatpush.msra.mxu0 %v201
    %462 = vmatpush.msra.mxu0 %v200
    %463 = vmatpush.msra.mxu0 %v199
    %464 = vmatpush.msra.mxu0 %v198
    %465 = vmatpush.msra.mxu0 %v197
    %466 = vmatpush.msra.mxu0 %v196
    %467 = vmatpush.msra.mxu0 %v195
    %468 = vmatpush.msra.mxu0 %v194
    %469 = vmatpush.msra.mxu0 %v193
    %470 = vmatpush.msra.mxu0 %v192
    %471 = vmatmul.f32.gmra.mxu0 %v260
    %v472 = vpop.f32.mrf.mxu0
    %v473 = vadd.f32 %v453, %v472
    %474 = vdwg.mxu0
    %475 = vmatpush.msra.mxu0 %v223
    %476 = vmatpush.msra.mxu0 %v222
    %477 = vmatpush.msra.mxu0 %v221
    %478 = vmatpush.msra.mxu0 %v220
    %479 = vmatpush.msra.mxu0 %v219
    %480 = vmatpush.msra.mxu0 %v218
    %481 = vmatpush.msra.mxu0 %v217
    %482 = vmatpush.msra.mxu0 %v216
    %483 = vmatpush.msra.mxu0 %v215
    %484 = vmatpush.msra.mxu0 %v214
    %485 = vmatpush.msra.mxu0 %v213
    %486 = vmatpush.msra.mxu0 %v212
    %487 = vmatpush.msra.mxu0 %v211
    %488 = vmatpush.msra.mxu0 %v210
    %489 = vmatpush.msra.mxu0 %v209
    %490 = vmatpush.msra.mxu0 %v208
    %491 = vmatmul.f32.gmra.mxu0 %v261
    %v492 = vpop.f32.mrf.mxu0
    %v493 = vadd.f32 %v473, %v492
    %494 = vdwg.mxu0
    %495 = vmatpush.msra.mxu0 %v239
    %496 = vmatpush.msra.mxu0 %v238
    %497 = vmatpush.msra.mxu0 %v237
    %498 = vmatpush.msra.mxu0 %v236
    %499 = vmatpush.msra.mxu0 %v235
    %500 = vmatpush.msra.mxu0 %v234
    %501 = vmatpush.msra.mxu0 %v233
    %502 = vmatpush.msra.mxu0 %v232
    %503 = vmatpush.msra.mxu0 %v231
    %504 = vmatpush.msra.mxu0 %v230
    %505 = vmatpush.msra.mxu0 %v229
    %506 = vmatpush.msra.mxu0 %v228
    %507 = vmatpush.msra.mxu0 %v227
    %508 = vmatpush.msra.mxu0 %v226
    %509 = vmatpush.msra.mxu0 %v225
    %510 = vmatpush.msra.mxu0 %v224
    %511 = vmatmul.f32.gmra.mxu0 %v262
    %v512 = vpop.f32.mrf.mxu0
    %v513 = vadd.f32 %v493, %v512
    %514 = vdwg.mxu0
    %515 = vst [vmem:[#allocation7] sm:$0x3] %v513
    // Predicated region
    $region22: #{msscaeaa_forward.9} parent=1 // pred_check
      _
    $region23: #{msscaeaa_forward.9} parent=1 // pred_check_branch
      %517 = sbr.rel (0) target = $region25
    $region24: #{msscaeaa_forward.9} parent=1 // pred_region
      %519 = vsyncadd [#allocation4], 0
      %s521 = sshll.u32 [#allocation7], 4
      %s522 = int_to_ptr.vmem [resolvable:$true] %s521
      %s523 = sshll.u32 %s3, 4
      %s524 = int_to_ptr.hbm [resolvable:$true] %s523
      %526 = dma.vmem_to_hbm [thread:$0]  %s522, 32, %s524, [#allocation4]
    $region25: #{msscaeaa_forward.9} parent=1 // pred_fallthru
      _
    // Predicated region
    $region26: #{msscaeaa_forward.9} parent=1 // pred_check
      _
    $region27: #{msscaeaa_forward.9} parent=1 // pred_check_branch
      %528 = sbr.rel (0) target = $region29
    $region28: #{msscaeaa_forward.9} parent=1 // pred_region
      %530 = dma.done [#allocation4], 32
    $region29: #{msscaeaa_forward.9} parent=1 // pred_fallthru
      _
    %531 = vsyncpa [#allocation3], 1
    %532 = vsyncpa [#allocation6], 1
    %533 = vsyncpa [#allocation4], 1

// kernel: msscaeaa_forward.8
$region0: #{msscaeaa_forward.8}
  #allocation0 [shape = 'u32[]', space=smem, size = 0x4, offset = 0x4, fixed_abs, tag = 'smem constant byte address 0x4 - core index']
  #allocation1 [shape = 'u32[72,128]{1,0:T(1,128)}', space=vmem, size = 0x9000, scoped, tag = 'internal scratch']
  %s0 = inlined_call_operand.vmem [shape: f32[2,3072], index: 0, kind: input, shape index: {}]
  %s1 = inlined_call_operand.hbm [shape: bf16[3072,1536], index: 1, kind: input, shape index: {}]
  %s2 = inlined_call_operand.hbm [shape: f32[1,1536], index: 2, kind: input, shape index: {}]
  %s3 = inlined_call_operand.vmem [shape: f32[2,1536], index: 3, kind: output, shape index: {}]
  %s4 = sld [smem:[#allocation0]]
  $region53: #{msscaeaa_forward.8} parent=0
    _
  %s6 = ssub.s32 1, %s4
  %s7 = scalar_select 0, %s6, %s4
  $region1: #{msscaeaa_forward.8} parent=0
    #allocation2 [shape = 'u8[9437184]{0}', space=vmem, size = 0x900000, scoped, tag = 'input window, operand 1']
    #allocation3 [shape = 's32[2]{0}', space=sflag, size = 0x8, scoped, tag = 'scoped memory for msscaeaa_forward.8']
    #allocation4 [shape = 'u8[6144]{0}', space=vmem, size = 0x1800, scoped, tag = 'input window, operand 2']
    #allocation5 [shape = 's32[2]{0}', space=sflag, size = 0x8, scoped, tag = 'scoped memory for msscaeaa_forward.8']
    %8 = vsyncpa [#allocation3], 0
    %s9 = scalar_lea.sflag [#allocation3], 1
    %10 = vsyncpa %s9, 0
    %11 = vsyncpa [#allocation5], 0
    %s12 = scalar_lea.sflag [#allocation5], 1
    %13 = vsyncpa %s12, 0
    loop: start=0, step=1, limit=4
    $region2: #{msscaeaa_forward.8} parent=1 // loop_pre_header
      _
    $region3: #{msscaeaa_forward.8} parent=1 // loop_header
      %s15 = sphi 0, %s19
      %p16 = scmp.ge.s32.totalorder %s15, 4
      %s23 = sphi 0, %s23
      %s25 = sphi 0, %s23
      %s26 = sphi 0, %s25
      %s40 = sphi 0, %s26
      %s46 = sphi 0, %s48
      %s49 = sphi 0, %s46
      %s50 = sphi 0, %s49
      %s66 = sphi 0, %s50
      %s72 = sphi 0, %s74
      %s75 = sphi 0, %s72
      %s76 = sphi 0, %s75
      %s92 = sphi 0, %s76
      %s98 = sphi 0, %s100
      %s101 = sphi 0, %s98
      %s102 = sphi 0, %s101
      %s118 = sphi 0, %s102
    $region4: #{msscaeaa_forward.8} parent=1 // loop_header_branch
      %18 = sbr.rel (%p16) target = $region8
    $region5: #{msscaeaa_forward.8} parent=1 // loop_body
      %s20 = ssub.s32 %s15, 1
      %s21 = ssub.s32 %s15, 2
      %s22 = sadd.s32 %s15, 1
      %s24 = sadd.s32 %s23, 1
      %p27 = scmp.eq.s32.totalorder %s15, 1
      %p28 = scmp.ne.s32.totalorder %s23, %s25
      %p29 = scmp.eq.s32.totalorder %s15, 0
      %p30 = por %p28, %p29
      %p31 = scmp.ne.s32.totalorder %s23, %s25
      %p32 = scmp.eq.s32.totalorder %s20, 1
      %p33 = por %p31, %p32
      %p34 = scmp.ne.s32.totalorder %s25, %s26
      %p35 = scmp.eq.s32.totalorder %s20, 0
      %p36 = por %p34, %p35
      %p37 = scmp.ne.s32.totalorder %s25, %s26
      %p38 = scmp.eq.s32.totalorder %s21, 1
      %p39 = por %p37, %p38
      %p41 = scmp.ne.s32.totalorder %s26, %s40
      %p42 = scmp.eq.s32.totalorder %s21, 0
      %p43 = por %p41, %p42
      %s44 = ssub.s32 %s15, %s22
      %p45 = scmp.eq.s32.totalorder %s44, 0
      %s47 = sadd.s32 %s46, 1
      %s48 = scalar_select %p45, %s46, %s47
      %p51 = pneg %p45
      %p52 = scmp.eq.s32.totalorder %s15, 1
      %p53 = por %p51, %p52
      %p54 = scmp.ne.s32.totalorder %s46, %s49
      %p55 = scmp.eq.s32.totalorder %s15, 0
      %p56 = por %p54, %p55
      %p57 = scmp.ne.s32.totalorder %s46, %s49
      %p58 = scmp.eq.s32.totalorder %s20, 1
      %p59 = por %p57, %p58
      %p60 = scmp.ne.s32.totalorder %s49, %s50
      %p61 = scmp.eq.s32.totalorder %s20, 0
      %p62 = por %p60, %p61
      %p63 = scmp.ne.s32.totalorder %s49, %s50
      %p64 = scmp.eq.s32.totalorder %s21, 1
      %p65 = por %p63, %p64
      %p67 = scmp.ne.s32.totalorder %s50, %s66
      %p68 = scmp.eq.s32.totalorder %s21, 0
      %p69 = por %p67, %p68
      %s70 = ssub.s32 %s15, %s22
      %p71 = scmp.eq.s32.totalorder %s70, 0
      %s73 = sadd.s32 %s72, 1
      %s74 = scalar_select %p71, %s72, %s73
      %p77 = pneg %p71
      %p78 = scmp.eq.s32.totalorder %s15, 1
      %p79 = por %p77, %p78
      %p80 = scmp.ne.s32.totalorder %s72, %s75
      %p81 = scmp.eq.s32.totalorder %s15, 0
      %p82 = por %p80, %p81
      %p83 = scmp.ne.s32.totalorder %s72, %s75
      %p84 = scmp.eq.s32.totalorder %s20, 1
      %p85 = por %p83, %p84
      %p86 = scmp.ne.s32.totalorder %s75, %s76
      %p87 = scmp.eq.s32.totalorder %s20, 0
      %p88 = por %p86, %p87
      %p89 = scmp.ne.s32.totalorder %s75, %s76
      %p90 = scmp.eq.s32.totalorder %s21, 1
      %p91 = por %p89, %p90
      %p93 = scmp.ne.s32.totalorder %s76, %s92
      %p94 = scmp.eq.s32.totalorder %s21, 0
      %p95 = por %p93, %p94
      %s96 = ssub.s32 %s15, %s22
      %p97 = scmp.eq.s32.totalorder %s96, 0
      %s99 = sadd.s32 %s98, 1
      %s100 = scalar_select %p97, %s98, %s99
      %p103 = pneg %p97
      %p104 = scmp.eq.s32.totalorder %s15, 1
      %p105 = por %p103, %p104
      %p106 = scmp.ne.s32.totalorder %s98, %s101
      %p107 = scmp.eq.s32.totalorder %s15, 0
      %p108 = por %p106, %p107
      %p109 = scmp.ne.s32.totalorder %s98, %s101
      %p110 = scmp.eq.s32.totalorder %s20, 1
      %p111 = por %p109, %p110
      %p112 = scmp.ne.s32.totalorder %s101, %s102
      %p113 = scmp.eq.s32.totalorder %s20, 0
      %p114 = por %p112, %p113
      %p115 = scmp.ne.s32.totalorder %s101, %s102
      %p116 = scmp.eq.s32.totalorder %s21, 1
      %p117 = por %p115, %p116
      %p119 = scmp.ne.s32.totalorder %s102, %s118
      %p120 = scmp.eq.s32.totalorder %s21, 0
      %p121 = por %p119, %p120
      %p122 = scmp.le.s32.totalorder 1, %s15
      %p123 = scmp.lt.s32.totalorder %s15, 3
      %p124 = pnand %p122, %p123
      %p125 = pneg %p124
      // Predicated region
      $region9: #{msscaeaa_forward.8} parent=5 // pred_check
        _
      $region10: #{msscaeaa_forward.8} parent=5 // pred_check_branch
        %127 = sbr.rel (%p124) target = $region12
      $region11: #{msscaeaa_forward.8} parent=5 // pred_region
        %s128 = ssub.s32 %s15, 1
        // Predicated region
        $region13: #{msscaeaa_forward.8} parent=11 // pred_check
          %p129 = pneg %p36
        $region14: #{msscaeaa_forward.8} parent=11 // pred_check_branch
          %131 = sbr.rel (%p129) target = $region16
        $region15: #{msscaeaa_forward.8} parent=11 // pred_region
          _
        $region16: #{msscaeaa_forward.8} parent=11 // pred_fallthru
          _
      $region12: #{msscaeaa_forward.8} parent=5 // pred_fallthru
        _
      %p132 = scmp.lt.s32.totalorder %s15, 2
      // Predicated region
      $region17: #{msscaeaa_forward.8} parent=5 // pred_check
        %p133 = pneg %p132
      $region18: #{msscaeaa_forward.8} parent=5 // pred_check_branch
        %135 = sbr.rel (%p133) target = $region20
      $region19: #{msscaeaa_forward.8} parent=5 // pred_region
        // Predicated region
        $region21: #{msscaeaa_forward.8} parent=19 // pred_check
          %p136 = pneg %p56
        $region22: #{msscaeaa_forward.8} parent=19 // pred_check_branch
          %138 = sbr.rel (%p136) target = $region24
        $region23: #{msscaeaa_forward.8} parent=19 // pred_region
          %s139 = sand.u32 %s46, 1
          %s140 = scalar_lea.sflag [#allocation3], %s139
          %s141 = sand.u32 %s46, 1
          %s142 = smul.addr %s141, 9216
          %s143 = scalar_lea.vmem [#allocation2], %s142
          %s144 = smul.u32 6, %s15
          %146 = vsyncadd %s140, 0
          %s147 = smul.addr %s144, 4
          %s148 = scalar_lea.hbm %s1, %s147
          %s149 = sshll.u32 %s148, 4
          %s150 = int_to_ptr.hbm [resolvable:$true] %s149
          %s151 = sshll.u32 %s143, 4
          %s152 = int_to_ptr.vmem [resolvable:$true] %s151
          %157 = dma.hbm_to_vmem [thread:$0]  %s150, 147456, %s152, %s140, 768, 384, 24
        $region24: #{msscaeaa_forward.8} parent=19 // pred_fallthru
          _
        // Predicated region
        $region25: #{msscaeaa_forward.8} parent=19 // pred_check
          %p158 = pneg %p82
        $region26: #{msscaeaa_forward.8} parent=19 // pred_check_branch
          %160 = sbr.rel (%p158) target = $region28
        $region27: #{msscaeaa_forward.8} parent=19 // pred_region
          %s161 = sand.u32 %s72, 1
          %s162 = scalar_lea.sflag [#allocation5], %s161
          %s163 = sand.u32 %s72, 1
          %s164 = smul.addr %s163, 6
          %s165 = scalar_lea.vmem [#allocation4], %s164
          %s166 = smul.u32 6, %s15
          %168 = vsyncadd %s162, 0
          %s169 = scalar_lea.hbm %s2, %s166
          %s171 = sshll.u32 %s169, 4
          %s172 = int_to_ptr.hbm [resolvable:$true] %s171
          %s173 = sshll.u32 %s165, 4
          %s174 = int_to_ptr.vmem [resolvable:$true] %s173
          %176 = dma.hbm_to_vmem [thread:$0]  %s172, 96, %s174, %s162
        $region28: #{msscaeaa_forward.8} parent=19 // pred_fallthru
          _
      $region20: #{msscaeaa_forward.8} parent=5 // pred_fallthru
        _
      %p177 = scmp.le.s32.totalorder 1, %s15
      %p178 = scmp.lt.s32.totalorder %s15, 3
      %p179 = pnand %p177, %p178
      %p180 = pneg %p179
      // Predicated region
      $region29: #{msscaeaa_forward.8} parent=5 // pred_check
        _
      $region30: #{msscaeaa_forward.8} parent=5 // pred_check_branch
        %182 = sbr.rel (%p179) target = $region32
      $region31: #{msscaeaa_forward.8} parent=5 // pred_region
        %s183 = ssub.s32 %s15, 1
        %s184 = sand.u32 %s49, 1
        %s185 = scalar_lea.sflag [#allocation3], %s184
        %s186 = sand.u32 %s49, 1
        %s187 = smul.addr %s186, 9216
        %s188 = scalar_lea.vmem [#allocation2], %s187
        // Predicated region
        $region33: #{msscaeaa_forward.8} parent=31 // pred_check
          %p189 = pneg %p62
        $region34: #{msscaeaa_forward.8} parent=31 // pred_check_branch
          %191 = sbr.rel (%p189) target = $region36
        $region35: #{msscaeaa_forward.8} parent=31 // pred_region
          %193 = dma.done %s185, 147456
        $region36: #{msscaeaa_forward.8} parent=31 // pred_fallthru
          _
        %s194 = sand.u32 %s75, 1
        %s195 = scalar_lea.sflag [#allocation5], %s194
        %s196 = sand.u32 %s75, 1
        %s197 = smul.addr %s196, 6
        %s198 = scalar_lea.vmem [#allocation4], %s197
        // Predicated region
        $region37: #{msscaeaa_forward.8} parent=31 // pred_check
          %p199 = pneg %p88
        $region38: #{msscaeaa_forward.8} parent=31 // pred_check_branch
          %201 = sbr.rel (%p199) target = $region40
        $region39: #{msscaeaa_forward.8} parent=31 // pred_region
          %203 = dma.done %s195, 96
        $region40: #{msscaeaa_forward.8} parent=31 // pred_fallthru
          _
        %p204 = pneg %p36
        %p205 = pneg %p33
        %s206 = sand.u32 %s49, 1
        %s207 = scalar_lea.sflag [#allocation3], %s206
        %s208 = sand.u32 %s49, 1
        %s209 = smul.addr %s208, 9216
        %s210 = scalar_lea.vmem [#allocation2], %s209
        %p211 = pneg %p62
        %p212 = pneg %p59
        %s213 = sand.u32 %s75, 1
        %s214 = scalar_lea.sflag [#allocation5], %s213
        %s215 = sand.u32 %s75, 1
        %s216 = smul.addr %s215, 6
        %s217 = scalar_lea.vmem [#allocation4], %s216
        %p218 = pneg %p88
        %p219 = pneg %p85
        %p220 = pneg %p114
        %p221 = pneg %p111
        %s222 = smul.u32 6, %s20
        %p223 = scmp.lt.s32.totalorder %s222, 11
        %s224 = scalar_select %p223, %s222, 11
        %s225 = smul.addr %s224, 2
        %s226 = scalar_lea.vmem %s3, %s225
        %s227 = smul.u32 6, %s20
        %s228 = smul.u32 6, %s20
        %s229 = smul.u32 6, %s20
        %p230 = scmp.lt.s32.totalorder %s229, 11
        %s231 = scalar_select %p230, %s229, 11
        %s232 = smul.addr %s231, 2
        %s233 = scalar_lea.vmem %s3, %s232
        %s234 = smul.u32 6, %s20
        %v235 = vld [vmem:[%s0] sm:$0xff]
        %v236 = vld [vmem:[%s0 + $0x8] sm:$0xff]
        %v237 = vld [vmem:[%s0 + $0x10] sm:$0xff]
        %v238 = vld [vmem:[%s0 + $0x18] sm:$0xff]
        %v239 = vld [vmem:[%s0 + $0x20] sm:$0xff]
        %v240 = vld [vmem:[%s0 + $0x28] sm:$0xff]
        %247 = vst [vmem:[#allocation1] ss:$4 sm:$0xff] %v235
        %s248 = scalar_lea.vmem [#allocation1], 32
        %249 = vst [vmem:[%s248] ss:$4 sm:$0xff] %v236
        %v250 = vld.sshfl [vmem:[#allocation1] sm:$0xff pattern:$0x73625140]
        %v251 = vld.sshfl [vmem:[#allocation1 + $0x8] sm:$0xff pattern:$0x73625140]
        %v252 = vld.sshfl [vmem:[#allocation1 + $0x10] sm:$0xff pattern:$0x73625140]
        %v253 = vld.sshfl [vmem:[#allocation1 + $0x18] sm:$0xff pattern:$0x73625140]
        %v254 = vld.sshfl [vmem:[#allocation1 + $0x20] sm:$0xff pattern:$0x73625140]
        %v255 = vld.sshfl [vmem:[#allocation1 + $0x28] sm:$0xff pattern:$0x73625140]
        %v256 = vld.sshfl [vmem:[#allocation1 + $0x30] sm:$0xff pattern:$0x73625140]
        %v257 = vld.sshfl [vmem:[#allocation1 + $0x38] sm:$0xff pattern:$0x73625140]
        %258 = vst [vmem:[#allocation1] ss:$4 sm:$0xff] %v237
        %259 = vst [vmem:[%s248] ss:$4 sm:$0xff] %v238
        %v260 = vld.sshfl [vmem:[#allocation1] sm:$0xff pattern:$0x73625140]
        %v261 = vld.sshfl [vmem:[#allocation1 + $0x8] sm:$0xff pattern:$0x73625140]
        %v262 = vld.sshfl [vmem:[#allocation1 + $0x10] sm:$0xff pattern:$0x73625140]
        %v263 = vld.sshfl [vmem:[#allocation1 + $0x18] sm:$0xff pattern:$0x73625140]
        %v264 = vld.sshfl [vmem:[#allocation1 + $0x20] sm:$0xff pattern:$0x73625140]
        %v265 = vld.sshfl [vmem:[#allocation1 + $0x28] sm:$0xff pattern:$0x73625140]
        %v266 = vld.sshfl [vmem:[#allocation1 + $0x30] sm:$0xff pattern:$0x73625140]
        %v267 = vld.sshfl [vmem:[#allocation1 + $0x38] sm:$0xff pattern:$0x73625140]
        %268 = vst [vmem:[#allocation1] ss:$4 sm:$0xff] %v239
        %269 = vst [vmem:[%s248] ss:$4 sm:$0xff] %v240
        %v270 = vld.sshfl [vmem:[#allocation1] sm:$0xff pattern:$0x73625140]
        %v271 = vld.sshfl [vmem:[#allocation1 + $0x8] sm:$0xff pattern:$0x73625140]
        %v272 = vld.sshfl [vmem:[#allocation1 + $0x10] sm:$0xff pattern:$0x73625140]
        %v273 = vld.sshfl [vmem:[#allocation1 + $0x18] sm:$0xff pattern:$0x73625140]
        %v274 = vld.sshfl [vmem:[#allocation1 + $0x20] sm:$0xff pattern:$0x73625140]
        %v275 = vld.sshfl [vmem:[#allocation1 + $0x28] sm:$0xff pattern:$0x73625140]
        %v276 = vld.sshfl [vmem:[#allocation1 + $0x30] sm:$0xff pattern:$0x73625140]
        %v277 = vld.sshfl [vmem:[#allocation1 + $0x38] sm:$0xff pattern:$0x73625140]
        %v302 = vpack.c.bf16 %v250, %v250
        %v303 = vpack.c.bf16 %v251, %v251
        %v304 = vpack.c.bf16 %v252, %v252
        %v305 = vpack.c.bf16 %v253, %v253
        %v306 = vpack.c.bf16 %v254, %v254
        %v307 = vpack.c.bf16 %v255, %v255
        %v308 = vpack.c.bf16 %v256, %v256
        %v309 = vpack.c.bf16 %v257, %v257
        %v310 = vpack.c.bf16 %v260, %v260
        %v311 = vpack.c.bf16 %v261, %v261
        %v312 = vpack.c.bf16 %v262, %v262
        %v313 = vpack.c.bf16 %v263, %v263
        %v314 = vpack.c.bf16 %v264, %v264
        %v315 = vpack.c.bf16 %v265, %v265
        %v316 = vpack.c.bf16 %v266, %v266
        %v317 = vpack.c.bf16 %v267, %v267
        %v318 = vpack.c.bf16 %v270, %v270
        %v319 = vpack.c.bf16 %v271, %v271
        %v320 = vpack.c.bf16 %v272, %v272
        %v321 = vpack.c.bf16 %v273, %v273
        %v322 = vpack.c.bf16 %v274, %v274
        %v323 = vpack.c.bf16 %v275, %v275
        %v324 = vpack.c.bf16 %v276, %v276
        %v325 = vpack.c.bf16 %v277, %v277
        %v326 = vld [vmem:[%s188] sm:$0xff]
        %v327 = vld [vmem:[%s188 + $0x8] sm:$0xff]
        %v328 = vld [vmem:[%s188 + $0x10] sm:$0xff]
        %v329 = vld [vmem:[%s188 + $0x18] sm:$0xff]
        %v330 = vld [vmem:[%s188 + $0x20] sm:$0xff]
        %v331 = vld [vmem:[%s188 + $0x28] sm:$0xff]
        %v332 = vld [vmem:[%s188 + $0x30] sm:$0xff]
        %v333 = vld [vmem:[%s188 + $0x38] sm:$0xff]
        %v334 = vld [vmem:[%s188 + $0x40] sm:$0xff]
        %v335 = vld [vmem:[%s188 + $0x48] sm:$0xff]
        %v336 = vld [vmem:[%s188 + $0x50] sm:$0xff]
        %v337 = vld [vmem:[%s188 + $0x58] sm:$0xff]
        %v338 = vld [vmem:[%s188 + $0x60] sm:$0xff]
        %v339 = vld [vmem:[%s188 + $0x68] sm:$0xff]
        %v340 = vld [vmem:[%s188 + $0x70] sm:$0xff]
        %v341 = vld [vmem:[%s188 + $0x78] sm:$0xff]
        %v342 = vld [vmem:[%s188 + $0x80] sm:$0xff]
        %v343 = vld [vmem:[%s188 + $0x88] sm:$0xff]
        %v344 = vld [vmem:[%s188 + $0x90] sm:$0xff]
        %v345 = vld [vmem:[%s188 + $0x98] sm:$0xff]
        %v346 = vld [vmem:[%s188 + $0xa0] sm:$0xff]
        %v347 = vld [vmem:[%s188 + $0xa8] sm:$0xff]
        %v348 = vld [vmem:[%s188 + $0xb0] sm:$0xff]
        %v349 = vld [vmem:[%s188 + $0xb8] sm:$0xff]
        %v350 = vld [vmem:[%s188 + $0xc0] sm:$0xff]
        %v351 = vld [vmem:[%s188 + $0xc8] sm:$0xff]
        %v352 = vld [vmem:[%s188 + $0xd0] sm:$0xff]
        %v353 = vld [vmem:[%s188 + $0xd8] sm:$0xff]
        %v354 = vld [vmem:[%s188 + $0xe0] sm:$0xff]
        %v355 = vld [vmem:[%s188 + $0xe8] sm:$0xff]
        %v356 = vld [vmem:[%s188 + $0xf0] sm:$0xff]
        %v357 = vld [vmem:[%s188 + $0xf8] sm:$0xff]
        %v358 = vld [vmem:[%s188 + $0x100] sm:$0xff]
        %v359 = vld [vmem:[%s188 + $0x108] sm:$0xff]
        %v360 = vld [vmem:[%s188 + $0x110] sm:$0xff]
        %v361 = vld [vmem:[%s188 + $0x118] sm:$0xff]
        %v362 = vld [vmem:[%s188 + $0x120] sm:$0xff]
        %v363 = vld [vmem:[%s188 + $0x128] sm:$0xff]
        %v364 = vld [vmem:[%s188 + $0x130] sm:$0xff]
        %v365 = vld [vmem:[%s188 + $0x138] sm:$0xff]
        %v366 = vld [vmem:[%s188 + $0x140] sm:$0xff]
        %v367 = vld [vmem:[%s188 + $0x148] sm:$0xff]
        %v368 = vld [vmem:[%s188 + $0x150] sm:$0xff]
        %v369 = vld [vmem:[%s188 + $0x158] sm:$0xff]
        %v370 = vld [vmem:[%s188 + $0x160] sm:$0xff]
        %v371 = vld [vmem:[%s188 + $0x168] sm:$0xff]
        %v372 = vld [vmem:[%s188 + $0x170] sm:$0xff]
        %v373 = vld [vmem:[%s188 + $0x178] sm:$0xff]
        %v374 = vld [vmem:[%s188 + $0x180] sm:$0xff]
        %v375 = vld [vmem:[%s188 + $0x188] sm:$0xff]
        %v376 = vld [vmem:[%s188 + $0x190] sm:$0xff]
        %v377 = vld [vmem:[%s188 + $0x198] sm:$0xff]
        %v378 = vld [vmem:[%s188 + $0x1a0] sm:$0xff]
        %v379 = vld [vmem:[%s188 + $0x1a8] sm:$0xff]
        %v380 = vld [vmem:[%s188 + $0x1b0] sm:$0xff]
        %v381 = vld [vmem:[%s188 + $0x1b8] sm:$0xff]
        %v382 = vld [vmem:[%s188 + $0x1c0] sm:$0xff]
        %v383 = vld [vmem:[%s188 + $0x1c8] sm:$0xff]
        %v384 = vld [vmem:[%s188 + $0x1d0] sm:$0xff]
        %v385 = vld [vmem:[%s188 + $0x1d8] sm:$0xff]
        %v386 = vld [vmem:[%s188 + $0x1e0] sm:$0xff]
        %v387 = vld [vmem:[%s188 + $0x1e8] sm:$0xff]
        %v388 = vld [vmem:[%s188 + $0x1f0] sm:$0xff]
        %v389 = vld [vmem:[%s188 + $0x1f8] sm:$0xff]
        %v390 = vld [vmem:[%s188 + $0x200] sm:$0xff]
        %v391 = vld [vmem:[%s188 + $0x208] sm:$0xff]
        %v392 = vld [vmem:[%s188 + $0x210] sm:$0xff]
        %v393 = vld [vmem:[%s188 + $0x218] sm:$0xff]
        %v394 = vld [vmem:[%s188 + $0x220] sm:$0xff]
        %v395 = vld [vmem:[%s188 + $0x228] sm:$0xff]
        %v396 = vld [vmem:[%s188 + $0x230] sm:$0xff]
        %v397 = vld [vmem:[%s188 + $0x238] sm:$0xff]
        %v398 = vld [vmem:[%s188 + $0x240] sm:$0xff]
        %v399 = vld [vmem:[%s188 + $0x248] sm:$0xff]
        %v400 = vld [vmem:[%s188 + $0x250] sm:$0xff]
        %v401 = vld [vmem:[%s188 + $0x258] sm:$0xff]
        %v402 = vld [vmem:[%s188 + $0x260] sm:$0xff]
        %v403 = vld [vmem:[%s188 + $0x268] sm:$0xff]
        %v404 = vld [vmem:[%s188 + $0x270] sm:$0xff]
        %v405 = vld [vmem:[%s188 + $0x278] sm:$0xff]
        %v406 = vld [vmem:[%s188 + $0x280] sm:$0xff]
        %v407 = vld [vmem:[%s188 + $0x288] sm:$0xff]
        %v408 = vld [vmem:[%s188 + $0x290] sm:$0xff]
        %v409 = vld [vmem:[%s188 + $0x298] sm:$0xff]
        %v410 = vld [vmem:[%s188 + $0x2a0] sm:$0xff]
        %v411 = vld [vmem:[%s188 + $0x2a8] sm:$0xff]
        %v412 = vld [vmem:[%s188 + $0x2b0] sm:$0xff]
        %v413 = vld [vmem:[%s188 + $0x2b8] sm:$0xff]
        %v414 = vld [vmem:[%s188 + $0x2c0] sm:$0xff]
        %v415 = vld [vmem:[%s188 + $0x2c8] sm:$0xff]
        %v416 = vld [vmem:[%s188 + $0x2d0] sm:$0xff]
        %v417 = vld [vmem:[%s188 + $0x2d8] sm:$0xff]
        %v418 = vld [vmem:[%s188 + $0x2e0] sm:$0xff]
        %v419 = vld [vmem:[%s188 + $0x2e8] sm:$0xff]
        %v420 = vld [vmem:[%s188 + $0x2f0] sm:$0xff]
        %v421 = vld [vmem:[%s188 + $0x2f8] sm:$0xff]
        %v422 = vld [vmem:[%s188 + $0x300] sm:$0xff]
        %v423 = vld [vmem:[%s188 + $0x308] sm:$0xff]
        %v424 = vld [vmem:[%s188 + $0x310] sm:$0xff]
        %v425 = vld [vmem:[%s188 + $0x318] sm:$0xff]
        %v426 = vld [vmem:[%s188 + $0x320] sm:$0xff]
        %v427 = vld [vmem:[%s188 + $0x328] sm:$0xff]
        %v428 = vld [vmem:[%s188 + $0x330] sm:$0xff]
        %v429 = vld [vmem:[%s188 + $0x338] sm:$0xff]
        %v430 = vld [vmem:[%s188 + $0x340] sm:$0xff]
        %v431 = vld [vmem:[%s188 + $0x348] sm:$0xff]
        %v432 = vld [vmem:[%s188 + $0x350] sm:$0xff]
        %v433 = vld [vmem:[%s188 + $0x358] sm:$0xff]
        %v434 = vld [vmem:[%s188 + $0x360] sm:$0xff]
        %v435 = vld [vmem:[%s188 + $0x368] sm:$0xff]
        %v436 = vld [vmem:[%s188 + $0x370] sm:$0xff]
        %v437 = vld [vmem:[%s188 + $0x378] sm:$0xff]
        %v438 = vld [vmem:[%s188 + $0x380] sm:$0xff]
        %v439 = vld [vmem:[%s188 + $0x388] sm:$0xff]
        %v440 = vld [vmem:[%s188 + $0x390] sm:$0xff]
        %v441 = vld [vmem:[%s188 + $0x398] sm:$0xff]
        %v442 = vld [vmem:[%s188 + $0x3a0] sm:$0xff]
        %v443 = vld [vmem:[%s188 + $0x3a8] sm:$0xff]
        %v444 = vld [vmem:[%s188 + $0x3b0] sm:$0xff]
        %v445 = vld [vmem:[%s188 + $0x3b8] sm:$0xff]
        %v446 = vld [vmem:[%s188 + $0x3c0] sm:$0xff]
        %v447 = vld [vmem:[%s188 + $0x3c8] sm:$0xff]
        %v448 = vld [vmem:[%s188 + $0x3d0] sm:$0xff]
        %v449 = vld [vmem:[%s188 + $0x3d8] sm:$0xff]
        %v450 = vld [vmem:[%s188 + $0x3e0] sm:$0xff]
        %v451 = vld [vmem:[%s188 + $0x3e8] sm:$0xff]
        %v452 = vld [vmem:[%s188 + $0x3f0] sm:$0xff]
        %v453 = vld [vmem:[%s188 + $0x3f8] sm:$0xff]
        %v454 = vld [vmem:[%s188 + $0x400] sm:$0xff]
        %v455 = vld [vmem:[%s188 + $0x408] sm:$0xff]
        %v456 = vld [vmem:[%s188 + $0x410] sm:$0xff]
        %v457 = vld [vmem:[%s188 + $0x418] sm:$0xff]
        %v458 = vld [vmem:[%s188 + $0x420] sm:$0xff]
        %v459 = vld [vmem:[%s188 + $0x428] sm:$0xff]
        %v460 = vld [vmem:[%s188 + $0x430] sm:$0xff]
        %v461 = vld [vmem:[%s188 + $0x438] sm:$0xff]
        %v462 = vld [vmem:[%s188 + $0x440] sm:$0xff]
        %v463 = vld [vmem:[%s188 + $0x448] sm:$0xff]
        %v464 = vld [vmem:[%s188 + $0x450] sm:$0xff]
        %v465 = vld [vmem:[%s188 + $0x458] sm:$0xff]
        %v466 = vld [vmem:[%s188 + $0x460] sm:$0xff]
        %v467 = vld [vmem:[%s188 + $0x468] sm:$0xff]
        %v468 = vld [vmem:[%s188 + $0x470] sm:$0xff]
        %v469 = vld [vmem:[%s188 + $0x478] sm:$0xff]
        %v470 = vld [vmem:[%s188 + $0x480] sm:$0xff]
        %v471 = vld [vmem:[%s188 + $0x488] sm:$0xff]
        %v472 = vld [vmem:[%s188 + $0x490] sm:$0xff]
        %v473 = vld [vmem:[%s188 + $0x498] sm:$0xff]
        %v474 = vld [vmem:[%s188 + $0x4a0] sm:$0xff]
        %v475 = vld [vmem:[%s188 + $0x4a8] sm:$0xff]
        %v476 = vld [vmem:[%s188 + $0x4b0] sm:$0xff]
        %v477 = vld [vmem:[%s188 + $0x4b8] sm:$0xff]
        %v478 = vld [vmem:[%s188 + $0x4c0] sm:$0xff]
        %v479 = vld [vmem:[%s188 + $0x4c8] sm:$0xff]
        %v480 = vld [vmem:[%s188 + $0x4d0] sm:$0xff]
        %v481 = vld [vmem:[%s188 + $0x4d8] sm:$0xff]
        %v482 = vld [vmem:[%s188 + $0x4e0] sm:$0xff]
        %v483 = vld [vmem:[%s188 + $0x4e8] sm:$0xff]
        %v484 = vld [vmem:[%s188 + $0x4f0] sm:$0xff]
        %v485 = vld [vmem:[%s188 + $0x4f8] sm:$0xff]
        %v486 = vld [vmem:[%s188 + $0x500] sm:$0xff]
        %v487 = vld [vmem:[%s188 + $0x508] sm:$0xff]
        %v488 = vld [vmem:[%s188 + $0x510] sm:$0xff]
        %v489 = vld [vmem:[%s188 + $0x518] sm:$0xff]
        %v490 = vld [vmem:[%s188 + $0x520] sm:$0xff]
        %v491 = vld [vmem:[%s188 + $0x528] sm:$0xff]
        %v492 = vld [vmem:[%s188 + $0x530] sm:$0xff]
        %v493 = vld [vmem:[%s188 + $0x538] sm:$0xff]
        %v494 = vld [vmem:[%s188 + $0x540] sm:$0xff]
        %v495 = vld [vmem:[%s188 + $0x548] sm:$0xff]
        %v496 = vld [vmem:[%s188 + $0x550] sm:$0xff]
        %v497 = vld [vmem:[%s188 + $0x558] sm:$0xff]
        %v498 = vld [vmem:[%s188 + $0x560] sm:$0xff]
        %v499 = vld [vmem:[%s188 + $0x568] sm:$0xff]
        %v500 = vld [vmem:[%s188 + $0x570] sm:$0xff]
        %v501 = vld [vmem:[%s188 + $0x578] sm:$0xff]
        %v502 = vld [vmem:[%s188 + $0x580] sm:$0xff]
        %v503 = vld [vmem:[%s188 + $0x588] sm:$0xff]
        %v504 = vld [vmem:[%s188 + $0x590] sm:$0xff]
        %v505 = vld [vmem:[%s188 + $0x598] sm:$0xff]
        %v506 = vld [vmem:[%s188 + $0x5a0] sm:$0xff]
        %v507 = vld [vmem:[%s188 + $0x5a8] sm:$0xff]
        %v508 = vld [vmem:[%s188 + $0x5b0] sm:$0xff]
        %v509 = vld [vmem:[%s188 + $0x5b8] sm:$0xff]
        %v510 = vld [vmem:[%s188 + $0x5c0] sm:$0xff]
        %v511 = vld [vmem:[%s188 + $0x5c8] sm:$0xff]
        %v512 = vld [vmem:[%s188 + $0x5d0] sm:$0xff]
        %v513 = vld [vmem:[%s188 + $0x5d8] sm:$0xff]
        %v514 = vld [vmem:[%s188 + $0x5e0] sm:$0xff]
        %v515 = vld [vmem:[%s188 + $0x5e8] sm:$0xff]
        %v516 = vld [vmem:[%s188 + $0x5f0] sm:$0xff]
        %v517 = vld [vmem:[%s188 + $0x5f8] sm:$0xff]
        %v518 = vld [vmem:[%s188 + $0x600] sm:$0xff]
        %v519 = vld [vmem:[%s188 + $0x608] sm:$0xff]
        %v520 = vld [vmem:[%s188 + $0x610] sm:$0xff]
        %v521 = vld [vmem:[%s188 + $0x618] sm:$0xff]
        %v522 = vld [vmem:[%s188 + $0x620] sm:$0xff]
        %v523 = vld [vmem:[%s188 + $0x628] sm:$0xff]
        %v524 = vld [vmem:[%s188 + $0x630] sm:$0xff]
        %v525 = vld [vmem:[%s188 + $0x638] sm:$0xff]
        %v526 = vld [vmem:[%s188 + $0x640] sm:$0xff]
        %v527 = vld [vmem:[%s188 + $0x648] sm:$0xff]
        %v528 = vld [vmem:[%s188 + $0x650] sm:$0xff]
        %v529 = vld [vmem:[%s188 + $0x658] sm:$0xff]
        %v530 = vld [vmem:[%s188 + $0x660] sm:$0xff]
        %v531 = vld [vmem:[%s188 + $0x668] sm:$0xff]
        %v532 = vld [vmem:[%s188 + $0x670] sm:$0xff]
        %v533 = vld [vmem:[%s188 + $0x678] sm:$0xff]
        %v534 = vld [vmem:[%s188 + $0x680] sm:$0xff]
        %v535 = vld [vmem:[%s188 + $0x688] sm:$0xff]
        %v536 = vld [vmem:[%s188 + $0x690] sm:$0xff]
        %v537 = vld [vmem:[%s188 + $0x698] sm:$0xff]
        %v538 = vld [vmem:[%s188 + $0x6a0] sm:$0xff]
        %v539 = vld [vmem:[%s188 + $0x6a8] sm:$0xff]
        %v540 = vld [vmem:[%s188 + $0x6b0] sm:$0xff]
        %v541 = vld [vmem:[%s188 + $0x6b8] sm:$0xff]
        %v542 = vld [vmem:[%s188 + $0x6c0] sm:$0xff]
        %v543 = vld [vmem:[%s188 + $0x6c8] sm:$0xff]
        %v544 = vld [vmem:[%s188 + $0x6d0] sm:$0xff]
        %v545 = vld [vmem:[%s188 + $0x6d8] sm:$0xff]
        %v546 = vld [vmem:[%s188 + $0x6e0] sm:$0xff]
        %v547 = vld [vmem:[%s188 + $0x6e8] sm:$0xff]
        %v548 = vld [vmem:[%s188 + $0x6f0] sm:$0xff]
        %v549 = vld [vmem:[%s188 + $0x6f8] sm:$0xff]
        %v550 = vld [vmem:[%s188 + $0x700] sm:$0xff]
        %v551 = vld [vmem:[%s188 + $0x708] sm:$0xff]
        %v552 = vld [vmem:[%s188 + $0x710] sm:$0xff]
        %v553 = vld [vmem:[%s188 + $0x718] sm:$0xff]
        %v554 = vld [vmem:[%s188 + $0x720] sm:$0xff]
        %v555 = vld [vmem:[%s188 + $0x728] sm:$0xff]
        %v556 = vld [vmem:[%s188 + $0x730] sm:$0xff]
        %v557 = vld [vmem:[%s188 + $0x738] sm:$0xff]
        %v558 = vld [vmem:[%s188 + $0x740] sm:$0xff]
        %v559 = vld [vmem:[%s188 + $0x748] sm:$0xff]
        %v560 = vld [vmem:[%s188 + $0x750] sm:$0xff]
        %v561 = vld [vmem:[%s188 + $0x758] sm:$0xff]
        %v562 = vld [vmem:[%s188 + $0x760] sm:$0xff]
        %v563 = vld [vmem:[%s188 + $0x768] sm:$0xff]
        %v564 = vld [vmem:[%s188 + $0x770] sm:$0xff]
        %v565 = vld [vmem:[%s188 + $0x778] sm:$0xff]
        %v566 = vld [vmem:[%s188 + $0x780] sm:$0xff]
        %v567 = vld [vmem:[%s188 + $0x788] sm:$0xff]
        %v568 = vld [vmem:[%s188 + $0x790] sm:$0xff]
        %v569 = vld [vmem:[%s188 + $0x798] sm:$0xff]
        %v570 = vld [vmem:[%s188 + $0x7a0] sm:$0xff]
        %v571 = vld [vmem:[%s188 + $0x7a8] sm:$0xff]
        %v572 = vld [vmem:[%s188 + $0x7b0] sm:$0xff]
        %v573 = vld [vmem:[%s188 + $0x7b8] sm:$0xff]
        %v574 = vld [vmem:[%s188 + $0x7c0] sm:$0xff]
        %v575 = vld [vmem:[%s188 + $0x7c8] sm:$0xff]
        %v576 = vld [vmem:[%s188 + $0x7d0] sm:$0xff]
        %v577 = vld [vmem:[%s188 + $0x7d8] sm:$0xff]
        %v578 = vld [vmem:[%s188 + $0x7e0] sm:$0xff]
        %v579 = vld [vmem:[%s188 + $0x7e8] sm:$0xff]
        %v580 = vld [vmem:[%s188 + $0x7f0] sm:$0xff]
        %v581 = vld [vmem:[%s188 + $0x7f8] sm:$0xff]
        %v582 = vld [vmem:[%s188 + $0x800] sm:$0xff]
        %v583 = vld [vmem:[%s188 + $0x808] sm:$0xff]
        %v584 = vld [vmem:[%s188 + $0x810] sm:$0xff]
        %v585 = vld [vmem:[%s188 + $0x818] sm:$0xff]
        %v586 = vld [vmem:[%s188 + $0x820] sm:$0xff]
        %v587 = vld [vmem:[%s188 + $0x828] sm:$0xff]
        %v588 = vld [vmem:[%s188 + $0x830] sm:$0xff]
        %v589 = vld [vmem:[%s188 + $0x838] sm:$0xff]
        %v590 = vld [vmem:[%s188 + $0x840] sm:$0xff]
        %v591 = vld [vmem:[%s188 + $0x848] sm:$0xff]
        %v592 = vld [vmem:[%s188 + $0x850] sm:$0xff]
        %v593 = vld [vmem:[%s188 + $0x858] sm:$0xff]
        %v594 = vld [vmem:[%s188 + $0x860] sm:$0xff]
        %v595 = vld [vmem:[%s188 + $0x868] sm:$0xff]
        %v596 = vld [vmem:[%s188 + $0x870] sm:$0xff]
        %v597 = vld [vmem:[%s188 + $0x878] sm:$0xff]
        %v598 = vld [vmem:[%s188 + $0x880] sm:$0xff]
        %v599 = vld [vmem:[%s188 + $0x888] sm:$0xff]
        %v600 = vld [vmem:[%s188 + $0x890] sm:$0xff]
        %v601 = vld [vmem:[%s188 + $0x898] sm:$0xff]
        %v602 = vld [vmem:[%s188 + $0x8a0] sm:$0xff]
        %v603 = vld [vmem:[%s188 + $0x8a8] sm:$0xff]
        %v604 = vld [vmem:[%s188 + $0x8b0] sm:$0xff]
        %v605 = vld [vmem:[%s188 + $0x8b8] sm:$0xff]
        %v606 = vld [vmem:[%s188 + $0x8c0] sm:$0xff]
        %v607 = vld [vmem:[%s188 + $0x8c8] sm:$0xff]
        %v608 = vld [vmem:[%s188 + $0x8d0] sm:$0xff]
        %v609 = vld [vmem:[%s188 + $0x8d8] sm:$0xff]
        %v610 = vld [vmem:[%s188 + $0x8e0] sm:$0xff]
        %v611 = vld [vmem:[%s188 + $0x8e8] sm:$0xff]
        %v612 = vld [vmem:[%s188 + $0x8f0] sm:$0xff]
        %v613 = vld [vmem:[%s188 + $0x8f8] sm:$0xff]
        %v614 = vld [vmem:[%s188 + $0x900] sm:$0xff]
        %v615 = vld [vmem:[%s188 + $0x908] sm:$0xff]
        %v616 = vld [vmem:[%s188 + $0x910] sm:$0xff]
        %v617 = vld [vmem:[%s188 + $0x918] sm:$0xff]
        %v618 = vld [vmem:[%s188 + $0x920] sm:$0xff]
        %v619 = vld [vmem:[%s188 + $0x928] sm:$0xff]
        %v620 = vld [vmem:[%s188 + $0x930] sm:$0xff]
        %v621 = vld [vmem:[%s188 + $0x938] sm:$0xff]
        %v622 = vld [vmem:[%s188 + $0x940] sm:$0xff]
        %v623 = vld [vmem:[%s188 + $0x948] sm:$0xff]
        %v624 = vld [vmem:[%s188 + $0x950] sm:$0xff]
        %v625 = vld [vmem:[%s188 + $0x958] sm:$0xff]
        %v626 = vld [vmem:[%s188 + $0x960] sm:$0xff]
        %v627 = vld [vmem:[%s188 + $0x968] sm:$0xff]
        %v628 = vld [vmem:[%s188 + $0x970] sm:$0xff]
        %v629 = vld [vmem:[%s188 + $0x978] sm:$0xff]
        %v630 = vld [vmem:[%s188 + $0x980] sm:$0xff]
        %v631 = vld [vmem:[%s188 + $0x988] sm:$0xff]
        %v632 = vld [vmem:[%s188 + $0x990] sm:$0xff]
        %v633 = vld [vmem:[%s188 + $0x998] sm:$0xff]
        %v634 = vld [vmem:[%s188 + $0x9a0] sm:$0xff]
        %v635 = vld [vmem:[%s188 + $0x9a8] sm:$0xff]
        %v636 = vld [vmem:[%s188 + $0x9b0] sm:$0xff]
        %v637 = vld [vmem:[%s188 + $0x9b8] sm:$0xff]
        %v638 = vld [vmem:[%s188 + $0x9c0] sm:$0xff]
        %v639 = vld [vmem:[%s188 + $0x9c8] sm:$0xff]
        %v640 = vld [vmem:[%s188 + $0x9d0] sm:$0xff]
        %v641 = vld [vmem:[%s188 + $0x9d8] sm:$0xff]
        %v642 = vld [vmem:[%s188 + $0x9e0] sm:$0xff]
        %v643 = vld [vmem:[%s188 + $0x9e8] sm:$0xff]
        %v644 = vld [vmem:[%s188 + $0x9f0] sm:$0xff]
        %v645 = vld [vmem:[%s188 + $0x9f8] sm:$0xff]
        %v646 = vld [vmem:[%s188 + $0xa00] sm:$0xff]
        %v647 = vld [vmem:[%s188 + $0xa08] sm:$0xff]
        %v648 = vld [vmem:[%s188 + $0xa10] sm:$0xff]
        %v649 = vld [vmem:[%s188 + $0xa18] sm:$0xff]
        %v650 = vld [vmem:[%s188 + $0xa20] sm:$0xff]
        %v651 = vld [vmem:[%s188 + $0xa28] sm:$0xff]
        %v652 = vld [vmem:[%s188 + $0xa30] sm:$0xff]
        %v653 = vld [vmem:[%s188 + $0xa38] sm:$0xff]
        %v654 = vld [vmem:[%s188 + $0xa40] sm:$0xff]
        %v655 = vld [vmem:[%s188 + $0xa48] sm:$0xff]
        %v656 = vld [vmem:[%s188 + $0xa50] sm:$0xff]
        %v657 = vld [vmem:[%s188 + $0xa58] sm:$0xff]
        %v658 = vld [vmem:[%s188 + $0xa60] sm:$0xff]
        %v659 = vld [vmem:[%s188 + $0xa68] sm:$0xff]
        %v660 = vld [vmem:[%s188 + $0xa70] sm:$0xff]
        %v661 = vld [vmem:[%s188 + $0xa78] sm:$0xff]
        %v662 = vld [vmem:[%s188 + $0xa80] sm:$0xff]
        %v663 = vld [vmem:[%s188 + $0xa88] sm:$0xff]
        %v664 = vld [vmem:[%s188 + $0xa90] sm:$0xff]
        %v665 = vld [vmem:[%s188 + $0xa98] sm:$0xff]
        %v666 = vld [vmem:[%s188 + $0xaa0] sm:$0xff]
        %v667 = vld [vmem:[%s188 + $0xaa8] sm:$0xff]
        %v668 = vld [vmem:[%s188 + $0xab0] sm:$0xff]
        %v669 = vld [vmem:[%s188 + $0xab8] sm:$0xff]
        %v670 = vld [vmem:[%s188 + $0xac0] sm:$0xff]
        %v671 = vld [vmem:[%s188 + $0xac8] sm:$0xff]
        %v672 = vld [vmem:[%s188 + $0xad0] sm:$0xff]
        %v673 = vld [vmem:[%s188 + $0xad8] sm:$0xff]
        %v674 = vld [vmem:[%s188 + $0xae0] sm:$0xff]
        %v675 = vld [vmem:[%s188 + $0xae8] sm:$0xff]
        %v676 = vld [vmem:[%s188 + $0xaf0] sm:$0xff]
        %v677 = vld [vmem:[%s188 + $0xaf8] sm:$0xff]
        %v678 = vld [vmem:[%s188 + $0xb00] sm:$0xff]
        %v679 = vld [vmem:[%s188 + $0xb08] sm:$0xff]
        %v680 = vld [vmem:[%s188 + $0xb10] sm:$0xff]
        %v681 = vld [vmem:[%s188 + $0xb18] sm:$0xff]
        %v682 = vld [vmem:[%s188 + $0xb20] sm:$0xff]
        %v683 = vld [vmem:[%s188 + $0xb28] sm:$0xff]
        %v684 = vld [vmem:[%s188 + $0xb30] sm:$0xff]
        %v685 = vld [vmem:[%s188 + $0xb38] sm:$0xff]
        %v686 = vld [vmem:[%s188 + $0xb40] sm:$0xff]
        %v687 = vld [vmem:[%s188 + $0xb48] sm:$0xff]
        %v688 = vld [vmem:[%s188 + $0xb50] sm:$0xff]
        %v689 = vld [vmem:[%s188 + $0xb58] sm:$0xff]
        %v690 = vld [vmem:[%s188 + $0xb60] sm:$0xff]
        %v691 = vld [vmem:[%s188 + $0xb68] sm:$0xff]
        %v692 = vld [vmem:[%s188 + $0xb70] sm:$0xff]
        %v693 = vld [vmem:[%s188 + $0xb78] sm:$0xff]
        %v694 = vld [vmem:[%s188 + $0xb80] sm:$0xff]
        %v695 = vld [vmem:[%s188 + $0xb88] sm:$0xff]
        %v696 = vld [vmem:[%s188 + $0xb90] sm:$0xff]
        %v697 = vld [vmem:[%s188 + $0xb98] sm:$0xff]
        %v698 = vld [vmem:[%s188 + $0xba0] sm:$0xff]
        %v699 = vld [vmem:[%s188 + $0xba8] sm:$0xff]
        %v700 = vld [vmem:[%s188 + $0xbb0] sm:$0xff]
        %v701 = vld [vmem:[%s188 + $0xbb8] sm:$0xff]
        %v702 = vld [vmem:[%s188 + $0xbc0] sm:$0xff]
        %v703 = vld [vmem:[%s188 + $0xbc8] sm:$0xff]
        %v704 = vld [vmem:[%s188 + $0xbd0] sm:$0xff]
        %v705 = vld [vmem:[%s188 + $0xbd8] sm:$0xff]
        %v706 = vld [vmem:[%s188 + $0xbe0] sm:$0xff]
        %v707 = vld [vmem:[%s188 + $0xbe8] sm:$0xff]
        %v708 = vld [vmem:[%s188 + $0xbf0] sm:$0xff]
        %v709 = vld [vmem:[%s188 + $0xbf8] sm:$0xff]
        %v710 = vld [vmem:[%s188 + $0xc00] sm:$0xff]
        %v711 = vld [vmem:[%s188 + $0xc08] sm:$0xff]
        %v712 = vld [vmem:[%s188 + $0xc10] sm:$0xff]
        %v713 = vld [vmem:[%s188 + $0xc18] sm:$0xff]
        %v714 = vld [vmem:[%s188 + $0xc20] sm:$0xff]
        %v715 = vld [vmem:[%s188 + $0xc28] sm:$0xff]
        %v716 = vld [vmem:[%s188 + $0xc30] sm:$0xff]
        %v717 = vld [vmem:[%s188 + $0xc38] sm:$0xff]
        %v718 = vld [vmem:[%s188 + $0xc40] sm:$0xff]
        %v719 = vld [vmem:[%s188 + $0xc48] sm:$0xff]
        %v720 = vld [vmem:[%s188 + $0xc50] sm:$0xff]
        %v721 = vld [vmem:[%s188 + $0xc58] sm:$0xff]
        %v722 = vld [vmem:[%s188 + $0xc60] sm:$0xff]
        %v723 = vld [vmem:[%s188 + $0xc68] sm:$0xff]
        %v724 = vld [vmem:[%s188 + $0xc70] sm:$0xff]
        %v725 = vld [vmem:[%s188 + $0xc78] sm:$0xff]
        %v726 = vld [vmem:[%s188 + $0xc80] sm:$0xff]
        %v727 = vld [vmem:[%s188 + $0xc88] sm:$0xff]
        %v728 = vld [vmem:[%s188 + $0xc90] sm:$0xff]
        %v729 = vld [vmem:[%s188 + $0xc98] sm:$0xff]
        %v730 = vld [vmem:[%s188 + $0xca0] sm:$0xff]
        %v731 = vld [vmem:[%s188 + $0xca8] sm:$0xff]
        %v732 = vld [vmem:[%s188 + $0xcb0] sm:$0xff]
        %v733 = vld [vmem:[%s188 + $0xcb8] sm:$0xff]
        %v734 = vld [vmem:[%s188 + $0xcc0] sm:$0xff]
        %v735 = vld [vmem:[%s188 + $0xcc8] sm:$0xff]
        %v736 = vld [vmem:[%s188 + $0xcd0] sm:$0xff]
        %v737 = vld [vmem:[%s188 + $0xcd8] sm:$0xff]
        %v738 = vld [vmem:[%s188 + $0xce0] sm:$0xff]
        %v739 = vld [vmem:[%s188 + $0xce8] sm:$0xff]
        %v740 = vld [vmem:[%s188 + $0xcf0] sm:$0xff]
        %v741 = vld [vmem:[%s188 + $0xcf8] sm:$0xff]
        %v742 = vld [vmem:[%s188 + $0xd00] sm:$0xff]
        %v743 = vld [vmem:[%s188 + $0xd08] sm:$0xff]
        %v744 = vld [vmem:[%s188 + $0xd10] sm:$0xff]
        %v745 = vld [vmem:[%s188 + $0xd18] sm:$0xff]
        %v746 = vld [vmem:[%s188 + $0xd20] sm:$0xff]
        %v747 = vld [vmem:[%s188 + $0xd28] sm:$0xff]
        %v748 = vld [vmem:[%s188 + $0xd30] sm:$0xff]
        %v749 = vld [vmem:[%s188 + $0xd38] sm:$0xff]
        %v750 = vld [vmem:[%s188 + $0xd40] sm:$0xff]
        %v751 = vld [vmem:[%s188 + $0xd48] sm:$0xff]
        %v752 = vld [vmem:[%s188 + $0xd50] sm:$0xff]
        %v753 = vld [vmem:[%s188 + $0xd58] sm:$0xff]
        %v754 = vld [vmem:[%s188 + $0xd60] sm:$0xff]
        %v755 = vld [vmem:[%s188 + $0xd68] sm:$0xff]
        %v756 = vld [vmem:[%s188 + $0xd70] sm:$0xff]
        %v757 = vld [vmem:[%s188 + $0xd78] sm:$0xff]
        %v758 = vld [vmem:[%s188 + $0xd80] sm:$0xff]
        %v759 = vld [vmem:[%s188 + $0xd88] sm:$0xff]
        %v760 = vld [vmem:[%s188 + $0xd90] sm:$0xff]
        %v761 = vld [vmem:[%s188 + $0xd98] sm:$0xff]
        %v762 = vld [vmem:[%s188 + $0xda0] sm:$0xff]
        %v763 = vld [vmem:[%s188 + $0xda8] sm:$0xff]
        %v764 = vld [vmem:[%s188 + $0xdb0] sm:$0xff]
        %v765 = vld [vmem:[%s188 + $0xdb8] sm:$0xff]
        %v766 = vld [vmem:[%s188 + $0xdc0] sm:$0xff]
        %v767 = vld [vmem:[%s188 + $0xdc8] sm:$0xff]
        %v768 = vld [vmem:[%s188 + $0xdd0] sm:$0xff]
        %v769 = vld [vmem:[%s188 + $0xdd8] sm:$0xff]
        %v770 = vld [vmem:[%s188 + $0xde0] sm:$0xff]
        %v771 = vld [vmem:[%s188 + $0xde8] sm:$0xff]
        %v772 = vld [vmem:[%s188 + $0xdf0] sm:$0xff]
        %v773 = vld [vmem:[%s188 + $0xdf8] sm:$0xff]
        %v774 = vld [vmem:[%s188 + $0xe00] sm:$0xff]
        %v775 = vld [vmem:[%s188 + $0xe08] sm:$0xff]
        %v776 = vld [vmem:[%s188 + $0xe10] sm:$0xff]
        %v777 = vld [vmem:[%s188 + $0xe18] sm:$0xff]
        %v778 = vld [vmem:[%s188 + $0xe20] sm:$0xff]
        %v779 = vld [vmem:[%s188 + $0xe28] sm:$0xff]
        %v780 = vld [vmem:[%s188 + $0xe30] sm:$0xff]
        %v781 = vld [vmem:[%s188 + $0xe38] sm:$0xff]
        %v782 = vld [vmem:[%s188 + $0xe40] sm:$0xff]
        %v783 = vld [vmem:[%s188 + $0xe48] sm:$0xff]
        %v784 = vld [vmem:[%s188 + $0xe50] sm:$0xff]
        %v785 = vld [vmem:[%s188 + $0xe58] sm:$0xff]
        %v786 = vld [vmem:[%s188 + $0xe60] sm:$0xff]
        %v787 = vld [vmem:[%s188 + $0xe68] sm:$0xff]
        %v788 = vld [vmem:[%s188 + $0xe70] sm:$0xff]
        %v789 = vld [vmem:[%s188 + $0xe78] sm:$0xff]
        %v790 = vld [vmem:[%s188 + $0xe80] sm:$0xff]
        %v791 = vld [vmem:[%s188 + $0xe88] sm:$0xff]
        %v792 = vld [vmem:[%s188 + $0xe90] sm:$0xff]
        %v793 = vld [vmem:[%s188 + $0xe98] sm:$0xff]
        %v794 = vld [vmem:[%s188 + $0xea0] sm:$0xff]
        %v795 = vld [vmem:[%s188 + $0xea8] sm:$0xff]
        %v796 = vld [vmem:[%s188 + $0xeb0] sm:$0xff]
        %v797 = vld [vmem:[%s188 + $0xeb8] sm:$0xff]
        %v798 = vld [vmem:[%s188 + $0xec0] sm:$0xff]
        %v799 = vld [vmem:[%s188 + $0xec8] sm:$0xff]
        %v800 = vld [vmem:[%s188 + $0xed0] sm:$0xff]
        %v801 = vld [vmem:[%s188 + $0xed8] sm:$0xff]
        %v802 = vld [vmem:[%s188 + $0xee0] sm:$0xff]
        %v803 = vld [vmem:[%s188 + $0xee8] sm:$0xff]
        %v804 = vld [vmem:[%s188 + $0xef0] sm:$0xff]
        %v805 = vld [vmem:[%s188 + $0xef8] sm:$0xff]
        %v806 = vld [vmem:[%s188 + $0xf00] sm:$0xff]
        %v807 = vld [vmem:[%s188 + $0xf08] sm:$0xff]
        %v808 = vld [vmem:[%s188 + $0xf10] sm:$0xff]
        %v809 = vld [vmem:[%s188 + $0xf18] sm:$0xff]
        %v810 = vld [vmem:[%s188 + $0xf20] sm:$0xff]
        %v811 = vld [vmem:[%s188 + $0xf28] sm:$0xff]
        %v812 = vld [vmem:[%s188 + $0xf30] sm:$0xff]
        %v813 = vld [vmem:[%s188 + $0xf38] sm:$0xff]
        %v814 = vld [vmem:[%s188 + $0xf40] sm:$0xff]
        %v815 = vld [vmem:[%s188 + $0xf48] sm:$0xff]
        %v816 = vld [vmem:[%s188 + $0xf50] sm:$0xff]
        %v817 = vld [vmem:[%s188 + $0xf58] sm:$0xff]
        %v818 = vld [vmem:[%s188 + $0xf60] sm:$0xff]
        %v819 = vld [vmem:[%s188 + $0xf68] sm:$0xff]
        %v820 = vld [vmem:[%s188 + $0xf70] sm:$0xff]
        %v821 = vld [vmem:[%s188 + $0xf78] sm:$0xff]
        %v822 = vld [vmem:[%s188 + $0xf80] sm:$0xff]
        %v823 = vld [vmem:[%s188 + $0xf88] sm:$0xff]
        %v824 = vld [vmem:[%s188 + $0xf90] sm:$0xff]
        %v825 = vld [vmem:[%s188 + $0xf98] sm:$0xff]
        %v826 = vld [vmem:[%s188 + $0xfa0] sm:$0xff]
        %v827 = vld [vmem:[%s188 + $0xfa8] sm:$0xff]
        %v828 = vld [vmem:[%s188 + $0xfb0] sm:$0xff]
        %v829 = vld [vmem:[%s188 + $0xfb8] sm:$0xff]
        %v830 = vld [vmem:[%s188 + $0xfc0] sm:$0xff]
        %v831 = vld [vmem:[%s188 + $0xfc8] sm:$0xff]
        %v832 = vld [vmem:[%s188 + $0xfd0] sm:$0xff]
        %v833 = vld [vmem:[%s188 + $0xfd8] sm:$0xff]
        %v834 = vld [vmem:[%s188 + $0xfe0] sm:$0xff]
        %v835 = vld [vmem:[%s188 + $0xfe8] sm:$0xff]
        %v836 = vld [vmem:[%s188 + $0xff0] sm:$0xff]
        %v837 = vld [vmem:[%s188 + $0xff8] sm:$0xff]
        %v838 = vld [vmem:[%s188 + $0x1000] sm:$0xff]
        %v839 = vld [vmem:[%s188 + $0x1008] sm:$0xff]
        %v840 = vld [vmem:[%s188 + $0x1010] sm:$0xff]
        %v841 = vld [vmem:[%s188 + $0x1018] sm:$0xff]
        %v842 = vld [vmem:[%s188 + $0x1020] sm:$0xff]
        %v843 = vld [vmem:[%s188 + $0x1028] sm:$0xff]
        %v844 = vld [vmem:[%s188 + $0x1030] sm:$0xff]
        %v845 = vld [vmem:[%s188 + $0x1038] sm:$0xff]
        %v846 = vld [vmem:[%s188 + $0x1040] sm:$0xff]
        %v847 = vld [vmem:[%s188 + $0x1048] sm:$0xff]
        %v848 = vld [vmem:[%s188 + $0x1050] sm:$0xff]
        %v849 = vld [vmem:[%s188 + $0x1058] sm:$0xff]
        %v850 = vld [vmem:[%s188 + $0x1060] sm:$0xff]
        %v851 = vld [vmem:[%s188 + $0x1068] sm:$0xff]
        %v852 = vld [vmem:[%s188 + $0x1070] sm:$0xff]
        %v853 = vld [vmem:[%s188 + $0x1078] sm:$0xff]
        %v854 = vld [vmem:[%s188 + $0x1080] sm:$0xff]
        %v855 = vld [vmem:[%s188 + $0x1088] sm:$0xff]
        %v856 = vld [vmem:[%s188 + $0x1090] sm:$0xff]
        %v857 = vld [vmem:[%s188 + $0x1098] sm:$0xff]
        %v858 = vld [vmem:[%s188 + $0x10a0] sm:$0xff]
        %v859 = vld [vmem:[%s188 + $0x10a8] sm:$0xff]
        %v860 = vld [vmem:[%s188 + $0x10b0] sm:$0xff]
        %v861 = vld [vmem:[%s188 + $0x10b8] sm:$0xff]
        %v862 = vld [vmem:[%s188 + $0x10c0] sm:$0xff]
        %v863 = vld [vmem:[%s188 + $0x10c8] sm:$0xff]
        %v864 = vld [vmem:[%s188 + $0x10d0] sm:$0xff]
        %v865 = vld [vmem:[%s188 + $0x10d8] sm:$0xff]
        %v866 = vld [vmem:[%s188 + $0x10e0] sm:$0xff]
        %v867 = vld [vmem:[%s188 + $0x10e8] sm:$0xff]
        %v868 = vld [vmem:[%s188 + $0x10f0] sm:$0xff]
        %v869 = vld [vmem:[%s188 + $0x10f8] sm:$0xff]
        %v870 = vld [vmem:[%s188 + $0x1100] sm:$0xff]
        %v871 = vld [vmem:[%s188 + $0x1108] sm:$0xff]
        %v872 = vld [vmem:[%s188 + $0x1110] sm:$0xff]
        %v873 = vld [vmem:[%s188 + $0x1118] sm:$0xff]
        %v874 = vld [vmem:[%s188 + $0x1120] sm:$0xff]
        %v875 = vld [vmem:[%s188 + $0x1128] sm:$0xff]
        %v876 = vld [vmem:[%s188 + $0x1130] sm:$0xff]
        %v877 = vld [vmem:[%s188 + $0x1138] sm:$0xff]
        %v878 = vld [vmem:[%s188 + $0x1140] sm:$0xff]
        %v879 = vld [vmem:[%s188 + $0x1148] sm:$0xff]
        %v880 = vld [vmem:[%s188 + $0x1150] sm:$0xff]
        %v881 = vld [vmem:[%s188 + $0x1158] sm:$0xff]
        %v882 = vld [vmem:[%s188 + $0x1160] sm:$0xff]
        %v883 = vld [vmem:[%s188 + $0x1168] sm:$0xff]
        %v884 = vld [vmem:[%s188 + $0x1170] sm:$0xff]
        %v885 = vld [vmem:[%s188 + $0x1178] sm:$0xff]
        %v886 = vld [vmem:[%s188 + $0x1180] sm:$0xff]
        %v887 = vld [vmem:[%s188 + $0x1188] sm:$0xff]
        %v888 = vld [vmem:[%s188 + $0x1190] sm:$0xff]
        %v889 = vld [vmem:[%s188 + $0x1198] sm:$0xff]
        %v890 = vld [vmem:[%s188 + $0x11a0] sm:$0xff]
        %v891 = vld [vmem:[%s188 + $0x11a8] sm:$0xff]
        %v892 = vld [vmem:[%s188 + $0x11b0] sm:$0xff]
        %v893 = vld [vmem:[%s188 + $0x11b8] sm:$0xff]
        %v894 = vld [vmem:[%s188 + $0x11c0] sm:$0xff]
        %v895 = vld [vmem:[%s188 + $0x11c8] sm:$0xff]
        %v896 = vld [vmem:[%s188 + $0x11d0] sm:$0xff]
        %v897 = vld [vmem:[%s188 + $0x11d8] sm:$0xff]
        %v898 = vld [vmem:[%s188 + $0x11e0] sm:$0xff]
        %v899 = vld [vmem:[%s188 + $0x11e8] sm:$0xff]
        %v900 = vld [vmem:[%s188 + $0x11f0] sm:$0xff]
        %v901 = vld [vmem:[%s188 + $0x11f8] sm:$0xff]
        %v902 = vld [vmem:[%s188 + $0x1200] sm:$0xff]
        %v903 = vld [vmem:[%s188 + $0x1208] sm:$0xff]
        %v904 = vld [vmem:[%s188 + $0x1210] sm:$0xff]
        %v905 = vld [vmem:[%s188 + $0x1218] sm:$0xff]
        %v906 = vld [vmem:[%s188 + $0x1220] sm:$0xff]
        %v907 = vld [vmem:[%s188 + $0x1228] sm:$0xff]
        %v908 = vld [vmem:[%s188 + $0x1230] sm:$0xff]
        %v909 = vld [vmem:[%s188 + $0x1238] sm:$0xff]
        %v910 = vld [vmem:[%s188 + $0x1240] sm:$0xff]
        %v911 = vld [vmem:[%s188 + $0x1248] sm:$0xff]
        %v912 = vld [vmem:[%s188 + $0x1250] sm:$0xff]
        %v913 = vld [vmem:[%s188 + $0x1258] sm:$0xff]
        %v914 = vld [vmem:[%s188 + $0x1260] sm:$0xff]
        %v915 = vld [vmem:[%s188 + $0x1268] sm:$0xff]
        %v916 = vld [vmem:[%s188 + $0x1270] sm:$0xff]
        %v917 = vld [vmem:[%s188 + $0x1278] sm:$0xff]
        %v918 = vld [vmem:[%s188 + $0x1280] sm:$0xff]
        %v919 = vld [vmem:[%s188 + $0x1288] sm:$0xff]
        %v920 = vld [vmem:[%s188 + $0x1290] sm:$0xff]
        %v921 = vld [vmem:[%s188 + $0x1298] sm:$0xff]
        %v922 = vld [vmem:[%s188 + $0x12a0] sm:$0xff]
        %v923 = vld [vmem:[%s188 + $0x12a8] sm:$0xff]
        %v924 = vld [vmem:[%s188 + $0x12b0] sm:$0xff]
        %v925 = vld [vmem:[%s188 + $0x12b8] sm:$0xff]
        %v926 = vld [vmem:[%s188 + $0x12c0] sm:$0xff]
        %v927 = vld [vmem:[%s188 + $0x12c8] sm:$0xff]
        %v928 = vld [vmem:[%s188 + $0x12d0] sm:$0xff]
        %v929 = vld [vmem:[%s188 + $0x12d8] sm:$0xff]
        %v930 = vld [vmem:[%s188 + $0x12e0] sm:$0xff]
        %v931 = vld [vmem:[%s188 + $0x12e8] sm:$0xff]
        %v932 = vld [vmem:[%s188 + $0x12f0] sm:$0xff]
        %v933 = vld [vmem:[%s188 + $0x12f8] sm:$0xff]
        %v934 = vld [vmem:[%s188 + $0x1300] sm:$0xff]
        %v935 = vld [vmem:[%s188 + $0x1308] sm:$0xff]
        %v936 = vld [vmem:[%s188 + $0x1310] sm:$0xff]
        %v937 = vld [vmem:[%s188 + $0x1318] sm:$0xff]
        %v938 = vld [vmem:[%s188 + $0x1320] sm:$0xff]
        %v939 = vld [vmem:[%s188 + $0x1328] sm:$0xff]
        %v940 = vld [vmem:[%s188 + $0x1330] sm:$0xff]
        %v941 = vld [vmem:[%s188 + $0x1338] sm:$0xff]
        %v942 = vld [vmem:[%s188 + $0x1340] sm:$0xff]
        %v943 = vld [vmem:[%s188 + $0x1348] sm:$0xff]
        %v944 = vld [vmem:[%s188 + $0x1350] sm:$0xff]
        %v945 = vld [vmem:[%s188 + $0x1358] sm:$0xff]
        %v946 = vld [vmem:[%s188 + $0x1360] sm:$0xff]
        %v947 = vld [vmem:[%s188 + $0x1368] sm:$0xff]
        %v948 = vld [vmem:[%s188 + $0x1370] sm:$0xff]
        %v949 = vld [vmem:[%s188 + $0x1378] sm:$0xff]
        %v950 = vld [vmem:[%s188 + $0x1380] sm:$0xff]
        %v951 = vld [vmem:[%s188 + $0x1388] sm:$0xff]
        %v952 = vld [vmem:[%s188 + $0x1390] sm:$0xff]
        %v953 = vld [vmem:[%s188 + $0x1398] sm:$0xff]
        %v954 = vld [vmem:[%s188 + $0x13a0] sm:$0xff]
        %v955 = vld [vmem:[%s188 + $0x13a8] sm:$0xff]
        %v956 = vld [vmem:[%s188 + $0x13b0] sm:$0xff]
        %v957 = vld [vmem:[%s188 + $0x13b8] sm:$0xff]
        %v958 = vld [vmem:[%s188 + $0x13c0] sm:$0xff]
        %v959 = vld [vmem:[%s188 + $0x13c8] sm:$0xff]
        %v960 = vld [vmem:[%s188 + $0x13d0] sm:$0xff]
        %v961 = vld [vmem:[%s188 + $0x13d8] sm:$0xff]
        %v962 = vld [vmem:[%s188 + $0x13e0] sm:$0xff]
        %v963 = vld [vmem:[%s188 + $0x13e8] sm:$0xff]
        %v964 = vld [vmem:[%s188 + $0x13f0] sm:$0xff]
        %v965 = vld [vmem:[%s188 + $0x13f8] sm:$0xff]
        %v966 = vld [vmem:[%s188 + $0x1400] sm:$0xff]
        %v967 = vld [vmem:[%s188 + $0x1408] sm:$0xff]
        %v968 = vld [vmem:[%s188 + $0x1410] sm:$0xff]
        %v969 = vld [vmem:[%s188 + $0x1418] sm:$0xff]
        %v970 = vld [vmem:[%s188 + $0x1420] sm:$0xff]
        %v971 = vld [vmem:[%s188 + $0x1428] sm:$0xff]
        %v972 = vld [vmem:[%s188 + $0x1430] sm:$0xff]
        %v973 = vld [vmem:[%s188 + $0x1438] sm:$0xff]
        %v974 = vld [vmem:[%s188 + $0x1440] sm:$0xff]
        %v975 = vld [vmem:[%s188 + $0x1448] sm:$0xff]
        %v976 = vld [vmem:[%s188 + $0x1450] sm:$0xff]
        %v977 = vld [vmem:[%s188 + $0x1458] sm:$0xff]
        %v978 = vld [vmem:[%s188 + $0x1460] sm:$0xff]
        %v979 = vld [vmem:[%s188 + $0x1468] sm:$0xff]
        %v980 = vld [vmem:[%s188 + $0x1470] sm:$0xff]
        %v981 = vld [vmem:[%s188 + $0x1478] sm:$0xff]
        %v982 = vld [vmem:[%s188 + $0x1480] sm:$0xff]
        %v983 = vld [vmem:[%s188 + $0x1488] sm:$0xff]
        %v984 = vld [vmem:[%s188 + $0x1490] sm:$0xff]
        %v985 = vld [vmem:[%s188 + $0x1498] sm:$0xff]
        %v986 = vld [vmem:[%s188 + $0x14a0] sm:$0xff]
        %v987 = vld [vmem:[%s188 + $0x14a8] sm:$0xff]
        %v988 = vld [vmem:[%s188 + $0x14b0] sm:$0xff]
        %v989 = vld [vmem:[%s188 + $0x14b8] sm:$0xff]
        %v990 = vld [vmem:[%s188 + $0x14c0] sm:$0xff]
        %v991 = vld [vmem:[%s188 + $0x14c8] sm:$0xff]
        %v992 = vld [vmem:[%s188 + $0x14d0] sm:$0xff]
        %v993 = vld [vmem:[%s188 + $0x14d8] sm:$0xff]
        %v994 = vld [vmem:[%s188 + $0x14e0] sm:$0xff]
        %v995 = vld [vmem:[%s188 + $0x14e8] sm:$0xff]
        %v996 = vld [vmem:[%s188 + $0x14f0] sm:$0xff]
        %v997 = vld [vmem:[%s188 + $0x14f8] sm:$0xff]
        %v998 = vld [vmem:[%s188 + $0x1500] sm:$0xff]
        %v999 = vld [vmem:[%s188 + $0x1508] sm:$0xff]
        %v1000 = vld [vmem:[%s188 + $0x1510] sm:$0xff]
        %v1001 = vld [vmem:[%s188 + $0x1518] sm:$0xff]
        %v1002 = vld [vmem:[%s188 + $0x1520] sm:$0xff]
        %v1003 = vld [vmem:[%s188 + $0x1528] sm:$0xff]
        %v1004 = vld [vmem:[%s188 + $0x1530] sm:$0xff]
        %v1005 = vld [vmem:[%s188 + $0x1538] sm:$0xff]
        %v1006 = vld [vmem:[%s188 + $0x1540] sm:$0xff]
        %v1007 = vld [vmem:[%s188 + $0x1548] sm:$0xff]
        %v1008 = vld [vmem:[%s188 + $0x1550] sm:$0xff]
        %v1009 = vld [vmem:[%s188 + $0x1558] sm:$0xff]
        %v1010 = vld [vmem:[%s188 + $0x1560] sm:$0xff]
        %v1011 = vld [vmem:[%s188 + $0x1568] sm:$0xff]
        %v1012 = vld [vmem:[%s188 + $0x1570] sm:$0xff]
        %v1013 = vld [vmem:[%s188 + $0x1578] sm:$0xff]
        %v1014 = vld [vmem:[%s188 + $0x1580] sm:$0xff]
        %v1015 = vld [vmem:[%s188 + $0x1588] sm:$0xff]
        %v1016 = vld [vmem:[%s188 + $0x1590] sm:$0xff]
        %v1017 = vld [vmem:[%s188 + $0x1598] sm:$0xff]
        %v1018 = vld [vmem:[%s188 + $0x15a0] sm:$0xff]
        %v1019 = vld [vmem:[%s188 + $0x15a8] sm:$0xff]
        %v1020 = vld [vmem:[%s188 + $0x15b0] sm:$0xff]
        %v1021 = vld [vmem:[%s188 + $0x15b8] sm:$0xff]
        %v1022 = vld [vmem:[%s188 + $0x15c0] sm:$0xff]
        %v1023 = vld [vmem:[%s188 + $0x15c8] sm:$0xff]
        %v1024 = vld [vmem:[%s188 + $0x15d0] sm:$0xff]
        %v1025 = vld [vmem:[%s188 + $0x15d8] sm:$0xff]
        %v1026 = vld [vmem:[%s188 + $0x15e0] sm:$0xff]
        %v1027 = vld [vmem:[%s188 + $0x15e8] sm:$0xff]
        %v1028 = vld [vmem:[%s188 + $0x15f0] sm:$0xff]
        %v1029 = vld [vmem:[%s188 + $0x15f8] sm:$0xff]
        %v1030 = vld [vmem:[%s188 + $0x1600] sm:$0xff]
        %v1031 = vld [vmem:[%s188 + $0x1608] sm:$0xff]
        %v1032 = vld [vmem:[%s188 + $0x1610] sm:$0xff]
        %v1033 = vld [vmem:[%s188 + $0x1618] sm:$0xff]
        %v1034 = vld [vmem:[%s188 + $0x1620] sm:$0xff]
        %v1035 = vld [vmem:[%s188 + $0x1628] sm:$0xff]
        %v1036 = vld [vmem:[%s188 + $0x1630] sm:$0xff]
        %v1037 = vld [vmem:[%s188 + $0x1638] sm:$0xff]
        %v1038 = vld [vmem:[%s188 + $0x1640] sm:$0xff]
        %v1039 = vld [vmem:[%s188 + $0x1648] sm:$0xff]
        %v1040 = vld [vmem:[%s188 + $0x1650] sm:$0xff]
        %v1041 = vld [vmem:[%s188 + $0x1658] sm:$0xff]
        %v1042 = vld [vmem:[%s188 + $0x1660] sm:$0xff]
        %v1043 = vld [vmem:[%s188 + $0x1668] sm:$0xff]
        %v1044 = vld [vmem:[%s188 + $0x1670] sm:$0xff]
        %v1045 = vld [vmem:[%s188 + $0x1678] sm:$0xff]
        %v1046 = vld [vmem:[%s188 + $0x1680] sm:$0xff]
        %v1047 = vld [vmem:[%s188 + $0x1688] sm:$0xff]
        %v1048 = vld [vmem:[%s188 + $0x1690] sm:$0xff]
        %v1049 = vld [vmem:[%s188 + $0x1698] sm:$0xff]
        %v1050 = vld [vmem:[%s188 + $0x16a0] sm:$0xff]
        %v1051 = vld [vmem:[%s188 + $0x16a8] sm:$0xff]
        %v1052 = vld [vmem:[%s188 + $0x16b0] sm:$0xff]
        %v1053 = vld [vmem:[%s188 + $0x16b8] sm:$0xff]
        %v1054 = vld [vmem:[%s188 + $0x16c0] sm:$0xff]
        %v1055 = vld [vmem:[%s188 + $0x16c8] sm:$0xff]
        %v1056 = vld [vmem:[%s188 + $0x16d0] sm:$0xff]
        %v1057 = vld [vmem:[%s188 + $0x16d8] sm:$0xff]
        %v1058 = vld [vmem:[%s188 + $0x16e0] sm:$0xff]
        %v1059 = vld [vmem:[%s188 + $0x16e8] sm:$0xff]
        %v1060 = vld [vmem:[%s188 + $0x16f0] sm:$0xff]
        %v1061 = vld [vmem:[%s188 + $0x16f8] sm:$0xff]
        %v1062 = vld [vmem:[%s188 + $0x1700] sm:$0xff]
        %v1063 = vld [vmem:[%s188 + $0x1708] sm:$0xff]
        %v1064 = vld [vmem:[%s188 + $0x1710] sm:$0xff]
        %v1065 = vld [vmem:[%s188 + $0x1718] sm:$0xff]
        %v1066 = vld [vmem:[%s188 + $0x1720] sm:$0xff]
        %v1067 = vld [vmem:[%s188 + $0x1728] sm:$0xff]
        %v1068 = vld [vmem:[%s188 + $0x1730] sm:$0xff]
        %v1069 = vld [vmem:[%s188 + $0x1738] sm:$0xff]
        %v1070 = vld [vmem:[%s188 + $0x1740] sm:$0xff]
        %v1071 = vld [vmem:[%s188 + $0x1748] sm:$0xff]
        %v1072 = vld [vmem:[%s188 + $0x1750] sm:$0xff]
        %v1073 = vld [vmem:[%s188 + $0x1758] sm:$0xff]
        %v1074 = vld [vmem:[%s188 + $0x1760] sm:$0xff]
        %v1075 = vld [vmem:[%s188 + $0x1768] sm:$0xff]
        %v1076 = vld [vmem:[%s188 + $0x1770] sm:$0xff]
        %v1077 = vld [vmem:[%s188 + $0x1778] sm:$0xff]
        %v1078 = vld [vmem:[%s188 + $0x1780] sm:$0xff]
        %v1079 = vld [vmem:[%s188 + $0x1788] sm:$0xff]
        %v1080 = vld [vmem:[%s188 + $0x1790] sm:$0xff]
        %v1081 = vld [vmem:[%s188 + $0x1798] sm:$0xff]
        %v1082 = vld [vmem:[%s188 + $0x17a0] sm:$0xff]
        %v1083 = vld [vmem:[%s188 + $0x17a8] sm:$0xff]
        %v1084 = vld [vmem:[%s188 + $0x17b0] sm:$0xff]
        %v1085 = vld [vmem:[%s188 + $0x17b8] sm:$0xff]
        %v1086 = vld [vmem:[%s188 + $0x17c0] sm:$0xff]
        %v1087 = vld [vmem:[%s188 + $0x17c8] sm:$0xff]
        %v1088 = vld [vmem:[%s188 + $0x17d0] sm:$0xff]
        %v1089 = vld [vmem:[%s188 + $0x17d8] sm:$0xff]
        %v1090 = vld [vmem:[%s188 + $0x17e0] sm:$0xff]
        %v1091 = vld [vmem:[%s188 + $0x17e8] sm:$0xff]
        %v1092 = vld [vmem:[%s188 + $0x17f0] sm:$0xff]
        %v1093 = vld [vmem:[%s188 + $0x17f8] sm:$0xff]
        %v1094 = vld [vmem:[%s188 + $0x1800] sm:$0xff]
        %v1095 = vld [vmem:[%s188 + $0x1808] sm:$0xff]
        %v1096 = vld [vmem:[%s188 + $0x1810] sm:$0xff]
        %v1097 = vld [vmem:[%s188 + $0x1818] sm:$0xff]
        %v1098 = vld [vmem:[%s188 + $0x1820] sm:$0xff]
        %v1099 = vld [vmem:[%s188 + $0x1828] sm:$0xff]
        %v1100 = vld [vmem:[%s188 + $0x1830] sm:$0xff]
        %v1101 = vld [vmem:[%s188 + $0x1838] sm:$0xff]
        %v1102 = vld [vmem:[%s188 + $0x1840] sm:$0xff]
        %v1103 = vld [vmem:[%s188 + $0x1848] sm:$0xff]
        %v1104 = vld [vmem:[%s188 + $0x1850] sm:$0xff]
        %v1105 = vld [vmem:[%s188 + $0x1858] sm:$0xff]
        %v1106 = vld [vmem:[%s188 + $0x1860] sm:$0xff]
        %v1107 = vld [vmem:[%s188 + $0x1868] sm:$0xff]
        %v1108 = vld [vmem:[%s188 + $0x1870] sm:$0xff]
        %v1109 = vld [vmem:[%s188 + $0x1878] sm:$0xff]
        %v1110 = vld [vmem:[%s188 + $0x1880] sm:$0xff]
        %v1111 = vld [vmem:[%s188 + $0x1888] sm:$0xff]
        %v1112 = vld [vmem:[%s188 + $0x1890] sm:$0xff]
        %v1113 = vld [vmem:[%s188 + $0x1898] sm:$0xff]
        %v1114 = vld [vmem:[%s188 + $0x18a0] sm:$0xff]
        %v1115 = vld [vmem:[%s188 + $0x18a8] sm:$0xff]
        %v1116 = vld [vmem:[%s188 + $0x18b0] sm:$0xff]
        %v1117 = vld [vmem:[%s188 + $0x18b8] sm:$0xff]
        %v1118 = vld [vmem:[%s188 + $0x18c0] sm:$0xff]
        %v1119 = vld [vmem:[%s188 + $0x18c8] sm:$0xff]
        %v1120 = vld [vmem:[%s188 + $0x18d0] sm:$0xff]
        %v1121 = vld [vmem:[%s188 + $0x18d8] sm:$0xff]
        %v1122 = vld [vmem:[%s188 + $0x18e0] sm:$0xff]
        %v1123 = vld [vmem:[%s188 + $0x18e8] sm:$0xff]
        %v1124 = vld [vmem:[%s188 + $0x18f0] sm:$0xff]
        %v1125 = vld [vmem:[%s188 + $0x18f8] sm:$0xff]
        %v1126 = vld [vmem:[%s188 + $0x1900] sm:$0xff]
        %v1127 = vld [vmem:[%s188 + $0x1908] sm:$0xff]
        %v1128 = vld [vmem:[%s188 + $0x1910] sm:$0xff]
        %v1129 = vld [vmem:[%s188 + $0x1918] sm:$0xff]
        %v1130 = vld [vmem:[%s188 + $0x1920] sm:$0xff]
        %v1131 = vld [vmem:[%s188 + $0x1928] sm:$0xff]
        %v1132 = vld [vmem:[%s188 + $0x1930] sm:$0xff]
        %v1133 = vld [vmem:[%s188 + $0x1938] sm:$0xff]
        %v1134 = vld [vmem:[%s188 + $0x1940] sm:$0xff]
        %v1135 = vld [vmem:[%s188 + $0x1948] sm:$0xff]
        %v1136 = vld [vmem:[%s188 + $0x1950] sm:$0xff]
        %v1137 = vld [vmem:[%s188 + $0x1958] sm:$0xff]
        %v1138 = vld [vmem:[%s188 + $0x1960] sm:$0xff]
        %v1139 = vld [vmem:[%s188 + $0x1968] sm:$0xff]
        %v1140 = vld [vmem:[%s188 + $0x1970] sm:$0xff]
        %v1141 = vld [vmem:[%s188 + $0x1978] sm:$0xff]
        %v1142 = vld [vmem:[%s188 + $0x1980] sm:$0xff]
        %v1143 = vld [vmem:[%s188 + $0x1988] sm:$0xff]
        %v1144 = vld [vmem:[%s188 + $0x1990] sm:$0xff]
        %v1145 = vld [vmem:[%s188 + $0x1998] sm:$0xff]
        %v1146 = vld [vmem:[%s188 + $0x19a0] sm:$0xff]
        %v1147 = vld [vmem:[%s188 + $0x19a8] sm:$0xff]
        %v1148 = vld [vmem:[%s188 + $0x19b0] sm:$0xff]
        %v1149 = vld [vmem:[%s188 + $0x19b8] sm:$0xff]
        %v1150 = vld [vmem:[%s188 + $0x19c0] sm:$0xff]
        %v1151 = vld [vmem:[%s188 + $0x19c8] sm:$0xff]
        %v1152 = vld [vmem:[%s188 + $0x19d0] sm:$0xff]
        %v1153 = vld [vmem:[%s188 + $0x19d8] sm:$0xff]
        %v1154 = vld [vmem:[%s188 + $0x19e0] sm:$0xff]
        %v1155 = vld [vmem:[%s188 + $0x19e8] sm:$0xff]
        %v1156 = vld [vmem:[%s188 + $0x19f0] sm:$0xff]
        %v1157 = vld [vmem:[%s188 + $0x19f8] sm:$0xff]
        %v1158 = vld [vmem:[%s188 + $0x1a00] sm:$0xff]
        %v1159 = vld [vmem:[%s188 + $0x1a08] sm:$0xff]
        %v1160 = vld [vmem:[%s188 + $0x1a10] sm:$0xff]
        %v1161 = vld [vmem:[%s188 + $0x1a18] sm:$0xff]
        %v1162 = vld [vmem:[%s188 + $0x1a20] sm:$0xff]
        %v1163 = vld [vmem:[%s188 + $0x1a28] sm:$0xff]
        %v1164 = vld [vmem:[%s188 + $0x1a30] sm:$0xff]
        %v1165 = vld [vmem:[%s188 + $0x1a38] sm:$0xff]
        %v1166 = vld [vmem:[%s188 + $0x1a40] sm:$0xff]
        %v1167 = vld [vmem:[%s188 + $0x1a48] sm:$0xff]
        %v1168 = vld [vmem:[%s188 + $0x1a50] sm:$0xff]
        %v1169 = vld [vmem:[%s188 + $0x1a58] sm:$0xff]
        %v1170 = vld [vmem:[%s188 + $0x1a60] sm:$0xff]
        %v1171 = vld [vmem:[%s188 + $0x1a68] sm:$0xff]
        %v1172 = vld [vmem:[%s188 + $0x1a70] sm:$0xff]
        %v1173 = vld [vmem:[%s188 + $0x1a78] sm:$0xff]
        %v1174 = vld [vmem:[%s188 + $0x1a80] sm:$0xff]
        %v1175 = vld [vmem:[%s188 + $0x1a88] sm:$0xff]
        %v1176 = vld [vmem:[%s188 + $0x1a90] sm:$0xff]
        %v1177 = vld [vmem:[%s188 + $0x1a98] sm:$0xff]
        %v1178 = vld [vmem:[%s188 + $0x1aa0] sm:$0xff]
        %v1179 = vld [vmem:[%s188 + $0x1aa8] sm:$0xff]
        %v1180 = vld [vmem:[%s188 + $0x1ab0] sm:$0xff]
        %v1181 = vld [vmem:[%s188 + $0x1ab8] sm:$0xff]
        %v1182 = vld [vmem:[%s188 + $0x1ac0] sm:$0xff]
        %v1183 = vld [vmem:[%s188 + $0x1ac8] sm:$0xff]
        %v1184 = vld [vmem:[%s188 + $0x1ad0] sm:$0xff]
        %v1185 = vld [vmem:[%s188 + $0x1ad8] sm:$0xff]
        %v1186 = vld [vmem:[%s188 + $0x1ae0] sm:$0xff]
        %v1187 = vld [vmem:[%s188 + $0x1ae8] sm:$0xff]
        %v1188 = vld [vmem:[%s188 + $0x1af0] sm:$0xff]
        %v1189 = vld [vmem:[%s188 + $0x1af8] sm:$0xff]
        %v1190 = vld [vmem:[%s188 + $0x1b00] sm:$0xff]
        %v1191 = vld [vmem:[%s188 + $0x1b08] sm:$0xff]
        %v1192 = vld [vmem:[%s188 + $0x1b10] sm:$0xff]
        %v1193 = vld [vmem:[%s188 + $0x1b18] sm:$0xff]
        %v1194 = vld [vmem:[%s188 + $0x1b20] sm:$0xff]
        %v1195 = vld [vmem:[%s188 + $0x1b28] sm:$0xff]
        %v1196 = vld [vmem:[%s188 + $0x1b30] sm:$0xff]
        %v1197 = vld [vmem:[%s188 + $0x1b38] sm:$0xff]
        %v1198 = vld [vmem:[%s188 + $0x1b40] sm:$0xff]
        %v1199 = vld [vmem:[%s188 + $0x1b48] sm:$0xff]
        %v1200 = vld [vmem:[%s188 + $0x1b50] sm:$0xff]
        %v1201 = vld [vmem:[%s188 + $0x1b58] sm:$0xff]
        %v1202 = vld [vmem:[%s188 + $0x1b60] sm:$0xff]
        %v1203 = vld [vmem:[%s188 + $0x1b68] sm:$0xff]
        %v1204 = vld [vmem:[%s188 + $0x1b70] sm:$0xff]
        %v1205 = vld [vmem:[%s188 + $0x1b78] sm:$0xff]
        %v1206 = vld [vmem:[%s188 + $0x1b80] sm:$0xff]
        %v1207 = vld [vmem:[%s188 + $0x1b88] sm:$0xff]
        %v1208 = vld [vmem:[%s188 + $0x1b90] sm:$0xff]
        %v1209 = vld [vmem:[%s188 + $0x1b98] sm:$0xff]
        %v1210 = vld [vmem:[%s188 + $0x1ba0] sm:$0xff]
        %v1211 = vld [vmem:[%s188 + $0x1ba8] sm:$0xff]
        %v1212 = vld [vmem:[%s188 + $0x1bb0] sm:$0xff]
        %v1213 = vld [vmem:[%s188 + $0x1bb8] sm:$0xff]
        %v1214 = vld [vmem:[%s188 + $0x1bc0] sm:$0xff]
        %v1215 = vld [vmem:[%s188 + $0x1bc8] sm:$0xff]
        %v1216 = vld [vmem:[%s188 + $0x1bd0] sm:$0xff]
        %v1217 = vld [vmem:[%s188 + $0x1bd8] sm:$0xff]
        %v1218 = vld [vmem:[%s188 + $0x1be0] sm:$0xff]
        %v1219 = vld [vmem:[%s188 + $0x1be8] sm:$0xff]
        %v1220 = vld [vmem:[%s188 + $0x1bf0] sm:$0xff]
        %v1221 = vld [vmem:[%s188 + $0x1bf8] sm:$0xff]
        %v1222 = vld [vmem:[%s188 + $0x1c00] sm:$0xff]
        %v1223 = vld [vmem:[%s188 + $0x1c08] sm:$0xff]
        %v1224 = vld [vmem:[%s188 + $0x1c10] sm:$0xff]
        %v1225 = vld [vmem:[%s188 + $0x1c18] sm:$0xff]
        %v1226 = vld [vmem:[%s188 + $0x1c20] sm:$0xff]
        %v1227 = vld [vmem:[%s188 + $0x1c28] sm:$0xff]
        %v1228 = vld [vmem:[%s188 + $0x1c30] sm:$0xff]
        %v1229 = vld [vmem:[%s188 + $0x1c38] sm:$0xff]
        %v1230 = vld [vmem:[%s188 + $0x1c40] sm:$0xff]
        %v1231 = vld [vmem:[%s188 + $0x1c48] sm:$0xff]
        %v1232 = vld [vmem:[%s188 + $0x1c50] sm:$0xff]
        %v1233 = vld [vmem:[%s188 + $0x1c58] sm:$0xff]
        %v1234 = vld [vmem:[%s188 + $0x1c60] sm:$0xff]
        %v1235 = vld [vmem:[%s188 + $0x1c68] sm:$0xff]
        %v1236 = vld [vmem:[%s188 + $0x1c70] sm:$0xff]
        %v1237 = vld [vmem:[%s188 + $0x1c78] sm:$0xff]
        %v1238 = vld [vmem:[%s188 + $0x1c80] sm:$0xff]
        %v1239 = vld [vmem:[%s188 + $0x1c88] sm:$0xff]
        %v1240 = vld [vmem:[%s188 + $0x1c90] sm:$0xff]
        %v1241 = vld [vmem:[%s188 + $0x1c98] sm:$0xff]
        %v1242 = vld [vmem:[%s188 + $0x1ca0] sm:$0xff]
        %v1243 = vld [vmem:[%s188 + $0x1ca8] sm:$0xff]
        %v1244 = vld [vmem:[%s188 + $0x1cb0] sm:$0xff]
        %v1245 = vld [vmem:[%s188 + $0x1cb8] sm:$0xff]
        %v1246 = vld [vmem:[%s188 + $0x1cc0] sm:$0xff]
        %v1247 = vld [vmem:[%s188 + $0x1cc8] sm:$0xff]
        %v1248 = vld [vmem:[%s188 + $0x1cd0] sm:$0xff]
        %v1249 = vld [vmem:[%s188 + $0x1cd8] sm:$0xff]
        %v1250 = vld [vmem:[%s188 + $0x1ce0] sm:$0xff]
        %v1251 = vld [vmem:[%s188 + $0x1ce8] sm:$0xff]
        %v1252 = vld [vmem:[%s188 + $0x1cf0] sm:$0xff]
        %v1253 = vld [vmem:[%s188 + $0x1cf8] sm:$0xff]
        %v1254 = vld [vmem:[%s188 + $0x1d00] sm:$0xff]
        %v1255 = vld [vmem:[%s188 + $0x1d08] sm:$0xff]
        %v1256 = vld [vmem:[%s188 + $0x1d10] sm:$0xff]
        %v1257 = vld [vmem:[%s188 + $0x1d18] sm:$0xff]
        %v1258 = vld [vmem:[%s188 + $0x1d20] sm:$0xff]
        %v1259 = vld [vmem:[%s188 + $0x1d28] sm:$0xff]
        %v1260 = vld [vmem:[%s188 + $0x1d30] sm:$0xff]
        %v1261 = vld [vmem:[%s188 + $0x1d38] sm:$0xff]
        %v1262 = vld [vmem:[%s188 + $0x1d40] sm:$0xff]
        %v1263 = vld [vmem:[%s188 + $0x1d48] sm:$0xff]
        %v1264 = vld [vmem:[%s188 + $0x1d50] sm:$0xff]
        %v1265 = vld [vmem:[%s188 + $0x1d58] sm:$0xff]
        %v1266 = vld [vmem:[%s188 + $0x1d60] sm:$0xff]
        %v1267 = vld [vmem:[%s188 + $0x1d68] sm:$0xff]
        %v1268 = vld [vmem:[%s188 + $0x1d70] sm:$0xff]
        %v1269 = vld [vmem:[%s188 + $0x1d78] sm:$0xff]
        %v1270 = vld [vmem:[%s188 + $0x1d80] sm:$0xff]
        %v1271 = vld [vmem:[%s188 + $0x1d88] sm:$0xff]
        %v1272 = vld [vmem:[%s188 + $0x1d90] sm:$0xff]
        %v1273 = vld [vmem:[%s188 + $0x1d98] sm:$0xff]
        %v1274 = vld [vmem:[%s188 + $0x1da0] sm:$0xff]
        %v1275 = vld [vmem:[%s188 + $0x1da8] sm:$0xff]
        %v1276 = vld [vmem:[%s188 + $0x1db0] sm:$0xff]
        %v1277 = vld [vmem:[%s188 + $0x1db8] sm:$0xff]
        %v1278 = vld [vmem:[%s188 + $0x1dc0] sm:$0xff]
        %v1279 = vld [vmem:[%s188 + $0x1dc8] sm:$0xff]
        %v1280 = vld [vmem:[%s188 + $0x1dd0] sm:$0xff]
        %v1281 = vld [vmem:[%s188 + $0x1dd8] sm:$0xff]
        %v1282 = vld [vmem:[%s188 + $0x1de0] sm:$0xff]
        %v1283 = vld [vmem:[%s188 + $0x1de8] sm:$0xff]
        %v1284 = vld [vmem:[%s188 + $0x1df0] sm:$0xff]
        %v1285 = vld [vmem:[%s188 + $0x1df8] sm:$0xff]
        %v1286 = vld [vmem:[%s188 + $0x1e00] sm:$0xff]
        %v1287 = vld [vmem:[%s188 + $0x1e08] sm:$0xff]
        %v1288 = vld [vmem:[%s188 + $0x1e10] sm:$0xff]
        %v1289 = vld [vmem:[%s188 + $0x1e18] sm:$0xff]
        %v1290 = vld [vmem:[%s188 + $0x1e20] sm:$0xff]
        %v1291 = vld [vmem:[%s188 + $0x1e28] sm:$0xff]
        %v1292 = vld [vmem:[%s188 + $0x1e30] sm:$0xff]
        %v1293 = vld [vmem:[%s188 + $0x1e38] sm:$0xff]
        %v1294 = vld [vmem:[%s188 + $0x1e40] sm:$0xff]
        %v1295 = vld [vmem:[%s188 + $0x1e48] sm:$0xff]
        %v1296 = vld [vmem:[%s188 + $0x1e50] sm:$0xff]
        %v1297 = vld [vmem:[%s188 + $0x1e58] sm:$0xff]
        %v1298 = vld [vmem:[%s188 + $0x1e60] sm:$0xff]
        %v1299 = vld [vmem:[%s188 + $0x1e68] sm:$0xff]
        %v1300 = vld [vmem:[%s188 + $0x1e70] sm:$0xff]
        %v1301 = vld [vmem:[%s188 + $0x1e78] sm:$0xff]
        %v1302 = vld [vmem:[%s188 + $0x1e80] sm:$0xff]
        %v1303 = vld [vmem:[%s188 + $0x1e88] sm:$0xff]
        %v1304 = vld [vmem:[%s188 + $0x1e90] sm:$0xff]
        %v1305 = vld [vmem:[%s188 + $0x1e98] sm:$0xff]
        %v1306 = vld [vmem:[%s188 + $0x1ea0] sm:$0xff]
        %v1307 = vld [vmem:[%s188 + $0x1ea8] sm:$0xff]
        %v1308 = vld [vmem:[%s188 + $0x1eb0] sm:$0xff]
        %v1309 = vld [vmem:[%s188 + $0x1eb8] sm:$0xff]
        %v1310 = vld [vmem:[%s188 + $0x1ec0] sm:$0xff]
        %v1311 = vld [vmem:[%s188 + $0x1ec8] sm:$0xff]
        %v1312 = vld [vmem:[%s188 + $0x1ed0] sm:$0xff]
        %v1313 = vld [vmem:[%s188 + $0x1ed8] sm:$0xff]
        %v1314 = vld [vmem:[%s188 + $0x1ee0] sm:$0xff]
        %v1315 = vld [vmem:[%s188 + $0x1ee8] sm:$0xff]
        %v1316 = vld [vmem:[%s188 + $0x1ef0] sm:$0xff]
        %v1317 = vld [vmem:[%s188 + $0x1ef8] sm:$0xff]
        %v1318 = vld [vmem:[%s188 + $0x1f00] sm:$0xff]
        %v1319 = vld [vmem:[%s188 + $0x1f08] sm:$0xff]
        %v1320 = vld [vmem:[%s188 + $0x1f10] sm:$0xff]
        %v1321 = vld [vmem:[%s188 + $0x1f18] sm:$0xff]
        %v1322 = vld [vmem:[%s188 + $0x1f20] sm:$0xff]
        %v1323 = vld [vmem:[%s188 + $0x1f28] sm:$0xff]
        %v1324 = vld [vmem:[%s188 + $0x1f30] sm:$0xff]
        %v1325 = vld [vmem:[%s188 + $0x1f38] sm:$0xff]
        %v1326 = vld [vmem:[%s188 + $0x1f40] sm:$0xff]
        %v1327 = vld [vmem:[%s188 + $0x1f48] sm:$0xff]
        %v1328 = vld [vmem:[%s188 + $0x1f50] sm:$0xff]
        %v1329 = vld [vmem:[%s188 + $0x1f58] sm:$0xff]
        %v1330 = vld [vmem:[%s188 + $0x1f60] sm:$0xff]
        %v1331 = vld [vmem:[%s188 + $0x1f68] sm:$0xff]
        %v1332 = vld [vmem:[%s188 + $0x1f70] sm:$0xff]
        %v1333 = vld [vmem:[%s188 + $0x1f78] sm:$0xff]
        %v1334 = vld [vmem:[%s188 + $0x1f80] sm:$0xff]
        %v1335 = vld [vmem:[%s188 + $0x1f88] sm:$0xff]
        %v1336 = vld [vmem:[%s188 + $0x1f90] sm:$0xff]
        %v1337 = vld [vmem:[%s188 + $0x1f98] sm:$0xff]
        %v1338 = vld [vmem:[%s188 + $0x1fa0] sm:$0xff]
        %v1339 = vld [vmem:[%s188 + $0x1fa8] sm:$0xff]
        %v1340 = vld [vmem:[%s188 + $0x1fb0] sm:$0xff]
        %v1341 = vld [vmem:[%s188 + $0x1fb8] sm:$0xff]
        %v1342 = vld [vmem:[%s188 + $0x1fc0] sm:$0xff]
        %v1343 = vld [vmem:[%s188 + $0x1fc8] sm:$0xff]
        %v1344 = vld [vmem:[%s188 + $0x1fd0] sm:$0xff]
        %v1345 = vld [vmem:[%s188 + $0x1fd8] sm:$0xff]
        %v1346 = vld [vmem:[%s188 + $0x1fe0] sm:$0xff]
        %v1347 = vld [vmem:[%s188 + $0x1fe8] sm:$0xff]
        %v1348 = vld [vmem:[%s188 + $0x1ff0] sm:$0xff]
        %v1349 = vld [vmem:[%s188 + $0x1ff8] sm:$0xff]
        %v1350 = vld [vmem:[%s188 + $0x2000] sm:$0xff]
        %v1351 = vld [vmem:[%s188 + $0x2008] sm:$0xff]
        %v1352 = vld [vmem:[%s188 + $0x2010] sm:$0xff]
        %v1353 = vld [vmem:[%s188 + $0x2018] sm:$0xff]
        %v1354 = vld [vmem:[%s188 + $0x2020] sm:$0xff]
        %v1355 = vld [vmem:[%s188 + $0x2028] sm:$0xff]
        %v1356 = vld [vmem:[%s188 + $0x2030] sm:$0xff]
        %v1357 = vld [vmem:[%s188 + $0x2038] sm:$0xff]
        %v1358 = vld [vmem:[%s188 + $0x2040] sm:$0xff]
        %v1359 = vld [vmem:[%s188 + $0x2048] sm:$0xff]
        %v1360 = vld [vmem:[%s188 + $0x2050] sm:$0xff]
        %v1361 = vld [vmem:[%s188 + $0x2058] sm:$0xff]
        %v1362 = vld [vmem:[%s188 + $0x2060] sm:$0xff]
        %v1363 = vld [vmem:[%s188 + $0x2068] sm:$0xff]
        %v1364 = vld [vmem:[%s188 + $0x2070] sm:$0xff]
        %v1365 = vld [vmem:[%s188 + $0x2078] sm:$0xff]
        %v1366 = vld [vmem:[%s188 + $0x2080] sm:$0xff]
        %v1367 = vld [vmem:[%s188 + $0x2088] sm:$0xff]
        %v1368 = vld [vmem:[%s188 + $0x2090] sm:$0xff]
        %v1369 = vld [vmem:[%s188 + $0x2098] sm:$0xff]
        %v1370 = vld [vmem:[%s188 + $0x20a0] sm:$0xff]
        %v1371 = vld [vmem:[%s188 + $0x20a8] sm:$0xff]
        %v1372 = vld [vmem:[%s188 + $0x20b0] sm:$0xff]
        %v1373 = vld [vmem:[%s188 + $0x20b8] sm:$0xff]
        %v1374 = vld [vmem:[%s188 + $0x20c0] sm:$0xff]
        %v1375 = vld [vmem:[%s188 + $0x20c8] sm:$0xff]
        %v1376 = vld [vmem:[%s188 + $0x20d0] sm:$0xff]
        %v1377 = vld [vmem:[%s188 + $0x20d8] sm:$0xff]
        %v1378 = vld [vmem:[%s188 + $0x20e0] sm:$0xff]
        %v1379 = vld [vmem:[%s188 + $0x20e8] sm:$0xff]
        %v1380 = vld [vmem:[%s188 + $0x20f0] sm:$0xff]
        %v1381 = vld [vmem:[%s188 + $0x20f8] sm:$0xff]
        %v1382 = vld [vmem:[%s188 + $0x2100] sm:$0xff]
        %v1383 = vld [vmem:[%s188 + $0x2108] sm:$0xff]
        %v1384 = vld [vmem:[%s188 + $0x2110] sm:$0xff]
        %v1385 = vld [vmem:[%s188 + $0x2118] sm:$0xff]
        %v1386 = vld [vmem:[%s188 + $0x2120] sm:$0xff]
        %v1387 = vld [vmem:[%s188 + $0x2128] sm:$0xff]
        %v1388 = vld [vmem:[%s188 + $0x2130] sm:$0xff]
        %v1389 = vld [vmem:[%s188 + $0x2138] sm:$0xff]
        %v1390 = vld [vmem:[%s188 + $0x2140] sm:$0xff]
        %v1391 = vld [vmem:[%s188 + $0x2148] sm:$0xff]
        %v1392 = vld [vmem:[%s188 + $0x2150] sm:$0xff]
        %v1393 = vld [vmem:[%s188 + $0x2158] sm:$0xff]
        %v1394 = vld [vmem:[%s188 + $0x2160] sm:$0xff]
        %v1395 = vld [vmem:[%s188 + $0x2168] sm:$0xff]
        %v1396 = vld [vmem:[%s188 + $0x2170] sm:$0xff]
        %v1397 = vld [vmem:[%s188 + $0x2178] sm:$0xff]
        %v1398 = vld [vmem:[%s188 + $0x2180] sm:$0xff]
        %v1399 = vld [vmem:[%s188 + $0x2188] sm:$0xff]
        %v1400 = vld [vmem:[%s188 + $0x2190] sm:$0xff]
        %v1401 = vld [vmem:[%s188 + $0x2198] sm:$0xff]
        %v1402 = vld [vmem:[%s188 + $0x21a0] sm:$0xff]
        %v1403 = vld [vmem:[%s188 + $0x21a8] sm:$0xff]
        %v1404 = vld [vmem:[%s188 + $0x21b0] sm:$0xff]
        %v1405 = vld [vmem:[%s188 + $0x21b8] sm:$0xff]
        %v1406 = vld [vmem:[%s188 + $0x21c0] sm:$0xff]
        %v1407 = vld [vmem:[%s188 + $0x21c8] sm:$0xff]
        %v1408 = vld [vmem:[%s188 + $0x21d0] sm:$0xff]
        %v1409 = vld [vmem:[%s188 + $0x21d8] sm:$0xff]
        %v1410 = vld [vmem:[%s188 + $0x21e0] sm:$0xff]
        %v1411 = vld [vmem:[%s188 + $0x21e8] sm:$0xff]
        %v1412 = vld [vmem:[%s188 + $0x21f0] sm:$0xff]
        %v1413 = vld [vmem:[%s188 + $0x21f8] sm:$0xff]
        %v1414 = vld [vmem:[%s188 + $0x2200] sm:$0xff]
        %v1415 = vld [vmem:[%s188 + $0x2208] sm:$0xff]
        %v1416 = vld [vmem:[%s188 + $0x2210] sm:$0xff]
        %v1417 = vld [vmem:[%s188 + $0x2218] sm:$0xff]
        %v1418 = vld [vmem:[%s188 + $0x2220] sm:$0xff]
        %v1419 = vld [vmem:[%s188 + $0x2228] sm:$0xff]
        %v1420 = vld [vmem:[%s188 + $0x2230] sm:$0xff]
        %v1421 = vld [vmem:[%s188 + $0x2238] sm:$0xff]
        %v1422 = vld [vmem:[%s188 + $0x2240] sm:$0xff]
        %v1423 = vld [vmem:[%s188 + $0x2248] sm:$0xff]
        %v1424 = vld [vmem:[%s188 + $0x2250] sm:$0xff]
        %v1425 = vld [vmem:[%s188 + $0x2258] sm:$0xff]
        %v1426 = vld [vmem:[%s188 + $0x2260] sm:$0xff]
        %v1427 = vld [vmem:[%s188 + $0x2268] sm:$0xff]
        %v1428 = vld [vmem:[%s188 + $0x2270] sm:$0xff]
        %v1429 = vld [vmem:[%s188 + $0x2278] sm:$0xff]
        %v1430 = vld [vmem:[%s188 + $0x2280] sm:$0xff]
        %v1431 = vld [vmem:[%s188 + $0x2288] sm:$0xff]
        %v1432 = vld [vmem:[%s188 + $0x2290] sm:$0xff]
        %v1433 = vld [vmem:[%s188 + $0x2298] sm:$0xff]
        %v1434 = vld [vmem:[%s188 + $0x22a0] sm:$0xff]
        %v1435 = vld [vmem:[%s188 + $0x22a8] sm:$0xff]
        %v1436 = vld [vmem:[%s188 + $0x22b0] sm:$0xff]
        %v1437 = vld [vmem:[%s188 + $0x22b8] sm:$0xff]
        %v1438 = vld [vmem:[%s188 + $0x22c0] sm:$0xff]
        %v1439 = vld [vmem:[%s188 + $0x22c8] sm:$0xff]
        %v1440 = vld [vmem:[%s188 + $0x22d0] sm:$0xff]
        %v1441 = vld [vmem:[%s188 + $0x22d8] sm:$0xff]
        %v1442 = vld [vmem:[%s188 + $0x22e0] sm:$0xff]
        %v1443 = vld [vmem:[%s188 + $0x22e8] sm:$0xff]
        %v1444 = vld [vmem:[%s188 + $0x22f0] sm:$0xff]
        %v1445 = vld [vmem:[%s188 + $0x22f8] sm:$0xff]
        %v1446 = vld [vmem:[%s188 + $0x2300] sm:$0xff]
        %v1447 = vld [vmem:[%s188 + $0x2308] sm:$0xff]
        %v1448 = vld [vmem:[%s188 + $0x2310] sm:$0xff]
        %v1449 = vld [vmem:[%s188 + $0x2318] sm:$0xff]
        %v1450 = vld [vmem:[%s188 + $0x2320] sm:$0xff]
        %v1451 = vld [vmem:[%s188 + $0x2328] sm:$0xff]
        %v1452 = vld [vmem:[%s188 + $0x2330] sm:$0xff]
        %v1453 = vld [vmem:[%s188 + $0x2338] sm:$0xff]
        %v1454 = vld [vmem:[%s188 + $0x2340] sm:$0xff]
        %v1455 = vld [vmem:[%s188 + $0x2348] sm:$0xff]
        %v1456 = vld [vmem:[%s188 + $0x2350] sm:$0xff]
        %v1457 = vld [vmem:[%s188 + $0x2358] sm:$0xff]
        %v1458 = vld [vmem:[%s188 + $0x2360] sm:$0xff]
        %v1459 = vld [vmem:[%s188 + $0x2368] sm:$0xff]
        %v1460 = vld [vmem:[%s188 + $0x2370] sm:$0xff]
        %v1461 = vld [vmem:[%s188 + $0x2378] sm:$0xff]
        %v1462 = vld [vmem:[%s188 + $0x2380] sm:$0xff]
        %v1463 = vld [vmem:[%s188 + $0x2388] sm:$0xff]
        %v1464 = vld [vmem:[%s188 + $0x2390] sm:$0xff]
        %v1465 = vld [vmem:[%s188 + $0x2398] sm:$0xff]
        %v1466 = vld [vmem:[%s188 + $0x23a0] sm:$0xff]
        %v1467 = vld [vmem:[%s188 + $0x23a8] sm:$0xff]
        %v1468 = vld [vmem:[%s188 + $0x23b0] sm:$0xff]
        %v1469 = vld [vmem:[%s188 + $0x23b8] sm:$0xff]
        %v1470 = vld [vmem:[%s188 + $0x23c0] sm:$0xff]
        %v1471 = vld [vmem:[%s188 + $0x23c8] sm:$0xff]
        %v1472 = vld [vmem:[%s188 + $0x23d0] sm:$0xff]
        %v1473 = vld [vmem:[%s188 + $0x23d8] sm:$0xff]
        %v1474 = vld [vmem:[%s188 + $0x23e0] sm:$0xff]
        %v1475 = vld [vmem:[%s188 + $0x23e8] sm:$0xff]
        %v1476 = vld [vmem:[%s188 + $0x23f0] sm:$0xff]
        %v1477 = vld [vmem:[%s188 + $0x23f8] sm:$0xff]
        %v1478 = vld [vmem:[%s198] sm:$0x3f]
        %v1480 = vperm.slane %v1478, 0
        %v1481 = vperm.slane %v1478, 1
        %v1482 = vperm.slane %v1478, 2
        %v1483 = vperm.slane %v1478, 3
        %v1484 = vperm.slane %v1478, 4
        %v1485 = vperm.slane %v1478, 5
        %v2644 = vunpack.c.l.b16 %v326
        %v2645 = vunpack.c.h.b16 %v326
        %v2646 = vunpack.c.l.b16 %v327
        %v2647 = vunpack.c.h.b16 %v327
        %v2648 = vunpack.c.l.b16 %v328
        %v2649 = vunpack.c.h.b16 %v328
        %v2650 = vunpack.c.l.b16 %v329
        %v2651 = vunpack.c.h.b16 %v329
        %v2652 = vunpack.c.l.b16 %v330
        %v2653 = vunpack.c.h.b16 %v330
        %v2654 = vunpack.c.l.b16 %v331
        %v2655 = vunpack.c.h.b16 %v331
        %v2656 = vunpack.c.l.b16 %v332
        %v2657 = vunpack.c.h.b16 %v332
        %v2658 = vunpack.c.l.b16 %v333
        %v2659 = vunpack.c.h.b16 %v333
        %v2660 = vunpack.c.l.b16 %v334
        %v2661 = vunpack.c.h.b16 %v334
        %v2662 = vunpack.c.l.b16 %v335
        %v2663 = vunpack.c.h.b16 %v335
        %v2664 = vunpack.c.l.b16 %v336
        %v2665 = vunpack.c.h.b16 %v336
        %v2666 = vunpack.c.l.b16 %v337
        %v2667 = vunpack.c.h.b16 %v337
        %v2668 = vunpack.c.l.b16 %v338
        %v2669 = vunpack.c.h.b16 %v338
        %v2670 = vunpack.c.l.b16 %v339
        %v2671 = vunpack.c.h.b16 %v339
        %v2672 = vunpack.c.l.b16 %v340
        %v2673 = vunpack.c.h.b16 %v340
        %v2674 = vunpack.c.l.b16 %v341
        %v2675 = vunpack.c.h.b16 %v341
        %v2676 = vunpack.c.l.b16 %v342
        %v2677 = vunpack.c.h.b16 %v342
        %v2678 = vunpack.c.l.b16 %v343
        %v2679 = vunpack.c.h.b16 %v343
        %v2680 = vunpack.c.l.b16 %v344
        %v2681 = vunpack.c.h.b16 %v344
        %v2682 = vunpack.c.l.b16 %v345
        %v2683 = vunpack.c.h.b16 %v345
        %v2684 = vunpack.c.l.b16 %v346
        %v2685 = vunpack.c.h.b16 %v346
        %v2686 = vunpack.c.l.b16 %v347
        %v2687 = vunpack.c.h.b16 %v347
        %v2688 = vunpack.c.l.b16 %v348
        %v2689 = vunpack.c.h.b16 %v348
        %v2690 = vunpack.c.l.b16 %v349
        %v2691 = vunpack.c.h.b16 %v349
        %v2692 = vunpack.c.l.b16 %v350
        %v2693 = vunpack.c.h.b16 %v350
        %v2694 = vunpack.c.l.b16 %v351
        %v2695 = vunpack.c.h.b16 %v351
        %v2696 = vunpack.c.l.b16 %v352
        %v2697 = vunpack.c.h.b16 %v352
        %v2698 = vunpack.c.l.b16 %v353
        %v2699 = vunpack.c.h.b16 %v353
        %v2700 = vunpack.c.l.b16 %v354
        %v2701 = vunpack.c.h.b16 %v354
        %v2702 = vunpack.c.l.b16 %v355
        %v2703 = vunpack.c.h.b16 %v355
        %v2704 = vunpack.c.l.b16 %v356
        %v2705 = vunpack.c.h.b16 %v356
        %v2706 = vunpack.c.l.b16 %v357
        %v2707 = vunpack.c.h.b16 %v357
        %v2708 = vunpack.c.l.b16 %v358
        %v2709 = vunpack.c.h.b16 %v358
        %v2710 = vunpack.c.l.b16 %v359
        %v2711 = vunpack.c.h.b16 %v359
        %v2712 = vunpack.c.l.b16 %v360
        %v2713 = vunpack.c.h.b16 %v360
        %v2714 = vunpack.c.l.b16 %v361
        %v2715 = vunpack.c.h.b16 %v361
        %v2716 = vunpack.c.l.b16 %v362
        %v2717 = vunpack.c.h.b16 %v362
        %v2718 = vunpack.c.l.b16 %v363
        %v2719 = vunpack.c.h.b16 %v363
        %v2720 = vunpack.c.l.b16 %v364
        %v2721 = vunpack.c.h.b16 %v364
        %v2722 = vunpack.c.l.b16 %v365
        %v2723 = vunpack.c.h.b16 %v365
        %v2724 = vunpack.c.l.b16 %v366
        %v2725 = vunpack.c.h.b16 %v366
        %v2726 = vunpack.c.l.b16 %v367
        %v2727 = vunpack.c.h.b16 %v367
        %v2728 = vunpack.c.l.b16 %v368
        %v2729 = vunpack.c.h.b16 %v368
        %v2730 = vunpack.c.l.b16 %v369
        %v2731 = vunpack.c.h.b16 %v369
        %v2732 = vunpack.c.l.b16 %v370
        %v2733 = vunpack.c.h.b16 %v370
        %v2734 = vunpack.c.l.b16 %v371
        %v2735 = vunpack.c.h.b16 %v371
        %v2736 = vunpack.c.l.b16 %v372
        %v2737 = vunpack.c.h.b16 %v372
        %v2738 = vunpack.c.l.b16 %v373
        %v2739 = vunpack.c.h.b16 %v373
        %v2740 = vunpack.c.l.b16 %v374
        %v2741 = vunpack.c.h.b16 %v374
        %v2742 = vunpack.c.l.b16 %v375
        %v2743 = vunpack.c.h.b16 %v375
        %v2744 = vunpack.c.l.b16 %v376
        %v2745 = vunpack.c.h.b16 %v376
        %v2746 = vunpack.c.l.b16 %v377
        %v2747 = vunpack.c.h.b16 %v377
        %v2748 = vunpack.c.l.b16 %v378
        %v2749 = vunpack.c.h.b16 %v378
        %v2750 = vunpack.c.l.b16 %v379
        %v2751 = vunpack.c.h.b16 %v379
        %v2752 = vunpack.c.l.b16 %v380
        %v2753 = vunpack.c.h.b16 %v380
        %v2754 = vunpack.c.l.b16 %v381
        %v2755 = vunpack.c.h.b16 %v381
        %v2756 = vunpack.c.l.b16 %v382
        %v2757 = vunpack.c.h.b16 %v382
        %v2758 = vunpack.c.l.b16 %v383
        %v2759 = vunpack.c.h.b16 %v383
        %v2760 = vunpack.c.l.b16 %v384
        %v2761 = vunpack.c.h.b16 %v384
        %v2762 = vunpack.c.l.b16 %v385
        %v2763 = vunpack.c.h.b16 %v385
        %v2764 = vunpack.c.l.b16 %v386
        %v2765 = vunpack.c.h.b16 %v386
        %v2766 = vunpack.c.l.b16 %v387
        %v2767 = vunpack.c.h.b16 %v387
        %v2768 = vunpack.c.l.b16 %v388
        %v2769 = vunpack.c.h.b16 %v388
        %v2770 = vunpack.c.l.b16 %v389
        %v2771 = vunpack.c.h.b16 %v389
        %v2772 = vunpack.c.l.b16 %v390
        %v2773 = vunpack.c.h.b16 %v390
        %v2774 = vunpack.c.l.b16 %v391
        %v2775 = vunpack.c.h.b16 %v391
        %v2776 = vunpack.c.l.b16 %v392
        %v2777 = vunpack.c.h.b16 %v392
        %v2778 = vunpack.c.l.b16 %v393
        %v2779 = vunpack.c.h.b16 %v393
        %v2780 = vunpack.c.l.b16 %v394
        %v2781 = vunpack.c.h.b16 %v394
        %v2782 = vunpack.c.l.b16 %v395
        %v2783 = vunpack.c.h.b16 %v395
        %v2784 = vunpack.c.l.b16 %v396
        %v2785 = vunpack.c.h.b16 %v396
        %v2786 = vunpack.c.l.b16 %v397
        %v2787 = vunpack.c.h.b16 %v397
        %v2788 = vunpack.c.l.b16 %v398
        %v2789 = vunpack.c.h.b16 %v398
        %v2790 = vunpack.c.l.b16 %v399
        %v2791 = vunpack.c.h.b16 %v399
        %v2792 = vunpack.c.l.b16 %v400
        %v2793 = vunpack.c.h.b16 %v400
        %v2794 = vunpack.c.l.b16 %v401
        %v2795 = vunpack.c.h.b16 %v401
        %v2796 = vunpack.c.l.b16 %v402
        %v2797 = vunpack.c.h.b16 %v402
        %v2798 = vunpack.c.l.b16 %v403
        %v2799 = vunpack.c.h.b16 %v403
        %v2800 = vunpack.c.l.b16 %v404
        %v2801 = vunpack.c.h.b16 %v404
        %v2802 = vunpack.c.l.b16 %v405
        %v2803 = vunpack.c.h.b16 %v405
        %v2804 = vunpack.c.l.b16 %v406
        %v2805 = vunpack.c.h.b16 %v406
        %v2806 = vunpack.c.l.b16 %v407
        %v2807 = vunpack.c.h.b16 %v407
        %v2808 = vunpack.c.l.b16 %v408
        %v2809 = vunpack.c.h.b16 %v408
        %v2810 = vunpack.c.l.b16 %v409
        %v2811 = vunpack.c.h.b16 %v409
        %v2812 = vunpack.c.l.b16 %v410
        %v2813 = vunpack.c.h.b16 %v410
        %v2814 = vunpack.c.l.b16 %v411
        %v2815 = vunpack.c.h.b16 %v411
        %v2816 = vunpack.c.l.b16 %v412
        %v2817 = vunpack.c.h.b16 %v412
        %v2818 = vunpack.c.l.b16 %v413
        %v2819 = vunpack.c.h.b16 %v413
        %v2820 = vunpack.c.l.b16 %v414
        %v2821 = vunpack.c.h.b16 %v414
        %v2822 = vunpack.c.l.b16 %v415
        %v2823 = vunpack.c.h.b16 %v415
        %v2824 = vunpack.c.l.b16 %v416
        %v2825 = vunpack.c.h.b16 %v416
        %v2826 = vunpack.c.l.b16 %v417
        %v2827 = vunpack.c.h.b16 %v417
        %v2828 = vunpack.c.l.b16 %v418
        %v2829 = vunpack.c.h.b16 %v418
        %v2830 = vunpack.c.l.b16 %v419
        %v2831 = vunpack.c.h.b16 %v419
        %v2832 = vunpack.c.l.b16 %v420
        %v2833 = vunpack.c.h.b16 %v420
        %v2834 = vunpack.c.l.b16 %v421
        %v2835 = vunpack.c.h.b16 %v421
        %v2836 = vunpack.c.l.b16 %v422
        %v2837 = vunpack.c.h.b16 %v422
        %v2838 = vunpack.c.l.b16 %v423
        %v2839 = vunpack.c.h.b16 %v423
        %v2840 = vunpack.c.l.b16 %v424
        %v2841 = vunpack.c.h.b16 %v424
        %v2842 = vunpack.c.l.b16 %v425
        %v2843 = vunpack.c.h.b16 %v425
        %v2844 = vunpack.c.l.b16 %v426
        %v2845 = vunpack.c.h.b16 %v426
        %v2846 = vunpack.c.l.b16 %v427
        %v2847 = vunpack.c.h.b16 %v427
        %v2848 = vunpack.c.l.b16 %v428
        %v2849 = vunpack.c.h.b16 %v428
        %v2850 = vunpack.c.l.b16 %v429
        %v2851 = vunpack.c.h.b16 %v429
        %v2852 = vunpack.c.l.b16 %v430
        %v2853 = vunpack.c.h.b16 %v430
        %v2854 = vunpack.c.l.b16 %v431
        %v2855 = vunpack.c.h.b16 %v431
        %v2856 = vunpack.c.l.b16 %v432
        %v2857 = vunpack.c.h.b16 %v432
        %v2858 = vunpack.c.l.b16 %v433
        %v2859 = vunpack.c.h.b16 %v433
        %v2860 = vunpack.c.l.b16 %v434
        %v2861 = vunpack.c.h.b16 %v434
        %v2862 = vunpack.c.l.b16 %v435
        %v2863 = vunpack.c.h.b16 %v435
        %v2864 = vunpack.c.l.b16 %v436
        %v2865 = vunpack.c.h.b16 %v436
        %v2866 = vunpack.c.l.b16 %v437
        %v2867 = vunpack.c.h.b16 %v437
        %v2868 = vunpack.c.l.b16 %v438
        %v2869 = vunpack.c.h.b16 %v438
        %v2870 = vunpack.c.l.b16 %v439
        %v2871 = vunpack.c.h.b16 %v439
        %v2872 = vunpack.c.l.b16 %v440
        %v2873 = vunpack.c.h.b16 %v440
        %v2874 = vunpack.c.l.b16 %v441
        %v2875 = vunpack.c.h.b16 %v441
        %v2876 = vunpack.c.l.b16 %v442
        %v2877 = vunpack.c.h.b16 %v442
        %v2878 = vunpack.c.l.b16 %v443
        %v2879 = vunpack.c.h.b16 %v443
        %v2880 = vunpack.c.l.b16 %v444
        %v2881 = vunpack.c.h.b16 %v444
        %v2882 = vunpack.c.l.b16 %v445
        %v2883 = vunpack.c.h.b16 %v445
        %v2884 = vunpack.c.l.b16 %v446
        %v2885 = vunpack.c.h.b16 %v446
        %v2886 = vunpack.c.l.b16 %v447
        %v2887 = vunpack.c.h.b16 %v447
        %v2888 = vunpack.c.l.b16 %v448
        %v2889 = vunpack.c.h.b16 %v448
        %v2890 = vunpack.c.l.b16 %v449
        %v2891 = vunpack.c.h.b16 %v449
        %v2892 = vunpack.c.l.b16 %v450
        %v2893 = vunpack.c.h.b16 %v450
        %v2894 = vunpack.c.l.b16 %v451
        %v2895 = vunpack.c.h.b16 %v451
        %v2896 = vunpack.c.l.b16 %v452
        %v2897 = vunpack.c.h.b16 %v452
        %v2898 = vunpack.c.l.b16 %v453
        %v2899 = vunpack.c.h.b16 %v453
        %v2900 = vunpack.c.l.b16 %v454
        %v2901 = vunpack.c.h.b16 %v454
        %v2902 = vunpack.c.l.b16 %v455
        %v2903 = vunpack.c.h.b16 %v455
        %v2904 = vunpack.c.l.b16 %v456
        %v2905 = vunpack.c.h.b16 %v456
        %v2906 = vunpack.c.l.b16 %v457
        %v2907 = vunpack.c.h.b16 %v457
        %v2908 = vunpack.c.l.b16 %v458
        %v2909 = vunpack.c.h.b16 %v458
        %v2910 = vunpack.c.l.b16 %v459
        %v2911 = vunpack.c.h.b16 %v459
        %v2912 = vunpack.c.l.b16 %v460
        %v2913 = vunpack.c.h.b16 %v460
        %v2914 = vunpack.c.l.b16 %v461
        %v2915 = vunpack.c.h.b16 %v461
        %v2916 = vunpack.c.l.b16 %v462
        %v2917 = vunpack.c.h.b16 %v462
        %v2918 = vunpack.c.l.b16 %v463
        %v2919 = vunpack.c.h.b16 %v463
        %v2920 = vunpack.c.l.b16 %v464
        %v2921 = vunpack.c.h.b16 %v464
        %v2922 = vunpack.c.l.b16 %v465
        %v2923 = vunpack.c.h.b16 %v465
        %v2924 = vunpack.c.l.b16 %v466
        %v2925 = vunpack.c.h.b16 %v466
        %v2926 = vunpack.c.l.b16 %v467
        %v2927 = vunpack.c.h.b16 %v467
        %v2928 = vunpack.c.l.b16 %v468
        %v2929 = vunpack.c.h.b16 %v468
        %v2930 = vunpack.c.l.b16 %v469
        %v2931 = vunpack.c.h.b16 %v469
        %v2932 = vunpack.c.l.b16 %v470
        %v2933 = vunpack.c.h.b16 %v470
        %v2934 = vunpack.c.l.b16 %v471
        %v2935 = vunpack.c.h.b16 %v471
        %v2936 = vunpack.c.l.b16 %v472
        %v2937 = vunpack.c.h.b16 %v472
        %v2938 = vunpack.c.l.b16 %v473
        %v2939 = vunpack.c.h.b16 %v473
        %v2940 = vunpack.c.l.b16 %v474
        %v2941 = vunpack.c.h.b16 %v474
        %v2942 = vunpack.c.l.b16 %v475
        %v2943 = vunpack.c.h.b16 %v475
        %v2944 = vunpack.c.l.b16 %v476
        %v2945 = vunpack.c.h.b16 %v476
        %v2946 = vunpack.c.l.b16 %v477
        %v2947 = vunpack.c.h.b16 %v477
        %v2948 = vunpack.c.l.b16 %v478
        %v2949 = vunpack.c.h.b16 %v478
        %v2950 = vunpack.c.l.b16 %v479
        %v2951 = vunpack.c.h.b16 %v479
        %v2952 = vunpack.c.l.b16 %v480
        %v2953 = vunpack.c.h.b16 %v480
        %v2954 = vunpack.c.l.b16 %v481
        %v2955 = vunpack.c.h.b16 %v481
        %v2956 = vunpack.c.l.b16 %v482
        %v2957 = vunpack.c.h.b16 %v482
        %v2958 = vunpack.c.l.b16 %v483
        %v2959 = vunpack.c.h.b16 %v483
        %v2960 = vunpack.c.l.b16 %v484
        %v2961 = vunpack.c.h.b16 %v484
        %v2962 = vunpack.c.l.b16 %v485
        %v2963 = vunpack.c.h.b16 %v485
        %v2964 = vunpack.c.l.b16 %v486
        %v2965 = vunpack.c.h.b16 %v486
        %v2966 = vunpack.c.l.b16 %v487
        %v2967 = vunpack.c.h.b16 %v487
        %v2968 = vunpack.c.l.b16 %v488
        %v2969 = vunpack.c.h.b16 %v488
        %v2970 = vunpack.c.l.b16 %v489
        %v2971 = vunpack.c.h.b16 %v489
        %v2972 = vunpack.c.l.b16 %v490
        %v2973 = vunpack.c.h.b16 %v490
        %v2974 = vunpack.c.l.b16 %v491
        %v2975 = vunpack.c.h.b16 %v491
        %v2976 = vunpack.c.l.b16 %v492
        %v2977 = vunpack.c.h.b16 %v492
        %v2978 = vunpack.c.l.b16 %v493
        %v2979 = vunpack.c.h.b16 %v493
        %v2980 = vunpack.c.l.b16 %v494
        %v2981 = vunpack.c.h.b16 %v494
        %v2982 = vunpack.c.l.b16 %v495
        %v2983 = vunpack.c.h.b16 %v495
        %v2984 = vunpack.c.l.b16 %v496
        %v2985 = vunpack.c.h.b16 %v496
        %v2986 = vunpack.c.l.b16 %v497
        %v2987 = vunpack.c.h.b16 %v497
        %v2988 = vunpack.c.l.b16 %v498
        %v2989 = vunpack.c.h.b16 %v498
        %v2990 = vunpack.c.l.b16 %v499
        %v2991 = vunpack.c.h.b16 %v499
        %v2992 = vunpack.c.l.b16 %v500
        %v2993 = vunpack.c.h.b16 %v500
        %v2994 = vunpack.c.l.b16 %v501
        %v2995 = vunpack.c.h.b16 %v501
        %v2996 = vunpack.c.l.b16 %v502
        %v2997 = vunpack.c.h.b16 %v502
        %v2998 = vunpack.c.l.b16 %v503
        %v2999 = vunpack.c.h.b16 %v503
        %v3000 = vunpack.c.l.b16 %v504
        %v3001 = vunpack.c.h.b16 %v504
        %v3002 = vunpack.c.l.b16 %v505
        %v3003 = vunpack.c.h.b16 %v505
        %v3004 = vunpack.c.l.b16 %v506
        %v3005 = vunpack.c.h.b16 %v506
        %v3006 = vunpack.c.l.b16 %v507
        %v3007 = vunpack.c.h.b16 %v507
        %v3008 = vunpack.c.l.b16 %v508
        %v3009 = vunpack.c.h.b16 %v508
        %v3010 = vunpack.c.l.b16 %v509
        %v3011 = vunpack.c.h.b16 %v509
        %v3012 = vunpack.c.l.b16 %v510
        %v3013 = vunpack.c.h.b16 %v510
        %v3014 = vunpack.c.l.b16 %v511
        %v3015 = vunpack.c.h.b16 %v511
        %v3016 = vunpack.c.l.b16 %v512
        %v3017 = vunpack.c.h.b16 %v512
        %v3018 = vunpack.c.l.b16 %v513
        %v3019 = vunpack.c.h.b16 %v513
        %v3020 = vunpack.c.l.b16 %v514
        %v3021 = vunpack.c.h.b16 %v514
        %v3022 = vunpack.c.l.b16 %v515
        %v3023 = vunpack.c.h.b16 %v515
        %v3024 = vunpack.c.l.b16 %v516
        %v3025 = vunpack.c.h.b16 %v516
        %v3026 = vunpack.c.l.b16 %v517
        %v3027 = vunpack.c.h.b16 %v517
        %v3028 = vunpack.c.l.b16 %v518
        %v3029 = vunpack.c.h.b16 %v518
        %v3030 = vunpack.c.l.b16 %v519
        %v3031 = vunpack.c.h.b16 %v519
        %v3032 = vunpack.c.l.b16 %v520
        %v3033 = vunpack.c.h.b16 %v520
        %v3034 = vunpack.c.l.b16 %v521
        %v3035 = vunpack.c.h.b16 %v521
        %v3036 = vunpack.c.l.b16 %v522
        %v3037 = vunpack.c.h.b16 %v522
        %v3038 = vunpack.c.l.b16 %v523
        %v3039 = vunpack.c.h.b16 %v523
        %v3040 = vunpack.c.l.b16 %v524
        %v3041 = vunpack.c.h.b16 %v524
        %v3042 = vunpack.c.l.b16 %v525
        %v3043 = vunpack.c.h.b16 %v525
        %v3044 = vunpack.c.l.b16 %v526
        %v3045 = vunpack.c.h.b16 %v526
        %v3046 = vunpack.c.l.b16 %v527
        %v3047 = vunpack.c.h.b16 %v527
        %v3048 = vunpack.c.l.b16 %v528
        %v3049 = vunpack.c.h.b16 %v528
        %v3050 = vunpack.c.l.b16 %v529
        %v3051 = vunpack.c.h.b16 %v529
        %v3052 = vunpack.c.l.b16 %v530
        %v3053 = vunpack.c.h.b16 %v530
        %v3054 = vunpack.c.l.b16 %v531
        %v3055 = vunpack.c.h.b16 %v531
        %v3056 = vunpack.c.l.b16 %v532
        %v3057 = vunpack.c.h.b16 %v532
        %v3058 = vunpack.c.l.b16 %v533
        %v3059 = vunpack.c.h.b16 %v533
        %v3060 = vunpack.c.l.b16 %v534
        %v3061 = vunpack.c.h.b16 %v534
        %v3062 = vunpack.c.l.b16 %v535
        %v3063 = vunpack.c.h.b16 %v535
        %v3064 = vunpack.c.l.b16 %v536
        %v3065 = vunpack.c.h.b16 %v536
        %v3066 = vunpack.c.l.b16 %v537
        %v3067 = vunpack.c.h.b16 %v537
        %v3068 = vunpack.c.l.b16 %v538
        %v3069 = vunpack.c.h.b16 %v538
        %v3070 = vunpack.c.l.b16 %v539
        %v3071 = vunpack.c.h.b16 %v539
        %v3072 = vunpack.c.l.b16 %v540
        %v3073 = vunpack.c.h.b16 %v540
        %v3074 = vunpack.c.l.b16 %v541
        %v3075 = vunpack.c.h.b16 %v541
        %v3076 = vunpack.c.l.b16 %v542
        %v3077 = vunpack.c.h.b16 %v542
        %v3078 = vunpack.c.l.b16 %v543
        %v3079 = vunpack.c.h.b16 %v543
        %v3080 = vunpack.c.l.b16 %v544
        %v3081 = vunpack.c.h.b16 %v544
        %v3082 = vunpack.c.l.b16 %v545
        %v3083 = vunpack.c.h.b16 %v545
        %v3084 = vunpack.c.l.b16 %v546
        %v3085 = vunpack.c.h.b16 %v546
        %v3086 = vunpack.c.l.b16 %v547
        %v3087 = vunpack.c.h.b16 %v547
        %v3088 = vunpack.c.l.b16 %v548
        %v3089 = vunpack.c.h.b16 %v548
        %v3090 = vunpack.c.l.b16 %v549
        %v3091 = vunpack.c.h.b16 %v549
        %v3092 = vunpack.c.l.b16 %v550
        %v3093 = vunpack.c.h.b16 %v550
        %v3094 = vunpack.c.l.b16 %v551
        %v3095 = vunpack.c.h.b16 %v551
        %v3096 = vunpack.c.l.b16 %v552
        %v3097 = vunpack.c.h.b16 %v552
        %v3098 = vunpack.c.l.b16 %v553
        %v3099 = vunpack.c.h.b16 %v553
        %v3100 = vunpack.c.l.b16 %v554
        %v3101 = vunpack.c.h.b16 %v554
        %v3102 = vunpack.c.l.b16 %v555
        %v3103 = vunpack.c.h.b16 %v555
        %v3104 = vunpack.c.l.b16 %v556
        %v3105 = vunpack.c.h.b16 %v556
        %v3106 = vunpack.c.l.b16 %v557
        %v3107 = vunpack.c.h.b16 %v557
        %v3108 = vunpack.c.l.b16 %v558
        %v3109 = vunpack.c.h.b16 %v558
        %v3110 = vunpack.c.l.b16 %v559
        %v3111 = vunpack.c.h.b16 %v559
        %v3112 = vunpack.c.l.b16 %v560
        %v3113 = vunpack.c.h.b16 %v560
        %v3114 = vunpack.c.l.b16 %v561
        %v3115 = vunpack.c.h.b16 %v561
        %v3116 = vunpack.c.l.b16 %v562
        %v3117 = vunpack.c.h.b16 %v562
        %v3118 = vunpack.c.l.b16 %v563
        %v3119 = vunpack.c.h.b16 %v563
        %v3120 = vunpack.c.l.b16 %v564
        %v3121 = vunpack.c.h.b16 %v564
        %v3122 = vunpack.c.l.b16 %v565
        %v3123 = vunpack.c.h.b16 %v565
        %v3124 = vunpack.c.l.b16 %v566
        %v3125 = vunpack.c.h.b16 %v566
        %v3126 = vunpack.c.l.b16 %v567
        %v3127 = vunpack.c.h.b16 %v567
        %v3128 = vunpack.c.l.b16 %v568
        %v3129 = vunpack.c.h.b16 %v568
        %v3130 = vunpack.c.l.b16 %v569
        %v3131 = vunpack.c.h.b16 %v569
        %v3132 = vunpack.c.l.b16 %v570
        %v3133 = vunpack.c.h.b16 %v570
        %v3134 = vunpack.c.l.b16 %v571
        %v3135 = vunpack.c.h.b16 %v571
        %v3136 = vunpack.c.l.b16 %v572
        %v3137 = vunpack.c.h.b16 %v572
        %v3138 = vunpack.c.l.b16 %v573
        %v3139 = vunpack.c.h.b16 %v573
        %v3140 = vunpack.c.l.b16 %v574
        %v3141 = vunpack.c.h.b16 %v574
        %v3142 = vunpack.c.l.b16 %v575
        %v3143 = vunpack.c.h.b16 %v575
        %v3144 = vunpack.c.l.b16 %v576
        %v3145 = vunpack.c.h.b16 %v576
        %v3146 = vunpack.c.l.b16 %v577
        %v3147 = vunpack.c.h.b16 %v577
        %v3148 = vunpack.c.l.b16 %v578
        %v3149 = vunpack.c.h.b16 %v578
        %v3150 = vunpack.c.l.b16 %v579
        %v3151 = vunpack.c.h.b16 %v579
        %v3152 = vunpack.c.l.b16 %v580
        %v3153 = vunpack.c.h.b16 %v580
        %v3154 = vunpack.c.l.b16 %v581
        %v3155 = vunpack.c.h.b16 %v581
        %v3156 = vunpack.c.l.b16 %v582
        %v3157 = vunpack.c.h.b16 %v582
        %v3158 = vunpack.c.l.b16 %v583
        %v3159 = vunpack.c.h.b16 %v583
        %v3160 = vunpack.c.l.b16 %v584
        %v3161 = vunpack.c.h.b16 %v584
        %v3162 = vunpack.c.l.b16 %v585
        %v3163 = vunpack.c.h.b16 %v585
        %v3164 = vunpack.c.l.b16 %v586
        %v3165 = vunpack.c.h.b16 %v586
        %v3166 = vunpack.c.l.b16 %v587
        %v3167 = vunpack.c.h.b16 %v587
        %v3168 = vunpack.c.l.b16 %v588
        %v3169 = vunpack.c.h.b16 %v588
        %v3170 = vunpack.c.l.b16 %v589
        %v3171 = vunpack.c.h.b16 %v589
        %v3172 = vunpack.c.l.b16 %v590
        %v3173 = vunpack.c.h.b16 %v590
        %v3174 = vunpack.c.l.b16 %v591
        %v3175 = vunpack.c.h.b16 %v591
        %v3176 = vunpack.c.l.b16 %v592
        %v3177 = vunpack.c.h.b16 %v592
        %v3178 = vunpack.c.l.b16 %v593
        %v3179 = vunpack.c.h.b16 %v593
        %v3180 = vunpack.c.l.b16 %v594
        %v3181 = vunpack.c.h.b16 %v594
        %v3182 = vunpack.c.l.b16 %v595
        %v3183 = vunpack.c.h.b16 %v595
        %v3184 = vunpack.c.l.b16 %v596
        %v3185 = vunpack.c.h.b16 %v596
        %v3186 = vunpack.c.l.b16 %v597
        %v3187 = vunpack.c.h.b16 %v597
        %v3188 = vunpack.c.l.b16 %v598
        %v3189 = vunpack.c.h.b16 %v598
        %v3190 = vunpack.c.l.b16 %v599
        %v3191 = vunpack.c.h.b16 %v599
        %v3192 = vunpack.c.l.b16 %v600
        %v3193 = vunpack.c.h.b16 %v600
        %v3194 = vunpack.c.l.b16 %v601
        %v3195 = vunpack.c.h.b16 %v601
        %v3196 = vunpack.c.l.b16 %v602
        %v3197 = vunpack.c.h.b16 %v602
        %v3198 = vunpack.c.l.b16 %v603
        %v3199 = vunpack.c.h.b16 %v603
        %v3200 = vunpack.c.l.b16 %v604
        %v3201 = vunpack.c.h.b16 %v604
        %v3202 = vunpack.c.l.b16 %v605
        %v3203 = vunpack.c.h.b16 %v605
        %v3204 = vunpack.c.l.b16 %v606
        %v3205 = vunpack.c.h.b16 %v606
        %v3206 = vunpack.c.l.b16 %v607
        %v3207 = vunpack.c.h.b16 %v607
        %v3208 = vunpack.c.l.b16 %v608
        %v3209 = vunpack.c.h.b16 %v608
        %v3210 = vunpack.c.l.b16 %v609
        %v3211 = vunpack.c.h.b16 %v609
        %v3212 = vunpack.c.l.b16 %v610
        %v3213 = vunpack.c.h.b16 %v610
        %v3214 = vunpack.c.l.b16 %v611
        %v3215 = vunpack.c.h.b16 %v611
        %v3216 = vunpack.c.l.b16 %v612
        %v3217 = vunpack.c.h.b16 %v612
        %v3218 = vunpack.c.l.b16 %v613
        %v3219 = vunpack.c.h.b16 %v613
        %v3220 = vunpack.c.l.b16 %v614
        %v3221 = vunpack.c.h.b16 %v614
        %v3222 = vunpack.c.l.b16 %v615
        %v3223 = vunpack.c.h.b16 %v615
        %v3224 = vunpack.c.l.b16 %v616
        %v3225 = vunpack.c.h.b16 %v616
        %v3226 = vunpack.c.l.b16 %v617
        %v3227 = vunpack.c.h.b16 %v617
        %v3228 = vunpack.c.l.b16 %v618
        %v3229 = vunpack.c.h.b16 %v618
        %v3230 = vunpack.c.l.b16 %v619
        %v3231 = vunpack.c.h.b16 %v619
        %v3232 = vunpack.c.l.b16 %v620
        %v3233 = vunpack.c.h.b16 %v620
        %v3234 = vunpack.c.l.b16 %v621
        %v3235 = vunpack.c.h.b16 %v621
        %v3236 = vunpack.c.l.b16 %v622
        %v3237 = vunpack.c.h.b16 %v622
        %v3238 = vunpack.c.l.b16 %v623
        %v3239 = vunpack.c.h.b16 %v623
        %v3240 = vunpack.c.l.b16 %v624
        %v3241 = vunpack.c.h.b16 %v624
        %v3242 = vunpack.c.l.b16 %v625
        %v3243 = vunpack.c.h.b16 %v625
        %v3244 = vunpack.c.l.b16 %v626
        %v3245 = vunpack.c.h.b16 %v626
        %v3246 = vunpack.c.l.b16 %v627
        %v3247 = vunpack.c.h.b16 %v627
        %v3248 = vunpack.c.l.b16 %v628
        %v3249 = vunpack.c.h.b16 %v628
        %v3250 = vunpack.c.l.b16 %v629
        %v3251 = vunpack.c.h.b16 %v629
        %v3252 = vunpack.c.l.b16 %v630
        %v3253 = vunpack.c.h.b16 %v630
        %v3254 = vunpack.c.l.b16 %v631
        %v3255 = vunpack.c.h.b16 %v631
        %v3256 = vunpack.c.l.b16 %v632
        %v3257 = vunpack.c.h.b16 %v632
        %v3258 = vunpack.c.l.b16 %v633
        %v3259 = vunpack.c.h.b16 %v633
        %v3260 = vunpack.c.l.b16 %v634
        %v3261 = vunpack.c.h.b16 %v634
        %v3262 = vunpack.c.l.b16 %v635
        %v3263 = vunpack.c.h.b16 %v635
        %v3264 = vunpack.c.l.b16 %v636
        %v3265 = vunpack.c.h.b16 %v636
        %v3266 = vunpack.c.l.b16 %v637
        %v3267 = vunpack.c.h.b16 %v637
        %v3268 = vunpack.c.l.b16 %v638
        %v3269 = vunpack.c.h.b16 %v638
        %v3270 = vunpack.c.l.b16 %v639
        %v3271 = vunpack.c.h.b16 %v639
        %v3272 = vunpack.c.l.b16 %v640
        %v3273 = vunpack.c.h.b16 %v640
        %v3274 = vunpack.c.l.b16 %v641
        %v3275 = vunpack.c.h.b16 %v641
        %v3276 = vunpack.c.l.b16 %v642
        %v3277 = vunpack.c.h.b16 %v642
        %v3278 = vunpack.c.l.b16 %v643
        %v3279 = vunpack.c.h.b16 %v643
        %v3280 = vunpack.c.l.b16 %v644
        %v3281 = vunpack.c.h.b16 %v644
        %v3282 = vunpack.c.l.b16 %v645
        %v3283 = vunpack.c.h.b16 %v645
        %v3284 = vunpack.c.l.b16 %v646
        %v3285 = vunpack.c.h.b16 %v646
        %v3286 = vunpack.c.l.b16 %v647
        %v3287 = vunpack.c.h.b16 %v647
        %v3288 = vunpack.c.l.b16 %v648
        %v3289 = vunpack.c.h.b16 %v648
        %v3290 = vunpack.c.l.b16 %v649
        %v3291 = vunpack.c.h.b16 %v649
        %v3292 = vunpack.c.l.b16 %v650
        %v3293 = vunpack.c.h.b16 %v650
        %v3294 = vunpack.c.l.b16 %v651
        %v3295 = vunpack.c.h.b16 %v651
        %v3296 = vunpack.c.l.b16 %v652
        %v3297 = vunpack.c.h.b16 %v652
        %v3298 = vunpack.c.l.b16 %v653
        %v3299 = vunpack.c.h.b16 %v653
        %v3300 = vunpack.c.l.b16 %v654
        %v3301 = vunpack.c.h.b16 %v654
        %v3302 = vunpack.c.l.b16 %v655
        %v3303 = vunpack.c.h.b16 %v655
        %v3304 = vunpack.c.l.b16 %v656
        %v3305 = vunpack.c.h.b16 %v656
        %v3306 = vunpack.c.l.b16 %v657
        %v3307 = vunpack.c.h.b16 %v657
        %v3308 = vunpack.c.l.b16 %v658
        %v3309 = vunpack.c.h.b16 %v658
        %v3310 = vunpack.c.l.b16 %v659
        %v3311 = vunpack.c.h.b16 %v659
        %v3312 = vunpack.c.l.b16 %v660
        %v3313 = vunpack.c.h.b16 %v660
        %v3314 = vunpack.c.l.b16 %v661
        %v3315 = vunpack.c.h.b16 %v661
        %v3316 = vunpack.c.l.b16 %v662
        %v3317 = vunpack.c.h.b16 %v662
        %v3318 = vunpack.c.l.b16 %v663
        %v3319 = vunpack.c.h.b16 %v663
        %v3320 = vunpack.c.l.b16 %v664
        %v3321 = vunpack.c.h.b16 %v664
        %v3322 = vunpack.c.l.b16 %v665
        %v3323 = vunpack.c.h.b16 %v665
        %v3324 = vunpack.c.l.b16 %v666
        %v3325 = vunpack.c.h.b16 %v666
        %v3326 = vunpack.c.l.b16 %v667
        %v3327 = vunpack.c.h.b16 %v667
        %v3328 = vunpack.c.l.b16 %v668
        %v3329 = vunpack.c.h.b16 %v668
        %v3330 = vunpack.c.l.b16 %v669
        %v3331 = vunpack.c.h.b16 %v669
        %v3332 = vunpack.c.l.b16 %v670
        %v3333 = vunpack.c.h.b16 %v670
        %v3334 = vunpack.c.l.b16 %v671
        %v3335 = vunpack.c.h.b16 %v671
        %v3336 = vunpack.c.l.b16 %v672
        %v3337 = vunpack.c.h.b16 %v672
        %v3338 = vunpack.c.l.b16 %v673
        %v3339 = vunpack.c.h.b16 %v673
        %v3340 = vunpack.c.l.b16 %v674
        %v3341 = vunpack.c.h.b16 %v674
        %v3342 = vunpack.c.l.b16 %v675
        %v3343 = vunpack.c.h.b16 %v675
        %v3344 = vunpack.c.l.b16 %v676
        %v3345 = vunpack.c.h.b16 %v676
        %v3346 = vunpack.c.l.b16 %v677
        %v3347 = vunpack.c.h.b16 %v677
        %v3348 = vunpack.c.l.b16 %v678
        %v3349 = vunpack.c.h.b16 %v678
        %v3350 = vunpack.c.l.b16 %v679
        %v3351 = vunpack.c.h.b16 %v679
        %v3352 = vunpack.c.l.b16 %v680
        %v3353 = vunpack.c.h.b16 %v680
        %v3354 = vunpack.c.l.b16 %v681
        %v3355 = vunpack.c.h.b16 %v681
        %v3356 = vunpack.c.l.b16 %v682
        %v3357 = vunpack.c.h.b16 %v682
        %v3358 = vunpack.c.l.b16 %v683
        %v3359 = vunpack.c.h.b16 %v683
        %v3360 = vunpack.c.l.b16 %v684
        %v3361 = vunpack.c.h.b16 %v684
        %v3362 = vunpack.c.l.b16 %v685
        %v3363 = vunpack.c.h.b16 %v685
        %v3364 = vunpack.c.l.b16 %v686
        %v3365 = vunpack.c.h.b16 %v686
        %v3366 = vunpack.c.l.b16 %v687
        %v3367 = vunpack.c.h.b16 %v687
        %v3368 = vunpack.c.l.b16 %v688
        %v3369 = vunpack.c.h.b16 %v688
        %v3370 = vunpack.c.l.b16 %v689
        %v3371 = vunpack.c.h.b16 %v689
        %v3372 = vunpack.c.l.b16 %v690
        %v3373 = vunpack.c.h.b16 %v690
        %v3374 = vunpack.c.l.b16 %v691
        %v3375 = vunpack.c.h.b16 %v691
        %v3376 = vunpack.c.l.b16 %v692
        %v3377 = vunpack.c.h.b16 %v692
        %v3378 = vunpack.c.l.b16 %v693
        %v3379 = vunpack.c.h.b16 %v693
        %v3380 = vunpack.c.l.b16 %v694
        %v3381 = vunpack.c.h.b16 %v694
        %v3382 = vunpack.c.l.b16 %v695
        %v3383 = vunpack.c.h.b16 %v695
        %v3384 = vunpack.c.l.b16 %v696
        %v3385 = vunpack.c.h.b16 %v696
        %v3386 = vunpack.c.l.b16 %v697
        %v3387 = vunpack.c.h.b16 %v697
        %v3388 = vunpack.c.l.b16 %v698
        %v3389 = vunpack.c.h.b16 %v698
        %v3390 = vunpack.c.l.b16 %v699
        %v3391 = vunpack.c.h.b16 %v699
        %v3392 = vunpack.c.l.b16 %v700
        %v3393 = vunpack.c.h.b16 %v700
        %v3394 = vunpack.c.l.b16 %v701
        %v3395 = vunpack.c.h.b16 %v701
        %v3396 = vunpack.c.l.b16 %v702
        %v3397 = vunpack.c.h.b16 %v702
        %v3398 = vunpack.c.l.b16 %v703
        %v3399 = vunpack.c.h.b16 %v703
        %v3400 = vunpack.c.l.b16 %v704
        %v3401 = vunpack.c.h.b16 %v704
        %v3402 = vunpack.c.l.b16 %v705
        %v3403 = vunpack.c.h.b16 %v705
        %v3404 = vunpack.c.l.b16 %v706
        %v3405 = vunpack.c.h.b16 %v706
        %v3406 = vunpack.c.l.b16 %v707
        %v3407 = vunpack.c.h.b16 %v707
        %v3408 = vunpack.c.l.b16 %v708
        %v3409 = vunpack.c.h.b16 %v708
        %v3410 = vunpack.c.l.b16 %v709
        %v3411 = vunpack.c.h.b16 %v709
        %v3412 = vunpack.c.l.b16 %v710
        %v3413 = vunpack.c.h.b16 %v710
        %v3414 = vunpack.c.l.b16 %v711
        %v3415 = vunpack.c.h.b16 %v711
        %v3416 = vunpack.c.l.b16 %v712
        %v3417 = vunpack.c.h.b16 %v712
        %v3418 = vunpack.c.l.b16 %v713
        %v3419 = vunpack.c.h.b16 %v713
        %v3420 = vunpack.c.l.b16 %v714
        %v3421 = vunpack.c.h.b16 %v714
        %v3422 = vunpack.c.l.b16 %v715
        %v3423 = vunpack.c.h.b16 %v715
        %v3424 = vunpack.c.l.b16 %v716
        %v3425 = vunpack.c.h.b16 %v716
        %v3426 = vunpack.c.l.b16 %v717
        %v3427 = vunpack.c.h.b16 %v717
        %v3428 = vunpack.c.l.b16 %v718
        %v3429 = vunpack.c.h.b16 %v718
        %v3430 = vunpack.c.l.b16 %v719
        %v3431 = vunpack.c.h.b16 %v719
        %v3432 = vunpack.c.l.b16 %v720
        %v3433 = vunpack.c.h.b16 %v720
        %v3434 = vunpack.c.l.b16 %v721
        %v3435 = vunpack.c.h.b16 %v721
        %v3436 = vunpack.c.l.b16 %v722
        %v3437 = vunpack.c.h.b16 %v722
        %v3438 = vunpack.c.l.b16 %v723
        %v3439 = vunpack.c.h.b16 %v723
        %v3440 = vunpack.c.l.b16 %v724
        %v3441 = vunpack.c.h.b16 %v724
        %v3442 = vunpack.c.l.b16 %v725
        %v3443 = vunpack.c.h.b16 %v725
        %v3444 = vunpack.c.l.b16 %v726
        %v3445 = vunpack.c.h.b16 %v726
        %v3446 = vunpack.c.l.b16 %v727
        %v3447 = vunpack.c.h.b16 %v727
        %v3448 = vunpack.c.l.b16 %v728
        %v3449 = vunpack.c.h.b16 %v728
        %v3450 = vunpack.c.l.b16 %v729
        %v3451 = vunpack.c.h.b16 %v729
        %v3452 = vunpack.c.l.b16 %v730
        %v3453 = vunpack.c.h.b16 %v730
        %v3454 = vunpack.c.l.b16 %v731
        %v3455 = vunpack.c.h.b16 %v731
        %v3456 = vunpack.c.l.b16 %v732
        %v3457 = vunpack.c.h.b16 %v732
        %v3458 = vunpack.c.l.b16 %v733
        %v3459 = vunpack.c.h.b16 %v733
        %v3460 = vunpack.c.l.b16 %v734
        %v3461 = vunpack.c.h.b16 %v734
        %v3462 = vunpack.c.l.b16 %v735
        %v3463 = vunpack.c.h.b16 %v735
        %v3464 = vunpack.c.l.b16 %v736
        %v3465 = vunpack.c.h.b16 %v736
        %v3466 = vunpack.c.l.b16 %v737
        %v3467 = vunpack.c.h.b16 %v737
        %v3468 = vunpack.c.l.b16 %v738
        %v3469 = vunpack.c.h.b16 %v738
        %v3470 = vunpack.c.l.b16 %v739
        %v3471 = vunpack.c.h.b16 %v739
        %v3472 = vunpack.c.l.b16 %v740
        %v3473 = vunpack.c.h.b16 %v740
        %v3474 = vunpack.c.l.b16 %v741
        %v3475 = vunpack.c.h.b16 %v741
        %v3476 = vunpack.c.l.b16 %v742
        %v3477 = vunpack.c.h.b16 %v742
        %v3478 = vunpack.c.l.b16 %v743
        %v3479 = vunpack.c.h.b16 %v743
        %v3480 = vunpack.c.l.b16 %v744
        %v3481 = vunpack.c.h.b16 %v744
        %v3482 = vunpack.c.l.b16 %v745
        %v3483 = vunpack.c.h.b16 %v745
        %v3484 = vunpack.c.l.b16 %v746
        %v3485 = vunpack.c.h.b16 %v746
        %v3486 = vunpack.c.l.b16 %v747
        %v3487 = vunpack.c.h.b16 %v747
        %v3488 = vunpack.c.l.b16 %v748
        %v3489 = vunpack.c.h.b16 %v748
        %v3490 = vunpack.c.l.b16 %v749
        %v3491 = vunpack.c.h.b16 %v749
        %v3492 = vunpack.c.l.b16 %v750
        %v3493 = vunpack.c.h.b16 %v750
        %v3494 = vunpack.c.l.b16 %v751
        %v3495 = vunpack.c.h.b16 %v751
        %v3496 = vunpack.c.l.b16 %v752
        %v3497 = vunpack.c.h.b16 %v752
        %v3498 = vunpack.c.l.b16 %v753
        %v3499 = vunpack.c.h.b16 %v753
        %v3500 = vunpack.c.l.b16 %v754
        %v3501 = vunpack.c.h.b16 %v754
        %v3502 = vunpack.c.l.b16 %v755
        %v3503 = vunpack.c.h.b16 %v755
        %v3504 = vunpack.c.l.b16 %v756
        %v3505 = vunpack.c.h.b16 %v756
        %v3506 = vunpack.c.l.b16 %v757
        %v3507 = vunpack.c.h.b16 %v757
        %v3508 = vunpack.c.l.b16 %v758
        %v3509 = vunpack.c.h.b16 %v758
        %v3510 = vunpack.c.l.b16 %v759
        %v3511 = vunpack.c.h.b16 %v759
        %v3512 = vunpack.c.l.b16 %v760
        %v3513 = vunpack.c.h.b16 %v760
        %v3514 = vunpack.c.l.b16 %v761
        %v3515 = vunpack.c.h.b16 %v761
        %v3516 = vunpack.c.l.b16 %v762
        %v3517 = vunpack.c.h.b16 %v762
        %v3518 = vunpack.c.l.b16 %v763
        %v3519 = vunpack.c.h.b16 %v763
        %v3520 = vunpack.c.l.b16 %v764
        %v3521 = vunpack.c.h.b16 %v764
        %v3522 = vunpack.c.l.b16 %v765
        %v3523 = vunpack.c.h.b16 %v765
        %v3524 = vunpack.c.l.b16 %v766
        %v3525 = vunpack.c.h.b16 %v766
        %v3526 = vunpack.c.l.b16 %v767
        %v3527 = vunpack.c.h.b16 %v767
        %v3528 = vunpack.c.l.b16 %v768
        %v3529 = vunpack.c.h.b16 %v768
        %v3530 = vunpack.c.l.b16 %v769
        %v3531 = vunpack.c.h.b16 %v769
        %v3532 = vunpack.c.l.b16 %v770
        %v3533 = vunpack.c.h.b16 %v770
        %v3534 = vunpack.c.l.b16 %v771
        %v3535 = vunpack.c.h.b16 %v771
        %v3536 = vunpack.c.l.b16 %v772
        %v3537 = vunpack.c.h.b16 %v772
        %v3538 = vunpack.c.l.b16 %v773
        %v3539 = vunpack.c.h.b16 %v773
        %v3540 = vunpack.c.l.b16 %v774
        %v3541 = vunpack.c.h.b16 %v774
        %v3542 = vunpack.c.l.b16 %v775
        %v3543 = vunpack.c.h.b16 %v775
        %v3544 = vunpack.c.l.b16 %v776
        %v3545 = vunpack.c.h.b16 %v776
        %v3546 = vunpack.c.l.b16 %v777
        %v3547 = vunpack.c.h.b16 %v777
        %v3548 = vunpack.c.l.b16 %v778
        %v3549 = vunpack.c.h.b16 %v778
        %v3550 = vunpack.c.l.b16 %v779
        %v3551 = vunpack.c.h.b16 %v779
        %v3552 = vunpack.c.l.b16 %v780
        %v3553 = vunpack.c.h.b16 %v780
        %v3554 = vunpack.c.l.b16 %v781
        %v3555 = vunpack.c.h.b16 %v781
        %v3556 = vunpack.c.l.b16 %v782
        %v3557 = vunpack.c.h.b16 %v782
        %v3558 = vunpack.c.l.b16 %v783
        %v3559 = vunpack.c.h.b16 %v783
        %v3560 = vunpack.c.l.b16 %v784
        %v3561 = vunpack.c.h.b16 %v784
        %v3562 = vunpack.c.l.b16 %v785
        %v3563 = vunpack.c.h.b16 %v785
        %v3564 = vunpack.c.l.b16 %v786
        %v3565 = vunpack.c.h.b16 %v786
        %v3566 = vunpack.c.l.b16 %v787
        %v3567 = vunpack.c.h.b16 %v787
        %v3568 = vunpack.c.l.b16 %v788
        %v3569 = vunpack.c.h.b16 %v788
        %v3570 = vunpack.c.l.b16 %v789
        %v3571 = vunpack.c.h.b16 %v789
        %v3572 = vunpack.c.l.b16 %v790
        %v3573 = vunpack.c.h.b16 %v790
        %v3574 = vunpack.c.l.b16 %v791
        %v3575 = vunpack.c.h.b16 %v791
        %v3576 = vunpack.c.l.b16 %v792
        %v3577 = vunpack.c.h.b16 %v792
        %v3578 = vunpack.c.l.b16 %v793
        %v3579 = vunpack.c.h.b16 %v793
        %v3580 = vunpack.c.l.b16 %v794
        %v3581 = vunpack.c.h.b16 %v794
        %v3582 = vunpack.c.l.b16 %v795
        %v3583 = vunpack.c.h.b16 %v795
        %v3584 = vunpack.c.l.b16 %v796
        %v3585 = vunpack.c.h.b16 %v796
        %v3586 = vunpack.c.l.b16 %v797
        %v3587 = vunpack.c.h.b16 %v797
        %v3588 = vunpack.c.l.b16 %v798
        %v3589 = vunpack.c.h.b16 %v798
        %v3590 = vunpack.c.l.b16 %v799
        %v3591 = vunpack.c.h.b16 %v799
        %v3592 = vunpack.c.l.b16 %v800
        %v3593 = vunpack.c.h.b16 %v800
        %v3594 = vunpack.c.l.b16 %v801
        %v3595 = vunpack.c.h.b16 %v801
        %v3596 = vunpack.c.l.b16 %v802
        %v3597 = vunpack.c.h.b16 %v802
        %v3598 = vunpack.c.l.b16 %v803
        %v3599 = vunpack.c.h.b16 %v803
        %v3600 = vunpack.c.l.b16 %v804
        %v3601 = vunpack.c.h.b16 %v804
        %v3602 = vunpack.c.l.b16 %v805
        %v3603 = vunpack.c.h.b16 %v805
        %v3604 = vunpack.c.l.b16 %v806
        %v3605 = vunpack.c.h.b16 %v806
        %v3606 = vunpack.c.l.b16 %v807
        %v3607 = vunpack.c.h.b16 %v807
        %v3608 = vunpack.c.l.b16 %v808
        %v3609 = vunpack.c.h.b16 %v808
        %v3610 = vunpack.c.l.b16 %v809
        %v3611 = vunpack.c.h.b16 %v809
        %v3612 = vunpack.c.l.b16 %v810
        %v3613 = vunpack.c.h.b16 %v810
        %v3614 = vunpack.c.l.b16 %v811
        %v3615 = vunpack.c.h.b16 %v811
        %v3616 = vunpack.c.l.b16 %v812
        %v3617 = vunpack.c.h.b16 %v812
        %v3618 = vunpack.c.l.b16 %v813
        %v3619 = vunpack.c.h.b16 %v813
        %v3620 = vunpack.c.l.b16 %v814
        %v3621 = vunpack.c.h.b16 %v814
        %v3622 = vunpack.c.l.b16 %v815
        %v3623 = vunpack.c.h.b16 %v815
        %v3624 = vunpack.c.l.b16 %v816
        %v3625 = vunpack.c.h.b16 %v816
        %v3626 = vunpack.c.l.b16 %v817
        %v3627 = vunpack.c.h.b16 %v817
        %v3628 = vunpack.c.l.b16 %v818
        %v3629 = vunpack.c.h.b16 %v818
        %v3630 = vunpack.c.l.b16 %v819
        %v3631 = vunpack.c.h.b16 %v819
        %v3632 = vunpack.c.l.b16 %v820
        %v3633 = vunpack.c.h.b16 %v820
        %v3634 = vunpack.c.l.b16 %v821
        %v3635 = vunpack.c.h.b16 %v821
        %v3636 = vunpack.c.l.b16 %v822
        %v3637 = vunpack.c.h.b16 %v822
        %v3638 = vunpack.c.l.b16 %v823
        %v3639 = vunpack.c.h.b16 %v823
        %v3640 = vunpack.c.l.b16 %v824
        %v3641 = vunpack.c.h.b16 %v824
        %v3642 = vunpack.c.l.b16 %v825
        %v3643 = vunpack.c.h.b16 %v825
        %v3644 = vunpack.c.l.b16 %v826
        %v3645 = vunpack.c.h.b16 %v826
        %v3646 = vunpack.c.l.b16 %v827
        %v3647 = vunpack.c.h.b16 %v827
        %v3648 = vunpack.c.l.b16 %v828
        %v3649 = vunpack.c.h.b16 %v828
        %v3650 = vunpack.c.l.b16 %v829
        %v3651 = vunpack.c.h.b16 %v829
        %v3652 = vunpack.c.l.b16 %v830
        %v3653 = vunpack.c.h.b16 %v830
        %v3654 = vunpack.c.l.b16 %v831
        %v3655 = vunpack.c.h.b16 %v831
        %v3656 = vunpack.c.l.b16 %v832
        %v3657 = vunpack.c.h.b16 %v832
        %v3658 = vunpack.c.l.b16 %v833
        %v3659 = vunpack.c.h.b16 %v833
        %v3660 = vunpack.c.l.b16 %v834
        %v3661 = vunpack.c.h.b16 %v834
        %v3662 = vunpack.c.l.b16 %v835
        %v3663 = vunpack.c.h.b16 %v835
        %v3664 = vunpack.c.l.b16 %v836
        %v3665 = vunpack.c.h.b16 %v836
        %v3666 = vunpack.c.l.b16 %v837
        %v3667 = vunpack.c.h.b16 %v837
        %v3668 = vunpack.c.l.b16 %v838
        %v3669 = vunpack.c.h.b16 %v838
        %v3670 = vunpack.c.l.b16 %v839
        %v3671 = vunpack.c.h.b16 %v839
        %v3672 = vunpack.c.l.b16 %v840
        %v3673 = vunpack.c.h.b16 %v840
        %v3674 = vunpack.c.l.b16 %v841
        %v3675 = vunpack.c.h.b16 %v841
        %v3676 = vunpack.c.l.b16 %v842
        %v3677 = vunpack.c.h.b16 %v842
        %v3678 = vunpack.c.l.b16 %v843
        %v3679 = vunpack.c.h.b16 %v843
        %v3680 = vunpack.c.l.b16 %v844
        %v3681 = vunpack.c.h.b16 %v844
        %v3682 = vunpack.c.l.b16 %v845
        %v3683 = vunpack.c.h.b16 %v845
        %v3684 = vunpack.c.l.b16 %v846
        %v3685 = vunpack.c.h.b16 %v846
        %v3686 = vunpack.c.l.b16 %v847
        %v3687 = vunpack.c.h.b16 %v847
        %v3688 = vunpack.c.l.b16 %v848
        %v3689 = vunpack.c.h.b16 %v848
        %v3690 = vunpack.c.l.b16 %v849
        %v3691 = vunpack.c.h.b16 %v849
        %v3692 = vunpack.c.l.b16 %v850
        %v3693 = vunpack.c.h.b16 %v850
        %v3694 = vunpack.c.l.b16 %v851
        %v3695 = vunpack.c.h.b16 %v851
        %v3696 = vunpack.c.l.b16 %v852
        %v3697 = vunpack.c.h.b16 %v852
        %v3698 = vunpack.c.l.b16 %v853
        %v3699 = vunpack.c.h.b16 %v853
        %v3700 = vunpack.c.l.b16 %v854
        %v3701 = vunpack.c.h.b16 %v854
        %v3702 = vunpack.c.l.b16 %v855
        %v3703 = vunpack.c.h.b16 %v855
        %v3704 = vunpack.c.l.b16 %v856
        %v3705 = vunpack.c.h.b16 %v856
        %v3706 = vunpack.c.l.b16 %v857
        %v3707 = vunpack.c.h.b16 %v857
        %v3708 = vunpack.c.l.b16 %v858
        %v3709 = vunpack.c.h.b16 %v858
        %v3710 = vunpack.c.l.b16 %v859
        %v3711 = vunpack.c.h.b16 %v859
        %v3712 = vunpack.c.l.b16 %v860
        %v3713 = vunpack.c.h.b16 %v860
        %v3714 = vunpack.c.l.b16 %v861
        %v3715 = vunpack.c.h.b16 %v861
        %v3716 = vunpack.c.l.b16 %v862
        %v3717 = vunpack.c.h.b16 %v862
        %v3718 = vunpack.c.l.b16 %v863
        %v3719 = vunpack.c.h.b16 %v863
        %v3720 = vunpack.c.l.b16 %v864
        %v3721 = vunpack.c.h.b16 %v864
        %v3722 = vunpack.c.l.b16 %v865
        %v3723 = vunpack.c.h.b16 %v865
        %v3724 = vunpack.c.l.b16 %v866
        %v3725 = vunpack.c.h.b16 %v866
        %v3726 = vunpack.c.l.b16 %v867
        %v3727 = vunpack.c.h.b16 %v867
        %v3728 = vunpack.c.l.b16 %v868
        %v3729 = vunpack.c.h.b16 %v868
        %v3730 = vunpack.c.l.b16 %v869
        %v3731 = vunpack.c.h.b16 %v869
        %v3732 = vunpack.c.l.b16 %v870
        %v3733 = vunpack.c.h.b16 %v870
        %v3734 = vunpack.c.l.b16 %v871
        %v3735 = vunpack.c.h.b16 %v871
        %v3736 = vunpack.c.l.b16 %v872
        %v3737 = vunpack.c.h.b16 %v872
        %v3738 = vunpack.c.l.b16 %v873
        %v3739 = vunpack.c.h.b16 %v873
        %v3740 = vunpack.c.l.b16 %v874
        %v3741 = vunpack.c.h.b16 %v874
        %v3742 = vunpack.c.l.b16 %v875
        %v3743 = vunpack.c.h.b16 %v875
        %v3744 = vunpack.c.l.b16 %v876
        %v3745 = vunpack.c.h.b16 %v876
        %v3746 = vunpack.c.l.b16 %v877
        %v3747 = vunpack.c.h.b16 %v877
        %v3748 = vunpack.c.l.b16 %v878
        %v3749 = vunpack.c.h.b16 %v878
        %v3750 = vunpack.c.l.b16 %v879
        %v3751 = vunpack.c.h.b16 %v879
        %v3752 = vunpack.c.l.b16 %v880
        %v3753 = vunpack.c.h.b16 %v880
        %v3754 = vunpack.c.l.b16 %v881
        %v3755 = vunpack.c.h.b16 %v881
        %v3756 = vunpack.c.l.b16 %v882
        %v3757 = vunpack.c.h.b16 %v882
        %v3758 = vunpack.c.l.b16 %v883
        %v3759 = vunpack.c.h.b16 %v883
        %v3760 = vunpack.c.l.b16 %v884
        %v3761 = vunpack.c.h.b16 %v884
        %v3762 = vunpack.c.l.b16 %v885
        %v3763 = vunpack.c.h.b16 %v885
        %v3764 = vunpack.c.l.b16 %v886
        %v3765 = vunpack.c.h.b16 %v886
        %v3766 = vunpack.c.l.b16 %v887
        %v3767 = vunpack.c.h.b16 %v887
        %v3768 = vunpack.c.l.b16 %v888
        %v3769 = vunpack.c.h.b16 %v888
        %v3770 = vunpack.c.l.b16 %v889
        %v3771 = vunpack.c.h.b16 %v889
        %v3772 = vunpack.c.l.b16 %v890
        %v3773 = vunpack.c.h.b16 %v890
        %v3774 = vunpack.c.l.b16 %v891
        %v3775 = vunpack.c.h.b16 %v891
        %v3776 = vunpack.c.l.b16 %v892
        %v3777 = vunpack.c.h.b16 %v892
        %v3778 = vunpack.c.l.b16 %v893
        %v3779 = vunpack.c.h.b16 %v893
        %v3780 = vunpack.c.l.b16 %v894
        %v3781 = vunpack.c.h.b16 %v894
        %v3782 = vunpack.c.l.b16 %v895
        %v3783 = vunpack.c.h.b16 %v895
        %v3784 = vunpack.c.l.b16 %v896
        %v3785 = vunpack.c.h.b16 %v896
        %v3786 = vunpack.c.l.b16 %v897
        %v3787 = vunpack.c.h.b16 %v897
        %v3788 = vunpack.c.l.b16 %v898
        %v3789 = vunpack.c.h.b16 %v898
        %v3790 = vunpack.c.l.b16 %v899
        %v3791 = vunpack.c.h.b16 %v899
        %v3792 = vunpack.c.l.b16 %v900
        %v3793 = vunpack.c.h.b16 %v900
        %v3794 = vunpack.c.l.b16 %v901
        %v3795 = vunpack.c.h.b16 %v901
        %v3796 = vunpack.c.l.b16 %v902
        %v3797 = vunpack.c.h.b16 %v902
        %v3798 = vunpack.c.l.b16 %v903
        %v3799 = vunpack.c.h.b16 %v903
        %v3800 = vunpack.c.l.b16 %v904
        %v3801 = vunpack.c.h.b16 %v904
        %v3802 = vunpack.c.l.b16 %v905
        %v3803 = vunpack.c.h.b16 %v905
        %v3804 = vunpack.c.l.b16 %v906
        %v3805 = vunpack.c.h.b16 %v906
        %v3806 = vunpack.c.l.b16 %v907
        %v3807 = vunpack.c.h.b16 %v907
        %v3808 = vunpack.c.l.b16 %v908
        %v3809 = vunpack.c.h.b16 %v908
        %v3810 = vunpack.c.l.b16 %v909
        %v3811 = vunpack.c.h.b16 %v909
        %v3812 = vunpack.c.l.b16 %v910
        %v3813 = vunpack.c.h.b16 %v910
        %v3814 = vunpack.c.l.b16 %v911
        %v3815 = vunpack.c.h.b16 %v911
        %v3816 = vunpack.c.l.b16 %v912
        %v3817 = vunpack.c.h.b16 %v912
        %v3818 = vunpack.c.l.b16 %v913
        %v3819 = vunpack.c.h.b16 %v913
        %v3820 = vunpack.c.l.b16 %v914
        %v3821 = vunpack.c.h.b16 %v914
        %v3822 = vunpack.c.l.b16 %v915
        %v3823 = vunpack.c.h.b16 %v915
        %v3824 = vunpack.c.l.b16 %v916
        %v3825 = vunpack.c.h.b16 %v916
        %v3826 = vunpack.c.l.b16 %v917
        %v3827 = vunpack.c.h.b16 %v917
        %v3828 = vunpack.c.l.b16 %v918
        %v3829 = vunpack.c.h.b16 %v918
        %v3830 = vunpack.c.l.b16 %v919
        %v3831 = vunpack.c.h.b16 %v919
        %v3832 = vunpack.c.l.b16 %v920
        %v3833 = vunpack.c.h.b16 %v920
        %v3834 = vunpack.c.l.b16 %v921
        %v3835 = vunpack.c.h.b16 %v921
        %v3836 = vunpack.c.l.b16 %v922
        %v3837 = vunpack.c.h.b16 %v922
        %v3838 = vunpack.c.l.b16 %v923
        %v3839 = vunpack.c.h.b16 %v923
        %v3840 = vunpack.c.l.b16 %v924
        %v3841 = vunpack.c.h.b16 %v924
        %v3842 = vunpack.c.l.b16 %v925
        %v3843 = vunpack.c.h.b16 %v925
        %v3844 = vunpack.c.l.b16 %v926
        %v3845 = vunpack.c.h.b16 %v926
        %v3846 = vunpack.c.l.b16 %v927
        %v3847 = vunpack.c.h.b16 %v927
        %v3848 = vunpack.c.l.b16 %v928
        %v3849 = vunpack.c.h.b16 %v928
        %v3850 = vunpack.c.l.b16 %v929
        %v3851 = vunpack.c.h.b16 %v929
        %v3852 = vunpack.c.l.b16 %v930
        %v3853 = vunpack.c.h.b16 %v930
        %v3854 = vunpack.c.l.b16 %v931
        %v3855 = vunpack.c.h.b16 %v931
        %v3856 = vunpack.c.l.b16 %v932
        %v3857 = vunpack.c.h.b16 %v932
        %v3858 = vunpack.c.l.b16 %v933
        %v3859 = vunpack.c.h.b16 %v933
        %v3860 = vunpack.c.l.b16 %v934
        %v3861 = vunpack.c.h.b16 %v934
        %v3862 = vunpack.c.l.b16 %v935
        %v3863 = vunpack.c.h.b16 %v935
        %v3864 = vunpack.c.l.b16 %v936
        %v3865 = vunpack.c.h.b16 %v936
        %v3866 = vunpack.c.l.b16 %v937
        %v3867 = vunpack.c.h.b16 %v937
        %v3868 = vunpack.c.l.b16 %v938
        %v3869 = vunpack.c.h.b16 %v938
        %v3870 = vunpack.c.l.b16 %v939
        %v3871 = vunpack.c.h.b16 %v939
        %v3872 = vunpack.c.l.b16 %v940
        %v3873 = vunpack.c.h.b16 %v940
        %v3874 = vunpack.c.l.b16 %v941
        %v3875 = vunpack.c.h.b16 %v941
        %v3876 = vunpack.c.l.b16 %v942
        %v3877 = vunpack.c.h.b16 %v942
        %v3878 = vunpack.c.l.b16 %v943
        %v3879 = vunpack.c.h.b16 %v943
        %v3880 = vunpack.c.l.b16 %v944
        %v3881 = vunpack.c.h.b16 %v944
        %v3882 = vunpack.c.l.b16 %v945
        %v3883 = vunpack.c.h.b16 %v945
        %v3884 = vunpack.c.l.b16 %v946
        %v3885 = vunpack.c.h.b16 %v946
        %v3886 = vunpack.c.l.b16 %v947
        %v3887 = vunpack.c.h.b16 %v947
        %v3888 = vunpack.c.l.b16 %v948
        %v3889 = vunpack.c.h.b16 %v948
        %v3890 = vunpack.c.l.b16 %v949
        %v3891 = vunpack.c.h.b16 %v949
        %v3892 = vunpack.c.l.b16 %v950
        %v3893 = vunpack.c.h.b16 %v950
        %v3894 = vunpack.c.l.b16 %v951
        %v3895 = vunpack.c.h.b16 %v951
        %v3896 = vunpack.c.l.b16 %v952
        %v3897 = vunpack.c.h.b16 %v952
        %v3898 = vunpack.c.l.b16 %v953
        %v3899 = vunpack.c.h.b16 %v953
        %v3900 = vunpack.c.l.b16 %v954
        %v3901 = vunpack.c.h.b16 %v954
        %v3902 = vunpack.c.l.b16 %v955
        %v3903 = vunpack.c.h.b16 %v955
        %v3904 = vunpack.c.l.b16 %v956
        %v3905 = vunpack.c.h.b16 %v956
        %v3906 = vunpack.c.l.b16 %v957
        %v3907 = vunpack.c.h.b16 %v957
        %v3908 = vunpack.c.l.b16 %v958
        %v3909 = vunpack.c.h.b16 %v958
        %v3910 = vunpack.c.l.b16 %v959
        %v3911 = vunpack.c.h.b16 %v959
        %v3912 = vunpack.c.l.b16 %v960
        %v3913 = vunpack.c.h.b16 %v960
        %v3914 = vunpack.c.l.b16 %v961
        %v3915 = vunpack.c.h.b16 %v961
        %v3916 = vunpack.c.l.b16 %v962
        %v3917 = vunpack.c.h.b16 %v962
        %v3918 = vunpack.c.l.b16 %v963
        %v3919 = vunpack.c.h.b16 %v963
        %v3920 = vunpack.c.l.b16 %v964
        %v3921 = vunpack.c.h.b16 %v964
        %v3922 = vunpack.c.l.b16 %v965
        %v3923 = vunpack.c.h.b16 %v965
        %v3924 = vunpack.c.l.b16 %v966
        %v3925 = vunpack.c.h.b16 %v966
        %v3926 = vunpack.c.l.b16 %v967
        %v3927 = vunpack.c.h.b16 %v967
        %v3928 = vunpack.c.l.b16 %v968
        %v3929 = vunpack.c.h.b16 %v968
        %v3930 = vunpack.c.l.b16 %v969
        %v3931 = vunpack.c.h.b16 %v969
        %v3932 = vunpack.c.l.b16 %v970
        %v3933 = vunpack.c.h.b16 %v970
        %v3934 = vunpack.c.l.b16 %v971
        %v3935 = vunpack.c.h.b16 %v971
        %v3936 = vunpack.c.l.b16 %v972
        %v3937 = vunpack.c.h.b16 %v972
        %v3938 = vunpack.c.l.b16 %v973
        %v3939 = vunpack.c.h.b16 %v973
        %v3940 = vunpack.c.l.b16 %v974
        %v3941 = vunpack.c.h.b16 %v974
        %v3942 = vunpack.c.l.b16 %v975
        %v3943 = vunpack.c.h.b16 %v975
        %v3944 = vunpack.c.l.b16 %v976
        %v3945 = vunpack.c.h.b16 %v976
        %v3946 = vunpack.c.l.b16 %v977
        %v3947 = vunpack.c.h.b16 %v977
        %v3948 = vunpack.c.l.b16 %v978
        %v3949 = vunpack.c.h.b16 %v978
        %v3950 = vunpack.c.l.b16 %v979
        %v3951 = vunpack.c.h.b16 %v979
        %v3952 = vunpack.c.l.b16 %v980
        %v3953 = vunpack.c.h.b16 %v980
        %v3954 = vunpack.c.l.b16 %v981
        %v3955 = vunpack.c.h.b16 %v981
        %v3956 = vunpack.c.l.b16 %v982
        %v3957 = vunpack.c.h.b16 %v982
        %v3958 = vunpack.c.l.b16 %v983
        %v3959 = vunpack.c.h.b16 %v983
        %v3960 = vunpack.c.l.b16 %v984
        %v3961 = vunpack.c.h.b16 %v984
        %v3962 = vunpack.c.l.b16 %v985
        %v3963 = vunpack.c.h.b16 %v985
        %v3964 = vunpack.c.l.b16 %v986
        %v3965 = vunpack.c.h.b16 %v986
        %v3966 = vunpack.c.l.b16 %v987
        %v3967 = vunpack.c.h.b16 %v987
        %v3968 = vunpack.c.l.b16 %v988
        %v3969 = vunpack.c.h.b16 %v988
        %v3970 = vunpack.c.l.b16 %v989
        %v3971 = vunpack.c.h.b16 %v989
        %v3972 = vunpack.c.l.b16 %v990
        %v3973 = vunpack.c.h.b16 %v990
        %v3974 = vunpack.c.l.b16 %v991
        %v3975 = vunpack.c.h.b16 %v991
        %v3976 = vunpack.c.l.b16 %v992
        %v3977 = vunpack.c.h.b16 %v992
        %v3978 = vunpack.c.l.b16 %v993
        %v3979 = vunpack.c.h.b16 %v993
        %v3980 = vunpack.c.l.b16 %v994
        %v3981 = vunpack.c.h.b16 %v994
        %v3982 = vunpack.c.l.b16 %v995
        %v3983 = vunpack.c.h.b16 %v995
        %v3984 = vunpack.c.l.b16 %v996
        %v3985 = vunpack.c.h.b16 %v996
        %v3986 = vunpack.c.l.b16 %v997
        %v3987 = vunpack.c.h.b16 %v997
        %v3988 = vunpack.c.l.b16 %v998
        %v3989 = vunpack.c.h.b16 %v998
        %v3990 = vunpack.c.l.b16 %v999
        %v3991 = vunpack.c.h.b16 %v999
        %v3992 = vunpack.c.l.b16 %v1000
        %v3993 = vunpack.c.h.b16 %v1000
        %v3994 = vunpack.c.l.b16 %v1001
        %v3995 = vunpack.c.h.b16 %v1001
        %v3996 = vunpack.c.l.b16 %v1002
        %v3997 = vunpack.c.h.b16 %v1002
        %v3998 = vunpack.c.l.b16 %v1003
        %v3999 = vunpack.c.h.b16 %v1003
        %v4000 = vunpack.c.l.b16 %v1004
        %v4001 = vunpack.c.h.b16 %v1004
        %v4002 = vunpack.c.l.b16 %v1005
        %v4003 = vunpack.c.h.b16 %v1005
        %v4004 = vunpack.c.l.b16 %v1006
        %v4005 = vunpack.c.h.b16 %v1006
        %v4006 = vunpack.c.l.b16 %v1007
        %v4007 = vunpack.c.h.b16 %v1007
        %v4008 = vunpack.c.l.b16 %v1008
        %v4009 = vunpack.c.h.b16 %v1008
        %v4010 = vunpack.c.l.b16 %v1009
        %v4011 = vunpack.c.h.b16 %v1009
        %v4012 = vunpack.c.l.b16 %v1010
        %v4013 = vunpack.c.h.b16 %v1010
        %v4014 = vunpack.c.l.b16 %v1011
        %v4015 = vunpack.c.h.b16 %v1011
        %v4016 = vunpack.c.l.b16 %v1012
        %v4017 = vunpack.c.h.b16 %v1012
        %v4018 = vunpack.c.l.b16 %v1013
        %v4019 = vunpack.c.h.b16 %v1013
        %v4020 = vunpack.c.l.b16 %v1014
        %v4021 = vunpack.c.h.b16 %v1014
        %v4022 = vunpack.c.l.b16 %v1015
        %v4023 = vunpack.c.h.b16 %v1015
        %v4024 = vunpack.c.l.b16 %v1016
        %v4025 = vunpack.c.h.b16 %v1016
        %v4026 = vunpack.c.l.b16 %v1017
        %v4027 = vunpack.c.h.b16 %v1017
        %v4028 = vunpack.c.l.b16 %v1018
        %v4029 = vunpack.c.h.b16 %v1018
        %v4030 = vunpack.c.l.b16 %v1019
        %v4031 = vunpack.c.h.b16 %v1019
        %v4032 = vunpack.c.l.b16 %v1020
        %v4033 = vunpack.c.h.b16 %v1020
        %v4034 = vunpack.c.l.b16 %v1021
        %v4035 = vunpack.c.h.b16 %v1021
        %v4036 = vunpack.c.l.b16 %v1022
        %v4037 = vunpack.c.h.b16 %v1022
        %v4038 = vunpack.c.l.b16 %v1023
        %v4039 = vunpack.c.h.b16 %v1023
        %v4040 = vunpack.c.l.b16 %v1024
        %v4041 = vunpack.c.h.b16 %v1024
        %v4042 = vunpack.c.l.b16 %v1025
        %v4043 = vunpack.c.h.b16 %v1025
        %v4044 = vunpack.c.l.b16 %v1026
        %v4045 = vunpack.c.h.b16 %v1026
        %v4046 = vunpack.c.l.b16 %v1027
        %v4047 = vunpack.c.h.b16 %v1027
        %v4048 = vunpack.c.l.b16 %v1028
        %v4049 = vunpack.c.h.b16 %v1028
        %v4050 = vunpack.c.l.b16 %v1029
        %v4051 = vunpack.c.h.b16 %v1029
        %v4052 = vunpack.c.l.b16 %v1030
        %v4053 = vunpack.c.h.b16 %v1030
        %v4054 = vunpack.c.l.b16 %v1031
        %v4055 = vunpack.c.h.b16 %v1031
        %v4056 = vunpack.c.l.b16 %v1032
        %v4057 = vunpack.c.h.b16 %v1032
        %v4058 = vunpack.c.l.b16 %v1033
        %v4059 = vunpack.c.h.b16 %v1033
        %v4060 = vunpack.c.l.b16 %v1034
        %v4061 = vunpack.c.h.b16 %v1034
        %v4062 = vunpack.c.l.b16 %v1035
        %v4063 = vunpack.c.h.b16 %v1035
        %v4064 = vunpack.c.l.b16 %v1036
        %v4065 = vunpack.c.h.b16 %v1036
        %v4066 = vunpack.c.l.b16 %v1037
        %v4067 = vunpack.c.h.b16 %v1037
        %v4068 = vunpack.c.l.b16 %v1038
        %v4069 = vunpack.c.h.b16 %v1038
        %v4070 = vunpack.c.l.b16 %v1039
        %v4071 = vunpack.c.h.b16 %v1039
        %v4072 = vunpack.c.l.b16 %v1040
        %v4073 = vunpack.c.h.b16 %v1040
        %v4074 = vunpack.c.l.b16 %v1041
        %v4075 = vunpack.c.h.b16 %v1041
        %v4076 = vunpack.c.l.b16 %v1042
        %v4077 = vunpack.c.h.b16 %v1042
        %v4078 = vunpack.c.l.b16 %v1043
        %v4079 = vunpack.c.h.b16 %v1043
        %v4080 = vunpack.c.l.b16 %v1044
        %v4081 = vunpack.c.h.b16 %v1044
        %v4082 = vunpack.c.l.b16 %v1045
        %v4083 = vunpack.c.h.b16 %v1045
        %v4084 = vunpack.c.l.b16 %v1046
        %v4085 = vunpack.c.h.b16 %v1046
        %v4086 = vunpack.c.l.b16 %v1047
        %v4087 = vunpack.c.h.b16 %v1047
        %v4088 = vunpack.c.l.b16 %v1048
        %v4089 = vunpack.c.h.b16 %v1048
        %v4090 = vunpack.c.l.b16 %v1049
        %v4091 = vunpack.c.h.b16 %v1049
        %v4092 = vunpack.c.l.b16 %v1050
        %v4093 = vunpack.c.h.b16 %v1050
        %v4094 = vunpack.c.l.b16 %v1051
        %v4095 = vunpack.c.h.b16 %v1051
        %v4096 = vunpack.c.l.b16 %v1052
        %v4097 = vunpack.c.h.b16 %v1052
        %v4098 = vunpack.c.l.b16 %v1053
        %v4099 = vunpack.c.h.b16 %v1053
        %v4100 = vunpack.c.l.b16 %v1054
        %v4101 = vunpack.c.h.b16 %v1054
        %v4102 = vunpack.c.l.b16 %v1055
        %v4103 = vunpack.c.h.b16 %v1055
        %v4104 = vunpack.c.l.b16 %v1056
        %v4105 = vunpack.c.h.b16 %v1056
        %v4106 = vunpack.c.l.b16 %v1057
        %v4107 = vunpack.c.h.b16 %v1057
        %v4108 = vunpack.c.l.b16 %v1058
        %v4109 = vunpack.c.h.b16 %v1058
        %v4110 = vunpack.c.l.b16 %v1059
        %v4111 = vunpack.c.h.b16 %v1059
        %v4112 = vunpack.c.l.b16 %v1060
        %v4113 = vunpack.c.h.b16 %v1060
        %v4114 = vunpack.c.l.b16 %v1061
        %v4115 = vunpack.c.h.b16 %v1061
        %v4116 = vunpack.c.l.b16 %v1062
        %v4117 = vunpack.c.h.b16 %v1062
        %v4118 = vunpack.c.l.b16 %v1063
        %v4119 = vunpack.c.h.b16 %v1063
        %v4120 = vunpack.c.l.b16 %v1064
        %v4121 = vunpack.c.h.b16 %v1064
        %v4122 = vunpack.c.l.b16 %v1065
        %v4123 = vunpack.c.h.b16 %v1065
        %v4124 = vunpack.c.l.b16 %v1066
        %v4125 = vunpack.c.h.b16 %v1066
        %v4126 = vunpack.c.l.b16 %v1067
        %v4127 = vunpack.c.h.b16 %v1067
        %v4128 = vunpack.c.l.b16 %v1068
        %v4129 = vunpack.c.h.b16 %v1068
        %v4130 = vunpack.c.l.b16 %v1069
        %v4131 = vunpack.c.h.b16 %v1069
        %v4132 = vunpack.c.l.b16 %v1070
        %v4133 = vunpack.c.h.b16 %v1070
        %v4134 = vunpack.c.l.b16 %v1071
        %v4135 = vunpack.c.h.b16 %v1071
        %v4136 = vunpack.c.l.b16 %v1072
        %v4137 = vunpack.c.h.b16 %v1072
        %v4138 = vunpack.c.l.b16 %v1073
        %v4139 = vunpack.c.h.b16 %v1073
        %v4140 = vunpack.c.l.b16 %v1074
        %v4141 = vunpack.c.h.b16 %v1074
        %v4142 = vunpack.c.l.b16 %v1075
        %v4143 = vunpack.c.h.b16 %v1075
        %v4144 = vunpack.c.l.b16 %v1076
        %v4145 = vunpack.c.h.b16 %v1076
        %v4146 = vunpack.c.l.b16 %v1077
        %v4147 = vunpack.c.h.b16 %v1077
        %v4148 = vunpack.c.l.b16 %v1078
        %v4149 = vunpack.c.h.b16 %v1078
        %v4150 = vunpack.c.l.b16 %v1079
        %v4151 = vunpack.c.h.b16 %v1079
        %v4152 = vunpack.c.l.b16 %v1080
        %v4153 = vunpack.c.h.b16 %v1080
        %v4154 = vunpack.c.l.b16 %v1081
        %v4155 = vunpack.c.h.b16 %v1081
        %v4156 = vunpack.c.l.b16 %v1082
        %v4157 = vunpack.c.h.b16 %v1082
        %v4158 = vunpack.c.l.b16 %v1083
        %v4159 = vunpack.c.h.b16 %v1083
        %v4160 = vunpack.c.l.b16 %v1084
        %v4161 = vunpack.c.h.b16 %v1084
        %v4162 = vunpack.c.l.b16 %v1085
        %v4163 = vunpack.c.h.b16 %v1085
        %v4164 = vunpack.c.l.b16 %v1086
        %v4165 = vunpack.c.h.b16 %v1086
        %v4166 = vunpack.c.l.b16 %v1087
        %v4167 = vunpack.c.h.b16 %v1087
        %v4168 = vunpack.c.l.b16 %v1088
        %v4169 = vunpack.c.h.b16 %v1088
        %v4170 = vunpack.c.l.b16 %v1089
        %v4171 = vunpack.c.h.b16 %v1089
        %v4172 = vunpack.c.l.b16 %v1090
        %v4173 = vunpack.c.h.b16 %v1090
        %v4174 = vunpack.c.l.b16 %v1091
        %v4175 = vunpack.c.h.b16 %v1091
        %v4176 = vunpack.c.l.b16 %v1092
        %v4177 = vunpack.c.h.b16 %v1092
        %v4178 = vunpack.c.l.b16 %v1093
        %v4179 = vunpack.c.h.b16 %v1093
        %v4180 = vunpack.c.l.b16 %v1094
        %v4181 = vunpack.c.h.b16 %v1094
        %v4182 = vunpack.c.l.b16 %v1095
        %v4183 = vunpack.c.h.b16 %v1095
        %v4184 = vunpack.c.l.b16 %v1096
        %v4185 = vunpack.c.h.b16 %v1096
        %v4186 = vunpack.c.l.b16 %v1097
        %v4187 = vunpack.c.h.b16 %v1097
        %v4188 = vunpack.c.l.b16 %v1098
        %v4189 = vunpack.c.h.b16 %v1098
        %v4190 = vunpack.c.l.b16 %v1099
        %v4191 = vunpack.c.h.b16 %v1099
        %v4192 = vunpack.c.l.b16 %v1100
        %v4193 = vunpack.c.h.b16 %v1100
        %v4194 = vunpack.c.l.b16 %v1101
        %v4195 = vunpack.c.h.b16 %v1101
        %v4196 = vunpack.c.l.b16 %v1102
        %v4197 = vunpack.c.h.b16 %v1102
        %v4198 = vunpack.c.l.b16 %v1103
        %v4199 = vunpack.c.h.b16 %v1103
        %v4200 = vunpack.c.l.b16 %v1104
        %v4201 = vunpack.c.h.b16 %v1104
        %v4202 = vunpack.c.l.b16 %v1105
        %v4203 = vunpack.c.h.b16 %v1105
        %v4204 = vunpack.c.l.b16 %v1106
        %v4205 = vunpack.c.h.b16 %v1106
        %v4206 = vunpack.c.l.b16 %v1107
        %v4207 = vunpack.c.h.b16 %v1107
        %v4208 = vunpack.c.l.b16 %v1108
        %v4209 = vunpack.c.h.b16 %v1108
        %v4210 = vunpack.c.l.b16 %v1109
        %v4211 = vunpack.c.h.b16 %v1109
        %v4212 = vunpack.c.l.b16 %v1110
        %v4213 = vunpack.c.h.b16 %v1110
        %v4214 = vunpack.c.l.b16 %v1111
        %v4215 = vunpack.c.h.b16 %v1111
        %v4216 = vunpack.c.l.b16 %v1112
        %v4217 = vunpack.c.h.b16 %v1112
        %v4218 = vunpack.c.l.b16 %v1113
        %v4219 = vunpack.c.h.b16 %v1113
        %v4220 = vunpack.c.l.b16 %v1114
        %v4221 = vunpack.c.h.b16 %v1114
        %v4222 = vunpack.c.l.b16 %v1115
        %v4223 = vunpack.c.h.b16 %v1115
        %v4224 = vunpack.c.l.b16 %v1116
        %v4225 = vunpack.c.h.b16 %v1116
        %v4226 = vunpack.c.l.b16 %v1117
        %v4227 = vunpack.c.h.b16 %v1117
        %v4228 = vunpack.c.l.b16 %v1118
        %v4229 = vunpack.c.h.b16 %v1118
        %v4230 = vunpack.c.l.b16 %v1119
        %v4231 = vunpack.c.h.b16 %v1119
        %v4232 = vunpack.c.l.b16 %v1120
        %v4233 = vunpack.c.h.b16 %v1120
        %v4234 = vunpack.c.l.b16 %v1121
        %v4235 = vunpack.c.h.b16 %v1121
        %v4236 = vunpack.c.l.b16 %v1122
        %v4237 = vunpack.c.h.b16 %v1122
        %v4238 = vunpack.c.l.b16 %v1123
        %v4239 = vunpack.c.h.b16 %v1123
        %v4240 = vunpack.c.l.b16 %v1124
        %v4241 = vunpack.c.h.b16 %v1124
        %v4242 = vunpack.c.l.b16 %v1125
        %v4243 = vunpack.c.h.b16 %v1125
        %v4244 = vunpack.c.l.b16 %v1126
        %v4245 = vunpack.c.h.b16 %v1126
        %v4246 = vunpack.c.l.b16 %v1127
        %v4247 = vunpack.c.h.b16 %v1127
        %v4248 = vunpack.c.l.b16 %v1128
        %v4249 = vunpack.c.h.b16 %v1128
        %v4250 = vunpack.c.l.b16 %v1129
        %v4251 = vunpack.c.h.b16 %v1129
        %v4252 = vunpack.c.l.b16 %v1130
        %v4253 = vunpack.c.h.b16 %v1130
        %v4254 = vunpack.c.l.b16 %v1131
        %v4255 = vunpack.c.h.b16 %v1131
        %v4256 = vunpack.c.l.b16 %v1132
        %v4257 = vunpack.c.h.b16 %v1132
        %v4258 = vunpack.c.l.b16 %v1133
        %v4259 = vunpack.c.h.b16 %v1133
        %v4260 = vunpack.c.l.b16 %v1134
        %v4261 = vunpack.c.h.b16 %v1134
        %v4262 = vunpack.c.l.b16 %v1135
        %v4263 = vunpack.c.h.b16 %v1135
        %v4264 = vunpack.c.l.b16 %v1136
        %v4265 = vunpack.c.h.b16 %v1136
        %v4266 = vunpack.c.l.b16 %v1137
        %v4267 = vunpack.c.h.b16 %v1137
        %v4268 = vunpack.c.l.b16 %v1138
        %v4269 = vunpack.c.h.b16 %v1138
        %v4270 = vunpack.c.l.b16 %v1139
        %v4271 = vunpack.c.h.b16 %v1139
        %v4272 = vunpack.c.l.b16 %v1140
        %v4273 = vunpack.c.h.b16 %v1140
        %v4274 = vunpack.c.l.b16 %v1141
        %v4275 = vunpack.c.h.b16 %v1141
        %v4276 = vunpack.c.l.b16 %v1142
        %v4277 = vunpack.c.h.b16 %v1142
        %v4278 = vunpack.c.l.b16 %v1143
        %v4279 = vunpack.c.h.b16 %v1143
        %v4280 = vunpack.c.l.b16 %v1144
        %v4281 = vunpack.c.h.b16 %v1144
        %v4282 = vunpack.c.l.b16 %v1145
        %v4283 = vunpack.c.h.b16 %v1145
        %v4284 = vunpack.c.l.b16 %v1146
        %v4285 = vunpack.c.h.b16 %v1146
        %v4286 = vunpack.c.l.b16 %v1147
        %v4287 = vunpack.c.h.b16 %v1147
        %v4288 = vunpack.c.l.b16 %v1148
        %v4289 = vunpack.c.h.b16 %v1148
        %v4290 = vunpack.c.l.b16 %v1149
        %v4291 = vunpack.c.h.b16 %v1149
        %v4292 = vunpack.c.l.b16 %v1150
        %v4293 = vunpack.c.h.b16 %v1150
        %v4294 = vunpack.c.l.b16 %v1151
        %v4295 = vunpack.c.h.b16 %v1151
        %v4296 = vunpack.c.l.b16 %v1152
        %v4297 = vunpack.c.h.b16 %v1152
        %v4298 = vunpack.c.l.b16 %v1153
        %v4299 = vunpack.c.h.b16 %v1153
        %v4300 = vunpack.c.l.b16 %v1154
        %v4301 = vunpack.c.h.b16 %v1154
        %v4302 = vunpack.c.l.b16 %v1155
        %v4303 = vunpack.c.h.b16 %v1155
        %v4304 = vunpack.c.l.b16 %v1156
        %v4305 = vunpack.c.h.b16 %v1156
        %v4306 = vunpack.c.l.b16 %v1157
        %v4307 = vunpack.c.h.b16 %v1157
        %v4308 = vunpack.c.l.b16 %v1158
        %v4309 = vunpack.c.h.b16 %v1158
        %v4310 = vunpack.c.l.b16 %v1159
        %v4311 = vunpack.c.h.b16 %v1159
        %v4312 = vunpack.c.l.b16 %v1160
        %v4313 = vunpack.c.h.b16 %v1160
        %v4314 = vunpack.c.l.b16 %v1161
        %v4315 = vunpack.c.h.b16 %v1161
        %v4316 = vunpack.c.l.b16 %v1162
        %v4317 = vunpack.c.h.b16 %v1162
        %v4318 = vunpack.c.l.b16 %v1163
        %v4319 = vunpack.c.h.b16 %v1163
        %v4320 = vunpack.c.l.b16 %v1164
        %v4321 = vunpack.c.h.b16 %v1164
        %v4322 = vunpack.c.l.b16 %v1165
        %v4323 = vunpack.c.h.b16 %v1165
        %v4324 = vunpack.c.l.b16 %v1166
        %v4325 = vunpack.c.h.b16 %v1166
        %v4326 = vunpack.c.l.b16 %v1167
        %v4327 = vunpack.c.h.b16 %v1167
        %v4328 = vunpack.c.l.b16 %v1168
        %v4329 = vunpack.c.h.b16 %v1168
        %v4330 = vunpack.c.l.b16 %v1169
        %v4331 = vunpack.c.h.b16 %v1169
        %v4332 = vunpack.c.l.b16 %v1170
        %v4333 = vunpack.c.h.b16 %v1170
        %v4334 = vunpack.c.l.b16 %v1171
        %v4335 = vunpack.c.h.b16 %v1171
        %v4336 = vunpack.c.l.b16 %v1172
        %v4337 = vunpack.c.h.b16 %v1172
        %v4338 = vunpack.c.l.b16 %v1173
        %v4339 = vunpack.c.h.b16 %v1173
        %v4340 = vunpack.c.l.b16 %v1174
        %v4341 = vunpack.c.h.b16 %v1174
        %v4342 = vunpack.c.l.b16 %v1175
        %v4343 = vunpack.c.h.b16 %v1175
        %v4344 = vunpack.c.l.b16 %v1176
        %v4345 = vunpack.c.h.b16 %v1176
        %v4346 = vunpack.c.l.b16 %v1177
        %v4347 = vunpack.c.h.b16 %v1177
        %v4348 = vunpack.c.l.b16 %v1178
        %v4349 = vunpack.c.h.b16 %v1178
        %v4350 = vunpack.c.l.b16 %v1179
        %v4351 = vunpack.c.h.b16 %v1179
        %v4352 = vunpack.c.l.b16 %v1180
        %v4353 = vunpack.c.h.b16 %v1180
        %v4354 = vunpack.c.l.b16 %v1181
        %v4355 = vunpack.c.h.b16 %v1181
        %v4356 = vunpack.c.l.b16 %v1182
        %v4357 = vunpack.c.h.b16 %v1182
        %v4358 = vunpack.c.l.b16 %v1183
        %v4359 = vunpack.c.h.b16 %v1183
        %v4360 = vunpack.c.l.b16 %v1184
        %v4361 = vunpack.c.h.b16 %v1184
        %v4362 = vunpack.c.l.b16 %v1185
        %v4363 = vunpack.c.h.b16 %v1185
        %v4364 = vunpack.c.l.b16 %v1186
        %v4365 = vunpack.c.h.b16 %v1186
        %v4366 = vunpack.c.l.b16 %v1187
        %v4367 = vunpack.c.h.b16 %v1187
        %v4368 = vunpack.c.l.b16 %v1188
        %v4369 = vunpack.c.h.b16 %v1188
        %v4370 = vunpack.c.l.b16 %v1189
        %v4371 = vunpack.c.h.b16 %v1189
        %v4372 = vunpack.c.l.b16 %v1190
        %v4373 = vunpack.c.h.b16 %v1190
        %v4374 = vunpack.c.l.b16 %v1191
        %v4375 = vunpack.c.h.b16 %v1191
        %v4376 = vunpack.c.l.b16 %v1192
        %v4377 = vunpack.c.h.b16 %v1192
        %v4378 = vunpack.c.l.b16 %v1193
        %v4379 = vunpack.c.h.b16 %v1193
        %v4380 = vunpack.c.l.b16 %v1194
        %v4381 = vunpack.c.h.b16 %v1194
        %v4382 = vunpack.c.l.b16 %v1195
        %v4383 = vunpack.c.h.b16 %v1195
        %v4384 = vunpack.c.l.b16 %v1196
        %v4385 = vunpack.c.h.b16 %v1196
        %v4386 = vunpack.c.l.b16 %v1197
        %v4387 = vunpack.c.h.b16 %v1197
        %v4388 = vunpack.c.l.b16 %v1198
        %v4389 = vunpack.c.h.b16 %v1198
        %v4390 = vunpack.c.l.b16 %v1199
        %v4391 = vunpack.c.h.b16 %v1199
        %v4392 = vunpack.c.l.b16 %v1200
        %v4393 = vunpack.c.h.b16 %v1200
        %v4394 = vunpack.c.l.b16 %v1201
        %v4395 = vunpack.c.h.b16 %v1201
        %v4396 = vunpack.c.l.b16 %v1202
        %v4397 = vunpack.c.h.b16 %v1202
        %v4398 = vunpack.c.l.b16 %v1203
        %v4399 = vunpack.c.h.b16 %v1203
        %v4400 = vunpack.c.l.b16 %v1204
        %v4401 = vunpack.c.h.b16 %v1204
        %v4402 = vunpack.c.l.b16 %v1205
        %v4403 = vunpack.c.h.b16 %v1205
        %v4404 = vunpack.c.l.b16 %v1206
        %v4405 = vunpack.c.h.b16 %v1206
        %v4406 = vunpack.c.l.b16 %v1207
        %v4407 = vunpack.c.h.b16 %v1207
        %v4408 = vunpack.c.l.b16 %v1208
        %v4409 = vunpack.c.h.b16 %v1208
        %v4410 = vunpack.c.l.b16 %v1209
        %v4411 = vunpack.c.h.b16 %v1209
        %v4412 = vunpack.c.l.b16 %v1210
        %v4413 = vunpack.c.h.b16 %v1210
        %v4414 = vunpack.c.l.b16 %v1211
        %v4415 = vunpack.c.h.b16 %v1211
        %v4416 = vunpack.c.l.b16 %v1212
        %v4417 = vunpack.c.h.b16 %v1212
        %v4418 = vunpack.c.l.b16 %v1213
        %v4419 = vunpack.c.h.b16 %v1213
        %v4420 = vunpack.c.l.b16 %v1214
        %v4421 = vunpack.c.h.b16 %v1214
        %v4422 = vunpack.c.l.b16 %v1215
        %v4423 = vunpack.c.h.b16 %v1215
        %v4424 = vunpack.c.l.b16 %v1216
        %v4425 = vunpack.c.h.b16 %v1216
        %v4426 = vunpack.c.l.b16 %v1217
        %v4427 = vunpack.c.h.b16 %v1217
        %v4428 = vunpack.c.l.b16 %v1218
        %v4429 = vunpack.c.h.b16 %v1218
        %v4430 = vunpack.c.l.b16 %v1219
        %v4431 = vunpack.c.h.b16 %v1219
        %v4432 = vunpack.c.l.b16 %v1220
        %v4433 = vunpack.c.h.b16 %v1220
        %v4434 = vunpack.c.l.b16 %v1221
        %v4435 = vunpack.c.h.b16 %v1221
        %v4436 = vunpack.c.l.b16 %v1222
        %v4437 = vunpack.c.h.b16 %v1222
        %v4438 = vunpack.c.l.b16 %v1223
        %v4439 = vunpack.c.h.b16 %v1223
        %v4440 = vunpack.c.l.b16 %v1224
        %v4441 = vunpack.c.h.b16 %v1224
        %v4442 = vunpack.c.l.b16 %v1225
        %v4443 = vunpack.c.h.b16 %v1225
        %v4444 = vunpack.c.l.b16 %v1226
        %v4445 = vunpack.c.h.b16 %v1226
        %v4446 = vunpack.c.l.b16 %v1227
        %v4447 = vunpack.c.h.b16 %v1227
        %v4448 = vunpack.c.l.b16 %v1228
        %v4449 = vunpack.c.h.b16 %v1228
        %v4450 = vunpack.c.l.b16 %v1229
        %v4451 = vunpack.c.h.b16 %v1229
        %v4452 = vunpack.c.l.b16 %v1230
        %v4453 = vunpack.c.h.b16 %v1230
        %v4454 = vunpack.c.l.b16 %v1231
        %v4455 = vunpack.c.h.b16 %v1231
        %v4456 = vunpack.c.l.b16 %v1232
        %v4457 = vunpack.c.h.b16 %v1232
        %v4458 = vunpack.c.l.b16 %v1233
        %v4459 = vunpack.c.h.b16 %v1233
        %v4460 = vunpack.c.l.b16 %v1234
        %v4461 = vunpack.c.h.b16 %v1234
        %v4462 = vunpack.c.l.b16 %v1235
        %v4463 = vunpack.c.h.b16 %v1235
        %v4464 = vunpack.c.l.b16 %v1236
        %v4465 = vunpack.c.h.b16 %v1236
        %v4466 = vunpack.c.l.b16 %v1237
        %v4467 = vunpack.c.h.b16 %v1237
        %v4468 = vunpack.c.l.b16 %v1238
        %v4469 = vunpack.c.h.b16 %v1238
        %v4470 = vunpack.c.l.b16 %v1239
        %v4471 = vunpack.c.h.b16 %v1239
        %v4472 = vunpack.c.l.b16 %v1240
        %v4473 = vunpack.c.h.b16 %v1240
        %v4474 = vunpack.c.l.b16 %v1241
        %v4475 = vunpack.c.h.b16 %v1241
        %v4476 = vunpack.c.l.b16 %v1242
        %v4477 = vunpack.c.h.b16 %v1242
        %v4478 = vunpack.c.l.b16 %v1243
        %v4479 = vunpack.c.h.b16 %v1243
        %v4480 = vunpack.c.l.b16 %v1244
        %v4481 = vunpack.c.h.b16 %v1244
        %v4482 = vunpack.c.l.b16 %v1245
        %v4483 = vunpack.c.h.b16 %v1245
        %v4484 = vunpack.c.l.b16 %v1246
        %v4485 = vunpack.c.h.b16 %v1246
        %v4486 = vunpack.c.l.b16 %v1247
        %v4487 = vunpack.c.h.b16 %v1247
        %v4488 = vunpack.c.l.b16 %v1248
        %v4489 = vunpack.c.h.b16 %v1248
        %v4490 = vunpack.c.l.b16 %v1249
        %v4491 = vunpack.c.h.b16 %v1249
        %v4492 = vunpack.c.l.b16 %v1250
        %v4493 = vunpack.c.h.b16 %v1250
        %v4494 = vunpack.c.l.b16 %v1251
        %v4495 = vunpack.c.h.b16 %v1251
        %v4496 = vunpack.c.l.b16 %v1252
        %v4497 = vunpack.c.h.b16 %v1252
        %v4498 = vunpack.c.l.b16 %v1253
        %v4499 = vunpack.c.h.b16 %v1253
        %v4500 = vunpack.c.l.b16 %v1254
        %v4501 = vunpack.c.h.b16 %v1254
        %v4502 = vunpack.c.l.b16 %v1255
        %v4503 = vunpack.c.h.b16 %v1255
        %v4504 = vunpack.c.l.b16 %v1256
        %v4505 = vunpack.c.h.b16 %v1256
        %v4506 = vunpack.c.l.b16 %v1257
        %v4507 = vunpack.c.h.b16 %v1257
        %v4508 = vunpack.c.l.b16 %v1258
        %v4509 = vunpack.c.h.b16 %v1258
        %v4510 = vunpack.c.l.b16 %v1259
        %v4511 = vunpack.c.h.b16 %v1259
        %v4512 = vunpack.c.l.b16 %v1260
        %v4513 = vunpack.c.h.b16 %v1260
        %v4514 = vunpack.c.l.b16 %v1261
        %v4515 = vunpack.c.h.b16 %v1261
        %v4516 = vunpack.c.l.b16 %v1262
        %v4517 = vunpack.c.h.b16 %v1262
        %v4518 = vunpack.c.l.b16 %v1263
        %v4519 = vunpack.c.h.b16 %v1263
        %v4520 = vunpack.c.l.b16 %v1264
        %v4521 = vunpack.c.h.b16 %v1264
        %v4522 = vunpack.c.l.b16 %v1265
        %v4523 = vunpack.c.h.b16 %v1265
        %v4524 = vunpack.c.l.b16 %v1266
        %v4525 = vunpack.c.h.b16 %v1266
        %v4526 = vunpack.c.l.b16 %v1267
        %v4527 = vunpack.c.h.b16 %v1267
        %v4528 = vunpack.c.l.b16 %v1268
        %v4529 = vunpack.c.h.b16 %v1268
        %v4530 = vunpack.c.l.b16 %v1269
        %v4531 = vunpack.c.h.b16 %v1269
        %v4532 = vunpack.c.l.b16 %v1270
        %v4533 = vunpack.c.h.b16 %v1270
        %v4534 = vunpack.c.l.b16 %v1271
        %v4535 = vunpack.c.h.b16 %v1271
        %v4536 = vunpack.c.l.b16 %v1272
        %v4537 = vunpack.c.h.b16 %v1272
        %v4538 = vunpack.c.l.b16 %v1273
        %v4539 = vunpack.c.h.b16 %v1273
        %v4540 = vunpack.c.l.b16 %v1274
        %v4541 = vunpack.c.h.b16 %v1274
        %v4542 = vunpack.c.l.b16 %v1275
        %v4543 = vunpack.c.h.b16 %v1275
        %v4544 = vunpack.c.l.b16 %v1276
        %v4545 = vunpack.c.h.b16 %v1276
        %v4546 = vunpack.c.l.b16 %v1277
        %v4547 = vunpack.c.h.b16 %v1277
        %v4548 = vunpack.c.l.b16 %v1278
        %v4549 = vunpack.c.h.b16 %v1278
        %v4550 = vunpack.c.l.b16 %v1279
        %v4551 = vunpack.c.h.b16 %v1279
        %v4552 = vunpack.c.l.b16 %v1280
        %v4553 = vunpack.c.h.b16 %v1280
        %v4554 = vunpack.c.l.b16 %v1281
        %v4555 = vunpack.c.h.b16 %v1281
        %v4556 = vunpack.c.l.b16 %v1282
        %v4557 = vunpack.c.h.b16 %v1282
        %v4558 = vunpack.c.l.b16 %v1283
        %v4559 = vunpack.c.h.b16 %v1283
        %v4560 = vunpack.c.l.b16 %v1284
        %v4561 = vunpack.c.h.b16 %v1284
        %v4562 = vunpack.c.l.b16 %v1285
        %v4563 = vunpack.c.h.b16 %v1285
        %v4564 = vunpack.c.l.b16 %v1286
        %v4565 = vunpack.c.h.b16 %v1286
        %v4566 = vunpack.c.l.b16 %v1287
        %v4567 = vunpack.c.h.b16 %v1287
        %v4568 = vunpack.c.l.b16 %v1288
        %v4569 = vunpack.c.h.b16 %v1288
        %v4570 = vunpack.c.l.b16 %v1289
        %v4571 = vunpack.c.h.b16 %v1289
        %v4572 = vunpack.c.l.b16 %v1290
        %v4573 = vunpack.c.h.b16 %v1290
        %v4574 = vunpack.c.l.b16 %v1291
        %v4575 = vunpack.c.h.b16 %v1291
        %v4576 = vunpack.c.l.b16 %v1292
        %v4577 = vunpack.c.h.b16 %v1292
        %v4578 = vunpack.c.l.b16 %v1293
        %v4579 = vunpack.c.h.b16 %v1293
        %v4580 = vunpack.c.l.b16 %v1294
        %v4581 = vunpack.c.h.b16 %v1294
        %v4582 = vunpack.c.l.b16 %v1295
        %v4583 = vunpack.c.h.b16 %v1295
        %v4584 = vunpack.c.l.b16 %v1296
        %v4585 = vunpack.c.h.b16 %v1296
        %v4586 = vunpack.c.l.b16 %v1297
        %v4587 = vunpack.c.h.b16 %v1297
        %v4588 = vunpack.c.l.b16 %v1298
        %v4589 = vunpack.c.h.b16 %v1298
        %v4590 = vunpack.c.l.b16 %v1299
        %v4591 = vunpack.c.h.b16 %v1299
        %v4592 = vunpack.c.l.b16 %v1300
        %v4593 = vunpack.c.h.b16 %v1300
        %v4594 = vunpack.c.l.b16 %v1301
        %v4595 = vunpack.c.h.b16 %v1301
        %v4596 = vunpack.c.l.b16 %v1302
        %v4597 = vunpack.c.h.b16 %v1302
        %v4598 = vunpack.c.l.b16 %v1303
        %v4599 = vunpack.c.h.b16 %v1303
        %v4600 = vunpack.c.l.b16 %v1304
        %v4601 = vunpack.c.h.b16 %v1304
        %v4602 = vunpack.c.l.b16 %v1305
        %v4603 = vunpack.c.h.b16 %v1305
        %v4604 = vunpack.c.l.b16 %v1306
        %v4605 = vunpack.c.h.b16 %v1306
        %v4606 = vunpack.c.l.b16 %v1307
        %v4607 = vunpack.c.h.b16 %v1307
        %v4608 = vunpack.c.l.b16 %v1308
        %v4609 = vunpack.c.h.b16 %v1308
        %v4610 = vunpack.c.l.b16 %v1309
        %v4611 = vunpack.c.h.b16 %v1309
        %v4612 = vunpack.c.l.b16 %v1310
        %v4613 = vunpack.c.h.b16 %v1310
        %v4614 = vunpack.c.l.b16 %v1311
        %v4615 = vunpack.c.h.b16 %v1311
        %v4616 = vunpack.c.l.b16 %v1312
        %v4617 = vunpack.c.h.b16 %v1312
        %v4618 = vunpack.c.l.b16 %v1313
        %v4619 = vunpack.c.h.b16 %v1313
        %v4620 = vunpack.c.l.b16 %v1314
        %v4621 = vunpack.c.h.b16 %v1314
        %v4622 = vunpack.c.l.b16 %v1315
        %v4623 = vunpack.c.h.b16 %v1315
        %v4624 = vunpack.c.l.b16 %v1316
        %v4625 = vunpack.c.h.b16 %v1316
        %v4626 = vunpack.c.l.b16 %v1317
        %v4627 = vunpack.c.h.b16 %v1317
        %v4628 = vunpack.c.l.b16 %v1318
        %v4629 = vunpack.c.h.b16 %v1318
        %v4630 = vunpack.c.l.b16 %v1319
        %v4631 = vunpack.c.h.b16 %v1319
        %v4632 = vunpack.c.l.b16 %v1320
        %v4633 = vunpack.c.h.b16 %v1320
        %v4634 = vunpack.c.l.b16 %v1321
        %v4635 = vunpack.c.h.b16 %v1321
        %v4636 = vunpack.c.l.b16 %v1322
        %v4637 = vunpack.c.h.b16 %v1322
        %v4638 = vunpack.c.l.b16 %v1323
        %v4639 = vunpack.c.h.b16 %v1323
        %v4640 = vunpack.c.l.b16 %v1324
        %v4641 = vunpack.c.h.b16 %v1324
        %v4642 = vunpack.c.l.b16 %v1325
        %v4643 = vunpack.c.h.b16 %v1325
        %v4644 = vunpack.c.l.b16 %v1326
        %v4645 = vunpack.c.h.b16 %v1326
        %v4646 = vunpack.c.l.b16 %v1327
        %v4647 = vunpack.c.h.b16 %v1327
        %v4648 = vunpack.c.l.b16 %v1328
        %v4649 = vunpack.c.h.b16 %v1328
        %v4650 = vunpack.c.l.b16 %v1329
        %v4651 = vunpack.c.h.b16 %v1329
        %v4652 = vunpack.c.l.b16 %v1330
        %v4653 = vunpack.c.h.b16 %v1330
        %v4654 = vunpack.c.l.b16 %v1331
        %v4655 = vunpack.c.h.b16 %v1331
        %v4656 = vunpack.c.l.b16 %v1332
        %v4657 = vunpack.c.h.b16 %v1332
        %v4658 = vunpack.c.l.b16 %v1333
        %v4659 = vunpack.c.h.b16 %v1333
        %v4660 = vunpack.c.l.b16 %v1334
        %v4661 = vunpack.c.h.b16 %v1334
        %v4662 = vunpack.c.l.b16 %v1335
        %v4663 = vunpack.c.h.b16 %v1335
        %v4664 = vunpack.c.l.b16 %v1336
        %v4665 = vunpack.c.h.b16 %v1336
        %v4666 = vunpack.c.l.b16 %v1337
        %v4667 = vunpack.c.h.b16 %v1337
        %v4668 = vunpack.c.l.b16 %v1338
        %v4669 = vunpack.c.h.b16 %v1338
        %v4670 = vunpack.c.l.b16 %v1339
        %v4671 = vunpack.c.h.b16 %v1339
        %v4672 = vunpack.c.l.b16 %v1340
        %v4673 = vunpack.c.h.b16 %v1340
        %v4674 = vunpack.c.l.b16 %v1341
        %v4675 = vunpack.c.h.b16 %v1341
        %v4676 = vunpack.c.l.b16 %v1342
        %v4677 = vunpack.c.h.b16 %v1342
        %v4678 = vunpack.c.l.b16 %v1343
        %v4679 = vunpack.c.h.b16 %v1343
        %v4680 = vunpack.c.l.b16 %v1344
        %v4681 = vunpack.c.h.b16 %v1344
        %v4682 = vunpack.c.l.b16 %v1345
        %v4683 = vunpack.c.h.b16 %v1345
        %v4684 = vunpack.c.l.b16 %v1346
        %v4685 = vunpack.c.h.b16 %v1346
        %v4686 = vunpack.c.l.b16 %v1347
        %v4687 = vunpack.c.h.b16 %v1347
        %v4688 = vunpack.c.l.b16 %v1348
        %v4689 = vunpack.c.h.b16 %v1348
        %v4690 = vunpack.c.l.b16 %v1349
        %v4691 = vunpack.c.h.b16 %v1349
        %v4692 = vunpack.c.l.b16 %v1350
        %v4693 = vunpack.c.h.b16 %v1350
        %v4694 = vunpack.c.l.b16 %v1351
        %v4695 = vunpack.c.h.b16 %v1351
        %v4696 = vunpack.c.l.b16 %v1352
        %v4697 = vunpack.c.h.b16 %v1352
        %v4698 = vunpack.c.l.b16 %v1353
        %v4699 = vunpack.c.h.b16 %v1353
        %v4700 = vunpack.c.l.b16 %v1354
        %v4701 = vunpack.c.h.b16 %v1354
        %v4702 = vunpack.c.l.b16 %v1355
        %v4703 = vunpack.c.h.b16 %v1355
        %v4704 = vunpack.c.l.b16 %v1356
        %v4705 = vunpack.c.h.b16 %v1356
        %v4706 = vunpack.c.l.b16 %v1357
        %v4707 = vunpack.c.h.b16 %v1357
        %v4708 = vunpack.c.l.b16 %v1358
        %v4709 = vunpack.c.h.b16 %v1358
        %v4710 = vunpack.c.l.b16 %v1359
        %v4711 = vunpack.c.h.b16 %v1359
        %v4712 = vunpack.c.l.b16 %v1360
        %v4713 = vunpack.c.h.b16 %v1360
        %v4714 = vunpack.c.l.b16 %v1361
        %v4715 = vunpack.c.h.b16 %v1361
        %v4716 = vunpack.c.l.b16 %v1362
        %v4717 = vunpack.c.h.b16 %v1362
        %v4718 = vunpack.c.l.b16 %v1363
        %v4719 = vunpack.c.h.b16 %v1363
        %v4720 = vunpack.c.l.b16 %v1364
        %v4721 = vunpack.c.h.b16 %v1364
        %v4722 = vunpack.c.l.b16 %v1365
        %v4723 = vunpack.c.h.b16 %v1365
        %v4724 = vunpack.c.l.b16 %v1366
        %v4725 = vunpack.c.h.b16 %v1366
        %v4726 = vunpack.c.l.b16 %v1367
        %v4727 = vunpack.c.h.b16 %v1367
        %v4728 = vunpack.c.l.b16 %v1368
        %v4729 = vunpack.c.h.b16 %v1368
        %v4730 = vunpack.c.l.b16 %v1369
        %v4731 = vunpack.c.h.b16 %v1369
        %v4732 = vunpack.c.l.b16 %v1370
        %v4733 = vunpack.c.h.b16 %v1370
        %v4734 = vunpack.c.l.b16 %v1371
        %v4735 = vunpack.c.h.b16 %v1371
        %v4736 = vunpack.c.l.b16 %v1372
        %v4737 = vunpack.c.h.b16 %v1372
        %v4738 = vunpack.c.l.b16 %v1373
        %v4739 = vunpack.c.h.b16 %v1373
        %v4740 = vunpack.c.l.b16 %v1374
        %v4741 = vunpack.c.h.b16 %v1374
        %v4742 = vunpack.c.l.b16 %v1375
        %v4743 = vunpack.c.h.b16 %v1375
        %v4744 = vunpack.c.l.b16 %v1376
        %v4745 = vunpack.c.h.b16 %v1376
        %v4746 = vunpack.c.l.b16 %v1377
        %v4747 = vunpack.c.h.b16 %v1377
        %v4748 = vunpack.c.l.b16 %v1378
        %v4749 = vunpack.c.h.b16 %v1378
        %v4750 = vunpack.c.l.b16 %v1379
        %v4751 = vunpack.c.h.b16 %v1379
        %v4752 = vunpack.c.l.b16 %v1380
        %v4753 = vunpack.c.h.b16 %v1380
        %v4754 = vunpack.c.l.b16 %v1381
        %v4755 = vunpack.c.h.b16 %v1381
        %v4756 = vunpack.c.l.b16 %v1382
        %v4757 = vunpack.c.h.b16 %v1382
        %v4758 = vunpack.c.l.b16 %v1383
        %v4759 = vunpack.c.h.b16 %v1383
        %v4760 = vunpack.c.l.b16 %v1384
        %v4761 = vunpack.c.h.b16 %v1384
        %v4762 = vunpack.c.l.b16 %v1385
        %v4763 = vunpack.c.h.b16 %v1385
        %v4764 = vunpack.c.l.b16 %v1386
        %v4765 = vunpack.c.h.b16 %v1386
        %v4766 = vunpack.c.l.b16 %v1387
        %v4767 = vunpack.c.h.b16 %v1387
        %v4768 = vunpack.c.l.b16 %v1388
        %v4769 = vunpack.c.h.b16 %v1388
        %v4770 = vunpack.c.l.b16 %v1389
        %v4771 = vunpack.c.h.b16 %v1389
        %v4772 = vunpack.c.l.b16 %v1390
        %v4773 = vunpack.c.h.b16 %v1390
        %v4774 = vunpack.c.l.b16 %v1391
        %v4775 = vunpack.c.h.b16 %v1391
        %v4776 = vunpack.c.l.b16 %v1392
        %v4777 = vunpack.c.h.b16 %v1392
        %v4778 = vunpack.c.l.b16 %v1393
        %v4779 = vunpack.c.h.b16 %v1393
        %v4780 = vunpack.c.l.b16 %v1394
        %v4781 = vunpack.c.h.b16 %v1394
        %v4782 = vunpack.c.l.b16 %v1395
        %v4783 = vunpack.c.h.b16 %v1395
        %v4784 = vunpack.c.l.b16 %v1396
        %v4785 = vunpack.c.h.b16 %v1396
        %v4786 = vunpack.c.l.b16 %v1397
        %v4787 = vunpack.c.h.b16 %v1397
        %v4788 = vunpack.c.l.b16 %v1398
        %v4789 = vunpack.c.h.b16 %v1398
        %v4790 = vunpack.c.l.b16 %v1399
        %v4791 = vunpack.c.h.b16 %v1399
        %v4792 = vunpack.c.l.b16 %v1400
        %v4793 = vunpack.c.h.b16 %v1400
        %v4794 = vunpack.c.l.b16 %v1401
        %v4795 = vunpack.c.h.b16 %v1401
        %v4796 = vunpack.c.l.b16 %v1402
        %v4797 = vunpack.c.h.b16 %v1402
        %v4798 = vunpack.c.l.b16 %v1403
        %v4799 = vunpack.c.h.b16 %v1403
        %v4800 = vunpack.c.l.b16 %v1404
        %v4801 = vunpack.c.h.b16 %v1404
        %v4802 = vunpack.c.l.b16 %v1405
        %v4803 = vunpack.c.h.b16 %v1405
        %v4804 = vunpack.c.l.b16 %v1406
        %v4805 = vunpack.c.h.b16 %v1406
        %v4806 = vunpack.c.l.b16 %v1407
        %v4807 = vunpack.c.h.b16 %v1407
        %v4808 = vunpack.c.l.b16 %v1408
        %v4809 = vunpack.c.h.b16 %v1408
        %v4810 = vunpack.c.l.b16 %v1409
        %v4811 = vunpack.c.h.b16 %v1409
        %v4812 = vunpack.c.l.b16 %v1410
        %v4813 = vunpack.c.h.b16 %v1410
        %v4814 = vunpack.c.l.b16 %v1411
        %v4815 = vunpack.c.h.b16 %v1411
        %v4816 = vunpack.c.l.b16 %v1412
        %v4817 = vunpack.c.h.b16 %v1412
        %v4818 = vunpack.c.l.b16 %v1413
        %v4819 = vunpack.c.h.b16 %v1413
        %v4820 = vunpack.c.l.b16 %v1414
        %v4821 = vunpack.c.h.b16 %v1414
        %v4822 = vunpack.c.l.b16 %v1415
        %v4823 = vunpack.c.h.b16 %v1415
        %v4824 = vunpack.c.l.b16 %v1416
        %v4825 = vunpack.c.h.b16 %v1416
        %v4826 = vunpack.c.l.b16 %v1417
        %v4827 = vunpack.c.h.b16 %v1417
        %v4828 = vunpack.c.l.b16 %v1418
        %v4829 = vunpack.c.h.b16 %v1418
        %v4830 = vunpack.c.l.b16 %v1419
        %v4831 = vunpack.c.h.b16 %v1419
        %v4832 = vunpack.c.l.b16 %v1420
        %v4833 = vunpack.c.h.b16 %v1420
        %v4834 = vunpack.c.l.b16 %v1421
        %v4835 = vunpack.c.h.b16 %v1421
        %v4836 = vunpack.c.l.b16 %v1422
        %v4837 = vunpack.c.h.b16 %v1422
        %v4838 = vunpack.c.l.b16 %v1423
        %v4839 = vunpack.c.h.b16 %v1423
        %v4840 = vunpack.c.l.b16 %v1424
        %v4841 = vunpack.c.h.b16 %v1424
        %v4842 = vunpack.c.l.b16 %v1425
        %v4843 = vunpack.c.h.b16 %v1425
        %v4844 = vunpack.c.l.b16 %v1426
        %v4845 = vunpack.c.h.b16 %v1426
        %v4846 = vunpack.c.l.b16 %v1427
        %v4847 = vunpack.c.h.b16 %v1427
        %v4848 = vunpack.c.l.b16 %v1428
        %v4849 = vunpack.c.h.b16 %v1428
        %v4850 = vunpack.c.l.b16 %v1429
        %v4851 = vunpack.c.h.b16 %v1429
        %v4852 = vunpack.c.l.b16 %v1430
        %v4853 = vunpack.c.h.b16 %v1430
        %v4854 = vunpack.c.l.b16 %v1431
        %v4855 = vunpack.c.h.b16 %v1431
        %v4856 = vunpack.c.l.b16 %v1432
        %v4857 = vunpack.c.h.b16 %v1432
        %v4858 = vunpack.c.l.b16 %v1433
        %v4859 = vunpack.c.h.b16 %v1433
        %v4860 = vunpack.c.l.b16 %v1434
        %v4861 = vunpack.c.h.b16 %v1434
        %v4862 = vunpack.c.l.b16 %v1435
        %v4863 = vunpack.c.h.b16 %v1435
        %v4864 = vunpack.c.l.b16 %v1436
        %v4865 = vunpack.c.h.b16 %v1436
        %v4866 = vunpack.c.l.b16 %v1437
        %v4867 = vunpack.c.h.b16 %v1437
        %v4868 = vunpack.c.l.b16 %v1438
        %v4869 = vunpack.c.h.b16 %v1438
        %v4870 = vunpack.c.l.b16 %v1439
        %v4871 = vunpack.c.h.b16 %v1439
        %v4872 = vunpack.c.l.b16 %v1440
        %v4873 = vunpack.c.h.b16 %v1440
        %v4874 = vunpack.c.l.b16 %v1441
        %v4875 = vunpack.c.h.b16 %v1441
        %v4876 = vunpack.c.l.b16 %v1442
        %v4877 = vunpack.c.h.b16 %v1442
        %v4878 = vunpack.c.l.b16 %v1443
        %v4879 = vunpack.c.h.b16 %v1443
        %v4880 = vunpack.c.l.b16 %v1444
        %v4881 = vunpack.c.h.b16 %v1444
        %v4882 = vunpack.c.l.b16 %v1445
        %v4883 = vunpack.c.h.b16 %v1445
        %v4884 = vunpack.c.l.b16 %v1446
        %v4885 = vunpack.c.h.b16 %v1446
        %v4886 = vunpack.c.l.b16 %v1447
        %v4887 = vunpack.c.h.b16 %v1447
        %v4888 = vunpack.c.l.b16 %v1448
        %v4889 = vunpack.c.h.b16 %v1448
        %v4890 = vunpack.c.l.b16 %v1449
        %v4891 = vunpack.c.h.b16 %v1449
        %v4892 = vunpack.c.l.b16 %v1450
        %v4893 = vunpack.c.h.b16 %v1450
        %v4894 = vunpack.c.l.b16 %v1451
        %v4895 = vunpack.c.h.b16 %v1451
        %v4896 = vunpack.c.l.b16 %v1452
        %v4897 = vunpack.c.h.b16 %v1452
        %v4898 = vunpack.c.l.b16 %v1453
        %v4899 = vunpack.c.h.b16 %v1453
        %v4900 = vunpack.c.l.b16 %v1454
        %v4901 = vunpack.c.h.b16 %v1454
        %v4902 = vunpack.c.l.b16 %v1455
        %v4903 = vunpack.c.h.b16 %v1455
        %v4904 = vunpack.c.l.b16 %v1456
        %v4905 = vunpack.c.h.b16 %v1456
        %v4906 = vunpack.c.l.b16 %v1457
        %v4907 = vunpack.c.h.b16 %v1457
        %v4908 = vunpack.c.l.b16 %v1458
        %v4909 = vunpack.c.h.b16 %v1458
        %v4910 = vunpack.c.l.b16 %v1459
        %v4911 = vunpack.c.h.b16 %v1459
        %v4912 = vunpack.c.l.b16 %v1460
        %v4913 = vunpack.c.h.b16 %v1460
        %v4914 = vunpack.c.l.b16 %v1461
        %v4915 = vunpack.c.h.b16 %v1461
        %v4916 = vunpack.c.l.b16 %v1462
        %v4917 = vunpack.c.h.b16 %v1462
        %v4918 = vunpack.c.l.b16 %v1463
        %v4919 = vunpack.c.h.b16 %v1463
        %v4920 = vunpack.c.l.b16 %v1464
        %v4921 = vunpack.c.h.b16 %v1464
        %v4922 = vunpack.c.l.b16 %v1465
        %v4923 = vunpack.c.h.b16 %v1465
        %v4924 = vunpack.c.l.b16 %v1466
        %v4925 = vunpack.c.h.b16 %v1466
        %v4926 = vunpack.c.l.b16 %v1467
        %v4927 = vunpack.c.h.b16 %v1467
        %v4928 = vunpack.c.l.b16 %v1468
        %v4929 = vunpack.c.h.b16 %v1468
        %v4930 = vunpack.c.l.b16 %v1469
        %v4931 = vunpack.c.h.b16 %v1469
        %v4932 = vunpack.c.l.b16 %v1470
        %v4933 = vunpack.c.h.b16 %v1470
        %v4934 = vunpack.c.l.b16 %v1471
        %v4935 = vunpack.c.h.b16 %v1471
        %v4936 = vunpack.c.l.b16 %v1472
        %v4937 = vunpack.c.h.b16 %v1472
        %v4938 = vunpack.c.l.b16 %v1473
        %v4939 = vunpack.c.h.b16 %v1473
        %v4940 = vunpack.c.l.b16 %v1474
        %v4941 = vunpack.c.h.b16 %v1474
        %v4942 = vunpack.c.l.b16 %v1475
        %v4943 = vunpack.c.h.b16 %v1475
        %v4944 = vunpack.c.l.b16 %v1476
        %v4945 = vunpack.c.h.b16 %v1476
        %v4946 = vunpack.c.l.b16 %v1477
        %v4947 = vunpack.c.h.b16 %v1477
        %v4948 = vpack.c.b16 %v2650, %v2644
        %v4949 = vpack.c.b16 %v2651, %v2645
        %v4950 = vpack.c.b16 %v2652, %v2646
        %v4951 = vpack.c.b16 %v2653, %v2647
        %v4952 = vpack.c.b16 %v2654, %v2648
        %v4953 = vpack.c.b16 %v2655, %v2649
        %v4954 = vpack.c.b16 %v2662, %v2656
        %v4955 = vpack.c.b16 %v2663, %v2657
        %v4956 = vpack.c.b16 %v2664, %v2658
        %v4957 = vpack.c.b16 %v2665, %v2659
        %v4958 = vpack.c.b16 %v2666, %v2660
        %v4959 = vpack.c.b16 %v2667, %v2661
        %v4960 = vpack.c.b16 %v2674, %v2668
        %v4961 = vpack.c.b16 %v2675, %v2669
        %v4962 = vpack.c.b16 %v2676, %v2670
        %v4963 = vpack.c.b16 %v2677, %v2671
        %v4964 = vpack.c.b16 %v2678, %v2672
        %v4965 = vpack.c.b16 %v2679, %v2673
        %v4966 = vpack.c.b16 %v2686, %v2680
        %v4967 = vpack.c.b16 %v2687, %v2681
        %v4968 = vpack.c.b16 %v2688, %v2682
        %v4969 = vpack.c.b16 %v2689, %v2683
        %v4970 = vpack.c.b16 %v2690, %v2684
        %v4971 = vpack.c.b16 %v2691, %v2685
        %v4972 = vpack.c.b16 %v2698, %v2692
        %v4973 = vpack.c.b16 %v2699, %v2693
        %v4974 = vpack.c.b16 %v2700, %v2694
        %v4975 = vpack.c.b16 %v2701, %v2695
        %v4976 = vpack.c.b16 %v2702, %v2696
        %v4977 = vpack.c.b16 %v2703, %v2697
        %v4978 = vpack.c.b16 %v2710, %v2704
        %v4979 = vpack.c.b16 %v2711, %v2705
        %v4980 = vpack.c.b16 %v2712, %v2706
        %v4981 = vpack.c.b16 %v2713, %v2707
        %v4982 = vpack.c.b16 %v2714, %v2708
        %v4983 = vpack.c.b16 %v2715, %v2709
        %v4984 = vpack.c.b16 %v2722, %v2716
        %v4985 = vpack.c.b16 %v2723, %v2717
        %v4986 = vpack.c.b16 %v2724, %v2718
        %v4987 = vpack.c.b16 %v2725, %v2719
        %v4988 = vpack.c.b16 %v2726, %v2720
        %v4989 = vpack.c.b16 %v2727, %v2721
        %v4990 = vpack.c.b16 %v2734, %v2728
        %v4991 = vpack.c.b16 %v2735, %v2729
        %v4992 = vpack.c.b16 %v2736, %v2730
        %v4993 = vpack.c.b16 %v2737, %v2731
        %v4994 = vpack.c.b16 %v2738, %v2732
        %v4995 = vpack.c.b16 %v2739, %v2733
        %v4996 = vpack.c.b16 %v2746, %v2740
        %v4997 = vpack.c.b16 %v2747, %v2741
        %v4998 = vpack.c.b16 %v2748, %v2742
        %v4999 = vpack.c.b16 %v2749, %v2743
        %v5000 = vpack.c.b16 %v2750, %v2744
        %v5001 = vpack.c.b16 %v2751, %v2745
        %v5002 = vpack.c.b16 %v2758, %v2752
        %v5003 = vpack.c.b16 %v2759, %v2753
        %v5004 = vpack.c.b16 %v2760, %v2754
        %v5005 = vpack.c.b16 %v2761, %v2755
        %v5006 = vpack.c.b16 %v2762, %v2756
        %v5007 = vpack.c.b16 %v2763, %v2757
        %v5008 = vpack.c.b16 %v2770, %v2764
        %v5009 = vpack.c.b16 %v2771, %v2765
        %v5010 = vpack.c.b16 %v2772, %v2766
        %v5011 = vpack.c.b16 %v2773, %v2767
        %v5012 = vpack.c.b16 %v2774, %v2768
        %v5013 = vpack.c.b16 %v2775, %v2769
        %v5014 = vpack.c.b16 %v2782, %v2776
        %v5015 = vpack.c.b16 %v2783, %v2777
        %v5016 = vpack.c.b16 %v2784, %v2778
        %v5017 = vpack.c.b16 %v2785, %v2779
        %v5018 = vpack.c.b16 %v2786, %v2780
        %v5019 = vpack.c.b16 %v2787, %v2781
        %v5020 = vpack.c.b16 %v2794, %v2788
        %v5021 = vpack.c.b16 %v2795, %v2789
        %v5022 = vpack.c.b16 %v2796, %v2790
        %v5023 = vpack.c.b16 %v2797, %v2791
        %v5024 = vpack.c.b16 %v2798, %v2792
        %v5025 = vpack.c.b16 %v2799, %v2793
        %v5026 = vpack.c.b16 %v2806, %v2800
        %v5027 = vpack.c.b16 %v2807, %v2801
        %v5028 = vpack.c.b16 %v2808, %v2802
        %v5029 = vpack.c.b16 %v2809, %v2803
        %v5030 = vpack.c.b16 %v2810, %v2804
        %v5031 = vpack.c.b16 %v2811, %v2805
        %v5032 = vpack.c.b16 %v2818, %v2812
        %v5033 = vpack.c.b16 %v2819, %v2813
        %v5034 = vpack.c.b16 %v2820, %v2814
        %v5035 = vpack.c.b16 %v2821, %v2815
        %v5036 = vpack.c.b16 %v2822, %v2816
        %v5037 = vpack.c.b16 %v2823, %v2817
        %v5038 = vpack.c.b16 %v2830, %v2824
        %v5039 = vpack.c.b16 %v2831, %v2825
        %v5040 = vpack.c.b16 %v2832, %v2826
        %v5041 = vpack.c.b16 %v2833, %v2827
        %v5042 = vpack.c.b16 %v2834, %v2828
        %v5043 = vpack.c.b16 %v2835, %v2829
        %v5044 = vpack.c.b16 %v2842, %v2836
        %v5045 = vpack.c.b16 %v2843, %v2837
        %v5046 = vpack.c.b16 %v2844, %v2838
        %v5047 = vpack.c.b16 %v2845, %v2839
        %v5048 = vpack.c.b16 %v2846, %v2840
        %v5049 = vpack.c.b16 %v2847, %v2841
        %v5050 = vpack.c.b16 %v2854, %v2848
        %v5051 = vpack.c.b16 %v2855, %v2849
        %v5052 = vpack.c.b16 %v2856, %v2850
        %v5053 = vpack.c.b16 %v2857, %v2851
        %v5054 = vpack.c.b16 %v2858, %v2852
        %v5055 = vpack.c.b16 %v2859, %v2853
        %v5056 = vpack.c.b16 %v2866, %v2860
        %v5057 = vpack.c.b16 %v2867, %v2861
        %v5058 = vpack.c.b16 %v2868, %v2862
        %v5059 = vpack.c.b16 %v2869, %v2863
        %v5060 = vpack.c.b16 %v2870, %v2864
        %v5061 = vpack.c.b16 %v2871, %v2865
        %v5062 = vpack.c.b16 %v2878, %v2872
        %v5063 = vpack.c.b16 %v2879, %v2873
        %v5064 = vpack.c.b16 %v2880, %v2874
        %v5065 = vpack.c.b16 %v2881, %v2875
        %v5066 = vpack.c.b16 %v2882, %v2876
        %v5067 = vpack.c.b16 %v2883, %v2877
        %v5068 = vpack.c.b16 %v2890, %v2884
        %v5069 = vpack.c.b16 %v2891, %v2885
        %v5070 = vpack.c.b16 %v2892, %v2886
        %v5071 = vpack.c.b16 %v2893, %v2887
        %v5072 = vpack.c.b16 %v2894, %v2888
        %v5073 = vpack.c.b16 %v2895, %v2889
        %v5074 = vpack.c.b16 %v2902, %v2896
        %v5075 = vpack.c.b16 %v2903, %v2897
        %v5076 = vpack.c.b16 %v2904, %v2898
        %v5077 = vpack.c.b16 %v2905, %v2899
        %v5078 = vpack.c.b16 %v2906, %v2900
        %v5079 = vpack.c.b16 %v2907, %v2901
        %v5080 = vpack.c.b16 %v2914, %v2908
        %v5081 = vpack.c.b16 %v2915, %v2909
        %v5082 = vpack.c.b16 %v2916, %v2910
        %v5083 = vpack.c.b16 %v2917, %v2911
        %v5084 = vpack.c.b16 %v2918, %v2912
        %v5085 = vpack.c.b16 %v2919, %v2913
        %v5086 = vpack.c.b16 %v2926, %v2920
        %v5087 = vpack.c.b16 %v2927, %v2921
        %v5088 = vpack.c.b16 %v2928, %v2922
        %v5089 = vpack.c.b16 %v2929, %v2923
        %v5090 = vpack.c.b16 %v2930, %v2924
        %v5091 = vpack.c.b16 %v2931, %v2925
        %v5092 = vpack.c.b16 %v2938, %v2932
        %v5093 = vpack.c.b16 %v2939, %v2933
        %v5094 = vpack.c.b16 %v2940, %v2934
        %v5095 = vpack.c.b16 %v2941, %v2935
        %v5096 = vpack.c.b16 %v2942, %v2936
        %v5097 = vpack.c.b16 %v2943, %v2937
        %v5098 = vpack.c.b16 %v2950, %v2944
        %v5099 = vpack.c.b16 %v2951, %v2945
        %v5100 = vpack.c.b16 %v2952, %v2946
        %v5101 = vpack.c.b16 %v2953, %v2947
        %v5102 = vpack.c.b16 %v2954, %v2948
        %v5103 = vpack.c.b16 %v2955, %v2949
        %v5104 = vpack.c.b16 %v2962, %v2956
        %v5105 = vpack.c.b16 %v2963, %v2957
        %v5106 = vpack.c.b16 %v2964, %v2958
        %v5107 = vpack.c.b16 %v2965, %v2959
        %v5108 = vpack.c.b16 %v2966, %v2960
        %v5109 = vpack.c.b16 %v2967, %v2961
        %v5110 = vpack.c.b16 %v2974, %v2968
        %v5111 = vpack.c.b16 %v2975, %v2969
        %v5112 = vpack.c.b16 %v2976, %v2970
        %v5113 = vpack.c.b16 %v2977, %v2971
        %v5114 = vpack.c.b16 %v2978, %v2972
        %v5115 = vpack.c.b16 %v2979, %v2973
        %v5116 = vpack.c.b16 %v2986, %v2980
        %v5117 = vpack.c.b16 %v2987, %v2981
        %v5118 = vpack.c.b16 %v2988, %v2982
        %v5119 = vpack.c.b16 %v2989, %v2983
        %v5120 = vpack.c.b16 %v2990, %v2984
        %v5121 = vpack.c.b16 %v2991, %v2985
        %v5122 = vpack.c.b16 %v2998, %v2992
        %v5123 = vpack.c.b16 %v2999, %v2993
        %v5124 = vpack.c.b16 %v3000, %v2994
        %v5125 = vpack.c.b16 %v3001, %v2995
        %v5126 = vpack.c.b16 %v3002, %v2996
        %v5127 = vpack.c.b16 %v3003, %v2997
        %v5128 = vpack.c.b16 %v3010, %v3004
        %v5129 = vpack.c.b16 %v3011, %v3005
        %v5130 = vpack.c.b16 %v3012, %v3006
        %v5131 = vpack.c.b16 %v3013, %v3007
        %v5132 = vpack.c.b16 %v3014, %v3008
        %v5133 = vpack.c.b16 %v3015, %v3009
        %v5134 = vpack.c.b16 %v3022, %v3016
        %v5135 = vpack.c.b16 %v3023, %v3017
        %v5136 = vpack.c.b16 %v3024, %v3018
        %v5137 = vpack.c.b16 %v3025, %v3019
        %v5138 = vpack.c.b16 %v3026, %v3020
        %v5139 = vpack.c.b16 %v3027, %v3021
        %v5140 = vpack.c.b16 %v3034, %v3028
        %v5141 = vpack.c.b16 %v3035, %v3029
        %v5142 = vpack.c.b16 %v3036, %v3030
        %v5143 = vpack.c.b16 %v3037, %v3031
        %v5144 = vpack.c.b16 %v3038, %v3032
        %v5145 = vpack.c.b16 %v3039, %v3033
        %v5146 = vpack.c.b16 %v3046, %v3040
        %v5147 = vpack.c.b16 %v3047, %v3041
        %v5148 = vpack.c.b16 %v3048, %v3042
        %v5149 = vpack.c.b16 %v3049, %v3043
        %v5150 = vpack.c.b16 %v3050, %v3044
        %v5151 = vpack.c.b16 %v3051, %v3045
        %v5152 = vpack.c.b16 %v3058, %v3052
        %v5153 = vpack.c.b16 %v3059, %v3053
        %v5154 = vpack.c.b16 %v3060, %v3054
        %v5155 = vpack.c.b16 %v3061, %v3055
        %v5156 = vpack.c.b16 %v3062, %v3056
        %v5157 = vpack.c.b16 %v3063, %v3057
        %v5158 = vpack.c.b16 %v3070, %v3064
        %v5159 = vpack.c.b16 %v3071, %v3065
        %v5160 = vpack.c.b16 %v3072, %v3066
        %v5161 = vpack.c.b16 %v3073, %v3067
        %v5162 = vpack.c.b16 %v3074, %v3068
        %v5163 = vpack.c.b16 %v3075, %v3069
        %v5164 = vpack.c.b16 %v3082, %v3076
        %v5165 = vpack.c.b16 %v3083, %v3077
        %v5166 = vpack.c.b16 %v3084, %v3078
        %v5167 = vpack.c.b16 %v3085, %v3079
        %v5168 = vpack.c.b16 %v3086, %v3080
        %v5169 = vpack.c.b16 %v3087, %v3081
        %v5170 = vpack.c.b16 %v3094, %v3088
        %v5171 = vpack.c.b16 %v3095, %v3089
        %v5172 = vpack.c.b16 %v3096, %v3090
        %v5173 = vpack.c.b16 %v3097, %v3091
        %v5174 = vpack.c.b16 %v3098, %v3092
        %v5175 = vpack.c.b16 %v3099, %v3093
        %v5176 = vpack.c.b16 %v3106, %v3100
        %v5177 = vpack.c.b16 %v3107, %v3101
        %v5178 = vpack.c.b16 %v3108, %v3102
        %v5179 = vpack.c.b16 %v3109, %v3103
        %v5180 = vpack.c.b16 %v3110, %v3104
        %v5181 = vpack.c.b16 %v3111, %v3105
        %v5182 = vpack.c.b16 %v3118, %v3112
        %v5183 = vpack.c.b16 %v3119, %v3113
        %v5184 = vpack.c.b16 %v3120, %v3114
        %v5185 = vpack.c.b16 %v3121, %v3115
        %v5186 = vpack.c.b16 %v3122, %v3116
        %v5187 = vpack.c.b16 %v3123, %v3117
        %v5188 = vpack.c.b16 %v3130, %v3124
        %v5189 = vpack.c.b16 %v3131, %v3125
        %v5190 = vpack.c.b16 %v3132, %v3126
        %v5191 = vpack.c.b16 %v3133, %v3127
        %v5192 = vpack.c.b16 %v3134, %v3128
        %v5193 = vpack.c.b16 %v3135, %v3129
        %v5194 = vpack.c.b16 %v3142, %v3136
        %v5195 = vpack.c.b16 %v3143, %v3137
        %v5196 = vpack.c.b16 %v3144, %v3138
        %v5197 = vpack.c.b16 %v3145, %v3139
        %v5198 = vpack.c.b16 %v3146, %v3140
        %v5199 = vpack.c.b16 %v3147, %v3141
        %v5200 = vpack.c.b16 %v3154, %v3148
        %v5201 = vpack.c.b16 %v3155, %v3149
        %v5202 = vpack.c.b16 %v3156, %v3150
        %v5203 = vpack.c.b16 %v3157, %v3151
        %v5204 = vpack.c.b16 %v3158, %v3152
        %v5205 = vpack.c.b16 %v3159, %v3153
        %v5206 = vpack.c.b16 %v3166, %v3160
        %v5207 = vpack.c.b16 %v3167, %v3161
        %v5208 = vpack.c.b16 %v3168, %v3162
        %v5209 = vpack.c.b16 %v3169, %v3163
        %v5210 = vpack.c.b16 %v3170, %v3164
        %v5211 = vpack.c.b16 %v3171, %v3165
        %v5212 = vpack.c.b16 %v3178, %v3172
        %v5213 = vpack.c.b16 %v3179, %v3173
        %v5214 = vpack.c.b16 %v3180, %v3174
        %v5215 = vpack.c.b16 %v3181, %v3175
        %v5216 = vpack.c.b16 %v3182, %v3176
        %v5217 = vpack.c.b16 %v3183, %v3177
        %v5218 = vpack.c.b16 %v3190, %v3184
        %v5219 = vpack.c.b16 %v3191, %v3185
        %v5220 = vpack.c.b16 %v3192, %v3186
        %v5221 = vpack.c.b16 %v3193, %v3187
        %v5222 = vpack.c.b16 %v3194, %v3188
        %v5223 = vpack.c.b16 %v3195, %v3189
        %v5224 = vpack.c.b16 %v3202, %v3196
        %v5225 = vpack.c.b16 %v3203, %v3197
        %v5226 = vpack.c.b16 %v3204, %v3198
        %v5227 = vpack.c.b16 %v3205, %v3199
        %v5228 = vpack.c.b16 %v3206, %v3200
        %v5229 = vpack.c.b16 %v3207, %v3201
        %v5230 = vpack.c.b16 %v3214, %v3208
        %v5231 = vpack.c.b16 %v3215, %v3209
        %v5232 = vpack.c.b16 %v3216, %v3210
        %v5233 = vpack.c.b16 %v3217, %v3211
        %v5234 = vpack.c.b16 %v3218, %v3212
        %v5235 = vpack.c.b16 %v3219, %v3213
        %v5236 = vpack.c.b16 %v3226, %v3220
        %v5237 = vpack.c.b16 %v3227, %v3221
        %v5238 = vpack.c.b16 %v3228, %v3222
        %v5239 = vpack.c.b16 %v3229, %v3223
        %v5240 = vpack.c.b16 %v3230, %v3224
        %v5241 = vpack.c.b16 %v3231, %v3225
        %v5242 = vpack.c.b16 %v3238, %v3232
        %v5243 = vpack.c.b16 %v3239, %v3233
        %v5244 = vpack.c.b16 %v3240, %v3234
        %v5245 = vpack.c.b16 %v3241, %v3235
        %v5246 = vpack.c.b16 %v3242, %v3236
        %v5247 = vpack.c.b16 %v3243, %v3237
        %v5248 = vpack.c.b16 %v3250, %v3244
        %v5249 = vpack.c.b16 %v3251, %v3245
        %v5250 = vpack.c.b16 %v3252, %v3246
        %v5251 = vpack.c.b16 %v3253, %v3247
        %v5252 = vpack.c.b16 %v3254, %v3248
        %v5253 = vpack.c.b16 %v3255, %v3249
        %v5254 = vpack.c.b16 %v3262, %v3256
        %v5255 = vpack.c.b16 %v3263, %v3257
        %v5256 = vpack.c.b16 %v3264, %v3258
        %v5257 = vpack.c.b16 %v3265, %v3259
        %v5258 = vpack.c.b16 %v3266, %v3260
        %v5259 = vpack.c.b16 %v3267, %v3261
        %v5260 = vpack.c.b16 %v3274, %v3268
        %v5261 = vpack.c.b16 %v3275, %v3269
        %v5262 = vpack.c.b16 %v3276, %v3270
        %v5263 = vpack.c.b16 %v3277, %v3271
        %v5264 = vpack.c.b16 %v3278, %v3272
        %v5265 = vpack.c.b16 %v3279, %v3273
        %v5266 = vpack.c.b16 %v3286, %v3280
        %v5267 = vpack.c.b16 %v3287, %v3281
        %v5268 = vpack.c.b16 %v3288, %v3282
        %v5269 = vpack.c.b16 %v3289, %v3283
        %v5270 = vpack.c.b16 %v3290, %v3284
        %v5271 = vpack.c.b16 %v3291, %v3285
        %v5272 = vpack.c.b16 %v3298, %v3292
        %v5273 = vpack.c.b16 %v3299, %v3293
        %v5274 = vpack.c.b16 %v3300, %v3294
        %v5275 = vpack.c.b16 %v3301, %v3295
        %v5276 = vpack.c.b16 %v3302, %v3296
        %v5277 = vpack.c.b16 %v3303, %v3297
        %v5278 = vpack.c.b16 %v3310, %v3304
        %v5279 = vpack.c.b16 %v3311, %v3305
        %v5280 = vpack.c.b16 %v3312, %v3306
        %v5281 = vpack.c.b16 %v3313, %v3307
        %v5282 = vpack.c.b16 %v3314, %v3308
        %v5283 = vpack.c.b16 %v3315, %v3309
        %v5284 = vpack.c.b16 %v3322, %v3316
        %v5285 = vpack.c.b16 %v3323, %v3317
        %v5286 = vpack.c.b16 %v3324, %v3318
        %v5287 = vpack.c.b16 %v3325, %v3319
        %v5288 = vpack.c.b16 %v3326, %v3320
        %v5289 = vpack.c.b16 %v3327, %v3321
        %v5290 = vpack.c.b16 %v3334, %v3328
        %v5291 = vpack.c.b16 %v3335, %v3329
        %v5292 = vpack.c.b16 %v3336, %v3330
        %v5293 = vpack.c.b16 %v3337, %v3331
        %v5294 = vpack.c.b16 %v3338, %v3332
        %v5295 = vpack.c.b16 %v3339, %v3333
        %v5296 = vpack.c.b16 %v3346, %v3340
        %v5297 = vpack.c.b16 %v3347, %v3341
        %v5298 = vpack.c.b16 %v3348, %v3342
        %v5299 = vpack.c.b16 %v3349, %v3343
        %v5300 = vpack.c.b16 %v3350, %v3344
        %v5301 = vpack.c.b16 %v3351, %v3345
        %v5302 = vpack.c.b16 %v3358, %v3352
        %v5303 = vpack.c.b16 %v3359, %v3353
        %v5304 = vpack.c.b16 %v3360, %v3354
        %v5305 = vpack.c.b16 %v3361, %v3355
        %v5306 = vpack.c.b16 %v3362, %v3356
        %v5307 = vpack.c.b16 %v3363, %v3357
        %v5308 = vpack.c.b16 %v3370, %v3364
        %v5309 = vpack.c.b16 %v3371, %v3365
        %v5310 = vpack.c.b16 %v3372, %v3366
        %v5311 = vpack.c.b16 %v3373, %v3367
        %v5312 = vpack.c.b16 %v3374, %v3368
        %v5313 = vpack.c.b16 %v3375, %v3369
        %v5314 = vpack.c.b16 %v3382, %v3376
        %v5315 = vpack.c.b16 %v3383, %v3377
        %v5316 = vpack.c.b16 %v3384, %v3378
        %v5317 = vpack.c.b16 %v3385, %v3379
        %v5318 = vpack.c.b16 %v3386, %v3380
        %v5319 = vpack.c.b16 %v3387, %v3381
        %v5320 = vpack.c.b16 %v3394, %v3388
        %v5321 = vpack.c.b16 %v3395, %v3389
        %v5322 = vpack.c.b16 %v3396, %v3390
        %v5323 = vpack.c.b16 %v3397, %v3391
        %v5324 = vpack.c.b16 %v3398, %v3392
        %v5325 = vpack.c.b16 %v3399, %v3393
        %v5326 = vpack.c.b16 %v3406, %v3400
        %v5327 = vpack.c.b16 %v3407, %v3401
        %v5328 = vpack.c.b16 %v3408, %v3402
        %v5329 = vpack.c.b16 %v3409, %v3403
        %v5330 = vpack.c.b16 %v3410, %v3404
        %v5331 = vpack.c.b16 %v3411, %v3405
        %v5332 = vpack.c.b16 %v3418, %v3412
        %v5333 = vpack.c.b16 %v3419, %v3413
        %v5334 = vpack.c.b16 %v3420, %v3414
        %v5335 = vpack.c.b16 %v3421, %v3415
        %v5336 = vpack.c.b16 %v3422, %v3416
        %v5337 = vpack.c.b16 %v3423, %v3417
        %v5338 = vpack.c.b16 %v3430, %v3424
        %v5339 = vpack.c.b16 %v3431, %v3425
        %v5340 = vpack.c.b16 %v3432, %v3426
        %v5341 = vpack.c.b16 %v3433, %v3427
        %v5342 = vpack.c.b16 %v3434, %v3428
        %v5343 = vpack.c.b16 %v3435, %v3429
        %v5344 = vpack.c.b16 %v3442, %v3436
        %v5345 = vpack.c.b16 %v3443, %v3437
        %v5346 = vpack.c.b16 %v3444, %v3438
        %v5347 = vpack.c.b16 %v3445, %v3439
        %v5348 = vpack.c.b16 %v3446, %v3440
        %v5349 = vpack.c.b16 %v3447, %v3441
        %v5350 = vpack.c.b16 %v3454, %v3448
        %v5351 = vpack.c.b16 %v3455, %v3449
        %v5352 = vpack.c.b16 %v3456, %v3450
        %v5353 = vpack.c.b16 %v3457, %v3451
        %v5354 = vpack.c.b16 %v3458, %v3452
        %v5355 = vpack.c.b16 %v3459, %v3453
        %v5356 = vpack.c.b16 %v3466, %v3460
        %v5357 = vpack.c.b16 %v3467, %v3461
        %v5358 = vpack.c.b16 %v3468, %v3462
        %v5359 = vpack.c.b16 %v3469, %v3463
        %v5360 = vpack.c.b16 %v3470, %v3464
        %v5361 = vpack.c.b16 %v3471, %v3465
        %v5362 = vpack.c.b16 %v3478, %v3472
        %v5363 = vpack.c.b16 %v3479, %v3473
        %v5364 = vpack.c.b16 %v3480, %v3474
        %v5365 = vpack.c.b16 %v3481, %v3475
        %v5366 = vpack.c.b16 %v3482, %v3476
        %v5367 = vpack.c.b16 %v3483, %v3477
        %v5368 = vpack.c.b16 %v3490, %v3484
        %v5369 = vpack.c.b16 %v3491, %v3485
        %v5370 = vpack.c.b16 %v3492, %v3486
        %v5371 = vpack.c.b16 %v3493, %v3487
        %v5372 = vpack.c.b16 %v3494, %v3488
        %v5373 = vpack.c.b16 %v3495, %v3489
        %v5374 = vpack.c.b16 %v3502, %v3496
        %v5375 = vpack.c.b16 %v3503, %v3497
        %v5376 = vpack.c.b16 %v3504, %v3498
        %v5377 = vpack.c.b16 %v3505, %v3499
        %v5378 = vpack.c.b16 %v3506, %v3500
        %v5379 = vpack.c.b16 %v3507, %v3501
        %v5380 = vpack.c.b16 %v3514, %v3508
        %v5381 = vpack.c.b16 %v3515, %v3509
        %v5382 = vpack.c.b16 %v3516, %v3510
        %v5383 = vpack.c.b16 %v3517, %v3511
        %v5384 = vpack.c.b16 %v3518, %v3512
        %v5385 = vpack.c.b16 %v3519, %v3513
        %v5386 = vpack.c.b16 %v3526, %v3520
        %v5387 = vpack.c.b16 %v3527, %v3521
        %v5388 = vpack.c.b16 %v3528, %v3522
        %v5389 = vpack.c.b16 %v3529, %v3523
        %v5390 = vpack.c.b16 %v3530, %v3524
        %v5391 = vpack.c.b16 %v3531, %v3525
        %v5392 = vpack.c.b16 %v3538, %v3532
        %v5393 = vpack.c.b16 %v3539, %v3533
        %v5394 = vpack.c.b16 %v3540, %v3534
        %v5395 = vpack.c.b16 %v3541, %v3535
        %v5396 = vpack.c.b16 %v3542, %v3536
        %v5397 = vpack.c.b16 %v3543, %v3537
        %v5398 = vpack.c.b16 %v3550, %v3544
        %v5399 = vpack.c.b16 %v3551, %v3545
        %v5400 = vpack.c.b16 %v3552, %v3546
        %v5401 = vpack.c.b16 %v3553, %v3547
        %v5402 = vpack.c.b16 %v3554, %v3548
        %v5403 = vpack.c.b16 %v3555, %v3549
        %v5404 = vpack.c.b16 %v3562, %v3556
        %v5405 = vpack.c.b16 %v3563, %v3557
        %v5406 = vpack.c.b16 %v3564, %v3558
        %v5407 = vpack.c.b16 %v3565, %v3559
        %v5408 = vpack.c.b16 %v3566, %v3560
        %v5409 = vpack.c.b16 %v3567, %v3561
        %v5410 = vpack.c.b16 %v3574, %v3568
        %v5411 = vpack.c.b16 %v3575, %v3569
        %v5412 = vpack.c.b16 %v3576, %v3570
        %v5413 = vpack.c.b16 %v3577, %v3571
        %v5414 = vpack.c.b16 %v3578, %v3572
        %v5415 = vpack.c.b16 %v3579, %v3573
        %v5416 = vpack.c.b16 %v3586, %v3580
        %v5417 = vpack.c.b16 %v3587, %v3581
        %v5418 = vpack.c.b16 %v3588, %v3582
        %v5419 = vpack.c.b16 %v3589, %v3583
        %v5420 = vpack.c.b16 %v3590, %v3584
        %v5421 = vpack.c.b16 %v3591, %v3585
        %v5422 = vpack.c.b16 %v3598, %v3592
        %v5423 = vpack.c.b16 %v3599, %v3593
        %v5424 = vpack.c.b16 %v3600, %v3594
        %v5425 = vpack.c.b16 %v3601, %v3595
        %v5426 = vpack.c.b16 %v3602, %v3596
        %v5427 = vpack.c.b16 %v3603, %v3597
        %v5428 = vpack.c.b16 %v3610, %v3604
        %v5429 = vpack.c.b16 %v3611, %v3605
        %v5430 = vpack.c.b16 %v3612, %v3606
        %v5431 = vpack.c.b16 %v3613, %v3607
        %v5432 = vpack.c.b16 %v3614, %v3608
        %v5433 = vpack.c.b16 %v3615, %v3609
        %v5434 = vpack.c.b16 %v3622, %v3616
        %v5435 = vpack.c.b16 %v3623, %v3617
        %v5436 = vpack.c.b16 %v3624, %v3618
        %v5437 = vpack.c.b16 %v3625, %v3619
        %v5438 = vpack.c.b16 %v3626, %v3620
        %v5439 = vpack.c.b16 %v3627, %v3621
        %v5440 = vpack.c.b16 %v3634, %v3628
        %v5441 = vpack.c.b16 %v3635, %v3629
        %v5442 = vpack.c.b16 %v3636, %v3630
        %v5443 = vpack.c.b16 %v3637, %v3631
        %v5444 = vpack.c.b16 %v3638, %v3632
        %v5445 = vpack.c.b16 %v3639, %v3633
        %v5446 = vpack.c.b16 %v3646, %v3640
        %v5447 = vpack.c.b16 %v3647, %v3641
        %v5448 = vpack.c.b16 %v3648, %v3642
        %v5449 = vpack.c.b16 %v3649, %v3643
        %v5450 = vpack.c.b16 %v3650, %v3644
        %v5451 = vpack.c.b16 %v3651, %v3645
        %v5452 = vpack.c.b16 %v3658, %v3652
        %v5453 = vpack.c.b16 %v3659, %v3653
        %v5454 = vpack.c.b16 %v3660, %v3654
        %v5455 = vpack.c.b16 %v3661, %v3655
        %v5456 = vpack.c.b16 %v3662, %v3656
        %v5457 = vpack.c.b16 %v3663, %v3657
        %v5458 = vpack.c.b16 %v3670, %v3664
        %v5459 = vpack.c.b16 %v3671, %v3665
        %v5460 = vpack.c.b16 %v3672, %v3666
        %v5461 = vpack.c.b16 %v3673, %v3667
        %v5462 = vpack.c.b16 %v3674, %v3668
        %v5463 = vpack.c.b16 %v3675, %v3669
        %v5464 = vpack.c.b16 %v3682, %v3676
        %v5465 = vpack.c.b16 %v3683, %v3677
        %v5466 = vpack.c.b16 %v3684, %v3678
        %v5467 = vpack.c.b16 %v3685, %v3679
        %v5468 = vpack.c.b16 %v3686, %v3680
        %v5469 = vpack.c.b16 %v3687, %v3681
        %v5470 = vpack.c.b16 %v3694, %v3688
        %v5471 = vpack.c.b16 %v3695, %v3689
        %v5472 = vpack.c.b16 %v3696, %v3690
        %v5473 = vpack.c.b16 %v3697, %v3691
        %v5474 = vpack.c.b16 %v3698, %v3692
        %v5475 = vpack.c.b16 %v3699, %v3693
        %v5476 = vpack.c.b16 %v3706, %v3700
        %v5477 = vpack.c.b16 %v3707, %v3701
        %v5478 = vpack.c.b16 %v3708, %v3702
        %v5479 = vpack.c.b16 %v3709, %v3703
        %v5480 = vpack.c.b16 %v3710, %v3704
        %v5481 = vpack.c.b16 %v3711, %v3705
        %v5482 = vpack.c.b16 %v3718, %v3712
        %v5483 = vpack.c.b16 %v3719, %v3713
        %v5484 = vpack.c.b16 %v3720, %v3714
        %v5485 = vpack.c.b16 %v3721, %v3715
        %v5486 = vpack.c.b16 %v3722, %v3716
        %v5487 = vpack.c.b16 %v3723, %v3717
        %v5488 = vpack.c.b16 %v3730, %v3724
        %v5489 = vpack.c.b16 %v3731, %v3725
        %v5490 = vpack.c.b16 %v3732, %v3726
        %v5491 = vpack.c.b16 %v3733, %v3727
        %v5492 = vpack.c.b16 %v3734, %v3728
        %v5493 = vpack.c.b16 %v3735, %v3729
        %v5494 = vpack.c.b16 %v3742, %v3736
        %v5495 = vpack.c.b16 %v3743, %v3737
        %v5496 = vpack.c.b16 %v3744, %v3738
        %v5497 = vpack.c.b16 %v3745, %v3739
        %v5498 = vpack.c.b16 %v3746, %v3740
        %v5499 = vpack.c.b16 %v3747, %v3741
        %v5500 = vpack.c.b16 %v3754, %v3748
        %v5501 = vpack.c.b16 %v3755, %v3749
        %v5502 = vpack.c.b16 %v3756, %v3750
        %v5503 = vpack.c.b16 %v3757, %v3751
        %v5504 = vpack.c.b16 %v3758, %v3752
        %v5505 = vpack.c.b16 %v3759, %v3753
        %v5506 = vpack.c.b16 %v3766, %v3760
        %v5507 = vpack.c.b16 %v3767, %v3761
        %v5508 = vpack.c.b16 %v3768, %v3762
        %v5509 = vpack.c.b16 %v3769, %v3763
        %v5510 = vpack.c.b16 %v3770, %v3764
        %v5511 = vpack.c.b16 %v3771, %v3765
        %v5512 = vpack.c.b16 %v3778, %v3772
        %v5513 = vpack.c.b16 %v3779, %v3773
        %v5514 = vpack.c.b16 %v3780, %v3774
        %v5515 = vpack.c.b16 %v3781, %v3775
        %v5516 = vpack.c.b16 %v3782, %v3776
        %v5517 = vpack.c.b16 %v3783, %v3777
        %v5518 = vpack.c.b16 %v3790, %v3784
        %v5519 = vpack.c.b16 %v3791, %v3785
        %v5520 = vpack.c.b16 %v3792, %v3786
        %v5521 = vpack.c.b16 %v3793, %v3787
        %v5522 = vpack.c.b16 %v3794, %v3788
        %v5523 = vpack.c.b16 %v3795, %v3789
        %v5524 = vpack.c.b16 %v3802, %v3796
        %v5525 = vpack.c.b16 %v3803, %v3797
        %v5526 = vpack.c.b16 %v3804, %v3798
        %v5527 = vpack.c.b16 %v3805, %v3799
        %v5528 = vpack.c.b16 %v3806, %v3800
        %v5529 = vpack.c.b16 %v3807, %v3801
        %v5530 = vpack.c.b16 %v3814, %v3808
        %v5531 = vpack.c.b16 %v3815, %v3809
        %v5532 = vpack.c.b16 %v3816, %v3810
        %v5533 = vpack.c.b16 %v3817, %v3811
        %v5534 = vpack.c.b16 %v3818, %v3812
        %v5535 = vpack.c.b16 %v3819, %v3813
        %v5536 = vpack.c.b16 %v3826, %v3820
        %v5537 = vpack.c.b16 %v3827, %v3821
        %v5538 = vpack.c.b16 %v3828, %v3822
        %v5539 = vpack.c.b16 %v3829, %v3823
        %v5540 = vpack.c.b16 %v3830, %v3824
        %v5541 = vpack.c.b16 %v3831, %v3825
        %v5542 = vpack.c.b16 %v3838, %v3832
        %v5543 = vpack.c.b16 %v3839, %v3833
        %v5544 = vpack.c.b16 %v3840, %v3834
        %v5545 = vpack.c.b16 %v3841, %v3835
        %v5546 = vpack.c.b16 %v3842, %v3836
        %v5547 = vpack.c.b16 %v3843, %v3837
        %v5548 = vpack.c.b16 %v3850, %v3844
        %v5549 = vpack.c.b16 %v3851, %v3845
        %v5550 = vpack.c.b16 %v3852, %v3846
        %v5551 = vpack.c.b16 %v3853, %v3847
        %v5552 = vpack.c.b16 %v3854, %v3848
        %v5553 = vpack.c.b16 %v3855, %v3849
        %v5554 = vpack.c.b16 %v3862, %v3856
        %v5555 = vpack.c.b16 %v3863, %v3857
        %v5556 = vpack.c.b16 %v3864, %v3858
        %v5557 = vpack.c.b16 %v3865, %v3859
        %v5558 = vpack.c.b16 %v3866, %v3860
        %v5559 = vpack.c.b16 %v3867, %v3861
        %v5560 = vpack.c.b16 %v3874, %v3868
        %v5561 = vpack.c.b16 %v3875, %v3869
        %v5562 = vpack.c.b16 %v3876, %v3870
        %v5563 = vpack.c.b16 %v3877, %v3871
        %v5564 = vpack.c.b16 %v3878, %v3872
        %v5565 = vpack.c.b16 %v3879, %v3873
        %v5566 = vpack.c.b16 %v3886, %v3880
        %v5567 = vpack.c.b16 %v3887, %v3881
        %v5568 = vpack.c.b16 %v3888, %v3882
        %v5569 = vpack.c.b16 %v3889, %v3883
        %v5570 = vpack.c.b16 %v3890, %v3884
        %v5571 = vpack.c.b16 %v3891, %v3885
        %v5572 = vpack.c.b16 %v3898, %v3892
        %v5573 = vpack.c.b16 %v3899, %v3893
        %v5574 = vpack.c.b16 %v3900, %v3894
        %v5575 = vpack.c.b16 %v3901, %v3895
        %v5576 = vpack.c.b16 %v3902, %v3896
        %v5577 = vpack.c.b16 %v3903, %v3897
        %v5578 = vpack.c.b16 %v3910, %v3904
        %v5579 = vpack.c.b16 %v3911, %v3905
        %v5580 = vpack.c.b16 %v3912, %v3906
        %v5581 = vpack.c.b16 %v3913, %v3907
        %v5582 = vpack.c.b16 %v3914, %v3908
        %v5583 = vpack.c.b16 %v3915, %v3909
        %v5584 = vpack.c.b16 %v3922, %v3916
        %v5585 = vpack.c.b16 %v3923, %v3917
        %v5586 = vpack.c.b16 %v3924, %v3918
        %v5587 = vpack.c.b16 %v3925, %v3919
        %v5588 = vpack.c.b16 %v3926, %v3920
        %v5589 = vpack.c.b16 %v3927, %v3921
        %v5590 = vpack.c.b16 %v3934, %v3928
        %v5591 = vpack.c.b16 %v3935, %v3929
        %v5592 = vpack.c.b16 %v3936, %v3930
        %v5593 = vpack.c.b16 %v3937, %v3931
        %v5594 = vpack.c.b16 %v3938, %v3932
        %v5595 = vpack.c.b16 %v3939, %v3933
        %v5596 = vpack.c.b16 %v3946, %v3940
        %v5597 = vpack.c.b16 %v3947, %v3941
        %v5598 = vpack.c.b16 %v3948, %v3942
        %v5599 = vpack.c.b16 %v3949, %v3943
        %v5600 = vpack.c.b16 %v3950, %v3944
        %v5601 = vpack.c.b16 %v3951, %v3945
        %v5602 = vpack.c.b16 %v3958, %v3952
        %v5603 = vpack.c.b16 %v3959, %v3953
        %v5604 = vpack.c.b16 %v3960, %v3954
        %v5605 = vpack.c.b16 %v3961, %v3955
        %v5606 = vpack.c.b16 %v3962, %v3956
        %v5607 = vpack.c.b16 %v3963, %v3957
        %v5608 = vpack.c.b16 %v3970, %v3964
        %v5609 = vpack.c.b16 %v3971, %v3965
        %v5610 = vpack.c.b16 %v3972, %v3966
        %v5611 = vpack.c.b16 %v3973, %v3967
        %v5612 = vpack.c.b16 %v3974, %v3968
        %v5613 = vpack.c.b16 %v3975, %v3969
        %v5614 = vpack.c.b16 %v3982, %v3976
        %v5615 = vpack.c.b16 %v3983, %v3977
        %v5616 = vpack.c.b16 %v3984, %v3978
        %v5617 = vpack.c.b16 %v3985, %v3979
        %v5618 = vpack.c.b16 %v3986, %v3980
        %v5619 = vpack.c.b16 %v3987, %v3981
        %v5620 = vpack.c.b16 %v3994, %v3988
        %v5621 = vpack.c.b16 %v3995, %v3989
        %v5622 = vpack.c.b16 %v3996, %v3990
        %v5623 = vpack.c.b16 %v3997, %v3991
        %v5624 = vpack.c.b16 %v3998, %v3992
        %v5625 = vpack.c.b16 %v3999, %v3993
        %v5626 = vpack.c.b16 %v4006, %v4000
        %v5627 = vpack.c.b16 %v4007, %v4001
        %v5628 = vpack.c.b16 %v4008, %v4002
        %v5629 = vpack.c.b16 %v4009, %v4003
        %v5630 = vpack.c.b16 %v4010, %v4004
        %v5631 = vpack.c.b16 %v4011, %v4005
        %v5632 = vpack.c.b16 %v4018, %v4012
        %v5633 = vpack.c.b16 %v4019, %v4013
        %v5634 = vpack.c.b16 %v4020, %v4014
        %v5635 = vpack.c.b16 %v4021, %v4015
        %v5636 = vpack.c.b16 %v4022, %v4016
        %v5637 = vpack.c.b16 %v4023, %v4017
        %v5638 = vpack.c.b16 %v4030, %v4024
        %v5639 = vpack.c.b16 %v4031, %v4025
        %v5640 = vpack.c.b16 %v4032, %v4026
        %v5641 = vpack.c.b16 %v4033, %v4027
        %v5642 = vpack.c.b16 %v4034, %v4028
        %v5643 = vpack.c.b16 %v4035, %v4029
        %v5644 = vpack.c.b16 %v4042, %v4036
        %v5645 = vpack.c.b16 %v4043, %v4037
        %v5646 = vpack.c.b16 %v4044, %v4038
        %v5647 = vpack.c.b16 %v4045, %v4039
        %v5648 = vpack.c.b16 %v4046, %v4040
        %v5649 = vpack.c.b16 %v4047, %v4041
        %v5650 = vpack.c.b16 %v4054, %v4048
        %v5651 = vpack.c.b16 %v4055, %v4049
        %v5652 = vpack.c.b16 %v4056, %v4050
        %v5653 = vpack.c.b16 %v4057, %v4051
        %v5654 = vpack.c.b16 %v4058, %v4052
        %v5655 = vpack.c.b16 %v4059, %v4053
        %v5656 = vpack.c.b16 %v4066, %v4060
        %v5657 = vpack.c.b16 %v4067, %v4061
        %v5658 = vpack.c.b16 %v4068, %v4062
        %v5659 = vpack.c.b16 %v4069, %v4063
        %v5660 = vpack.c.b16 %v4070, %v4064
        %v5661 = vpack.c.b16 %v4071, %v4065
        %v5662 = vpack.c.b16 %v4078, %v4072
        %v5663 = vpack.c.b16 %v4079, %v4073
        %v5664 = vpack.c.b16 %v4080, %v4074
        %v5665 = vpack.c.b16 %v4081, %v4075
        %v5666 = vpack.c.b16 %v4082, %v4076
        %v5667 = vpack.c.b16 %v4083, %v4077
        %v5668 = vpack.c.b16 %v4090, %v4084
        %v5669 = vpack.c.b16 %v4091, %v4085
        %v5670 = vpack.c.b16 %v4092, %v4086
        %v5671 = vpack.c.b16 %v4093, %v4087
        %v5672 = vpack.c.b16 %v4094, %v4088
        %v5673 = vpack.c.b16 %v4095, %v4089
        %v5674 = vpack.c.b16 %v4102, %v4096
        %v5675 = vpack.c.b16 %v4103, %v4097
        %v5676 = vpack.c.b16 %v4104, %v4098
        %v5677 = vpack.c.b16 %v4105, %v4099
        %v5678 = vpack.c.b16 %v4106, %v4100
        %v5679 = vpack.c.b16 %v4107, %v4101
        %v5680 = vpack.c.b16 %v4114, %v4108
        %v5681 = vpack.c.b16 %v4115, %v4109
        %v5682 = vpack.c.b16 %v4116, %v4110
        %v5683 = vpack.c.b16 %v4117, %v4111
        %v5684 = vpack.c.b16 %v4118, %v4112
        %v5685 = vpack.c.b16 %v4119, %v4113
        %v5686 = vpack.c.b16 %v4126, %v4120
        %v5687 = vpack.c.b16 %v4127, %v4121
        %v5688 = vpack.c.b16 %v4128, %v4122
        %v5689 = vpack.c.b16 %v4129, %v4123
        %v5690 = vpack.c.b16 %v4130, %v4124
        %v5691 = vpack.c.b16 %v4131, %v4125
        %v5692 = vpack.c.b16 %v4138, %v4132
        %v5693 = vpack.c.b16 %v4139, %v4133
        %v5694 = vpack.c.b16 %v4140, %v4134
        %v5695 = vpack.c.b16 %v4141, %v4135
        %v5696 = vpack.c.b16 %v4142, %v4136
        %v5697 = vpack.c.b16 %v4143, %v4137
        %v5698 = vpack.c.b16 %v4150, %v4144
        %v5699 = vpack.c.b16 %v4151, %v4145
        %v5700 = vpack.c.b16 %v4152, %v4146
        %v5701 = vpack.c.b16 %v4153, %v4147
        %v5702 = vpack.c.b16 %v4154, %v4148
        %v5703 = vpack.c.b16 %v4155, %v4149
        %v5704 = vpack.c.b16 %v4162, %v4156
        %v5705 = vpack.c.b16 %v4163, %v4157
        %v5706 = vpack.c.b16 %v4164, %v4158
        %v5707 = vpack.c.b16 %v4165, %v4159
        %v5708 = vpack.c.b16 %v4166, %v4160
        %v5709 = vpack.c.b16 %v4167, %v4161
        %v5710 = vpack.c.b16 %v4174, %v4168
        %v5711 = vpack.c.b16 %v4175, %v4169
        %v5712 = vpack.c.b16 %v4176, %v4170
        %v5713 = vpack.c.b16 %v4177, %v4171
        %v5714 = vpack.c.b16 %v4178, %v4172
        %v5715 = vpack.c.b16 %v4179, %v4173
        %v5716 = vpack.c.b16 %v4186, %v4180
        %v5717 = vpack.c.b16 %v4187, %v4181
        %v5718 = vpack.c.b16 %v4188, %v4182
        %v5719 = vpack.c.b16 %v4189, %v4183
        %v5720 = vpack.c.b16 %v4190, %v4184
        %v5721 = vpack.c.b16 %v4191, %v4185
        %v5722 = vpack.c.b16 %v4198, %v4192
        %v5723 = vpack.c.b16 %v4199, %v4193
        %v5724 = vpack.c.b16 %v4200, %v4194
        %v5725 = vpack.c.b16 %v4201, %v4195
        %v5726 = vpack.c.b16 %v4202, %v4196
        %v5727 = vpack.c.b16 %v4203, %v4197
        %v5728 = vpack.c.b16 %v4210, %v4204
        %v5729 = vpack.c.b16 %v4211, %v4205
        %v5730 = vpack.c.b16 %v4212, %v4206
        %v5731 = vpack.c.b16 %v4213, %v4207
        %v5732 = vpack.c.b16 %v4214, %v4208
        %v5733 = vpack.c.b16 %v4215, %v4209
        %v5734 = vpack.c.b16 %v4222, %v4216
        %v5735 = vpack.c.b16 %v4223, %v4217
        %v5736 = vpack.c.b16 %v4224, %v4218
        %v5737 = vpack.c.b16 %v4225, %v4219
        %v5738 = vpack.c.b16 %v4226, %v4220
        %v5739 = vpack.c.b16 %v4227, %v4221
        %v5740 = vpack.c.b16 %v4234, %v4228
        %v5741 = vpack.c.b16 %v4235, %v4229
        %v5742 = vpack.c.b16 %v4236, %v4230
        %v5743 = vpack.c.b16 %v4237, %v4231
        %v5744 = vpack.c.b16 %v4238, %v4232
        %v5745 = vpack.c.b16 %v4239, %v4233
        %v5746 = vpack.c.b16 %v4246, %v4240
        %v5747 = vpack.c.b16 %v4247, %v4241
        %v5748 = vpack.c.b16 %v4248, %v4242
        %v5749 = vpack.c.b16 %v4249, %v4243
        %v5750 = vpack.c.b16 %v4250, %v4244
        %v5751 = vpack.c.b16 %v4251, %v4245
        %v5752 = vpack.c.b16 %v4258, %v4252
        %v5753 = vpack.c.b16 %v4259, %v4253
        %v5754 = vpack.c.b16 %v4260, %v4254
        %v5755 = vpack.c.b16 %v4261, %v4255
        %v5756 = vpack.c.b16 %v4262, %v4256
        %v5757 = vpack.c.b16 %v4263, %v4257
        %v5758 = vpack.c.b16 %v4270, %v4264
        %v5759 = vpack.c.b16 %v4271, %v4265
        %v5760 = vpack.c.b16 %v4272, %v4266
        %v5761 = vpack.c.b16 %v4273, %v4267
        %v5762 = vpack.c.b16 %v4274, %v4268
        %v5763 = vpack.c.b16 %v4275, %v4269
        %v5764 = vpack.c.b16 %v4282, %v4276
        %v5765 = vpack.c.b16 %v4283, %v4277
        %v5766 = vpack.c.b16 %v4284, %v4278
        %v5767 = vpack.c.b16 %v4285, %v4279
        %v5768 = vpack.c.b16 %v4286, %v4280
        %v5769 = vpack.c.b16 %v4287, %v4281
        %v5770 = vpack.c.b16 %v4294, %v4288
        %v5771 = vpack.c.b16 %v4295, %v4289
        %v5772 = vpack.c.b16 %v4296, %v4290
        %v5773 = vpack.c.b16 %v4297, %v4291
        %v5774 = vpack.c.b16 %v4298, %v4292
        %v5775 = vpack.c.b16 %v4299, %v4293
        %v5776 = vpack.c.b16 %v4306, %v4300
        %v5777 = vpack.c.b16 %v4307, %v4301
        %v5778 = vpack.c.b16 %v4308, %v4302
        %v5779 = vpack.c.b16 %v4309, %v4303
        %v5780 = vpack.c.b16 %v4310, %v4304
        %v5781 = vpack.c.b16 %v4311, %v4305
        %v5782 = vpack.c.b16 %v4318, %v4312
        %v5783 = vpack.c.b16 %v4319, %v4313
        %v5784 = vpack.c.b16 %v4320, %v4314
        %v5785 = vpack.c.b16 %v4321, %v4315
        %v5786 = vpack.c.b16 %v4322, %v4316
        %v5787 = vpack.c.b16 %v4323, %v4317
        %v5788 = vpack.c.b16 %v4330, %v4324
        %v5789 = vpack.c.b16 %v4331, %v4325
        %v5790 = vpack.c.b16 %v4332, %v4326
        %v5791 = vpack.c.b16 %v4333, %v4327
        %v5792 = vpack.c.b16 %v4334, %v4328
        %v5793 = vpack.c.b16 %v4335, %v4329
        %v5794 = vpack.c.b16 %v4342, %v4336
        %v5795 = vpack.c.b16 %v4343, %v4337
        %v5796 = vpack.c.b16 %v4344, %v4338
        %v5797 = vpack.c.b16 %v4345, %v4339
        %v5798 = vpack.c.b16 %v4346, %v4340
        %v5799 = vpack.c.b16 %v4347, %v4341
        %v5800 = vpack.c.b16 %v4354, %v4348
        %v5801 = vpack.c.b16 %v4355, %v4349
        %v5802 = vpack.c.b16 %v4356, %v4350
        %v5803 = vpack.c.b16 %v4357, %v4351
        %v5804 = vpack.c.b16 %v4358, %v4352
        %v5805 = vpack.c.b16 %v4359, %v4353
        %v5806 = vpack.c.b16 %v4366, %v4360
        %v5807 = vpack.c.b16 %v4367, %v4361
        %v5808 = vpack.c.b16 %v4368, %v4362
        %v5809 = vpack.c.b16 %v4369, %v4363
        %v5810 = vpack.c.b16 %v4370, %v4364
        %v5811 = vpack.c.b16 %v4371, %v4365
        %v5812 = vpack.c.b16 %v4378, %v4372
        %v5813 = vpack.c.b16 %v4379, %v4373
        %v5814 = vpack.c.b16 %v4380, %v4374
        %v5815 = vpack.c.b16 %v4381, %v4375
        %v5816 = vpack.c.b16 %v4382, %v4376
        %v5817 = vpack.c.b16 %v4383, %v4377
        %v5818 = vpack.c.b16 %v4390, %v4384
        %v5819 = vpack.c.b16 %v4391, %v4385
        %v5820 = vpack.c.b16 %v4392, %v4386
        %v5821 = vpack.c.b16 %v4393, %v4387
        %v5822 = vpack.c.b16 %v4394, %v4388
        %v5823 = vpack.c.b16 %v4395, %v4389
        %v5824 = vpack.c.b16 %v4402, %v4396
        %v5825 = vpack.c.b16 %v4403, %v4397
        %v5826 = vpack.c.b16 %v4404, %v4398
        %v5827 = vpack.c.b16 %v4405, %v4399
        %v5828 = vpack.c.b16 %v4406, %v4400
        %v5829 = vpack.c.b16 %v4407, %v4401
        %v5830 = vpack.c.b16 %v4414, %v4408
        %v5831 = vpack.c.b16 %v4415, %v4409
        %v5832 = vpack.c.b16 %v4416, %v4410
        %v5833 = vpack.c.b16 %v4417, %v4411
        %v5834 = vpack.c.b16 %v4418, %v4412
        %v5835 = vpack.c.b16 %v4419, %v4413
        %v5836 = vpack.c.b16 %v4426, %v4420
        %v5837 = vpack.c.b16 %v4427, %v4421
        %v5838 = vpack.c.b16 %v4428, %v4422
        %v5839 = vpack.c.b16 %v4429, %v4423
        %v5840 = vpack.c.b16 %v4430, %v4424
        %v5841 = vpack.c.b16 %v4431, %v4425
        %v5842 = vpack.c.b16 %v4438, %v4432
        %v5843 = vpack.c.b16 %v4439, %v4433
        %v5844 = vpack.c.b16 %v4440, %v4434
        %v5845 = vpack.c.b16 %v4441, %v4435
        %v5846 = vpack.c.b16 %v4442, %v4436
        %v5847 = vpack.c.b16 %v4443, %v4437
        %v5848 = vpack.c.b16 %v4450, %v4444
        %v5849 = vpack.c.b16 %v4451, %v4445
        %v5850 = vpack.c.b16 %v4452, %v4446
        %v5851 = vpack.c.b16 %v4453, %v4447
        %v5852 = vpack.c.b16 %v4454, %v4448
        %v5853 = vpack.c.b16 %v4455, %v4449
        %v5854 = vpack.c.b16 %v4462, %v4456
        %v5855 = vpack.c.b16 %v4463, %v4457
        %v5856 = vpack.c.b16 %v4464, %v4458
        %v5857 = vpack.c.b16 %v4465, %v4459
        %v5858 = vpack.c.b16 %v4466, %v4460
        %v5859 = vpack.c.b16 %v4467, %v4461
        %v5860 = vpack.c.b16 %v4474, %v4468
        %v5861 = vpack.c.b16 %v4475, %v4469
        %v5862 = vpack.c.b16 %v4476, %v4470
        %v5863 = vpack.c.b16 %v4477, %v4471
        %v5864 = vpack.c.b16 %v4478, %v4472
        %v5865 = vpack.c.b16 %v4479, %v4473
        %v5866 = vpack.c.b16 %v4486, %v4480
        %v5867 = vpack.c.b16 %v4487, %v4481
        %v5868 = vpack.c.b16 %v4488, %v4482
        %v5869 = vpack.c.b16 %v4489, %v4483
        %v5870 = vpack.c.b16 %v4490, %v4484
        %v5871 = vpack.c.b16 %v4491, %v4485
        %v5872 = vpack.c.b16 %v4498, %v4492
        %v5873 = vpack.c.b16 %v4499, %v4493
        %v5874 = vpack.c.b16 %v4500, %v4494
        %v5875 = vpack.c.b16 %v4501, %v4495
        %v5876 = vpack.c.b16 %v4502, %v4496
        %v5877 = vpack.c.b16 %v4503, %v4497
        %v5878 = vpack.c.b16 %v4510, %v4504
        %v5879 = vpack.c.b16 %v4511, %v4505
        %v5880 = vpack.c.b16 %v4512, %v4506
        %v5881 = vpack.c.b16 %v4513, %v4507
        %v5882 = vpack.c.b16 %v4514, %v4508
        %v5883 = vpack.c.b16 %v4515, %v4509
        %v5884 = vpack.c.b16 %v4522, %v4516
        %v5885 = vpack.c.b16 %v4523, %v4517
        %v5886 = vpack.c.b16 %v4524, %v4518
        %v5887 = vpack.c.b16 %v4525, %v4519
        %v5888 = vpack.c.b16 %v4526, %v4520
        %v5889 = vpack.c.b16 %v4527, %v4521
        %v5890 = vpack.c.b16 %v4534, %v4528
        %v5891 = vpack.c.b16 %v4535, %v4529
        %v5892 = vpack.c.b16 %v4536, %v4530
        %v5893 = vpack.c.b16 %v4537, %v4531
        %v5894 = vpack.c.b16 %v4538, %v4532
        %v5895 = vpack.c.b16 %v4539, %v4533
        %v5896 = vpack.c.b16 %v4546, %v4540
        %v5897 = vpack.c.b16 %v4547, %v4541
        %v5898 = vpack.c.b16 %v4548, %v4542
        %v5899 = vpack.c.b16 %v4549, %v4543
        %v5900 = vpack.c.b16 %v4550, %v4544
        %v5901 = vpack.c.b16 %v4551, %v4545
        %v5902 = vpack.c.b16 %v4558, %v4552
        %v5903 = vpack.c.b16 %v4559, %v4553
        %v5904 = vpack.c.b16 %v4560, %v4554
        %v5905 = vpack.c.b16 %v4561, %v4555
        %v5906 = vpack.c.b16 %v4562, %v4556
        %v5907 = vpack.c.b16 %v4563, %v4557
        %v5908 = vpack.c.b16 %v4570, %v4564
        %v5909 = vpack.c.b16 %v4571, %v4565
        %v5910 = vpack.c.b16 %v4572, %v4566
        %v5911 = vpack.c.b16 %v4573, %v4567
        %v5912 = vpack.c.b16 %v4574, %v4568
        %v5913 = vpack.c.b16 %v4575, %v4569
        %v5914 = vpack.c.b16 %v4582, %v4576
        %v5915 = vpack.c.b16 %v4583, %v4577
        %v5916 = vpack.c.b16 %v4584, %v4578
        %v5917 = vpack.c.b16 %v4585, %v4579
        %v5918 = vpack.c.b16 %v4586, %v4580
        %v5919 = vpack.c.b16 %v4587, %v4581
        %v5920 = vpack.c.b16 %v4594, %v4588
        %v5921 = vpack.c.b16 %v4595, %v4589
        %v5922 = vpack.c.b16 %v4596, %v4590
        %v5923 = vpack.c.b16 %v4597, %v4591
        %v5924 = vpack.c.b16 %v4598, %v4592
        %v5925 = vpack.c.b16 %v4599, %v4593
        %v5926 = vpack.c.b16 %v4606, %v4600
        %v5927 = vpack.c.b16 %v4607, %v4601
        %v5928 = vpack.c.b16 %v4608, %v4602
        %v5929 = vpack.c.b16 %v4609, %v4603
        %v5930 = vpack.c.b16 %v4610, %v4604
        %v5931 = vpack.c.b16 %v4611, %v4605
        %v5932 = vpack.c.b16 %v4618, %v4612
        %v5933 = vpack.c.b16 %v4619, %v4613
        %v5934 = vpack.c.b16 %v4620, %v4614
        %v5935 = vpack.c.b16 %v4621, %v4615
        %v5936 = vpack.c.b16 %v4622, %v4616
        %v5937 = vpack.c.b16 %v4623, %v4617
        %v5938 = vpack.c.b16 %v4630, %v4624
        %v5939 = vpack.c.b16 %v4631, %v4625
        %v5940 = vpack.c.b16 %v4632, %v4626
        %v5941 = vpack.c.b16 %v4633, %v4627
        %v5942 = vpack.c.b16 %v4634, %v4628
        %v5943 = vpack.c.b16 %v4635, %v4629
        %v5944 = vpack.c.b16 %v4642, %v4636
        %v5945 = vpack.c.b16 %v4643, %v4637
        %v5946 = vpack.c.b16 %v4644, %v4638
        %v5947 = vpack.c.b16 %v4645, %v4639
        %v5948 = vpack.c.b16 %v4646, %v4640
        %v5949 = vpack.c.b16 %v4647, %v4641
        %v5950 = vpack.c.b16 %v4654, %v4648
        %v5951 = vpack.c.b16 %v4655, %v4649
        %v5952 = vpack.c.b16 %v4656, %v4650
        %v5953 = vpack.c.b16 %v4657, %v4651
        %v5954 = vpack.c.b16 %v4658, %v4652
        %v5955 = vpack.c.b16 %v4659, %v4653
        %v5956 = vpack.c.b16 %v4666, %v4660
        %v5957 = vpack.c.b16 %v4667, %v4661
        %v5958 = vpack.c.b16 %v4668, %v4662
        %v5959 = vpack.c.b16 %v4669, %v4663
        %v5960 = vpack.c.b16 %v4670, %v4664
        %v5961 = vpack.c.b16 %v4671, %v4665
        %v5962 = vpack.c.b16 %v4678, %v4672
        %v5963 = vpack.c.b16 %v4679, %v4673
        %v5964 = vpack.c.b16 %v4680, %v4674
        %v5965 = vpack.c.b16 %v4681, %v4675
        %v5966 = vpack.c.b16 %v4682, %v4676
        %v5967 = vpack.c.b16 %v4683, %v4677
        %v5968 = vpack.c.b16 %v4690, %v4684
        %v5969 = vpack.c.b16 %v4691, %v4685
        %v5970 = vpack.c.b16 %v4692, %v4686
        %v5971 = vpack.c.b16 %v4693, %v4687
        %v5972 = vpack.c.b16 %v4694, %v4688
        %v5973 = vpack.c.b16 %v4695, %v4689
        %v5974 = vpack.c.b16 %v4702, %v4696
        %v5975 = vpack.c.b16 %v4703, %v4697
        %v5976 = vpack.c.b16 %v4704, %v4698
        %v5977 = vpack.c.b16 %v4705, %v4699
        %v5978 = vpack.c.b16 %v4706, %v4700
        %v5979 = vpack.c.b16 %v4707, %v4701
        %v5980 = vpack.c.b16 %v4714, %v4708
        %v5981 = vpack.c.b16 %v4715, %v4709
        %v5982 = vpack.c.b16 %v4716, %v4710
        %v5983 = vpack.c.b16 %v4717, %v4711
        %v5984 = vpack.c.b16 %v4718, %v4712
        %v5985 = vpack.c.b16 %v4719, %v4713
        %v5986 = vpack.c.b16 %v4726, %v4720
        %v5987 = vpack.c.b16 %v4727, %v4721
        %v5988 = vpack.c.b16 %v4728, %v4722
        %v5989 = vpack.c.b16 %v4729, %v4723
        %v5990 = vpack.c.b16 %v4730, %v4724
        %v5991 = vpack.c.b16 %v4731, %v4725
        %v5992 = vpack.c.b16 %v4738, %v4732
        %v5993 = vpack.c.b16 %v4739, %v4733
        %v5994 = vpack.c.b16 %v4740, %v4734
        %v5995 = vpack.c.b16 %v4741, %v4735
        %v5996 = vpack.c.b16 %v4742, %v4736
        %v5997 = vpack.c.b16 %v4743, %v4737
        %v5998 = vpack.c.b16 %v4750, %v4744
        %v5999 = vpack.c.b16 %v4751, %v4745
        %v6000 = vpack.c.b16 %v4752, %v4746
        %v6001 = vpack.c.b16 %v4753, %v4747
        %v6002 = vpack.c.b16 %v4754, %v4748
        %v6003 = vpack.c.b16 %v4755, %v4749
        %v6004 = vpack.c.b16 %v4762, %v4756
        %v6005 = vpack.c.b16 %v4763, %v4757
        %v6006 = vpack.c.b16 %v4764, %v4758
        %v6007 = vpack.c.b16 %v4765, %v4759
        %v6008 = vpack.c.b16 %v4766, %v4760
        %v6009 = vpack.c.b16 %v4767, %v4761
        %v6010 = vpack.c.b16 %v4774, %v4768
        %v6011 = vpack.c.b16 %v4775, %v4769
        %v6012 = vpack.c.b16 %v4776, %v4770
        %v6013 = vpack.c.b16 %v4777, %v4771
        %v6014 = vpack.c.b16 %v4778, %v4772
        %v6015 = vpack.c.b16 %v4779, %v4773
        %v6016 = vpack.c.b16 %v4786, %v4780
        %v6017 = vpack.c.b16 %v4787, %v4781
        %v6018 = vpack.c.b16 %v4788, %v4782
        %v6019 = vpack.c.b16 %v4789, %v4783
        %v6020 = vpack.c.b16 %v4790, %v4784
        %v6021 = vpack.c.b16 %v4791, %v4785
        %v6022 = vpack.c.b16 %v4798, %v4792
        %v6023 = vpack.c.b16 %v4799, %v4793
        %v6024 = vpack.c.b16 %v4800, %v4794
        %v6025 = vpack.c.b16 %v4801, %v4795
        %v6026 = vpack.c.b16 %v4802, %v4796
        %v6027 = vpack.c.b16 %v4803, %v4797
        %v6028 = vpack.c.b16 %v4810, %v4804
        %v6029 = vpack.c.b16 %v4811, %v4805
        %v6030 = vpack.c.b16 %v4812, %v4806
        %v6031 = vpack.c.b16 %v4813, %v4807
        %v6032 = vpack.c.b16 %v4814, %v4808
        %v6033 = vpack.c.b16 %v4815, %v4809
        %v6034 = vpack.c.b16 %v4822, %v4816
        %v6035 = vpack.c.b16 %v4823, %v4817
        %v6036 = vpack.c.b16 %v4824, %v4818
        %v6037 = vpack.c.b16 %v4825, %v4819
        %v6038 = vpack.c.b16 %v4826, %v4820
        %v6039 = vpack.c.b16 %v4827, %v4821
        %v6040 = vpack.c.b16 %v4834, %v4828
        %v6041 = vpack.c.b16 %v4835, %v4829
        %v6042 = vpack.c.b16 %v4836, %v4830
        %v6043 = vpack.c.b16 %v4837, %v4831
        %v6044 = vpack.c.b16 %v4838, %v4832
        %v6045 = vpack.c.b16 %v4839, %v4833
        %v6046 = vpack.c.b16 %v4846, %v4840
        %v6047 = vpack.c.b16 %v4847, %v4841
        %v6048 = vpack.c.b16 %v4848, %v4842
        %v6049 = vpack.c.b16 %v4849, %v4843
        %v6050 = vpack.c.b16 %v4850, %v4844
        %v6051 = vpack.c.b16 %v4851, %v4845
        %v6052 = vpack.c.b16 %v4858, %v4852
        %v6053 = vpack.c.b16 %v4859, %v4853
        %v6054 = vpack.c.b16 %v4860, %v4854
        %v6055 = vpack.c.b16 %v4861, %v4855
        %v6056 = vpack.c.b16 %v4862, %v4856
        %v6057 = vpack.c.b16 %v4863, %v4857
        %v6058 = vpack.c.b16 %v4870, %v4864
        %v6059 = vpack.c.b16 %v4871, %v4865
        %v6060 = vpack.c.b16 %v4872, %v4866
        %v6061 = vpack.c.b16 %v4873, %v4867
        %v6062 = vpack.c.b16 %v4874, %v4868
        %v6063 = vpack.c.b16 %v4875, %v4869
        %v6064 = vpack.c.b16 %v4882, %v4876
        %v6065 = vpack.c.b16 %v4883, %v4877
        %v6066 = vpack.c.b16 %v4884, %v4878
        %v6067 = vpack.c.b16 %v4885, %v4879
        %v6068 = vpack.c.b16 %v4886, %v4880
        %v6069 = vpack.c.b16 %v4887, %v4881
        %v6070 = vpack.c.b16 %v4894, %v4888
        %v6071 = vpack.c.b16 %v4895, %v4889
        %v6072 = vpack.c.b16 %v4896, %v4890
        %v6073 = vpack.c.b16 %v4897, %v4891
        %v6074 = vpack.c.b16 %v4898, %v4892
        %v6075 = vpack.c.b16 %v4899, %v4893
        %v6076 = vpack.c.b16 %v4906, %v4900
        %v6077 = vpack.c.b16 %v4907, %v4901
        %v6078 = vpack.c.b16 %v4908, %v4902
        %v6079 = vpack.c.b16 %v4909, %v4903
        %v6080 = vpack.c.b16 %v4910, %v4904
        %v6081 = vpack.c.b16 %v4911, %v4905
        %v6082 = vpack.c.b16 %v4918, %v4912
        %v6083 = vpack.c.b16 %v4919, %v4913
        %v6084 = vpack.c.b16 %v4920, %v4914
        %v6085 = vpack.c.b16 %v4921, %v4915
        %v6086 = vpack.c.b16 %v4922, %v4916
        %v6087 = vpack.c.b16 %v4923, %v4917
        %v6088 = vpack.c.b16 %v4930, %v4924
        %v6089 = vpack.c.b16 %v4931, %v4925
        %v6090 = vpack.c.b16 %v4932, %v4926
        %v6091 = vpack.c.b16 %v4933, %v4927
        %v6092 = vpack.c.b16 %v4934, %v4928
        %v6093 = vpack.c.b16 %v4935, %v4929
        %v6094 = vpack.c.b16 %v4942, %v4936
        %v6095 = vpack.c.b16 %v4943, %v4937
        %v6096 = vpack.c.b16 %v4944, %v4938
        %v6097 = vpack.c.b16 %v4945, %v4939
        %v6098 = vpack.c.b16 %v4946, %v4940
        %v6099 = vpack.c.b16 %v4947, %v4941
        %7252 = vmatpush.bf16.msra.mxu0 %v4990
        %7253 = vmatpush.bf16.msra.mxu0 %v4984
        %7254 = vmatpush.bf16.msra.mxu0 %v4978
        %7255 = vmatpush.bf16.msra.mxu0 %v4972
        %7256 = vmatpush.bf16.msra.mxu0 %v4966
        %7257 = vmatpush.bf16.msra.mxu0 %v4960
        %7258 = vmatpush.bf16.msra.mxu0 %v4954
        %7259 = vmatpush.bf16.msra.mxu0 %v4948
        %7260 = vmatmul.bf16.gmra.mxu0 %v302
        %v7261 = vpop.f32.mrf.mxu0
        %v7262 = vadd.f32 %v1480, %v7261
        %v7263 = vpop.f32.mrf.mxu0
        %7264 = vdwg.mxu0
        %7265 = vmatpush.bf16.msra.mxu0 %v5038
        %7266 = vmatpush.bf16.msra.mxu0 %v5032
        %7267 = vmatpush.bf16.msra.mxu0 %v5026
        %7268 = vmatpush.bf16.msra.mxu0 %v5020
        %7269 = vmatpush.bf16.msra.mxu0 %v5014
        %7270 = vmatpush.bf16.msra.mxu0 %v5008
        %7271 = vmatpush.bf16.msra.mxu0 %v5002
        %7272 = vmatpush.bf16.msra.mxu0 %v4996
        %7273 = vmatmul.bf16.gmra.mxu0 %v303
        %v7274 = vpop.f32.mrf.mxu0
        %v7275 = vadd.f32 %v7262, %v7274
        %v7276 = vpop.f32.mrf.mxu0
        %7277 = vdwg.mxu0
        %7278 = vmatpush.bf16.msra.mxu0 %v5086
        %7279 = vmatpush.bf16.msra.mxu0 %v5080
        %7280 = vmatpush.bf16.msra.mxu0 %v5074
        %7281 = vmatpush.bf16.msra.mxu0 %v5068
        %7282 = vmatpush.bf16.msra.mxu0 %v5062
        %7283 = vmatpush.bf16.msra.mxu0 %v5056
        %7284 = vmatpush.bf16.msra.mxu0 %v5050
        %7285 = vmatpush.bf16.msra.mxu0 %v5044
        %7286 = vmatmul.bf16.gmra.mxu0 %v304
        %v7287 = vpop.f32.mrf.mxu0
        %v7288 = vadd.f32 %v7275, %v7287
        %v7289 = vpop.f32.mrf.mxu0
        %7290 = vdwg.mxu0
        %7291 = vmatpush.bf16.msra.mxu0 %v5134
        %7292 = vmatpush.bf16.msra.mxu0 %v5128
        %7293 = vmatpush.bf16.msra.mxu0 %v5122
        %7294 = vmatpush.bf16.msra.mxu0 %v5116
        %7295 = vmatpush.bf16.msra.mxu0 %v5110
        %7296 = vmatpush.bf16.msra.mxu0 %v5104
        %7297 = vmatpush.bf16.msra.mxu0 %v5098
        %7298 = vmatpush.bf16.msra.mxu0 %v5092
        %7299 = vmatmul.bf16.gmra.mxu0 %v305
        %v7300 = vpop.f32.mrf.mxu0
        %v7301 = vadd.f32 %v7288, %v7300
        %v7302 = vpop.f32.mrf.mxu0
        %7303 = vdwg.mxu0
        %7304 = vmatpush.bf16.msra.mxu0 %v5182
        %7305 = vmatpush.bf16.msra.mxu0 %v5176
        %7306 = vmatpush.bf16.msra.mxu0 %v5170
        %7307 = vmatpush.bf16.msra.mxu0 %v5164
        %7308 = vmatpush.bf16.msra.mxu0 %v5158
        %7309 = vmatpush.bf16.msra.mxu0 %v5152
        %7310 = vmatpush.bf16.msra.mxu0 %v5146
        %7311 = vmatpush.bf16.msra.mxu0 %v5140
        %7312 = vmatmul.bf16.gmra.mxu0 %v306
        %v7313 = vpop.f32.mrf.mxu0
        %v7314 = vadd.f32 %v7301, %v7313
        %v7315 = vpop.f32.mrf.mxu0
        %7316 = vdwg.mxu0
        %7317 = vmatpush.bf16.msra.mxu0 %v5230
        %7318 = vmatpush.bf16.msra.mxu0 %v5224
        %7319 = vmatpush.bf16.msra.mxu0 %v5218
        %7320 = vmatpush.bf16.msra.mxu0 %v5212
        %7321 = vmatpush.bf16.msra.mxu0 %v5206
        %7322 = vmatpush.bf16.msra.mxu0 %v5200
        %7323 = vmatpush.bf16.msra.mxu0 %v5194
        %7324 = vmatpush.bf16.msra.mxu0 %v5188
        %7325 = vmatmul.bf16.gmra.mxu0 %v307
        %v7326 = vpop.f32.mrf.mxu0
        %v7327 = vadd.f32 %v7314, %v7326
        %v7328 = vpop.f32.mrf.mxu0
        %7329 = vdwg.mxu0
        %7330 = vmatpush.bf16.msra.mxu0 %v5278
        %7331 = vmatpush.bf16.msra.mxu0 %v5272
        %7332 = vmatpush.bf16.msra.mxu0 %v5266
        %7333 = vmatpush.bf16.msra.mxu0 %v5260
        %7334 = vmatpush.bf16.msra.mxu0 %v5254
        %7335 = vmatpush.bf16.msra.mxu0 %v5248
        %7336 = vmatpush.bf16.msra.mxu0 %v5242
        %7337 = vmatpush.bf16.msra.mxu0 %v5236
        %7338 = vmatmul.bf16.gmra.mxu0 %v308
        %v7339 = vpop.f32.mrf.mxu0
        %v7340 = vadd.f32 %v7327, %v7339
        %v7341 = vpop.f32.mrf.mxu0
        %7342 = vdwg.mxu0
        %7343 = vmatpush.bf16.msra.mxu0 %v5326
        %7344 = vmatpush.bf16.msra.mxu0 %v5320
        %7345 = vmatpush.bf16.msra.mxu0 %v5314
        %7346 = vmatpush.bf16.msra.mxu0 %v5308
        %7347 = vmatpush.bf16.msra.mxu0 %v5302
        %7348 = vmatpush.bf16.msra.mxu0 %v5296
        %7349 = vmatpush.bf16.msra.mxu0 %v5290
        %7350 = vmatpush.bf16.msra.mxu0 %v5284
        %7351 = vmatmul.bf16.gmra.mxu0 %v309
        %v7352 = vpop.f32.mrf.mxu0
        %v7353 = vadd.f32 %v7340, %v7352
        %v7354 = vpop.f32.mrf.mxu0
        %7355 = vdwg.mxu0
        %7356 = vmatpush.bf16.msra.mxu0 %v5374
        %7357 = vmatpush.bf16.msra.mxu0 %v5368
        %7358 = vmatpush.bf16.msra.mxu0 %v5362
        %7359 = vmatpush.bf16.msra.mxu0 %v5356
        %7360 = vmatpush.bf16.msra.mxu0 %v5350
        %7361 = vmatpush.bf16.msra.mxu0 %v5344
        %7362 = vmatpush.bf16.msra.mxu0 %v5338
        %7363 = vmatpush.bf16.msra.mxu0 %v5332
        %7364 = vmatmul.bf16.gmra.mxu0 %v310
        %v7365 = vpop.f32.mrf.mxu0
        %v7366 = vadd.f32 %v7353, %v7365
        %v7367 = vpop.f32.mrf.mxu0
        %7368 = vdwg.mxu0
        %7369 = vmatpush.bf16.msra.mxu0 %v5422
        %7370 = vmatpush.bf16.msra.mxu0 %v5416
        %7371 = vmatpush.bf16.msra.mxu0 %v5410
        %7372 = vmatpush.bf16.msra.mxu0 %v5404
        %7373 = vmatpush.bf16.msra.mxu0 %v5398
        %7374 = vmatpush.bf16.msra.mxu0 %v5392
        %7375 = vmatpush.bf16.msra.mxu0 %v5386
        %7376 = vmatpush.bf16.msra.mxu0 %v5380
        %7377 = vmatmul.bf16.gmra.mxu0 %v311
        %v7378 = vpop.f32.mrf.mxu0
        %v7379 = vadd.f32 %v7366, %v7378
        %v7380 = vpop.f32.mrf.mxu0
        %7381 = vdwg.mxu0
        %7382 = vmatpush.bf16.msra.mxu0 %v5470
        %7383 = vmatpush.bf16.msra.mxu0 %v5464
        %7384 = vmatpush.bf16.msra.mxu0 %v5458
        %7385 = vmatpush.bf16.msra.mxu0 %v5452
        %7386 = vmatpush.bf16.msra.mxu0 %v5446
        %7387 = vmatpush.bf16.msra.mxu0 %v5440
        %7388 = vmatpush.bf16.msra.mxu0 %v5434
        %7389 = vmatpush.bf16.msra.mxu0 %v5428
        %7390 = vmatmul.bf16.gmra.mxu0 %v312
        %v7391 = vpop.f32.mrf.mxu0
        %v7392 = vadd.f32 %v7379, %v7391
        %v7393 = vpop.f32.mrf.mxu0
        %7394 = vdwg.mxu0
        %7395 = vmatpush.bf16.msra.mxu0 %v5518
        %7396 = vmatpush.bf16.msra.mxu0 %v5512
        %7397 = vmatpush.bf16.msra.mxu0 %v5506
        %7398 = vmatpush.bf16.msra.mxu0 %v5500
        %7399 = vmatpush.bf16.msra.mxu0 %v5494
        %7400 = vmatpush.bf16.msra.mxu0 %v5488
        %7401 = vmatpush.bf16.msra.mxu0 %v5482
        %7402 = vmatpush.bf16.msra.mxu0 %v5476
        %7403 = vmatmul.bf16.gmra.mxu0 %v313
        %v7404 = vpop.f32.mrf.mxu0
        %v7405 = vadd.f32 %v7392, %v7404
        %v7406 = vpop.f32.mrf.mxu0
        %7407 = vdwg.mxu0
        %7408 = vmatpush.bf16.msra.mxu0 %v5566
        %7409 = vmatpush.bf16.msra.mxu0 %v5560
        %7410 = vmatpush.bf16.msra.mxu0 %v5554
        %7411 = vmatpush.bf16.msra.mxu0 %v5548
        %7412 = vmatpush.bf16.msra.mxu0 %v5542
        %7413 = vmatpush.bf16.msra.mxu0 %v5536
        %7414 = vmatpush.bf16.msra.mxu0 %v5530
        %7415 = vmatpush.bf16.msra.mxu0 %v5524
        %7416 = vmatmul.bf16.gmra.mxu0 %v314
        %v7417 = vpop.f32.mrf.mxu0
        %v7418 = vadd.f32 %v7405, %v7417
        %v7419 = vpop.f32.mrf.mxu0
        %7420 = vdwg.mxu0
        %7421 = vmatpush.bf16.msra.mxu0 %v5614
        %7422 = vmatpush.bf16.msra.mxu0 %v5608
        %7423 = vmatpush.bf16.msra.mxu0 %v5602
        %7424 = vmatpush.bf16.msra.mxu0 %v5596
        %7425 = vmatpush.bf16.msra.mxu0 %v5590
        %7426 = vmatpush.bf16.msra.mxu0 %v5584
        %7427 = vmatpush.bf16.msra.mxu0 %v5578
        %7428 = vmatpush.bf16.msra.mxu0 %v5572
        %7429 = vmatmul.bf16.gmra.mxu0 %v315
        %v7430 = vpop.f32.mrf.mxu0
        %v7431 = vadd.f32 %v7418, %v7430
        %v7432 = vpop.f32.mrf.mxu0
        %7433 = vdwg.mxu0
        %7434 = vmatpush.bf16.msra.mxu0 %v5662
        %7435 = vmatpush.bf16.msra.mxu0 %v5656
        %7436 = vmatpush.bf16.msra.mxu0 %v5650
        %7437 = vmatpush.bf16.msra.mxu0 %v5644
        %7438 = vmatpush.bf16.msra.mxu0 %v5638
        %7439 = vmatpush.bf16.msra.mxu0 %v5632
        %7440 = vmatpush.bf16.msra.mxu0 %v5626
        %7441 = vmatpush.bf16.msra.mxu0 %v5620
        %7442 = vmatmul.bf16.gmra.mxu0 %v316
        %v7443 = vpop.f32.mrf.mxu0
        %v7444 = vadd.f32 %v7431, %v7443
        %v7445 = vpop.f32.mrf.mxu0
        %7446 = vdwg.mxu0
        %7447 = vmatpush.bf16.msra.mxu0 %v5710
        %7448 = vmatpush.bf16.msra.mxu0 %v5704
        %7449 = vmatpush.bf16.msra.mxu0 %v5698
        %7450 = vmatpush.bf16.msra.mxu0 %v5692
        %7451 = vmatpush.bf16.msra.mxu0 %v5686
        %7452 = vmatpush.bf16.msra.mxu0 %v5680
        %7453 = vmatpush.bf16.msra.mxu0 %v5674
        %7454 = vmatpush.bf16.msra.mxu0 %v5668
        %7455 = vmatmul.bf16.gmra.mxu0 %v317
        %v7456 = vpop.f32.mrf.mxu0
        %v7457 = vadd.f32 %v7444, %v7456
        %v7458 = vpop.f32.mrf.mxu0
        %7459 = vdwg.mxu0
        %7460 = vmatpush.bf16.msra.mxu0 %v5758
        %7461 = vmatpush.bf16.msra.mxu0 %v5752
        %7462 = vmatpush.bf16.msra.mxu0 %v5746
        %7463 = vmatpush.bf16.msra.mxu0 %v5740
        %7464 = vmatpush.bf16.msra.mxu0 %v5734
        %7465 = vmatpush.bf16.msra.mxu0 %v5728
        %7466 = vmatpush.bf16.msra.mxu0 %v5722
        %7467 = vmatpush.bf16.msra.mxu0 %v5716
        %7468 = vmatmul.bf16.gmra.mxu0 %v318
        %v7469 = vpop.f32.mrf.mxu0
        %v7470 = vadd.f32 %v7457, %v7469
        %v7471 = vpop.f32.mrf.mxu0
        %7472 = vdwg.mxu0
        %7473 = vmatpush.bf16.msra.mxu0 %v5806
        %7474 = vmatpush.bf16.msra.mxu0 %v5800
        %7475 = vmatpush.bf16.msra.mxu0 %v5794
        %7476 = vmatpush.bf16.msra.mxu0 %v5788
        %7477 = vmatpush.bf16.msra.mxu0 %v5782
        %7478 = vmatpush.bf16.msra.mxu0 %v5776
        %7479 = vmatpush.bf16.msra.mxu0 %v5770
        %7480 = vmatpush.bf16.msra.mxu0 %v5764
        %7481 = vmatmul.bf16.gmra.mxu0 %v319
        %v7482 = vpop.f32.mrf.mxu0
        %v7483 = vadd.f32 %v7470, %v7482
        %v7484 = vpop.f32.mrf.mxu0
        %7485 = vdwg.mxu0
        %7486 = vmatpush.bf16.msra.mxu0 %v5854
        %7487 = vmatpush.bf16.msra.mxu0 %v5848
        %7488 = vmatpush.bf16.msra.mxu0 %v5842
        %7489 = vmatpush.bf16.msra.mxu0 %v5836
        %7490 = vmatpush.bf16.msra.mxu0 %v5830
        %7491 = vmatpush.bf16.msra.mxu0 %v5824
        %7492 = vmatpush.bf16.msra.mxu0 %v5818
        %7493 = vmatpush.bf16.msra.mxu0 %v5812
        %7494 = vmatmul.bf16.gmra.mxu0 %v320
        %v7495 = vpop.f32.mrf.mxu0
        %v7496 = vadd.f32 %v7483, %v7495
        %v7497 = vpop.f32.mrf.mxu0
        %7498 = vdwg.mxu0
        %7499 = vmatpush.bf16.msra.mxu0 %v5902
        %7500 = vmatpush.bf16.msra.mxu0 %v5896
        %7501 = vmatpush.bf16.msra.mxu0 %v5890
        %7502 = vmatpush.bf16.msra.mxu0 %v5884
        %7503 = vmatpush.bf16.msra.mxu0 %v5878
        %7504 = vmatpush.bf16.msra.mxu0 %v5872
        %7505 = vmatpush.bf16.msra.mxu0 %v5866
        %7506 = vmatpush.bf16.msra.mxu0 %v5860
        %7507 = vmatmul.bf16.gmra.mxu0 %v321
        %v7508 = vpop.f32.mrf.mxu0
        %v7509 = vadd.f32 %v7496, %v7508
        %v7510 = vpop.f32.mrf.mxu0
        %7511 = vdwg.mxu0
        %7512 = vmatpush.bf16.msra.mxu0 %v5950
        %7513 = vmatpush.bf16.msra.mxu0 %v5944
        %7514 = vmatpush.bf16.msra.mxu0 %v5938
        %7515 = vmatpush.bf16.msra.mxu0 %v5932
        %7516 = vmatpush.bf16.msra.mxu0 %v5926
        %7517 = vmatpush.bf16.msra.mxu0 %v5920
        %7518 = vmatpush.bf16.msra.mxu0 %v5914
        %7519 = vmatpush.bf16.msra.mxu0 %v5908
        %7520 = vmatmul.bf16.gmra.mxu0 %v322
        %v7521 = vpop.f32.mrf.mxu0
        %v7522 = vadd.f32 %v7509, %v7521
        %v7523 = vpop.f32.mrf.mxu0
        %7524 = vdwg.mxu0
        %7525 = vmatpush.bf16.msra.mxu0 %v5998
        %7526 = vmatpush.bf16.msra.mxu0 %v5992
        %7527 = vmatpush.bf16.msra.mxu0 %v5986
        %7528 = vmatpush.bf16.msra.mxu0 %v5980
        %7529 = vmatpush.bf16.msra.mxu0 %v5974
        %7530 = vmatpush.bf16.msra.mxu0 %v5968
        %7531 = vmatpush.bf16.msra.mxu0 %v5962
        %7532 = vmatpush.bf16.msra.mxu0 %v5956
        %7533 = vmatmul.bf16.gmra.mxu0 %v323
        %v7534 = vpop.f32.mrf.mxu0
        %v7535 = vadd.f32 %v7522, %v7534
        %v7536 = vpop.f32.mrf.mxu0
        %7537 = vdwg.mxu0
        %7538 = vmatpush.bf16.msra.mxu0 %v6046
        %7539 = vmatpush.bf16.msra.mxu0 %v6040
        %7540 = vmatpush.bf16.msra.mxu0 %v6034
        %7541 = vmatpush.bf16.msra.mxu0 %v6028
        %7542 = vmatpush.bf16.msra.mxu0 %v6022
        %7543 = vmatpush.bf16.msra.mxu0 %v6016
        %7544 = vmatpush.bf16.msra.mxu0 %v6010
        %7545 = vmatpush.bf16.msra.mxu0 %v6004
        %7546 = vmatmul.bf16.gmra.mxu0 %v324
        %v7547 = vpop.f32.mrf.mxu0
        %v7548 = vadd.f32 %v7535, %v7547
        %v7549 = vpop.f32.mrf.mxu0
        %7550 = vdwg.mxu0
        %7551 = vmatpush.bf16.msra.mxu0 %v6094
        %7552 = vmatpush.bf16.msra.mxu0 %v6088
        %7553 = vmatpush.bf16.msra.mxu0 %v6082
        %7554 = vmatpush.bf16.msra.mxu0 %v6076
        %7555 = vmatpush.bf16.msra.mxu0 %v6070
        %7556 = vmatpush.bf16.msra.mxu0 %v6064
        %7557 = vmatpush.bf16.msra.mxu0 %v6058
        %7558 = vmatpush.bf16.msra.mxu0 %v6052
        %7559 = vmatmul.bf16.gmra.mxu0 %v325
        %v7560 = vpop.f32.mrf.mxu0
        %v7561 = vadd.f32 %v7548, %v7560
        %v7562 = vpop.f32.mrf.mxu0
        %7563 = vdwg.mxu0
        %7564 = vmatpush.bf16.msra.mxu0 %v4991
        %7565 = vmatpush.bf16.msra.mxu0 %v4985
        %7566 = vmatpush.bf16.msra.mxu0 %v4979
        %7567 = vmatpush.bf16.msra.mxu0 %v4973
        %7568 = vmatpush.bf16.msra.mxu0 %v4967
        %7569 = vmatpush.bf16.msra.mxu0 %v4961
        %7570 = vmatpush.bf16.msra.mxu0 %v4955
        %7571 = vmatpush.bf16.msra.mxu0 %v4949
        %7572 = vmatmul.bf16.gmra.mxu0 %v302
        %v7573 = vpop.f32.mrf.mxu0
        %v7574 = vadd.f32 %v1481, %v7573
        %v7575 = vpop.f32.mrf.mxu0
        %7576 = vdwg.mxu0
        %7577 = vmatpush.bf16.msra.mxu0 %v5039
        %7578 = vmatpush.bf16.msra.mxu0 %v5033
        %7579 = vmatpush.bf16.msra.mxu0 %v5027
        %7580 = vmatpush.bf16.msra.mxu0 %v5021
        %7581 = vmatpush.bf16.msra.mxu0 %v5015
        %7582 = vmatpush.bf16.msra.mxu0 %v5009
        %7583 = vmatpush.bf16.msra.mxu0 %v5003
        %7584 = vmatpush.bf16.msra.mxu0 %v4997
        %7585 = vmatmul.bf16.gmra.mxu0 %v303
        %v7586 = vpop.f32.mrf.mxu0
        %v7587 = vadd.f32 %v7574, %v7586
        %v7588 = vpop.f32.mrf.mxu0
        %7589 = vdwg.mxu0
        %7590 = vmatpush.bf16.msra.mxu0 %v5087
        %7591 = vmatpush.bf16.msra.mxu0 %v5081
        %7592 = vmatpush.bf16.msra.mxu0 %v5075
        %7593 = vmatpush.bf16.msra.mxu0 %v5069
        %7594 = vmatpush.bf16.msra.mxu0 %v5063
        %7595 = vmatpush.bf16.msra.mxu0 %v5057
        %7596 = vmatpush.bf16.msra.mxu0 %v5051
        %7597 = vmatpush.bf16.msra.mxu0 %v5045
        %7598 = vmatmul.bf16.gmra.mxu0 %v304
        %v7599 = vpop.f32.mrf.mxu0
        %v7600 = vadd.f32 %v7587, %v7599
        %v7601 = vpop.f32.mrf.mxu0
        %7602 = vdwg.mxu0
        %7603 = vmatpush.bf16.msra.mxu0 %v5135
        %7604 = vmatpush.bf16.msra.mxu0 %v5129
        %7605 = vmatpush.bf16.msra.mxu0 %v5123
        %7606 = vmatpush.bf16.msra.mxu0 %v5117
        %7607 = vmatpush.bf16.msra.mxu0 %v5111
        %7608 = vmatpush.bf16.msra.mxu0 %v5105
        %7609 = vmatpush.bf16.msra.mxu0 %v5099
        %7610 = vmatpush.bf16.msra.mxu0 %v5093
        %7611 = vmatmul.bf16.gmra.mxu0 %v305
        %v7612 = vpop.f32.mrf.mxu0
        %v7613 = vadd.f32 %v7600, %v7612
        %v7614 = vpop.f32.mrf.mxu0
        %7615 = vdwg.mxu0
        %7616 = vmatpush.bf16.msra.mxu0 %v5183
        %7617 = vmatpush.bf16.msra.mxu0 %v5177
        %7618 = vmatpush.bf16.msra.mxu0 %v5171
        %7619 = vmatpush.bf16.msra.mxu0 %v5165
        %7620 = vmatpush.bf16.msra.mxu0 %v5159
        %7621 = vmatpush.bf16.msra.mxu0 %v5153
        %7622 = vmatpush.bf16.msra.mxu0 %v5147
        %7623 = vmatpush.bf16.msra.mxu0 %v5141
        %7624 = vmatmul.bf16.gmra.mxu0 %v306
        %v7625 = vpop.f32.mrf.mxu0
        %v7626 = vadd.f32 %v7613, %v7625
        %v7627 = vpop.f32.mrf.mxu0
        %7628 = vdwg.mxu0
        %7629 = vmatpush.bf16.msra.mxu0 %v5231
        %7630 = vmatpush.bf16.msra.mxu0 %v5225
        %7631 = vmatpush.bf16.msra.mxu0 %v5219
        %7632 = vmatpush.bf16.msra.mxu0 %v5213
        %7633 = vmatpush.bf16.msra.mxu0 %v5207
        %7634 = vmatpush.bf16.msra.mxu0 %v5201
        %7635 = vmatpush.bf16.msra.mxu0 %v5195
        %7636 = vmatpush.bf16.msra.mxu0 %v5189
        %7637 = vmatmul.bf16.gmra.mxu0 %v307
        %v7638 = vpop.f32.mrf.mxu0
        %v7639 = vadd.f32 %v7626, %v7638
        %v7640 = vpop.f32.mrf.mxu0
        %7641 = vdwg.mxu0
        %7642 = vmatpush.bf16.msra.mxu0 %v5279
        %7643 = vmatpush.bf16.msra.mxu0 %v5273
        %7644 = vmatpush.bf16.msra.mxu0 %v5267
        %7645 = vmatpush.bf16.msra.mxu0 %v5261
        %7646 = vmatpush.bf16.msra.mxu0 %v5255
        %7647 = vmatpush.bf16.msra.mxu0 %v5249
        %7648 = vmatpush.bf16.msra.mxu0 %v5243
        %7649 = vmatpush.bf16.msra.mxu0 %v5237
        %7650 = vmatmul.bf16.gmra.mxu0 %v308
        %v7651 = vpop.f32.mrf.mxu0
        %v7652 = vadd.f32 %v7639, %v7651
        %v7653 = vpop.f32.mrf.mxu0
        %7654 = vdwg.mxu0
        %7655 = vmatpush.bf16.msra.mxu0 %v5327
        %7656 = vmatpush.bf16.msra.mxu0 %v5321
        %7657 = vmatpush.bf16.msra.mxu0 %v5315
        %7658 = vmatpush.bf16.msra.mxu0 %v5309
        %7659 = vmatpush.bf16.msra.mxu0 %v5303
        %7660 = vmatpush.bf16.msra.mxu0 %v5297
        %7661 = vmatpush.bf16.msra.mxu0 %v5291
        %7662 = vmatpush.bf16.msra.mxu0 %v5285
        %7663 = vmatmul.bf16.gmra.mxu0 %v309
        %v7664 = vpop.f32.mrf.mxu0
        %v7665 = vadd.f32 %v7652, %v7664
        %v7666 = vpop.f32.mrf.mxu0
        %7667 = vdwg.mxu0
        %7668 = vmatpush.bf16.msra.mxu0 %v5375
        %7669 = vmatpush.bf16.msra.mxu0 %v5369
        %7670 = vmatpush.bf16.msra.mxu0 %v5363
        %7671 = vmatpush.bf16.msra.mxu0 %v5357
        %7672 = vmatpush.bf16.msra.mxu0 %v5351
        %7673 = vmatpush.bf16.msra.mxu0 %v5345
        %7674 = vmatpush.bf16.msra.mxu0 %v5339
        %7675 = vmatpush.bf16.msra.mxu0 %v5333
        %7676 = vmatmul.bf16.gmra.mxu0 %v310
        %v7677 = vpop.f32.mrf.mxu0
        %v7678 = vadd.f32 %v7665, %v7677
        %v7679 = vpop.f32.mrf.mxu0
        %7680 = vdwg.mxu0
        %7681 = vmatpush.bf16.msra.mxu0 %v5423
        %7682 = vmatpush.bf16.msra.mxu0 %v5417
        %7683 = vmatpush.bf16.msra.mxu0 %v5411
        %7684 = vmatpush.bf16.msra.mxu0 %v5405
        %7685 = vmatpush.bf16.msra.mxu0 %v5399
        %7686 = vmatpush.bf16.msra.mxu0 %v5393
        %7687 = vmatpush.bf16.msra.mxu0 %v5387
        %7688 = vmatpush.bf16.msra.mxu0 %v5381
        %7689 = vmatmul.bf16.gmra.mxu0 %v311
        %v7690 = vpop.f32.mrf.mxu0
        %v7691 = vadd.f32 %v7678, %v7690
        %v7692 = vpop.f32.mrf.mxu0
        %7693 = vdwg.mxu0
        %7694 = vmatpush.bf16.msra.mxu0 %v5471
        %7695 = vmatpush.bf16.msra.mxu0 %v5465
        %7696 = vmatpush.bf16.msra.mxu0 %v5459
        %7697 = vmatpush.bf16.msra.mxu0 %v5453
        %7698 = vmatpush.bf16.msra.mxu0 %v5447
        %7699 = vmatpush.bf16.msra.mxu0 %v5441
        %7700 = vmatpush.bf16.msra.mxu0 %v5435
        %7701 = vmatpush.bf16.msra.mxu0 %v5429
        %7702 = vmatmul.bf16.gmra.mxu0 %v312
        %v7703 = vpop.f32.mrf.mxu0
        %v7704 = vadd.f32 %v7691, %v7703
        %v7705 = vpop.f32.mrf.mxu0
        %7706 = vdwg.mxu0
        %7707 = vmatpush.bf16.msra.mxu0 %v5519
        %7708 = vmatpush.bf16.msra.mxu0 %v5513
        %7709 = vmatpush.bf16.msra.mxu0 %v5507
        %7710 = vmatpush.bf16.msra.mxu0 %v5501
        %7711 = vmatpush.bf16.msra.mxu0 %v5495
        %7712 = vmatpush.bf16.msra.mxu0 %v5489
        %7713 = vmatpush.bf16.msra.mxu0 %v5483
        %7714 = vmatpush.bf16.msra.mxu0 %v5477
        %7715 = vmatmul.bf16.gmra.mxu0 %v313
        %v7716 = vpop.f32.mrf.mxu0
        %v7717 = vadd.f32 %v7704, %v7716
        %v7718 = vpop.f32.mrf.mxu0
        %7719 = vdwg.mxu0
        %7720 = vmatpush.bf16.msra.mxu0 %v5567
        %7721 = vmatpush.bf16.msra.mxu0 %v5561
        %7722 = vmatpush.bf16.msra.mxu0 %v5555
        %7723 = vmatpush.bf16.msra.mxu0 %v5549
        %7724 = vmatpush.bf16.msra.mxu0 %v5543
        %7725 = vmatpush.bf16.msra.mxu0 %v5537
        %7726 = vmatpush.bf16.msra.mxu0 %v5531
        %7727 = vmatpush.bf16.msra.mxu0 %v5525
        %7728 = vmatmul.bf16.gmra.mxu0 %v314
        %v7729 = vpop.f32.mrf.mxu0
        %v7730 = vadd.f32 %v7717, %v7729
        %v7731 = vpop.f32.mrf.mxu0
        %7732 = vdwg.mxu0
        %7733 = vmatpush.bf16.msra.mxu0 %v5615
        %7734 = vmatpush.bf16.msra.mxu0 %v5609
        %7735 = vmatpush.bf16.msra.mxu0 %v5603
        %7736 = vmatpush.bf16.msra.mxu0 %v5597
        %7737 = vmatpush.bf16.msra.mxu0 %v5591
        %7738 = vmatpush.bf16.msra.mxu0 %v5585
        %7739 = vmatpush.bf16.msra.mxu0 %v5579
        %7740 = vmatpush.bf16.msra.mxu0 %v5573
        %7741 = vmatmul.bf16.gmra.mxu0 %v315
        %v7742 = vpop.f32.mrf.mxu0
        %v7743 = vadd.f32 %v7730, %v7742
        %v7744 = vpop.f32.mrf.mxu0
        %7745 = vdwg.mxu0
        %7746 = vmatpush.bf16.msra.mxu0 %v5663
        %7747 = vmatpush.bf16.msra.mxu0 %v5657
        %7748 = vmatpush.bf16.msra.mxu0 %v5651
        %7749 = vmatpush.bf16.msra.mxu0 %v5645
        %7750 = vmatpush.bf16.msra.mxu0 %v5639
        %7751 = vmatpush.bf16.msra.mxu0 %v5633
        %7752 = vmatpush.bf16.msra.mxu0 %v5627
        %7753 = vmatpush.bf16.msra.mxu0 %v5621
        %7754 = vmatmul.bf16.gmra.mxu0 %v316
        %v7755 = vpop.f32.mrf.mxu0
        %v7756 = vadd.f32 %v7743, %v7755
        %v7757 = vpop.f32.mrf.mxu0
        %7758 = vdwg.mxu0
        %7759 = vmatpush.bf16.msra.mxu0 %v5711
        %7760 = vmatpush.bf16.msra.mxu0 %v5705
        %7761 = vmatpush.bf16.msra.mxu0 %v5699
        %7762 = vmatpush.bf16.msra.mxu0 %v5693
        %7763 = vmatpush.bf16.msra.mxu0 %v5687
        %7764 = vmatpush.bf16.msra.mxu0 %v5681
        %7765 = vmatpush.bf16.msra.mxu0 %v5675
        %7766 = vmatpush.bf16.msra.mxu0 %v5669
        %7767 = vmatmul.bf16.gmra.mxu0 %v317
        %v7768 = vpop.f32.mrf.mxu0
        %v7769 = vadd.f32 %v7756, %v7768
        %v7770 = vpop.f32.mrf.mxu0
        %7771 = vdwg.mxu0
        %7772 = vmatpush.bf16.msra.mxu0 %v5759
        %7773 = vmatpush.bf16.msra.mxu0 %v5753
        %7774 = vmatpush.bf16.msra.mxu0 %v5747
        %7775 = vmatpush.bf16.msra.mxu0 %v5741
        %7776 = vmatpush.bf16.msra.mxu0 %v5735
        %7777 = vmatpush.bf16.msra.mxu0 %v5729
        %7778 = vmatpush.bf16.msra.mxu0 %v5723
        %7779 = vmatpush.bf16.msra.mxu0 %v5717
        %7780 = vmatmul.bf16.gmra.mxu0 %v318
        %v7781 = vpop.f32.mrf.mxu0
        %v7782 = vadd.f32 %v7769, %v7781
        %v7783 = vpop.f32.mrf.mxu0
        %7784 = vdwg.mxu0
        %7785 = vmatpush.bf16.msra.mxu0 %v5807
        %7786 = vmatpush.bf16.msra.mxu0 %v5801
        %7787 = vmatpush.bf16.msra.mxu0 %v5795
        %7788 = vmatpush.bf16.msra.mxu0 %v5789
        %7789 = vmatpush.bf16.msra.mxu0 %v5783
        %7790 = vmatpush.bf16.msra.mxu0 %v5777
        %7791 = vmatpush.bf16.msra.mxu0 %v5771
        %7792 = vmatpush.bf16.msra.mxu0 %v5765
        %7793 = vmatmul.bf16.gmra.mxu0 %v319
        %v7794 = vpop.f32.mrf.mxu0
        %v7795 = vadd.f32 %v7782, %v7794
        %v7796 = vpop.f32.mrf.mxu0
        %7797 = vdwg.mxu0
        %7798 = vmatpush.bf16.msra.mxu0 %v5855
        %7799 = vmatpush.bf16.msra.mxu0 %v5849
        %7800 = vmatpush.bf16.msra.mxu0 %v5843
        %7801 = vmatpush.bf16.msra.mxu0 %v5837
        %7802 = vmatpush.bf16.msra.mxu0 %v5831
        %7803 = vmatpush.bf16.msra.mxu0 %v5825
        %7804 = vmatpush.bf16.msra.mxu0 %v5819
        %7805 = vmatpush.bf16.msra.mxu0 %v5813
        %7806 = vmatmul.bf16.gmra.mxu0 %v320
        %v7807 = vpop.f32.mrf.mxu0
        %v7808 = vadd.f32 %v7795, %v7807
        %v7809 = vpop.f32.mrf.mxu0
        %7810 = vdwg.mxu0
        %7811 = vmatpush.bf16.msra.mxu0 %v5903
        %7812 = vmatpush.bf16.msra.mxu0 %v5897
        %7813 = vmatpush.bf16.msra.mxu0 %v5891
        %7814 = vmatpush.bf16.msra.mxu0 %v5885
        %7815 = vmatpush.bf16.msra.mxu0 %v5879
        %7816 = vmatpush.bf16.msra.mxu0 %v5873
        %7817 = vmatpush.bf16.msra.mxu0 %v5867
        %7818 = vmatpush.bf16.msra.mxu0 %v5861
        %7819 = vmatmul.bf16.gmra.mxu0 %v321
        %v7820 = vpop.f32.mrf.mxu0
        %v7821 = vadd.f32 %v7808, %v7820
        %v7822 = vpop.f32.mrf.mxu0
        %7823 = vdwg.mxu0
        %7824 = vmatpush.bf16.msra.mxu0 %v5951
        %7825 = vmatpush.bf16.msra.mxu0 %v5945
        %7826 = vmatpush.bf16.msra.mxu0 %v5939
        %7827 = vmatpush.bf16.msra.mxu0 %v5933
        %7828 = vmatpush.bf16.msra.mxu0 %v5927
        %7829 = vmatpush.bf16.msra.mxu0 %v5921
        %7830 = vmatpush.bf16.msra.mxu0 %v5915
        %7831 = vmatpush.bf16.msra.mxu0 %v5909
        %7832 = vmatmul.bf16.gmra.mxu0 %v322
        %v7833 = vpop.f32.mrf.mxu0
        %v7834 = vadd.f32 %v7821, %v7833
        %v7835 = vpop.f32.mrf.mxu0
        %7836 = vdwg.mxu0
        %7837 = vmatpush.bf16.msra.mxu0 %v5999
        %7838 = vmatpush.bf16.msra.mxu0 %v5993
        %7839 = vmatpush.bf16.msra.mxu0 %v5987
        %7840 = vmatpush.bf16.msra.mxu0 %v5981
        %7841 = vmatpush.bf16.msra.mxu0 %v5975
        %7842 = vmatpush.bf16.msra.mxu0 %v5969
        %7843 = vmatpush.bf16.msra.mxu0 %v5963
        %7844 = vmatpush.bf16.msra.mxu0 %v5957
        %7845 = vmatmul.bf16.gmra.mxu0 %v323
        %v7846 = vpop.f32.mrf.mxu0
        %v7847 = vadd.f32 %v7834, %v7846
        %v7848 = vpop.f32.mrf.mxu0
        %7849 = vdwg.mxu0
        %7850 = vmatpush.bf16.msra.mxu0 %v6047
        %7851 = vmatpush.bf16.msra.mxu0 %v6041
        %7852 = vmatpush.bf16.msra.mxu0 %v6035
        %7853 = vmatpush.bf16.msra.mxu0 %v6029
        %7854 = vmatpush.bf16.msra.mxu0 %v6023
        %7855 = vmatpush.bf16.msra.mxu0 %v6017
        %7856 = vmatpush.bf16.msra.mxu0 %v6011
        %7857 = vmatpush.bf16.msra.mxu0 %v6005
        %7858 = vmatmul.bf16.gmra.mxu0 %v324
        %v7859 = vpop.f32.mrf.mxu0
        %v7860 = vadd.f32 %v7847, %v7859
        %v7861 = vpop.f32.mrf.mxu0
        %7862 = vdwg.mxu0
        %7863 = vmatpush.bf16.msra.mxu0 %v6095
        %7864 = vmatpush.bf16.msra.mxu0 %v6089
        %7865 = vmatpush.bf16.msra.mxu0 %v6083
        %7866 = vmatpush.bf16.msra.mxu0 %v6077
        %7867 = vmatpush.bf16.msra.mxu0 %v6071
        %7868 = vmatpush.bf16.msra.mxu0 %v6065
        %7869 = vmatpush.bf16.msra.mxu0 %v6059
        %7870 = vmatpush.bf16.msra.mxu0 %v6053
        %7871 = vmatmul.bf16.gmra.mxu0 %v325
        %v7872 = vpop.f32.mrf.mxu0
        %v7873 = vadd.f32 %v7860, %v7872
        %v7874 = vpop.f32.mrf.mxu0
        %7875 = vdwg.mxu0
        %7876 = vmatpush.bf16.msra.mxu0 %v4992
        %7877 = vmatpush.bf16.msra.mxu0 %v4986
        %7878 = vmatpush.bf16.msra.mxu0 %v4980
        %7879 = vmatpush.bf16.msra.mxu0 %v4974
        %7880 = vmatpush.bf16.msra.mxu0 %v4968
        %7881 = vmatpush.bf16.msra.mxu0 %v4962
        %7882 = vmatpush.bf16.msra.mxu0 %v4956
        %7883 = vmatpush.bf16.msra.mxu0 %v4950
        %7884 = vmatmul.bf16.gmra.mxu0 %v302
        %v7885 = vpop.f32.mrf.mxu0
        %v7886 = vadd.f32 %v1482, %v7885
        %v7887 = vpop.f32.mrf.mxu0
        %7888 = vdwg.mxu0
        %7889 = vmatpush.bf16.msra.mxu0 %v5040
        %7890 = vmatpush.bf16.msra.mxu0 %v5034
        %7891 = vmatpush.bf16.msra.mxu0 %v5028
        %7892 = vmatpush.bf16.msra.mxu0 %v5022
        %7893 = vmatpush.bf16.msra.mxu0 %v5016
        %7894 = vmatpush.bf16.msra.mxu0 %v5010
        %7895 = vmatpush.bf16.msra.mxu0 %v5004
        %7896 = vmatpush.bf16.msra.mxu0 %v4998
        %7897 = vmatmul.bf16.gmra.mxu0 %v303
        %v7898 = vpop.f32.mrf.mxu0
        %v7899 = vadd.f32 %v7886, %v7898
        %v7900 = vpop.f32.mrf.mxu0
        %7901 = vdwg.mxu0
        %7902 = vmatpush.bf16.msra.mxu0 %v5088
        %7903 = vmatpush.bf16.msra.mxu0 %v5082
        %7904 = vmatpush.bf16.msra.mxu0 %v5076
        %7905 = vmatpush.bf16.msra.mxu0 %v5070
        %7906 = vmatpush.bf16.msra.mxu0 %v5064
        %7907 = vmatpush.bf16.msra.mxu0 %v5058
        %7908 = vmatpush.bf16.msra.mxu0 %v5052
        %7909 = vmatpush.bf16.msra.mxu0 %v5046
        %7910 = vmatmul.bf16.gmra.mxu0 %v304
        %v7911 = vpop.f32.mrf.mxu0
        %v7912 = vadd.f32 %v7899, %v7911
        %v7913 = vpop.f32.mrf.mxu0
        %7914 = vdwg.mxu0
        %7915 = vmatpush.bf16.msra.mxu0 %v5136
        %7916 = vmatpush.bf16.msra.mxu0 %v5130
        %7917 = vmatpush.bf16.msra.mxu0 %v5124
        %7918 = vmatpush.bf16.msra.mxu0 %v5118
        %7919 = vmatpush.bf16.msra.mxu0 %v5112
        %7920 = vmatpush.bf16.msra.mxu0 %v5106
        %7921 = vmatpush.bf16.msra.mxu0 %v5100
        %7922 = vmatpush.bf16.msra.mxu0 %v5094
        %7923 = vmatmul.bf16.gmra.mxu0 %v305
        %v7924 = vpop.f32.mrf.mxu0
        %v7925 = vadd.f32 %v7912, %v7924
        %v7926 = vpop.f32.mrf.mxu0
        %7927 = vdwg.mxu0
        %7928 = vmatpush.bf16.msra.mxu0 %v5184
        %7929 = vmatpush.bf16.msra.mxu0 %v5178
        %7930 = vmatpush.bf16.msra.mxu0 %v5172
        %7931 = vmatpush.bf16.msra.mxu0 %v5166
        %7932 = vmatpush.bf16.msra.mxu0 %v5160
        %7933 = vmatpush.bf16.msra.mxu0 %v5154
        %7934 = vmatpush.bf16.msra.mxu0 %v5148
        %7935 = vmatpush.bf16.msra.mxu0 %v5142
        %7936 = vmatmul.bf16.gmra.mxu0 %v306
        %v7937 = vpop.f32.mrf.mxu0
        %v7938 = vadd.f32 %v7925, %v7937
        %v7939 = vpop.f32.mrf.mxu0
        %7940 = vdwg.mxu0
        %7941 = vmatpush.bf16.msra.mxu0 %v5232
        %7942 = vmatpush.bf16.msra.mxu0 %v5226
        %7943 = vmatpush.bf16.msra.mxu0 %v5220
        %7944 = vmatpush.bf16.msra.mxu0 %v5214
        %7945 = vmatpush.bf16.msra.mxu0 %v5208
        %7946 = vmatpush.bf16.msra.mxu0 %v5202
        %7947 = vmatpush.bf16.msra.mxu0 %v5196
        %7948 = vmatpush.bf16.msra.mxu0 %v5190
        %7949 = vmatmul.bf16.gmra.mxu0 %v307
        %v7950 = vpop.f32.mrf.mxu0
        %v7951 = vadd.f32 %v7938, %v7950
        %v7952 = vpop.f32.mrf.mxu0
        %7953 = vdwg.mxu0
        %7954 = vmatpush.bf16.msra.mxu0 %v5280
        %7955 = vmatpush.bf16.msra.mxu0 %v5274
        %7956 = vmatpush.bf16.msra.mxu0 %v5268
        %7957 = vmatpush.bf16.msra.mxu0 %v5262
        %7958 = vmatpush.bf16.msra.mxu0 %v5256
        %7959 = vmatpush.bf16.msra.mxu0 %v5250
        %7960 = vmatpush.bf16.msra.mxu0 %v5244
        %7961 = vmatpush.bf16.msra.mxu0 %v5238
        %7962 = vmatmul.bf16.gmra.mxu0 %v308
        %v7963 = vpop.f32.mrf.mxu0
        %v7964 = vadd.f32 %v7951, %v7963
        %v7965 = vpop.f32.mrf.mxu0
        %7966 = vdwg.mxu0
        %7967 = vmatpush.bf16.msra.mxu0 %v5328
        %7968 = vmatpush.bf16.msra.mxu0 %v5322
        %7969 = vmatpush.bf16.msra.mxu0 %v5316
        %7970 = vmatpush.bf16.msra.mxu0 %v5310
        %7971 = vmatpush.bf16.msra.mxu0 %v5304
        %7972 = vmatpush.bf16.msra.mxu0 %v5298
        %7973 = vmatpush.bf16.msra.mxu0 %v5292
        %7974 = vmatpush.bf16.msra.mxu0 %v5286
        %7975 = vmatmul.bf16.gmra.mxu0 %v309
        %v7976 = vpop.f32.mrf.mxu0
        %v7977 = vadd.f32 %v7964, %v7976
        %v7978 = vpop.f32.mrf.mxu0
        %7979 = vdwg.mxu0
        %7980 = vmatpush.bf16.msra.mxu0 %v5376
        %7981 = vmatpush.bf16.msra.mxu0 %v5370
        %7982 = vmatpush.bf16.msra.mxu0 %v5364
        %7983 = vmatpush.bf16.msra.mxu0 %v5358
        %7984 = vmatpush.bf16.msra.mxu0 %v5352
        %7985 = vmatpush.bf16.msra.mxu0 %v5346
        %7986 = vmatpush.bf16.msra.mxu0 %v5340
        %7987 = vmatpush.bf16.msra.mxu0 %v5334
        %7988 = vmatmul.bf16.gmra.mxu0 %v310
        %v7989 = vpop.f32.mrf.mxu0
        %v7990 = vadd.f32 %v7977, %v7989
        %v7991 = vpop.f32.mrf.mxu0
        %7992 = vdwg.mxu0
        %7993 = vmatpush.bf16.msra.mxu0 %v5424
        %7994 = vmatpush.bf16.msra.mxu0 %v5418
        %7995 = vmatpush.bf16.msra.mxu0 %v5412
        %7996 = vmatpush.bf16.msra.mxu0 %v5406
        %7997 = vmatpush.bf16.msra.mxu0 %v5400
        %7998 = vmatpush.bf16.msra.mxu0 %v5394
        %7999 = vmatpush.bf16.msra.mxu0 %v5388
        %8000 = vmatpush.bf16.msra.mxu0 %v5382
        %8001 = vmatmul.bf16.gmra.mxu0 %v311
        %v8002 = vpop.f32.mrf.mxu0
        %v8003 = vadd.f32 %v7990, %v8002
        %v8004 = vpop.f32.mrf.mxu0
        %8005 = vdwg.mxu0
        %8006 = vmatpush.bf16.msra.mxu0 %v5472
        %8007 = vmatpush.bf16.msra.mxu0 %v5466
        %8008 = vmatpush.bf16.msra.mxu0 %v5460
        %8009 = vmatpush.bf16.msra.mxu0 %v5454
        %8010 = vmatpush.bf16.msra.mxu0 %v5448
        %8011 = vmatpush.bf16.msra.mxu0 %v5442
        %8012 = vmatpush.bf16.msra.mxu0 %v5436
        %8013 = vmatpush.bf16.msra.mxu0 %v5430
        %8014 = vmatmul.bf16.gmra.mxu0 %v312
        %v8015 = vpop.f32.mrf.mxu0
        %v8016 = vadd.f32 %v8003, %v8015
        %v8017 = vpop.f32.mrf.mxu0
        %8018 = vdwg.mxu0
        %8019 = vmatpush.bf16.msra.mxu0 %v5520
        %8020 = vmatpush.bf16.msra.mxu0 %v5514
        %8021 = vmatpush.bf16.msra.mxu0 %v5508
        %8022 = vmatpush.bf16.msra.mxu0 %v5502
        %8023 = vmatpush.bf16.msra.mxu0 %v5496
        %8024 = vmatpush.bf16.msra.mxu0 %v5490
        %8025 = vmatpush.bf16.msra.mxu0 %v5484
        %8026 = vmatpush.bf16.msra.mxu0 %v5478
        %8027 = vmatmul.bf16.gmra.mxu0 %v313
        %v8028 = vpop.f32.mrf.mxu0
        %v8029 = vadd.f32 %v8016, %v8028
        %v8030 = vpop.f32.mrf.mxu0
        %8031 = vdwg.mxu0
        %8032 = vmatpush.bf16.msra.mxu0 %v5568
        %8033 = vmatpush.bf16.msra.mxu0 %v5562
        %8034 = vmatpush.bf16.msra.mxu0 %v5556
        %8035 = vmatpush.bf16.msra.mxu0 %v5550
        %8036 = vmatpush.bf16.msra.mxu0 %v5544
        %8037 = vmatpush.bf16.msra.mxu0 %v5538
        %8038 = vmatpush.bf16.msra.mxu0 %v5532
        %8039 = vmatpush.bf16.msra.mxu0 %v5526
        %8040 = vmatmul.bf16.gmra.mxu0 %v314
        %v8041 = vpop.f32.mrf.mxu0
        %v8042 = vadd.f32 %v8029, %v8041
        %v8043 = vpop.f32.mrf.mxu0
        %8044 = vdwg.mxu0
        %8045 = vmatpush.bf16.msra.mxu0 %v5616
        %8046 = vmatpush.bf16.msra.mxu0 %v5610
        %8047 = vmatpush.bf16.msra.mxu0 %v5604
        %8048 = vmatpush.bf16.msra.mxu0 %v5598
        %8049 = vmatpush.bf16.msra.mxu0 %v5592
        %8050 = vmatpush.bf16.msra.mxu0 %v5586
        %8051 = vmatpush.bf16.msra.mxu0 %v5580
        %8052 = vmatpush.bf16.msra.mxu0 %v5574
        %8053 = vmatmul.bf16.gmra.mxu0 %v315
        %v8054 = vpop.f32.mrf.mxu0
        %v8055 = vadd.f32 %v8042, %v8054
        %v8056 = vpop.f32.mrf.mxu0
        %8057 = vdwg.mxu0
        %8058 = vmatpush.bf16.msra.mxu0 %v5664
        %8059 = vmatpush.bf16.msra.mxu0 %v5658
        %8060 = vmatpush.bf16.msra.mxu0 %v5652
        %8061 = vmatpush.bf16.msra.mxu0 %v5646
        %8062 = vmatpush.bf16.msra.mxu0 %v5640
        %8063 = vmatpush.bf16.msra.mxu0 %v5634
        %8064 = vmatpush.bf16.msra.mxu0 %v5628
        %8065 = vmatpush.bf16.msra.mxu0 %v5622
        %8066 = vmatmul.bf16.gmra.mxu0 %v316
        %v8067 = vpop.f32.mrf.mxu0
        %v8068 = vadd.f32 %v8055, %v8067
        %v8069 = vpop.f32.mrf.mxu0
        %8070 = vdwg.mxu0
        %8071 = vmatpush.bf16.msra.mxu0 %v5712
        %8072 = vmatpush.bf16.msra.mxu0 %v5706
        %8073 = vmatpush.bf16.msra.mxu0 %v5700
        %8074 = vmatpush.bf16.msra.mxu0 %v5694
        %8075 = vmatpush.bf16.msra.mxu0 %v5688
        %8076 = vmatpush.bf16.msra.mxu0 %v5682
        %8077 = vmatpush.bf16.msra.mxu0 %v5676
        %8078 = vmatpush.bf16.msra.mxu0 %v5670
        %8079 = vmatmul.bf16.gmra.mxu0 %v317
        %v8080 = vpop.f32.mrf.mxu0
        %v8081 = vadd.f32 %v8068, %v8080
        %v8082 = vpop.f32.mrf.mxu0
        %8083 = vdwg.mxu0
        %8084 = vmatpush.bf16.msra.mxu0 %v5760
        %8085 = vmatpush.bf16.msra.mxu0 %v5754
        %8086 = vmatpush.bf16.msra.mxu0 %v5748
        %8087 = vmatpush.bf16.msra.mxu0 %v5742
        %8088 = vmatpush.bf16.msra.mxu0 %v5736
        %8089 = vmatpush.bf16.msra.mxu0 %v5730
        %8090 = vmatpush.bf16.msra.mxu0 %v5724
        %8091 = vmatpush.bf16.msra.mxu0 %v5718
        %8092 = vmatmul.bf16.gmra.mxu0 %v318
        %v8093 = vpop.f32.mrf.mxu0
        %v8094 = vadd.f32 %v8081, %v8093
        %v8095 = vpop.f32.mrf.mxu0
        %8096 = vdwg.mxu0
        %8097 = vmatpush.bf16.msra.mxu0 %v5808
        %8098 = vmatpush.bf16.msra.mxu0 %v5802
        %8099 = vmatpush.bf16.msra.mxu0 %v5796
        %8100 = vmatpush.bf16.msra.mxu0 %v5790
        %8101 = vmatpush.bf16.msra.mxu0 %v5784
        %8102 = vmatpush.bf16.msra.mxu0 %v5778
        %8103 = vmatpush.bf16.msra.mxu0 %v5772
        %8104 = vmatpush.bf16.msra.mxu0 %v5766
        %8105 = vmatmul.bf16.gmra.mxu0 %v319
        %v8106 = vpop.f32.mrf.mxu0
        %v8107 = vadd.f32 %v8094, %v8106
        %v8108 = vpop.f32.mrf.mxu0
        %8109 = vdwg.mxu0
        %8110 = vmatpush.bf16.msra.mxu0 %v5856
        %8111 = vmatpush.bf16.msra.mxu0 %v5850
        %8112 = vmatpush.bf16.msra.mxu0 %v5844
        %8113 = vmatpush.bf16.msra.mxu0 %v5838
        %8114 = vmatpush.bf16.msra.mxu0 %v5832
        %8115 = vmatpush.bf16.msra.mxu0 %v5826
        %8116 = vmatpush.bf16.msra.mxu0 %v5820
        %8117 = vmatpush.bf16.msra.mxu0 %v5814
        %8118 = vmatmul.bf16.gmra.mxu0 %v320
        %v8119 = vpop.f32.mrf.mxu0
        %v8120 = vadd.f32 %v8107, %v8119
        %v8121 = vpop.f32.mrf.mxu0
        %8122 = vdwg.mxu0
        %8123 = vmatpush.bf16.msra.mxu0 %v5904
        %8124 = vmatpush.bf16.msra.mxu0 %v5898
        %8125 = vmatpush.bf16.msra.mxu0 %v5892
        %8126 = vmatpush.bf16.msra.mxu0 %v5886
        %8127 = vmatpush.bf16.msra.mxu0 %v5880
        %8128 = vmatpush.bf16.msra.mxu0 %v5874
        %8129 = vmatpush.bf16.msra.mxu0 %v5868
        %8130 = vmatpush.bf16.msra.mxu0 %v5862
        %8131 = vmatmul.bf16.gmra.mxu0 %v321
        %v8132 = vpop.f32.mrf.mxu0
        %v8133 = vadd.f32 %v8120, %v8132
        %v8134 = vpop.f32.mrf.mxu0
        %8135 = vdwg.mxu0
        %8136 = vmatpush.bf16.msra.mxu0 %v5952
        %8137 = vmatpush.bf16.msra.mxu0 %v5946
        %8138 = vmatpush.bf16.msra.mxu0 %v5940
        %8139 = vmatpush.bf16.msra.mxu0 %v5934
        %8140 = vmatpush.bf16.msra.mxu0 %v5928
        %8141 = vmatpush.bf16.msra.mxu0 %v5922
        %8142 = vmatpush.bf16.msra.mxu0 %v5916
        %8143 = vmatpush.bf16.msra.mxu0 %v5910
        %8144 = vmatmul.bf16.gmra.mxu0 %v322
        %v8145 = vpop.f32.mrf.mxu0
        %v8146 = vadd.f32 %v8133, %v8145
        %v8147 = vpop.f32.mrf.mxu0
        %8148 = vdwg.mxu0
        %8149 = vmatpush.bf16.msra.mxu0 %v6000
        %8150 = vmatpush.bf16.msra.mxu0 %v5994
        %8151 = vmatpush.bf16.msra.mxu0 %v5988
        %8152 = vmatpush.bf16.msra.mxu0 %v5982
        %8153 = vmatpush.bf16.msra.mxu0 %v5976
        %8154 = vmatpush.bf16.msra.mxu0 %v5970
        %8155 = vmatpush.bf16.msra.mxu0 %v5964
        %8156 = vmatpush.bf16.msra.mxu0 %v5958
        %8157 = vmatmul.bf16.gmra.mxu0 %v323
        %v8158 = vpop.f32.mrf.mxu0
        %v8159 = vadd.f32 %v8146, %v8158
        %v8160 = vpop.f32.mrf.mxu0
        %8161 = vdwg.mxu0
        %8162 = vmatpush.bf16.msra.mxu0 %v6048
        %8163 = vmatpush.bf16.msra.mxu0 %v6042
        %8164 = vmatpush.bf16.msra.mxu0 %v6036
        %8165 = vmatpush.bf16.msra.mxu0 %v6030
        %8166 = vmatpush.bf16.msra.mxu0 %v6024
        %8167 = vmatpush.bf16.msra.mxu0 %v6018
        %8168 = vmatpush.bf16.msra.mxu0 %v6012
        %8169 = vmatpush.bf16.msra.mxu0 %v6006
        %8170 = vmatmul.bf16.gmra.mxu0 %v324
        %v8171 = vpop.f32.mrf.mxu0
        %v8172 = vadd.f32 %v8159, %v8171
        %v8173 = vpop.f32.mrf.mxu0
        %8174 = vdwg.mxu0
        %8175 = vmatpush.bf16.msra.mxu0 %v6096
        %8176 = vmatpush.bf16.msra.mxu0 %v6090
        %8177 = vmatpush.bf16.msra.mxu0 %v6084
        %8178 = vmatpush.bf16.msra.mxu0 %v6078
        %8179 = vmatpush.bf16.msra.mxu0 %v6072
        %8180 = vmatpush.bf16.msra.mxu0 %v6066
        %8181 = vmatpush.bf16.msra.mxu0 %v6060
        %8182 = vmatpush.bf16.msra.mxu0 %v6054
        %8183 = vmatmul.bf16.gmra.mxu0 %v325
        %v8184 = vpop.f32.mrf.mxu0
        %v8185 = vadd.f32 %v8172, %v8184
        %v8186 = vpop.f32.mrf.mxu0
        %8187 = vdwg.mxu0
        %8188 = vmatpush.bf16.msra.mxu0 %v4993
        %8189 = vmatpush.bf16.msra.mxu0 %v4987
        %8190 = vmatpush.bf16.msra.mxu0 %v4981
        %8191 = vmatpush.bf16.msra.mxu0 %v4975
        %8192 = vmatpush.bf16.msra.mxu0 %v4969
        %8193 = vmatpush.bf16.msra.mxu0 %v4963
        %8194 = vmatpush.bf16.msra.mxu0 %v4957
        %8195 = vmatpush.bf16.msra.mxu0 %v4951
        %8196 = vmatmul.bf16.gmra.mxu0 %v302
        %v8197 = vpop.f32.mrf.mxu0
        %v8198 = vadd.f32 %v1483, %v8197
        %v8199 = vpop.f32.mrf.mxu0
        %8200 = vdwg.mxu0
        %8201 = vmatpush.bf16.msra.mxu0 %v5041
        %8202 = vmatpush.bf16.msra.mxu0 %v5035
        %8203 = vmatpush.bf16.msra.mxu0 %v5029
        %8204 = vmatpush.bf16.msra.mxu0 %v5023
        %8205 = vmatpush.bf16.msra.mxu0 %v5017
        %8206 = vmatpush.bf16.msra.mxu0 %v5011
        %8207 = vmatpush.bf16.msra.mxu0 %v5005
        %8208 = vmatpush.bf16.msra.mxu0 %v4999
        %8209 = vmatmul.bf16.gmra.mxu0 %v303
        %v8210 = vpop.f32.mrf.mxu0
        %v8211 = vadd.f32 %v8198, %v8210
        %v8212 = vpop.f32.mrf.mxu0
        %8213 = vdwg.mxu0
        %8214 = vmatpush.bf16.msra.mxu0 %v5089
        %8215 = vmatpush.bf16.msra.mxu0 %v5083
        %8216 = vmatpush.bf16.msra.mxu0 %v5077
        %8217 = vmatpush.bf16.msra.mxu0 %v5071
        %8218 = vmatpush.bf16.msra.mxu0 %v5065
        %8219 = vmatpush.bf16.msra.mxu0 %v5059
        %8220 = vmatpush.bf16.msra.mxu0 %v5053
        %8221 = vmatpush.bf16.msra.mxu0 %v5047
        %8222 = vmatmul.bf16.gmra.mxu0 %v304
        %v8223 = vpop.f32.mrf.mxu0
        %v8224 = vadd.f32 %v8211, %v8223
        %v8225 = vpop.f32.mrf.mxu0
        %8226 = vdwg.mxu0
        %8227 = vmatpush.bf16.msra.mxu0 %v5137
        %8228 = vmatpush.bf16.msra.mxu0 %v5131
        %8229 = vmatpush.bf16.msra.mxu0 %v5125
        %8230 = vmatpush.bf16.msra.mxu0 %v5119
        %8231 = vmatpush.bf16.msra.mxu0 %v5113
        %8232 = vmatpush.bf16.msra.mxu0 %v5107
        %8233 = vmatpush.bf16.msra.mxu0 %v5101
        %8234 = vmatpush.bf16.msra.mxu0 %v5095
        %8235 = vmatmul.bf16.gmra.mxu0 %v305
        %v8236 = vpop.f32.mrf.mxu0
        %v8237 = vadd.f32 %v8224, %v8236
        %v8238 = vpop.f32.mrf.mxu0
        %8239 = vdwg.mxu0
        %8240 = vmatpush.bf16.msra.mxu0 %v5185
        %8241 = vmatpush.bf16.msra.mxu0 %v5179
        %8242 = vmatpush.bf16.msra.mxu0 %v5173
        %8243 = vmatpush.bf16.msra.mxu0 %v5167
        %8244 = vmatpush.bf16.msra.mxu0 %v5161
        %8245 = vmatpush.bf16.msra.mxu0 %v5155
        %8246 = vmatpush.bf16.msra.mxu0 %v5149
        %8247 = vmatpush.bf16.msra.mxu0 %v5143
        %8248 = vmatmul.bf16.gmra.mxu0 %v306
        %v8249 = vpop.f32.mrf.mxu0
        %v8250 = vadd.f32 %v8237, %v8249
        %v8251 = vpop.f32.mrf.mxu0
        %8252 = vdwg.mxu0
        %8253 = vmatpush.bf16.msra.mxu0 %v5233
        %8254 = vmatpush.bf16.msra.mxu0 %v5227
        %8255 = vmatpush.bf16.msra.mxu0 %v5221
        %8256 = vmatpush.bf16.msra.mxu0 %v5215
        %8257 = vmatpush.bf16.msra.mxu0 %v5209
        %8258 = vmatpush.bf16.msra.mxu0 %v5203
        %8259 = vmatpush.bf16.msra.mxu0 %v5197
        %8260 = vmatpush.bf16.msra.mxu0 %v5191
        %8261 = vmatmul.bf16.gmra.mxu0 %v307
        %v8262 = vpop.f32.mrf.mxu0
        %v8263 = vadd.f32 %v8250, %v8262
        %v8264 = vpop.f32.mrf.mxu0
        %8265 = vdwg.mxu0
        %8266 = vmatpush.bf16.msra.mxu0 %v5281
        %8267 = vmatpush.bf16.msra.mxu0 %v5275
        %8268 = vmatpush.bf16.msra.mxu0 %v5269
        %8269 = vmatpush.bf16.msra.mxu0 %v5263
        %8270 = vmatpush.bf16.msra.mxu0 %v5257
        %8271 = vmatpush.bf16.msra.mxu0 %v5251
        %8272 = vmatpush.bf16.msra.mxu0 %v5245
        %8273 = vmatpush.bf16.msra.mxu0 %v5239
        %8274 = vmatmul.bf16.gmra.mxu0 %v308
        %v8275 = vpop.f32.mrf.mxu0
        %v8276 = vadd.f32 %v8263, %v8275
        %v8277 = vpop.f32.mrf.mxu0
        %8278 = vdwg.mxu0
        %8279 = vmatpush.bf16.msra.mxu0 %v5329
        %8280 = vmatpush.bf16.msra.mxu0 %v5323
        %8281 = vmatpush.bf16.msra.mxu0 %v5317
        %8282 = vmatpush.bf16.msra.mxu0 %v5311
        %8283 = vmatpush.bf16.msra.mxu0 %v5305
        %8284 = vmatpush.bf16.msra.mxu0 %v5299
        %8285 = vmatpush.bf16.msra.mxu0 %v5293
        %8286 = vmatpush.bf16.msra.mxu0 %v5287
        %8287 = vmatmul.bf16.gmra.mxu0 %v309
        %v8288 = vpop.f32.mrf.mxu0
        %v8289 = vadd.f32 %v8276, %v8288
        %v8290 = vpop.f32.mrf.mxu0
        %8291 = vdwg.mxu0
        %8292 = vmatpush.bf16.msra.mxu0 %v5377
        %8293 = vmatpush.bf16.msra.mxu0 %v5371
        %8294 = vmatpush.bf16.msra.mxu0 %v5365
        %8295 = vmatpush.bf16.msra.mxu0 %v5359
        %8296 = vmatpush.bf16.msra.mxu0 %v5353
        %8297 = vmatpush.bf16.msra.mxu0 %v5347
        %8298 = vmatpush.bf16.msra.mxu0 %v5341
        %8299 = vmatpush.bf16.msra.mxu0 %v5335
        %8300 = vmatmul.bf16.gmra.mxu0 %v310
        %v8301 = vpop.f32.mrf.mxu0
        %v8302 = vadd.f32 %v8289, %v8301
        %v8303 = vpop.f32.mrf.mxu0
        %8304 = vdwg.mxu0
        %8305 = vmatpush.bf16.msra.mxu0 %v5425
        %8306 = vmatpush.bf16.msra.mxu0 %v5419
        %8307 = vmatpush.bf16.msra.mxu0 %v5413
        %8308 = vmatpush.bf16.msra.mxu0 %v5407
        %8309 = vmatpush.bf16.msra.mxu0 %v5401
        %8310 = vmatpush.bf16.msra.mxu0 %v5395
        %8311 = vmatpush.bf16.msra.mxu0 %v5389
        %8312 = vmatpush.bf16.msra.mxu0 %v5383
        %8313 = vmatmul.bf16.gmra.mxu0 %v311
        %v8314 = vpop.f32.mrf.mxu0
        %v8315 = vadd.f32 %v8302, %v8314
        %v8316 = vpop.f32.mrf.mxu0
        %8317 = vdwg.mxu0
        %8318 = vmatpush.bf16.msra.mxu0 %v5473
        %8319 = vmatpush.bf16.msra.mxu0 %v5467
        %8320 = vmatpush.bf16.msra.mxu0 %v5461
        %8321 = vmatpush.bf16.msra.mxu0 %v5455
        %8322 = vmatpush.bf16.msra.mxu0 %v5449
        %8323 = vmatpush.bf16.msra.mxu0 %v5443
        %8324 = vmatpush.bf16.msra.mxu0 %v5437
        %8325 = vmatpush.bf16.msra.mxu0 %v5431
        %8326 = vmatmul.bf16.gmra.mxu0 %v312
        %v8327 = vpop.f32.mrf.mxu0
        %v8328 = vadd.f32 %v8315, %v8327
        %v8329 = vpop.f32.mrf.mxu0
        %8330 = vdwg.mxu0
        %8331 = vmatpush.bf16.msra.mxu0 %v5521
        %8332 = vmatpush.bf16.msra.mxu0 %v5515
        %8333 = vmatpush.bf16.msra.mxu0 %v5509
        %8334 = vmatpush.bf16.msra.mxu0 %v5503
        %8335 = vmatpush.bf16.msra.mxu0 %v5497
        %8336 = vmatpush.bf16.msra.mxu0 %v5491
        %8337 = vmatpush.bf16.msra.mxu0 %v5485
        %8338 = vmatpush.bf16.msra.mxu0 %v5479
        %8339 = vmatmul.bf16.gmra.mxu0 %v313
        %v8340 = vpop.f32.mrf.mxu0
        %v8341 = vadd.f32 %v8328, %v8340
        %v8342 = vpop.f32.mrf.mxu0
        %8343 = vdwg.mxu0
        %8344 = vmatpush.bf16.msra.mxu0 %v5569
        %8345 = vmatpush.bf16.msra.mxu0 %v5563
        %8346 = vmatpush.bf16.msra.mxu0 %v5557
        %8347 = vmatpush.bf16.msra.mxu0 %v5551
        %8348 = vmatpush.bf16.msra.mxu0 %v5545
        %8349 = vmatpush.bf16.msra.mxu0 %v5539
        %8350 = vmatpush.bf16.msra.mxu0 %v5533
        %8351 = vmatpush.bf16.msra.mxu0 %v5527
        %8352 = vmatmul.bf16.gmra.mxu0 %v314
        %v8353 = vpop.f32.mrf.mxu0
        %v8354 = vadd.f32 %v8341, %v8353
        %v8355 = vpop.f32.mrf.mxu0
        %8356 = vdwg.mxu0
        %8357 = vmatpush.bf16.msra.mxu0 %v5617
        %8358 = vmatpush.bf16.msra.mxu0 %v5611
        %8359 = vmatpush.bf16.msra.mxu0 %v5605
        %8360 = vmatpush.bf16.msra.mxu0 %v5599
        %8361 = vmatpush.bf16.msra.mxu0 %v5593
        %8362 = vmatpush.bf16.msra.mxu0 %v5587
        %8363 = vmatpush.bf16.msra.mxu0 %v5581
        %8364 = vmatpush.bf16.msra.mxu0 %v5575
        %8365 = vmatmul.bf16.gmra.mxu0 %v315
        %v8366 = vpop.f32.mrf.mxu0
        %v8367 = vadd.f32 %v8354, %v8366
        %v8368 = vpop.f32.mrf.mxu0
        %8369 = vdwg.mxu0
        %8370 = vmatpush.bf16.msra.mxu0 %v5665
        %8371 = vmatpush.bf16.msra.mxu0 %v5659
        %8372 = vmatpush.bf16.msra.mxu0 %v5653
        %8373 = vmatpush.bf16.msra.mxu0 %v5647
        %8374 = vmatpush.bf16.msra.mxu0 %v5641
        %8375 = vmatpush.bf16.msra.mxu0 %v5635
        %8376 = vmatpush.bf16.msra.mxu0 %v5629
        %8377 = vmatpush.bf16.msra.mxu0 %v5623
        %8378 = vmatmul.bf16.gmra.mxu0 %v316
        %v8379 = vpop.f32.mrf.mxu0
        %v8380 = vadd.f32 %v8367, %v8379
        %v8381 = vpop.f32.mrf.mxu0
        %8382 = vdwg.mxu0
        %8383 = vmatpush.bf16.msra.mxu0 %v5713
        %8384 = vmatpush.bf16.msra.mxu0 %v5707
        %8385 = vmatpush.bf16.msra.mxu0 %v5701
        %8386 = vmatpush.bf16.msra.mxu0 %v5695
        %8387 = vmatpush.bf16.msra.mxu0 %v5689
        %8388 = vmatpush.bf16.msra.mxu0 %v5683
        %8389 = vmatpush.bf16.msra.mxu0 %v5677
        %8390 = vmatpush.bf16.msra.mxu0 %v5671
        %8391 = vmatmul.bf16.gmra.mxu0 %v317
        %v8392 = vpop.f32.mrf.mxu0
        %v8393 = vadd.f32 %v8380, %v8392
        %v8394 = vpop.f32.mrf.mxu0
        %8395 = vdwg.mxu0
        %8396 = vmatpush.bf16.msra.mxu0 %v5761
        %8397 = vmatpush.bf16.msra.mxu0 %v5755
        %8398 = vmatpush.bf16.msra.mxu0 %v5749
        %8399 = vmatpush.bf16.msra.mxu0 %v5743
        %8400 = vmatpush.bf16.msra.mxu0 %v5737
        %8401 = vmatpush.bf16.msra.mxu0 %v5731
        %8402 = vmatpush.bf16.msra.mxu0 %v5725
        %8403 = vmatpush.bf16.msra.mxu0 %v5719
        %8404 = vmatmul.bf16.gmra.mxu0 %v318
        %v8405 = vpop.f32.mrf.mxu0
        %v8406 = vadd.f32 %v8393, %v8405
        %v8407 = vpop.f32.mrf.mxu0
        %8408 = vdwg.mxu0
        %8409 = vmatpush.bf16.msra.mxu0 %v5809
        %8410 = vmatpush.bf16.msra.mxu0 %v5803
        %8411 = vmatpush.bf16.msra.mxu0 %v5797
        %8412 = vmatpush.bf16.msra.mxu0 %v5791
        %8413 = vmatpush.bf16.msra.mxu0 %v5785
        %8414 = vmatpush.bf16.msra.mxu0 %v5779
        %8415 = vmatpush.bf16.msra.mxu0 %v5773
        %8416 = vmatpush.bf16.msra.mxu0 %v5767
        %8417 = vmatmul.bf16.gmra.mxu0 %v319
        %v8418 = vpop.f32.mrf.mxu0
        %v8419 = vadd.f32 %v8406, %v8418
        %v8420 = vpop.f32.mrf.mxu0
        %8421 = vdwg.mxu0
        %8422 = vmatpush.bf16.msra.mxu0 %v5857
        %8423 = vmatpush.bf16.msra.mxu0 %v5851
        %8424 = vmatpush.bf16.msra.mxu0 %v5845
        %8425 = vmatpush.bf16.msra.mxu0 %v5839
        %8426 = vmatpush.bf16.msra.mxu0 %v5833
        %8427 = vmatpush.bf16.msra.mxu0 %v5827
        %8428 = vmatpush.bf16.msra.mxu0 %v5821
        %8429 = vmatpush.bf16.msra.mxu0 %v5815
        %8430 = vmatmul.bf16.gmra.mxu0 %v320
        %v8431 = vpop.f32.mrf.mxu0
        %v8432 = vadd.f32 %v8419, %v8431
        %v8433 = vpop.f32.mrf.mxu0
        %8434 = vdwg.mxu0
        %8435 = vmatpush.bf16.msra.mxu0 %v5905
        %8436 = vmatpush.bf16.msra.mxu0 %v5899
        %8437 = vmatpush.bf16.msra.mxu0 %v5893
        %8438 = vmatpush.bf16.msra.mxu0 %v5887
        %8439 = vmatpush.bf16.msra.mxu0 %v5881
        %8440 = vmatpush.bf16.msra.mxu0 %v5875
        %8441 = vmatpush.bf16.msra.mxu0 %v5869
        %8442 = vmatpush.bf16.msra.mxu0 %v5863
        %8443 = vmatmul.bf16.gmra.mxu0 %v321
        %v8444 = vpop.f32.mrf.mxu0
        %v8445 = vadd.f32 %v8432, %v8444
        %v8446 = vpop.f32.mrf.mxu0
        %8447 = vdwg.mxu0
        %8448 = vmatpush.bf16.msra.mxu0 %v5953
        %8449 = vmatpush.bf16.msra.mxu0 %v5947
        %8450 = vmatpush.bf16.msra.mxu0 %v5941
        %8451 = vmatpush.bf16.msra.mxu0 %v5935
        %8452 = vmatpush.bf16.msra.mxu0 %v5929
        %8453 = vmatpush.bf16.msra.mxu0 %v5923
        %8454 = vmatpush.bf16.msra.mxu0 %v5917
        %8455 = vmatpush.bf16.msra.mxu0 %v5911
        %8456 = vmatmul.bf16.gmra.mxu0 %v322
        %v8457 = vpop.f32.mrf.mxu0
        %v8458 = vadd.f32 %v8445, %v8457
        %v8459 = vpop.f32.mrf.mxu0
        %8460 = vdwg.mxu0
        %8461 = vmatpush.bf16.msra.mxu0 %v6001
        %8462 = vmatpush.bf16.msra.mxu0 %v5995
        %8463 = vmatpush.bf16.msra.mxu0 %v5989
        %8464 = vmatpush.bf16.msra.mxu0 %v5983
        %8465 = vmatpush.bf16.msra.mxu0 %v5977
        %8466 = vmatpush.bf16.msra.mxu0 %v5971
        %8467 = vmatpush.bf16.msra.mxu0 %v5965
        %8468 = vmatpush.bf16.msra.mxu0 %v5959
        %8469 = vmatmul.bf16.gmra.mxu0 %v323
        %v8470 = vpop.f32.mrf.mxu0
        %v8471 = vadd.f32 %v8458, %v8470
        %v8472 = vpop.f32.mrf.mxu0
        %8473 = vdwg.mxu0
        %8474 = vmatpush.bf16.msra.mxu0 %v6049
        %8475 = vmatpush.bf16.msra.mxu0 %v6043
        %8476 = vmatpush.bf16.msra.mxu0 %v6037
        %8477 = vmatpush.bf16.msra.mxu0 %v6031
        %8478 = vmatpush.bf16.msra.mxu0 %v6025
        %8479 = vmatpush.bf16.msra.mxu0 %v6019
        %8480 = vmatpush.bf16.msra.mxu0 %v6013
        %8481 = vmatpush.bf16.msra.mxu0 %v6007
        %8482 = vmatmul.bf16.gmra.mxu0 %v324
        %v8483 = vpop.f32.mrf.mxu0
        %v8484 = vadd.f32 %v8471, %v8483
        %v8485 = vpop.f32.mrf.mxu0
        %8486 = vdwg.mxu0
        %8487 = vmatpush.bf16.msra.mxu0 %v6097
        %8488 = vmatpush.bf16.msra.mxu0 %v6091
        %8489 = vmatpush.bf16.msra.mxu0 %v6085
        %8490 = vmatpush.bf16.msra.mxu0 %v6079
        %8491 = vmatpush.bf16.msra.mxu0 %v6073
        %8492 = vmatpush.bf16.msra.mxu0 %v6067
        %8493 = vmatpush.bf16.msra.mxu0 %v6061
        %8494 = vmatpush.bf16.msra.mxu0 %v6055
        %8495 = vmatmul.bf16.gmra.mxu0 %v325
        %v8496 = vpop.f32.mrf.mxu0
        %v8497 = vadd.f32 %v8484, %v8496
        %v8498 = vpop.f32.mrf.mxu0
        %8499 = vdwg.mxu0
        %8500 = vmatpush.bf16.msra.mxu0 %v4994
        %8501 = vmatpush.bf16.msra.mxu0 %v4988
        %8502 = vmatpush.bf16.msra.mxu0 %v4982
        %8503 = vmatpush.bf16.msra.mxu0 %v4976
        %8504 = vmatpush.bf16.msra.mxu0 %v4970
        %8505 = vmatpush.bf16.msra.mxu0 %v4964
        %8506 = vmatpush.bf16.msra.mxu0 %v4958
        %8507 = vmatpush.bf16.msra.mxu0 %v4952
        %8508 = vmatmul.bf16.gmra.mxu0 %v302
        %v8509 = vpop.f32.mrf.mxu0
        %v8510 = vadd.f32 %v1484, %v8509
        %v8511 = vpop.f32.mrf.mxu0
        %8512 = vdwg.mxu0
        %8513 = vmatpush.bf16.msra.mxu0 %v5042
        %8514 = vmatpush.bf16.msra.mxu0 %v5036
        %8515 = vmatpush.bf16.msra.mxu0 %v5030
        %8516 = vmatpush.bf16.msra.mxu0 %v5024
        %8517 = vmatpush.bf16.msra.mxu0 %v5018
        %8518 = vmatpush.bf16.msra.mxu0 %v5012
        %8519 = vmatpush.bf16.msra.mxu0 %v5006
        %8520 = vmatpush.bf16.msra.mxu0 %v5000
        %8521 = vmatmul.bf16.gmra.mxu0 %v303
        %v8522 = vpop.f32.mrf.mxu0
        %v8523 = vadd.f32 %v8510, %v8522
        %v8524 = vpop.f32.mrf.mxu0
        %8525 = vdwg.mxu0
        %8526 = vmatpush.bf16.msra.mxu0 %v5090
        %8527 = vmatpush.bf16.msra.mxu0 %v5084
        %8528 = vmatpush.bf16.msra.mxu0 %v5078
        %8529 = vmatpush.bf16.msra.mxu0 %v5072
        %8530 = vmatpush.bf16.msra.mxu0 %v5066
        %8531 = vmatpush.bf16.msra.mxu0 %v5060
        %8532 = vmatpush.bf16.msra.mxu0 %v5054
        %8533 = vmatpush.bf16.msra.mxu0 %v5048
        %8534 = vmatmul.bf16.gmra.mxu0 %v304
        %v8535 = vpop.f32.mrf.mxu0
        %v8536 = vadd.f32 %v8523, %v8535
        %v8537 = vpop.f32.mrf.mxu0
        %8538 = vdwg.mxu0
        %8539 = vmatpush.bf16.msra.mxu0 %v5138
        %8540 = vmatpush.bf16.msra.mxu0 %v5132
        %8541 = vmatpush.bf16.msra.mxu0 %v5126
        %8542 = vmatpush.bf16.msra.mxu0 %v5120
        %8543 = vmatpush.bf16.msra.mxu0 %v5114
        %8544 = vmatpush.bf16.msra.mxu0 %v5108
        %8545 = vmatpush.bf16.msra.mxu0 %v5102
        %8546 = vmatpush.bf16.msra.mxu0 %v5096
        %8547 = vmatmul.bf16.gmra.mxu0 %v305
        %v8548 = vpop.f32.mrf.mxu0
        %v8549 = vadd.f32 %v8536, %v8548
        %v8550 = vpop.f32.mrf.mxu0
        %8551 = vdwg.mxu0
        %8552 = vmatpush.bf16.msra.mxu0 %v5186
        %8553 = vmatpush.bf16.msra.mxu0 %v5180
        %8554 = vmatpush.bf16.msra.mxu0 %v5174
        %8555 = vmatpush.bf16.msra.mxu0 %v5168
        %8556 = vmatpush.bf16.msra.mxu0 %v5162
        %8557 = vmatpush.bf16.msra.mxu0 %v5156
        %8558 = vmatpush.bf16.msra.mxu0 %v5150
        %8559 = vmatpush.bf16.msra.mxu0 %v5144
        %8560 = vmatmul.bf16.gmra.mxu0 %v306
        %v8561 = vpop.f32.mrf.mxu0
        %v8562 = vadd.f32 %v8549, %v8561
        %v8563 = vpop.f32.mrf.mxu0
        %8564 = vdwg.mxu0
        %8565 = vmatpush.bf16.msra.mxu0 %v5234
        %8566 = vmatpush.bf16.msra.mxu0 %v5228
        %8567 = vmatpush.bf16.msra.mxu0 %v5222
        %8568 = vmatpush.bf16.msra.mxu0 %v5216
        %8569 = vmatpush.bf16.msra.mxu0 %v5210
        %8570 = vmatpush.bf16.msra.mxu0 %v5204
        %8571 = vmatpush.bf16.msra.mxu0 %v5198
        %8572 = vmatpush.bf16.msra.mxu0 %v5192
        %8573 = vmatmul.bf16.gmra.mxu0 %v307
        %v8574 = vpop.f32.mrf.mxu0
        %v8575 = vadd.f32 %v8562, %v8574
        %v8576 = vpop.f32.mrf.mxu0
        %8577 = vdwg.mxu0
        %8578 = vmatpush.bf16.msra.mxu0 %v5282
        %8579 = vmatpush.bf16.msra.mxu0 %v5276
        %8580 = vmatpush.bf16.msra.mxu0 %v5270
        %8581 = vmatpush.bf16.msra.mxu0 %v5264
        %8582 = vmatpush.bf16.msra.mxu0 %v5258
        %8583 = vmatpush.bf16.msra.mxu0 %v5252
        %8584 = vmatpush.bf16.msra.mxu0 %v5246
        %8585 = vmatpush.bf16.msra.mxu0 %v5240
        %8586 = vmatmul.bf16.gmra.mxu0 %v308
        %v8587 = vpop.f32.mrf.mxu0
        %v8588 = vadd.f32 %v8575, %v8587
        %v8589 = vpop.f32.mrf.mxu0
        %8590 = vdwg.mxu0
        %8591 = vmatpush.bf16.msra.mxu0 %v5330
        %8592 = vmatpush.bf16.msra.mxu0 %v5324
        %8593 = vmatpush.bf16.msra.mxu0 %v5318
        %8594 = vmatpush.bf16.msra.mxu0 %v5312
        %8595 = vmatpush.bf16.msra.mxu0 %v5306
        %8596 = vmatpush.bf16.msra.mxu0 %v5300
        %8597 = vmatpush.bf16.msra.mxu0 %v5294
        %8598 = vmatpush.bf16.msra.mxu0 %v5288
        %8599 = vmatmul.bf16.gmra.mxu0 %v309
        %v8600 = vpop.f32.mrf.mxu0
        %v8601 = vadd.f32 %v8588, %v8600
        %v8602 = vpop.f32.mrf.mxu0
        %8603 = vdwg.mxu0
        %8604 = vmatpush.bf16.msra.mxu0 %v5378
        %8605 = vmatpush.bf16.msra.mxu0 %v5372
        %8606 = vmatpush.bf16.msra.mxu0 %v5366
        %8607 = vmatpush.bf16.msra.mxu0 %v5360
        %8608 = vmatpush.bf16.msra.mxu0 %v5354
        %8609 = vmatpush.bf16.msra.mxu0 %v5348
        %8610 = vmatpush.bf16.msra.mxu0 %v5342
        %8611 = vmatpush.bf16.msra.mxu0 %v5336
        %8612 = vmatmul.bf16.gmra.mxu0 %v310
        %v8613 = vpop.f32.mrf.mxu0
        %v8614 = vadd.f32 %v8601, %v8613
        %v8615 = vpop.f32.mrf.mxu0
        %8616 = vdwg.mxu0
        %8617 = vmatpush.bf16.msra.mxu0 %v5426
        %8618 = vmatpush.bf16.msra.mxu0 %v5420
        %8619 = vmatpush.bf16.msra.mxu0 %v5414
        %8620 = vmatpush.bf16.msra.mxu0 %v5408
        %8621 = vmatpush.bf16.msra.mxu0 %v5402
        %8622 = vmatpush.bf16.msra.mxu0 %v5396
        %8623 = vmatpush.bf16.msra.mxu0 %v5390
        %8624 = vmatpush.bf16.msra.mxu0 %v5384
        %8625 = vmatmul.bf16.gmra.mxu0 %v311
        %v8626 = vpop.f32.mrf.mxu0
        %v8627 = vadd.f32 %v8614, %v8626
        %v8628 = vpop.f32.mrf.mxu0
        %8629 = vdwg.mxu0
        %8630 = vmatpush.bf16.msra.mxu0 %v5474
        %8631 = vmatpush.bf16.msra.mxu0 %v5468
        %8632 = vmatpush.bf16.msra.mxu0 %v5462
        %8633 = vmatpush.bf16.msra.mxu0 %v5456
        %8634 = vmatpush.bf16.msra.mxu0 %v5450
        %8635 = vmatpush.bf16.msra.mxu0 %v5444
        %8636 = vmatpush.bf16.msra.mxu0 %v5438
        %8637 = vmatpush.bf16.msra.mxu0 %v5432
        %8638 = vmatmul.bf16.gmra.mxu0 %v312
        %v8639 = vpop.f32.mrf.mxu0
        %v8640 = vadd.f32 %v8627, %v8639
        %v8641 = vpop.f32.mrf.mxu0
        %8642 = vdwg.mxu0
        %8643 = vmatpush.bf16.msra.mxu0 %v5522
        %8644 = vmatpush.bf16.msra.mxu0 %v5516
        %8645 = vmatpush.bf16.msra.mxu0 %v5510
        %8646 = vmatpush.bf16.msra.mxu0 %v5504
        %8647 = vmatpush.bf16.msra.mxu0 %v5498
        %8648 = vmatpush.bf16.msra.mxu0 %v5492
        %8649 = vmatpush.bf16.msra.mxu0 %v5486
        %8650 = vmatpush.bf16.msra.mxu0 %v5480
        %8651 = vmatmul.bf16.gmra.mxu0 %v313
        %v8652 = vpop.f32.mrf.mxu0
        %v8653 = vadd.f32 %v8640, %v8652
        %v8654 = vpop.f32.mrf.mxu0
        %8655 = vdwg.mxu0
        %8656 = vmatpush.bf16.msra.mxu0 %v5570
        %8657 = vmatpush.bf16.msra.mxu0 %v5564
        %8658 = vmatpush.bf16.msra.mxu0 %v5558
        %8659 = vmatpush.bf16.msra.mxu0 %v5552
        %8660 = vmatpush.bf16.msra.mxu0 %v5546
        %8661 = vmatpush.bf16.msra.mxu0 %v5540
        %8662 = vmatpush.bf16.msra.mxu0 %v5534
        %8663 = vmatpush.bf16.msra.mxu0 %v5528
        %8664 = vmatmul.bf16.gmra.mxu0 %v314
        %v8665 = vpop.f32.mrf.mxu0
        %v8666 = vadd.f32 %v8653, %v8665
        %v8667 = vpop.f32.mrf.mxu0
        %8668 = vdwg.mxu0
        %8669 = vmatpush.bf16.msra.mxu0 %v5618
        %8670 = vmatpush.bf16.msra.mxu0 %v5612
        %8671 = vmatpush.bf16.msra.mxu0 %v5606
        %8672 = vmatpush.bf16.msra.mxu0 %v5600
        %8673 = vmatpush.bf16.msra.mxu0 %v5594
        %8674 = vmatpush.bf16.msra.mxu0 %v5588
        %8675 = vmatpush.bf16.msra.mxu0 %v5582
        %8676 = vmatpush.bf16.msra.mxu0 %v5576
        %8677 = vmatmul.bf16.gmra.mxu0 %v315
        %v8678 = vpop.f32.mrf.mxu0
        %v8679 = vadd.f32 %v8666, %v8678
        %v8680 = vpop.f32.mrf.mxu0
        %8681 = vdwg.mxu0
        %8682 = vmatpush.bf16.msra.mxu0 %v5666
        %8683 = vmatpush.bf16.msra.mxu0 %v5660
        %8684 = vmatpush.bf16.msra.mxu0 %v5654
        %8685 = vmatpush.bf16.msra.mxu0 %v5648
        %8686 = vmatpush.bf16.msra.mxu0 %v5642
        %8687 = vmatpush.bf16.msra.mxu0 %v5636
        %8688 = vmatpush.bf16.msra.mxu0 %v5630
        %8689 = vmatpush.bf16.msra.mxu0 %v5624
        %8690 = vmatmul.bf16.gmra.mxu0 %v316
        %v8691 = vpop.f32.mrf.mxu0
        %v8692 = vadd.f32 %v8679, %v8691
        %v8693 = vpop.f32.mrf.mxu0
        %8694 = vdwg.mxu0
        %8695 = vmatpush.bf16.msra.mxu0 %v5714
        %8696 = vmatpush.bf16.msra.mxu0 %v5708
        %8697 = vmatpush.bf16.msra.mxu0 %v5702
        %8698 = vmatpush.bf16.msra.mxu0 %v5696
        %8699 = vmatpush.bf16.msra.mxu0 %v5690
        %8700 = vmatpush.bf16.msra.mxu0 %v5684
        %8701 = vmatpush.bf16.msra.mxu0 %v5678
        %8702 = vmatpush.bf16.msra.mxu0 %v5672
        %8703 = vmatmul.bf16.gmra.mxu0 %v317
        %v8704 = vpop.f32.mrf.mxu0
        %v8705 = vadd.f32 %v8692, %v8704
        %v8706 = vpop.f32.mrf.mxu0
        %8707 = vdwg.mxu0
        %8708 = vmatpush.bf16.msra.mxu0 %v5762
        %8709 = vmatpush.bf16.msra.mxu0 %v5756
        %8710 = vmatpush.bf16.msra.mxu0 %v5750
        %8711 = vmatpush.bf16.msra.mxu0 %v5744
        %8712 = vmatpush.bf16.msra.mxu0 %v5738
        %8713 = vmatpush.bf16.msra.mxu0 %v5732
        %8714 = vmatpush.bf16.msra.mxu0 %v5726
        %8715 = vmatpush.bf16.msra.mxu0 %v5720
        %8716 = vmatmul.bf16.gmra.mxu0 %v318
        %v8717 = vpop.f32.mrf.mxu0
        %v8718 = vadd.f32 %v8705, %v8717
        %v8719 = vpop.f32.mrf.mxu0
        %8720 = vdwg.mxu0
        %8721 = vmatpush.bf16.msra.mxu0 %v5810
        %8722 = vmatpush.bf16.msra.mxu0 %v5804
        %8723 = vmatpush.bf16.msra.mxu0 %v5798
        %8724 = vmatpush.bf16.msra.mxu0 %v5792
        %8725 = vmatpush.bf16.msra.mxu0 %v5786
        %8726 = vmatpush.bf16.msra.mxu0 %v5780
        %8727 = vmatpush.bf16.msra.mxu0 %v5774
        %8728 = vmatpush.bf16.msra.mxu0 %v5768
        %8729 = vmatmul.bf16.gmra.mxu0 %v319
        %v8730 = vpop.f32.mrf.mxu0
        %v8731 = vadd.f32 %v8718, %v8730
        %v8732 = vpop.f32.mrf.mxu0
        %8733 = vdwg.mxu0
        %8734 = vmatpush.bf16.msra.mxu0 %v5858
        %8735 = vmatpush.bf16.msra.mxu0 %v5852
        %8736 = vmatpush.bf16.msra.mxu0 %v5846
        %8737 = vmatpush.bf16.msra.mxu0 %v5840
        %8738 = vmatpush.bf16.msra.mxu0 %v5834
        %8739 = vmatpush.bf16.msra.mxu0 %v5828
        %8740 = vmatpush.bf16.msra.mxu0 %v5822
        %8741 = vmatpush.bf16.msra.mxu0 %v5816
        %8742 = vmatmul.bf16.gmra.mxu0 %v320
        %v8743 = vpop.f32.mrf.mxu0
        %v8744 = vadd.f32 %v8731, %v8743
        %v8745 = vpop.f32.mrf.mxu0
        %8746 = vdwg.mxu0
        %8747 = vmatpush.bf16.msra.mxu0 %v5906
        %8748 = vmatpush.bf16.msra.mxu0 %v5900
        %8749 = vmatpush.bf16.msra.mxu0 %v5894
        %8750 = vmatpush.bf16.msra.mxu0 %v5888
        %8751 = vmatpush.bf16.msra.mxu0 %v5882
        %8752 = vmatpush.bf16.msra.mxu0 %v5876
        %8753 = vmatpush.bf16.msra.mxu0 %v5870
        %8754 = vmatpush.bf16.msra.mxu0 %v5864
        %8755 = vmatmul.bf16.gmra.mxu0 %v321
        %v8756 = vpop.f32.mrf.mxu0
        %v8757 = vadd.f32 %v8744, %v8756
        %v8758 = vpop.f32.mrf.mxu0
        %8759 = vdwg.mxu0
        %8760 = vmatpush.bf16.msra.mxu0 %v5954
        %8761 = vmatpush.bf16.msra.mxu0 %v5948
        %8762 = vmatpush.bf16.msra.mxu0 %v5942
        %8763 = vmatpush.bf16.msra.mxu0 %v5936
        %8764 = vmatpush.bf16.msra.mxu0 %v5930
        %8765 = vmatpush.bf16.msra.mxu0 %v5924
        %8766 = vmatpush.bf16.msra.mxu0 %v5918
        %8767 = vmatpush.bf16.msra.mxu0 %v5912
        %8768 = vmatmul.bf16.gmra.mxu0 %v322
        %v8769 = vpop.f32.mrf.mxu0
        %v8770 = vadd.f32 %v8757, %v8769
        %v8771 = vpop.f32.mrf.mxu0
        %8772 = vdwg.mxu0
        %8773 = vmatpush.bf16.msra.mxu0 %v6002
        %8774 = vmatpush.bf16.msra.mxu0 %v5996
        %8775 = vmatpush.bf16.msra.mxu0 %v5990
        %8776 = vmatpush.bf16.msra.mxu0 %v5984
        %8777 = vmatpush.bf16.msra.mxu0 %v5978
        %8778 = vmatpush.bf16.msra.mxu0 %v5972
        %8779 = vmatpush.bf16.msra.mxu0 %v5966
        %8780 = vmatpush.bf16.msra.mxu0 %v5960
        %8781 = vmatmul.bf16.gmra.mxu0 %v323
        %v8782 = vpop.f32.mrf.mxu0
        %v8783 = vadd.f32 %v8770, %v8782
        %v8784 = vpop.f32.mrf.mxu0
        %8785 = vdwg.mxu0
        %8786 = vmatpush.bf16.msra.mxu0 %v6050
        %8787 = vmatpush.bf16.msra.mxu0 %v6044
        %8788 = vmatpush.bf16.msra.mxu0 %v6038
        %8789 = vmatpush.bf16.msra.mxu0 %v6032
        %8790 = vmatpush.bf16.msra.mxu0 %v6026
        %8791 = vmatpush.bf16.msra.mxu0 %v6020
        %8792 = vmatpush.bf16.msra.mxu0 %v6014
        %8793 = vmatpush.bf16.msra.mxu0 %v6008
        %8794 = vmatmul.bf16.gmra.mxu0 %v324
        %v8795 = vpop.f32.mrf.mxu0
        %v8796 = vadd.f32 %v8783, %v8795
        %v8797 = vpop.f32.mrf.mxu0
        %8798 = vdwg.mxu0
        %8799 = vmatpush.bf16.msra.mxu0 %v6098
        %8800 = vmatpush.bf16.msra.mxu0 %v6092
        %8801 = vmatpush.bf16.msra.mxu0 %v6086
        %8802 = vmatpush.bf16.msra.mxu0 %v6080
        %8803 = vmatpush.bf16.msra.mxu0 %v6074
        %8804 = vmatpush.bf16.msra.mxu0 %v6068
        %8805 = vmatpush.bf16.msra.mxu0 %v6062
        %8806 = vmatpush.bf16.msra.mxu0 %v6056
        %8807 = vmatmul.bf16.gmra.mxu0 %v325
        %v8808 = vpop.f32.mrf.mxu0
        %v8809 = vadd.f32 %v8796, %v8808
        %v8810 = vpop.f32.mrf.mxu0
        %8811 = vdwg.mxu0
        %8812 = vmatpush.bf16.msra.mxu0 %v4995
        %8813 = vmatpush.bf16.msra.mxu0 %v4989
        %8814 = vmatpush.bf16.msra.mxu0 %v4983
        %8815 = vmatpush.bf16.msra.mxu0 %v4977
        %8816 = vmatpush.bf16.msra.mxu0 %v4971
        %8817 = vmatpush.bf16.msra.mxu0 %v4965
        %8818 = vmatpush.bf16.msra.mxu0 %v4959
        %8819 = vmatpush.bf16.msra.mxu0 %v4953
        %8820 = vmatmul.bf16.gmra.mxu0 %v302
        %v8821 = vpop.f32.mrf.mxu0
        %v8822 = vadd.f32 %v1485, %v8821
        %v8823 = vpop.f32.mrf.mxu0
        %8824 = vdwg.mxu0
        %8825 = vmatpush.bf16.msra.mxu0 %v5043
        %8826 = vmatpush.bf16.msra.mxu0 %v5037
        %8827 = vmatpush.bf16.msra.mxu0 %v5031
        %8828 = vmatpush.bf16.msra.mxu0 %v5025
        %8829 = vmatpush.bf16.msra.mxu0 %v5019
        %8830 = vmatpush.bf16.msra.mxu0 %v5013
        %8831 = vmatpush.bf16.msra.mxu0 %v5007
        %8832 = vmatpush.bf16.msra.mxu0 %v5001
        %8833 = vmatmul.bf16.gmra.mxu0 %v303
        %v8834 = vpop.f32.mrf.mxu0
        %v8835 = vadd.f32 %v8822, %v8834
        %v8836 = vpop.f32.mrf.mxu0
        %8837 = vdwg.mxu0
        %8838 = vmatpush.bf16.msra.mxu0 %v5091
        %8839 = vmatpush.bf16.msra.mxu0 %v5085
        %8840 = vmatpush.bf16.msra.mxu0 %v5079
        %8841 = vmatpush.bf16.msra.mxu0 %v5073
        %8842 = vmatpush.bf16.msra.mxu0 %v5067
        %8843 = vmatpush.bf16.msra.mxu0 %v5061
        %8844 = vmatpush.bf16.msra.mxu0 %v5055
        %8845 = vmatpush.bf16.msra.mxu0 %v5049
        %8846 = vmatmul.bf16.gmra.mxu0 %v304
        %v8847 = vpop.f32.mrf.mxu0
        %v8848 = vadd.f32 %v8835, %v8847
        %v8849 = vpop.f32.mrf.mxu0
        %8850 = vdwg.mxu0
        %8851 = vmatpush.bf16.msra.mxu0 %v5139
        %8852 = vmatpush.bf16.msra.mxu0 %v5133
        %8853 = vmatpush.bf16.msra.mxu0 %v5127
        %8854 = vmatpush.bf16.msra.mxu0 %v5121
        %8855 = vmatpush.bf16.msra.mxu0 %v5115
        %8856 = vmatpush.bf16.msra.mxu0 %v5109
        %8857 = vmatpush.bf16.msra.mxu0 %v5103
        %8858 = vmatpush.bf16.msra.mxu0 %v5097
        %8859 = vmatmul.bf16.gmra.mxu0 %v305
        %v8860 = vpop.f32.mrf.mxu0
        %v8861 = vadd.f32 %v8848, %v8860
        %v8862 = vpop.f32.mrf.mxu0
        %8863 = vdwg.mxu0
        %8864 = vmatpush.bf16.msra.mxu0 %v5187
        %8865 = vmatpush.bf16.msra.mxu0 %v5181
        %8866 = vmatpush.bf16.msra.mxu0 %v5175
        %8867 = vmatpush.bf16.msra.mxu0 %v5169
        %8868 = vmatpush.bf16.msra.mxu0 %v5163
        %8869 = vmatpush.bf16.msra.mxu0 %v5157
        %8870 = vmatpush.bf16.msra.mxu0 %v5151
        %8871 = vmatpush.bf16.msra.mxu0 %v5145
        %8872 = vmatmul.bf16.gmra.mxu0 %v306
        %v8873 = vpop.f32.mrf.mxu0
        %v8874 = vadd.f32 %v8861, %v8873
        %v8875 = vpop.f32.mrf.mxu0
        %8876 = vdwg.mxu0
        %8877 = vmatpush.bf16.msra.mxu0 %v5235
        %8878 = vmatpush.bf16.msra.mxu0 %v5229
        %8879 = vmatpush.bf16.msra.mxu0 %v5223
        %8880 = vmatpush.bf16.msra.mxu0 %v5217
        %8881 = vmatpush.bf16.msra.mxu0 %v5211
        %8882 = vmatpush.bf16.msra.mxu0 %v5205
        %8883 = vmatpush.bf16.msra.mxu0 %v5199
        %8884 = vmatpush.bf16.msra.mxu0 %v5193
        %8885 = vmatmul.bf16.gmra.mxu0 %v307
        %v8886 = vpop.f32.mrf.mxu0
        %v8887 = vadd.f32 %v8874, %v8886
        %v8888 = vpop.f32.mrf.mxu0
        %8889 = vdwg.mxu0
        %8890 = vmatpush.bf16.msra.mxu0 %v5283
        %8891 = vmatpush.bf16.msra.mxu0 %v5277
        %8892 = vmatpush.bf16.msra.mxu0 %v5271
        %8893 = vmatpush.bf16.msra.mxu0 %v5265
        %8894 = vmatpush.bf16.msra.mxu0 %v5259
        %8895 = vmatpush.bf16.msra.mxu0 %v5253
        %8896 = vmatpush.bf16.msra.mxu0 %v5247
        %8897 = vmatpush.bf16.msra.mxu0 %v5241
        %8898 = vmatmul.bf16.gmra.mxu0 %v308
        %v8899 = vpop.f32.mrf.mxu0
        %v8900 = vadd.f32 %v8887, %v8899
        %v8901 = vpop.f32.mrf.mxu0
        %8902 = vdwg.mxu0
        %8903 = vmatpush.bf16.msra.mxu0 %v5331
        %8904 = vmatpush.bf16.msra.mxu0 %v5325
        %8905 = vmatpush.bf16.msra.mxu0 %v5319
        %8906 = vmatpush.bf16.msra.mxu0 %v5313
        %8907 = vmatpush.bf16.msra.mxu0 %v5307
        %8908 = vmatpush.bf16.msra.mxu0 %v5301
        %8909 = vmatpush.bf16.msra.mxu0 %v5295
        %8910 = vmatpush.bf16.msra.mxu0 %v5289
        %8911 = vmatmul.bf16.gmra.mxu0 %v309
        %v8912 = vpop.f32.mrf.mxu0
        %v8913 = vadd.f32 %v8900, %v8912
        %v8914 = vpop.f32.mrf.mxu0
        %8915 = vdwg.mxu0
        %8916 = vmatpush.bf16.msra.mxu0 %v5379
        %8917 = vmatpush.bf16.msra.mxu0 %v5373
        %8918 = vmatpush.bf16.msra.mxu0 %v5367
        %8919 = vmatpush.bf16.msra.mxu0 %v5361
        %8920 = vmatpush.bf16.msra.mxu0 %v5355
        %8921 = vmatpush.bf16.msra.mxu0 %v5349
        %8922 = vmatpush.bf16.msra.mxu0 %v5343
        %8923 = vmatpush.bf16.msra.mxu0 %v5337
        %8924 = vmatmul.bf16.gmra.mxu0 %v310
        %v8925 = vpop.f32.mrf.mxu0
        %v8926 = vadd.f32 %v8913, %v8925
        %v8927 = vpop.f32.mrf.mxu0
        %8928 = vdwg.mxu0
        %8929 = vmatpush.bf16.msra.mxu0 %v5427
        %8930 = vmatpush.bf16.msra.mxu0 %v5421
        %8931 = vmatpush.bf16.msra.mxu0 %v5415
        %8932 = vmatpush.bf16.msra.mxu0 %v5409
        %8933 = vmatpush.bf16.msra.mxu0 %v5403
        %8934 = vmatpush.bf16.msra.mxu0 %v5397
        %8935 = vmatpush.bf16.msra.mxu0 %v5391
        %8936 = vmatpush.bf16.msra.mxu0 %v5385
        %8937 = vmatmul.bf16.gmra.mxu0 %v311
        %v8938 = vpop.f32.mrf.mxu0
        %v8939 = vadd.f32 %v8926, %v8938
        %v8940 = vpop.f32.mrf.mxu0
        %8941 = vdwg.mxu0
        %8942 = vmatpush.bf16.msra.mxu0 %v5475
        %8943 = vmatpush.bf16.msra.mxu0 %v5469
        %8944 = vmatpush.bf16.msra.mxu0 %v5463
        %8945 = vmatpush.bf16.msra.mxu0 %v5457
        %8946 = vmatpush.bf16.msra.mxu0 %v5451
        %8947 = vmatpush.bf16.msra.mxu0 %v5445
        %8948 = vmatpush.bf16.msra.mxu0 %v5439
        %8949 = vmatpush.bf16.msra.mxu0 %v5433
        %8950 = vmatmul.bf16.gmra.mxu0 %v312
        %v8951 = vpop.f32.mrf.mxu0
        %v8952 = vadd.f32 %v8939, %v8951
        %v8953 = vpop.f32.mrf.mxu0
        %8954 = vdwg.mxu0
        %8955 = vmatpush.bf16.msra.mxu0 %v5523
        %8956 = vmatpush.bf16.msra.mxu0 %v5517
        %8957 = vmatpush.bf16.msra.mxu0 %v5511
        %8958 = vmatpush.bf16.msra.mxu0 %v5505
        %8959 = vmatpush.bf16.msra.mxu0 %v5499
        %8960 = vmatpush.bf16.msra.mxu0 %v5493
        %8961 = vmatpush.bf16.msra.mxu0 %v5487
        %8962 = vmatpush.bf16.msra.mxu0 %v5481
        %8963 = vmatmul.bf16.gmra.mxu0 %v313
        %v8964 = vpop.f32.mrf.mxu0
        %v8965 = vadd.f32 %v8952, %v8964
        %v8966 = vpop.f32.mrf.mxu0
        %8967 = vdwg.mxu0
        %8968 = vmatpush.bf16.msra.mxu0 %v5571
        %8969 = vmatpush.bf16.msra.mxu0 %v5565
        %8970 = vmatpush.bf16.msra.mxu0 %v5559
        %8971 = vmatpush.bf16.msra.mxu0 %v5553
        %8972 = vmatpush.bf16.msra.mxu0 %v5547
        %8973 = vmatpush.bf16.msra.mxu0 %v5541
        %8974 = vmatpush.bf16.msra.mxu0 %v5535
        %8975 = vmatpush.bf16.msra.mxu0 %v5529
        %8976 = vmatmul.bf16.gmra.mxu0 %v314
        %v8977 = vpop.f32.mrf.mxu0
        %v8978 = vadd.f32 %v8965, %v8977
        %v8979 = vpop.f32.mrf.mxu0
        %8980 = vdwg.mxu0
        %8981 = vmatpush.bf16.msra.mxu0 %v5619
        %8982 = vmatpush.bf16.msra.mxu0 %v5613
        %8983 = vmatpush.bf16.msra.mxu0 %v5607
        %8984 = vmatpush.bf16.msra.mxu0 %v5601
        %8985 = vmatpush.bf16.msra.mxu0 %v5595
        %8986 = vmatpush.bf16.msra.mxu0 %v5589
        %8987 = vmatpush.bf16.msra.mxu0 %v5583
        %8988 = vmatpush.bf16.msra.mxu0 %v5577
        %8989 = vmatmul.bf16.gmra.mxu0 %v315
        %v8990 = vpop.f32.mrf.mxu0
        %v8991 = vadd.f32 %v8978, %v8990
        %v8992 = vpop.f32.mrf.mxu0
        %8993 = vdwg.mxu0
        %8994 = vmatpush.bf16.msra.mxu0 %v5667
        %8995 = vmatpush.bf16.msra.mxu0 %v5661
        %8996 = vmatpush.bf16.msra.mxu0 %v5655
        %8997 = vmatpush.bf16.msra.mxu0 %v5649
        %8998 = vmatpush.bf16.msra.mxu0 %v5643
        %8999 = vmatpush.bf16.msra.mxu0 %v5637
        %9000 = vmatpush.bf16.msra.mxu0 %v5631
        %9001 = vmatpush.bf16.msra.mxu0 %v5625
        %9002 = vmatmul.bf16.gmra.mxu0 %v316
        %v9003 = vpop.f32.mrf.mxu0
        %v9004 = vadd.f32 %v8991, %v9003
        %v9005 = vpop.f32.mrf.mxu0
        %9006 = vdwg.mxu0
        %9007 = vmatpush.bf16.msra.mxu0 %v5715
        %9008 = vmatpush.bf16.msra.mxu0 %v5709
        %9009 = vmatpush.bf16.msra.mxu0 %v5703
        %9010 = vmatpush.bf16.msra.mxu0 %v5697
        %9011 = vmatpush.bf16.msra.mxu0 %v5691
        %9012 = vmatpush.bf16.msra.mxu0 %v5685
        %9013 = vmatpush.bf16.msra.mxu0 %v5679
        %9014 = vmatpush.bf16.msra.mxu0 %v5673
        %9015 = vmatmul.bf16.gmra.mxu0 %v317
        %v9016 = vpop.f32.mrf.mxu0
        %v9017 = vadd.f32 %v9004, %v9016
        %v9018 = vpop.f32.mrf.mxu0
        %9019 = vdwg.mxu0
        %9020 = vmatpush.bf16.msra.mxu0 %v5763
        %9021 = vmatpush.bf16.msra.mxu0 %v5757
        %9022 = vmatpush.bf16.msra.mxu0 %v5751
        %9023 = vmatpush.bf16.msra.mxu0 %v5745
        %9024 = vmatpush.bf16.msra.mxu0 %v5739
        %9025 = vmatpush.bf16.msra.mxu0 %v5733
        %9026 = vmatpush.bf16.msra.mxu0 %v5727
        %9027 = vmatpush.bf16.msra.mxu0 %v5721
        %9028 = vmatmul.bf16.gmra.mxu0 %v318
        %v9029 = vpop.f32.mrf.mxu0
        %v9030 = vadd.f32 %v9017, %v9029
        %v9031 = vpop.f32.mrf.mxu0
        %9032 = vdwg.mxu0
        %9033 = vmatpush.bf16.msra.mxu0 %v5811
        %9034 = vmatpush.bf16.msra.mxu0 %v5805
        %9035 = vmatpush.bf16.msra.mxu0 %v5799
        %9036 = vmatpush.bf16.msra.mxu0 %v5793
        %9037 = vmatpush.bf16.msra.mxu0 %v5787
        %9038 = vmatpush.bf16.msra.mxu0 %v5781
        %9039 = vmatpush.bf16.msra.mxu0 %v5775
        %9040 = vmatpush.bf16.msra.mxu0 %v5769
        %9041 = vmatmul.bf16.gmra.mxu0 %v319
        %v9042 = vpop.f32.mrf.mxu0
        %v9043 = vadd.f32 %v9030, %v9042
        %v9044 = vpop.f32.mrf.mxu0
        %9045 = vdwg.mxu0
        %9046 = vmatpush.bf16.msra.mxu0 %v5859
        %9047 = vmatpush.bf16.msra.mxu0 %v5853
        %9048 = vmatpush.bf16.msra.mxu0 %v5847
        %9049 = vmatpush.bf16.msra.mxu0 %v5841
        %9050 = vmatpush.bf16.msra.mxu0 %v5835
        %9051 = vmatpush.bf16.msra.mxu0 %v5829
        %9052 = vmatpush.bf16.msra.mxu0 %v5823
        %9053 = vmatpush.bf16.msra.mxu0 %v5817
        %9054 = vmatmul.bf16.gmra.mxu0 %v320
        %v9055 = vpop.f32.mrf.mxu0
        %v9056 = vadd.f32 %v9043, %v9055
        %v9057 = vpop.f32.mrf.mxu0
        %9058 = vdwg.mxu0
        %9059 = vmatpush.bf16.msra.mxu0 %v5907
        %9060 = vmatpush.bf16.msra.mxu0 %v5901
        %9061 = vmatpush.bf16.msra.mxu0 %v5895
        %9062 = vmatpush.bf16.msra.mxu0 %v5889
        %9063 = vmatpush.bf16.msra.mxu0 %v5883
        %9064 = vmatpush.bf16.msra.mxu0 %v5877
        %9065 = vmatpush.bf16.msra.mxu0 %v5871
        %9066 = vmatpush.bf16.msra.mxu0 %v5865
        %9067 = vmatmul.bf16.gmra.mxu0 %v321
        %v9068 = vpop.f32.mrf.mxu0
        %v9069 = vadd.f32 %v9056, %v9068
        %v9070 = vpop.f32.mrf.mxu0
        %9071 = vdwg.mxu0
        %9072 = vmatpush.bf16.msra.mxu0 %v5955
        %9073 = vmatpush.bf16.msra.mxu0 %v5949
        %9074 = vmatpush.bf16.msra.mxu0 %v5943
        %9075 = vmatpush.bf16.msra.mxu0 %v5937
        %9076 = vmatpush.bf16.msra.mxu0 %v5931
        %9077 = vmatpush.bf16.msra.mxu0 %v5925
        %9078 = vmatpush.bf16.msra.mxu0 %v5919
        %9079 = vmatpush.bf16.msra.mxu0 %v5913
        %9080 = vmatmul.bf16.gmra.mxu0 %v322
        %v9081 = vpop.f32.mrf.mxu0
        %v9082 = vadd.f32 %v9069, %v9081
        %v9083 = vpop.f32.mrf.mxu0
        %9084 = vdwg.mxu0
        %9085 = vmatpush.bf16.msra.mxu0 %v6003
        %9086 = vmatpush.bf16.msra.mxu0 %v5997
        %9087 = vmatpush.bf16.msra.mxu0 %v5991
        %9088 = vmatpush.bf16.msra.mxu0 %v5985
        %9089 = vmatpush.bf16.msra.mxu0 %v5979
        %9090 = vmatpush.bf16.msra.mxu0 %v5973
        %9091 = vmatpush.bf16.msra.mxu0 %v5967
        %9092 = vmatpush.bf16.msra.mxu0 %v5961
        %9093 = vmatmul.bf16.gmra.mxu0 %v323
        %v9094 = vpop.f32.mrf.mxu0
        %v9095 = vadd.f32 %v9082, %v9094
        %v9096 = vpop.f32.mrf.mxu0
        %9097 = vdwg.mxu0
        %9098 = vmatpush.bf16.msra.mxu0 %v6051
        %9099 = vmatpush.bf16.msra.mxu0 %v6045
        %9100 = vmatpush.bf16.msra.mxu0 %v6039
        %9101 = vmatpush.bf16.msra.mxu0 %v6033
        %9102 = vmatpush.bf16.msra.mxu0 %v6027
        %9103 = vmatpush.bf16.msra.mxu0 %v6021
        %9104 = vmatpush.bf16.msra.mxu0 %v6015
        %9105 = vmatpush.bf16.msra.mxu0 %v6009
        %9106 = vmatmul.bf16.gmra.mxu0 %v324
        %v9107 = vpop.f32.mrf.mxu0
        %v9108 = vadd.f32 %v9095, %v9107
        %v9109 = vpop.f32.mrf.mxu0
        %9110 = vdwg.mxu0
        %9111 = vmatpush.bf16.msra.mxu0 %v6099
        %9112 = vmatpush.bf16.msra.mxu0 %v6093
        %9113 = vmatpush.bf16.msra.mxu0 %v6087
        %9114 = vmatpush.bf16.msra.mxu0 %v6081
        %9115 = vmatpush.bf16.msra.mxu0 %v6075
        %9116 = vmatpush.bf16.msra.mxu0 %v6069
        %9117 = vmatpush.bf16.msra.mxu0 %v6063
        %9118 = vmatpush.bf16.msra.mxu0 %v6057
        %9119 = vmatmul.bf16.gmra.mxu0 %v325
        %v9120 = vpop.f32.mrf.mxu0
        %v9121 = vadd.f32 %v9108, %v9120
        %v9122 = vpop.f32.mrf.mxu0
        %9123 = vdwg.mxu0
        %v9124 = vmax.f32 %v7561, 0.0
        %v9125 = vmax.f32 %v7873, 0.0
        %v9126 = vmax.f32 %v8185, 0.0
        %v9127 = vmax.f32 %v8497, 0.0
        %v9128 = vmax.f32 %v8809, 0.0
        %v9129 = vmax.f32 %v9121, 0.0
        %v9136 = vrot.slane %v9125, 6
        %v9137 = vrot.slane %v9126, 4
        %v9138 = vrot.slane %v9127, 2
        %v9139 = vrot.slane %v9129, 6
        %vm9140 = vcmask 1041408
        %v9141 = vsel %vm9140, %v9124, %v9136
        %vm9142 = vcmask 1045508
        %v9143 = vsel %vm9142, %v9137, %v9138
        %vm9144 = vcmask 1043456
        %v9145 = vsel %vm9144, %v9141, %v9143
        %v9146 = vsel %vm9140, %v9128, %v9139
        %9149 = vst [vmem:[%s233] sm:$0xff] %v9145
        %9150 = vst [vmem:[%s233 + $0x8] sm:$0xf] %v9146
        %s9151 = smul.u32 6, %s20
        %p9152 = scmp.lt.s32.totalorder %s9151, 11
        %s9153 = scalar_select %p9152, %s9151, 11
        %s9154 = smul.addr %s9153, 2
        %s9155 = scalar_lea.vmem %s3, %s9154
        // Predicated region
        $region41: #{msscaeaa_forward.8} parent=31 // pred_check
          %p9156 = pneg %p111
        $region42: #{msscaeaa_forward.8} parent=31 // pred_check_branch
          %9158 = sbr.rel (%p9156) target = $region44
        $region43: #{msscaeaa_forward.8} parent=31 // pred_region
          %s9159 = smul.u32 6, %s20
        $region44: #{msscaeaa_forward.8} parent=31 // pred_fallthru
          _
      $region32: #{msscaeaa_forward.8} parent=5 // pred_fallthru
        _
      %p9160 = scmp.le.s32.totalorder 2, %s15
      // Predicated region
      $region45: #{msscaeaa_forward.8} parent=5 // pred_check
        %p9161 = pneg %p9160
      $region46: #{msscaeaa_forward.8} parent=5 // pred_check_branch
        %9163 = sbr.rel (%p9161) target = $region48
      $region47: #{msscaeaa_forward.8} parent=5 // pred_region
        %s9164 = ssub.s32 %s15, 2
        // Predicated region
        $region49: #{msscaeaa_forward.8} parent=47 // pred_check
          %p9165 = pneg %p117
        $region50: #{msscaeaa_forward.8} parent=47 // pred_check_branch
          %9167 = sbr.rel (%p9165) target = $region52
        $region51: #{msscaeaa_forward.8} parent=47 // pred_region
          %s9168 = smul.u32 6, %s21
          %p9169 = scmp.lt.s32.totalorder %s9168, 11
          %s9170 = scalar_select %p9169, %s9168, 11
          %s9171 = smul.addr %s9170, 2
          %s9172 = scalar_lea.vmem %s3, %s9171
        $region52: #{msscaeaa_forward.8} parent=47 // pred_fallthru
          _
      $region48: #{msscaeaa_forward.8} parent=5 // pred_fallthru
        _
    $region6: #{msscaeaa_forward.8} parent=1 // loop_footer
      %s19 = sadd.s32 1, %s15
    $region7: #{msscaeaa_forward.8} parent=1 // loop_footer_branch
      %14 = sbr.rel target = $region3
    $region8: #{msscaeaa_forward.8} parent=1 // loop_exit
      _
    %9173 = vsyncpa [#allocation3], 1
    %s9174 = scalar_lea.sflag [#allocation3], 1
    %9175 = vsyncpa %s9174, 1
    %9176 = vsyncpa [#allocation5], 1
    %s9177 = scalar_lea.sflag [#allocation5], 1
    %9178 = vsyncpa %s9177, 1

</llo_original>
